<compile_context>
chip_gen: v7x
topology: tpu7x:2x2x1
jax: 0.10.0
libtpu: 0.0.40
codegen_flags: <defaults>
</compile_context>

<pallas_src>
import numpy as np
import jax
import jax.numpy as jnp
from jax import lax
from jax.experimental import pallas as pl
from jax.experimental.pallas import tpu as pltpu

F32 = jnp.float32
BF16 = jnp.bfloat16

_VMEM_BUDGET = 40 * 1024 * 1024          # stay well under v7x's 64 MiB physical VMEM
_VMEM_LIMIT_CAP = 56 * 1024 * 1024


def _round_up(n, m):
    return ((n + m - 1) // m) * m


def _pick_tile(n):
    """Token-tile rows: multiple of 8, <= 1024, aim for >= 4 grid steps
    (>= 2 per TensorCore when the 'parallel' axis shards across a v7x megacore;
    larger tiles amortize the ~0.35us/step overhead on v5e)."""
    quarter = _round_up(max(-(-n // 4), 8), 8)
    return min(1024, quarter)


def _make_block_kernel(C, CP):
    inv_c = 1.0 / float(C)

    def kernel(x_ref, vec_ref, wqkv_ref, bqkv_ref, slog_ref, seg_ref, re_ref,
               so_ref, wp_ref, w1_ref, b1_ref, w2_ref, wh_ref, o_ref):
        RP = wqkv_ref.shape[1] // 3
        x_c = x_ref[...]                                  # (TN, C) true-width tokens
        tn = x_c.shape[0]
        if CP > C:                                        # lane-pad in-kernel (cheap copy)
            x = jnp.concatenate([x_c, jnp.zeros((tn, CP - C), F32)], axis=-1)
        else:
            x = x_c
        vec = vec_ref[...]                                # (19, CP) per-channel params
        cmask = (lax.broadcasted_iota(jnp.int32, (1, CP), 1) < C).astype(F32)

        def row(r):
            return vec[r:r + 1, :]                        # (1, CP)

        def layernorm(z, g, b):
            mu = jnp.sum(z, axis=-1, keepdims=True) * inv_c
            d = (z - mu) * cmask
            var = jnp.sum(d * d, axis=-1, keepdims=True) * inv_c
            return d * lax.rsqrt(var + 1e-5) * g + b      # pad lanes stay 0

        def bdot(a, w):                                   # bf16 MXU, f32 accumulation
            return jnp.dot(a.astype(BF16), w, preferred_element_type=F32)

        # ---- norm1 + per-token head attention ---------------------------------
        xn = layernorm(x, row(0), row(1))
        qkv = bdot(xn, wqkv_ref[...]) + bqkv_ref[...]     # (TN, 3*RP)
        qrep = qkv[:, 0 * RP:1 * RP]      # Qrep[t, j*C+i*hd+d] = scale*q[t,i,d]
        krep = qkv[:, 1 * RP:2 * RP]      # Krep[t, j*C+i*hd+d] = k[t,j,d]
        vrep = qkv[:, 2 * RP:3 * RP]      # Vrep[t, j*C+i*hd+d] = v[t,j,d]

        # logits[t, i*H+j] = scale * sum_d q[t,i,d]*k[t,j,d]  (scale folded into wq)
        logits = bdot(qrep * krep, slog_ref[...])                       # (TN, HH)
        m = jnp.max(logits, axis=-1, keepdims=True)
        e = jnp.exp(logits - m)
        # per-head softmax normalization on the tiny (TN, HH) tensor
        esum = jnp.dot(e, seg_ref[...], preferred_element_type=F32)     # sum_j per head
        p = e * pl.reciprocal(esum, approx=True)
        prep = bdot(p, re_ref[...])                                     # (TN, RP)
        attn = bdot(prep * vrep, so_ref[...])        # (TN, CP), PyTorch order d*H+i
        # NOTE: self.proj is never applied in the reference forward.

        x1 = x + row(2) * attn                            # + ls_gamma1 * attn

        # ---- norm2 + Mlp (ResMLP with a single length-1 token) -----------------
        xn2 = layernorm(x1, row(3), row(4))
        pe = bdot(xn2, wp_ref[...]) + row(5)              # patch embed
        u = pe * row(6) + row(7)                          # pre-affine
        tm = u * row(8) + row(9)                          # token-mix Linear(1, 1)
        pe = pe + row(10) * tm                            # + gamma_1 * token_mix
        t2 = pe * row(11) + row(12)                       # post-affine
        h = bdot(t2, w1_ref[...]) + b1_ref[...]
        h = jax.nn.gelu(h, approximate=True)              # tanh GELU (EUP)
        ff = bdot(h, w2_ref[...]) + row(13)
        pe = pe + row(14) * ff                            # + gamma_2 * FeedForward
        af = pe * row(15) + row(16)                       # final affine (mean over 1 token = id)
        mlp = bdot(af, wh_ref[...]) + row(17)

        o_ref[...] = x1 + row(18) * mlp                   # + ls_gamma2 * mlp

    return kernel


class SwinTransformerBlock3DPallas:
    """Pallas-TPU forward of SwinTransformerBlock3D.  x: (B, C, D, H, W) -> same shape."""

    def __init__(self, key, dim, input_resolution=None, num_heads=4,
                 window_size=(7, 7, 7), shift_size=(0, 0, 0), mlp_ratio=4.0,
                 ls_init_value=1e-5, resmlp_init_value=1e-4):
        del input_resolution, window_size, shift_size  # per-token attention; windows cancel
        C = dim
        nh = num_heads
        hd = C // nh
        mlp_dim = int(C * mlp_ratio)
        CP = _round_up(C, 128)            # lane-dense channel padding
        R = nh * C                        # replicated head-layout width
        RP = _round_up(R, 128)
        MP = _round_up(mlp_dim, 128)
        HH = nh * nh
        scale = hd ** (-0.5)
        self.C, self.CP, self.RP, self.MP = C, CP, RP, MP
        self._kernel = _make_block_kernel(C, CP)

        ks = jax.random.split(key, 12)

        def nrm(k, shape, s=0.02):
            return (s * jax.random.normal(k, shape)).astype(F32)

        # PyTorch-layout weights (out_features, in_features).
        wqkv = nrm(ks[0], (3 * C, C)); bqkv = nrm(ks[1], (3 * C,))
        wp = nrm(ks[2], (C, C)); bp = nrm(ks[3], (C,))        # ResMLP 1x1-conv patch embed
        tokw = nrm(ks[4], ()); tokb = nrm(ks[5], ())          # token-mix Linear(1, 1)
        w1 = nrm(ks[6], (mlp_dim, C)); b1 = nrm(ks[7], (mlp_dim,))
        w2 = nrm(ks[8], (C, mlp_dim)); b2 = nrm(ks[9], (C,))
        wh = nrm(ks[10], (C, C)); bh = nrm(ks[11], (C,))      # ResMLP head Linear

        # --- fold head replication (and the attention scale) into the qkv weight ---
        # replicated column index r = j*C + i*hd + d   (i = own head, j = other head)
        q_src = np.tile(np.arange(C), nh)                               # r -> i*hd + d
        k_src = np.concatenate(
            [np.tile(np.arange(j * hd, (j + 1) * hd), nh) for j in range(nh)])  # r -> j*hd + d

        def rep(wt_pt, b_pt, src):
            wt = jnp.transpose(wt_pt)[:, src]      # (C, R): input x replicated-output
            w_pad = jnp.zeros((CP, RP), F32).at[:C, :R].set(wt)
            b_pad = jnp.zeros((RP,), F32).at[:R].set(b_pt[src])
            return w_pad, b_pad

        wq_r, bq_r = rep(wqkv[0:C] * scale, bqkv[0:C] * scale, q_src)   # scale folded here
        wk_r, bk_r = rep(wqkv[C:2 * C], bqkv[C:2 * C], k_src)
        wv_r, bv_r = rep(wqkv[2 * C:3 * C], bqkv[2 * C:3 * C], k_src)
        wqkv_rep = jnp.concatenate([wq_r, wk_r, wv_r], axis=1).astype(BF16)   # (CP, 3*RP)
        bqkv_rep = jnp.concatenate([bq_r, bk_r, bv_r]).reshape(1, 3 * RP)     # f32

        # --- static 0/1 routing matrices (exact in bf16) ------------------------
        slog = np.zeros((RP, HH), np.float32)  # (Qrep*Krep) @ slog -> logits[i*H+j]
        seg = np.zeros((HH, HH), np.float32)   # e @ seg -> per-head sum, broadcast per head
        re_m = np.zeros((HH, RP), np.float32)  # p @ re_m -> Prep[j*C+i*hd+d]
        so_m = np.zeros((RP, CP), np.float32)  # (Prep*Vrep) @ so_m -> channel d*H+i
        for i in range(nh):
            for j in range(nh):
                seg[i * nh + j, i * nh:(i + 1) * nh] = 1.0
                for d in range(hd):
                    r = j * C + i * hd + d
                    slog[r, i * nh + j] = 1.0
                    re_m[i * nh + j, r] = 1.0
                    so_m[r, d * nh + i] = 1.0

        # --- per-channel parameter rows (zero-padded to CP lanes) ---------------
        def pad_vec(v):
            return jnp.zeros((CP,), F32).at[:C].set(v)

        ones_c = jnp.ones((C,), F32)
        zeros_c = jnp.zeros((C,), F32)
        vecs = jnp.stack([
            pad_vec(ones_c), pad_vec(zeros_c),               # 0,1  LayerNorm1 gamma/beta
            pad_vec(ls_init_value * ones_c),                 # 2    ls_gamma1
            pad_vec(ones_c), pad_vec(zeros_c),               # 3,4  LayerNorm2 gamma/beta
            pad_vec(bp),                                     # 5    patch-embed bias
            pad_vec(ones_c), pad_vec(zeros_c),               # 6,7  pre-affine alpha/beta
            jnp.full((CP,), tokw, F32),                      # 8    token-mix weight (scalar)
            jnp.full((CP,), tokb, F32),                      # 9    token-mix bias   (scalar)
            pad_vec(resmlp_init_value * ones_c),             # 10   MLPblock gamma_1
            pad_vec(ones_c), pad_vec(zeros_c),               # 11,12 post-affine alpha/beta
            pad_vec(b2),                                     # 13   FeedForward second bias
            pad_vec(resmlp_init_value * ones_c),             # 14   MLPblock gamma_2
            pad_vec(ones_c), pad_vec(zeros_c),               # 15,16 final affine alpha/beta
            pad_vec(bh),                                     # 17   head bias
            pad_vec(ls_init_value * ones_c),                 # 18   ls_gamma2
        ], axis=0)

        wp_pad = jnp.zeros((CP, CP), F32).at[:C, :C].set(wp.T).astype(BF16)
        w1_pad = jnp.zeros((CP, MP), F32).at[:C, :mlp_dim].set(w1.T).astype(BF16)
        b1_pad = jnp.zeros((1, MP), F32).at[0, :mlp_dim].set(b1)
        w2_pad = jnp.zeros((MP, CP), F32).at[:mlp_dim, :C].set(w2.T).astype(BF16)
        wh_pad = jnp.zeros((CP, CP), F32).at[:C, :C].set(wh.T).astype(BF16)

        self.params = (vecs, wqkv_rep, bqkv_rep,
                       jnp.asarray(slog, BF16), jnp.asarray(seg, F32),
                       jnp.asarray(re_m, BF16), jnp.asarray(so_m, BF16),
                       wp_pad, w1_pad, b1_pad, w2_pad, wh_pad)

        self._weight_bytes = int(sum(int(a.size) * jnp.dtype(a.dtype).itemsize
                                     for a in self.params))
        # folded qkv replication scales as nh*C^2 -- keep it within a safe VMEM slice
        assert self._weight_bytes <= 24 * 1024 * 1024, (
            "replicated-qkv weight set too large for VMEM; reduce dim/num_heads")

    # rough per-tile VMEM working set: single-buffered weights + double-buffered
    # token I/O tiles + a generous estimate of f32 intermediates.
    def _est_vmem_bytes(self, tn):
        io = 2 * tn * self.C * 4 + 2 * tn * self.CP * 4
        act = tn * (8 * self.RP + 3 * self.MP + 16 * self.CP) * 4
        return self._weight_bytes + io + act

    def _run(self, tok, tn, Np, vmem_limit, single_buffer_weights):
        C, CP = self.C, self.CP

        def const_spec(a):
            nd = a.ndim
            if single_buffer_weights:
                return pl.BlockSpec(a.shape, lambda i: (0,) * nd,
                                    pipeline_mode=pl.Buffered(1))
            return pl.BlockSpec(a.shape, lambda i: (0,) * nd)

        return pl.pallas_call(
            self._kernel,
            out_shape=jax.ShapeDtypeStruct((Np, CP), F32),
            grid=(Np // tn,),
            in_specs=[pl.BlockSpec((tn, C), lambda i: (i, 0))]
                     + [const_spec(a) for a in self.params],
            out_specs=pl.BlockSpec((tn, CP), lambda i: (i, 0)),
            compiler_params=pltpu.CompilerParams(
                dimension_semantics=("parallel",),
                vmem_limit_bytes=vmem_limit),
        )(tok, *self.params)

    def __call__(self, x):
        B, C, D, H, W = x.shape
        assert C == self.C
        tok = jnp.transpose(x, (0, 2, 3, 4, 1)).reshape(-1, C).astype(F32)
        N = tok.shape[0]

        tn = _pick_tile(N)
        while tn > 8 and self._est_vmem_bytes(tn) > _VMEM_BUDGET:
            tn = max(8, ((tn // 2) // 8) * 8)
        est = self._est_vmem_bytes(tn)
        vmem_limit = int(min(_VMEM_LIMIT_CAP, max(2 * est, 32 * 1024 * 1024)))

        Np = _round_up(N, tn)
        if Np != N:
            tok = jnp.concatenate([tok, jnp.zeros((Np - N, C), F32)], axis=0)

        try:
            out = self._run(tok, tn, Np, vmem_limit, True)
        except Exception:
            # TODO(synk): fallback for JAX builds that reject pl.Buffered(1) on
            # pallas_call BlockSpecs; identical math, default double buffering.
            out = self._run(tok, tn, Np, vmem_limit, False)

        out = out[:N, :C].reshape(B, D, H, W, C)
        return jnp.transpose(out, (0, 4, 1, 2, 3))


if __name__ == "__main__":
    key = jax.random.PRNGKey(0)
    kx, kp = jax.random.split(key)

    B, Cdim = 2, 32
    D = H = W = 8
    x = jax.random.normal(kx, (B, Cdim, D, H, W), dtype=jnp.float32)

    block = SwinTransformerBlock3DPallas(
        kp, dim=Cdim, input_resolution=(D, H, W), num_heads=4,
        window_size=(2, 2, 2), shift_size=(0, 0, 0), mlp_ratio=2.0)

    y = block(x)
    y = jax.block_until_ready(y)

    assert y.shape == (B, Cdim, D, H, W), y.shape
    assert y.dtype == jnp.float32
    assert bool(jnp.all(jnp.isfinite(y)))

    print("KERNEL_OK")
</pallas_src>

<mosaic_0001>
module attributes {stable_mosaic.version = 11 : i64} {
  func.func @kernel(%arg0: i32, %arg1: memref<256x32xf32, #tpu.memory_space<vmem>>, %arg2: memref<19x128xf32, #tpu.memory_space<vmem>>, %arg3: memref<128x384xbf16, #tpu.memory_space<vmem>>, %arg4: memref<1x384xf32, #tpu.memory_space<vmem>>, %arg5: memref<128x16xbf16, #tpu.memory_space<vmem>>, %arg6: memref<16x16xf32, #tpu.memory_space<vmem>>, %arg7: memref<16x128xbf16, #tpu.memory_space<vmem>>, %arg8: memref<128x128xbf16, #tpu.memory_space<vmem>>, %arg9: memref<128x128xbf16, #tpu.memory_space<vmem>>, %arg10: memref<128x128xbf16, #tpu.memory_space<vmem>>, %arg11: memref<1x128xf32, #tpu.memory_space<vmem>>, %arg12: memref<128x128xbf16, #tpu.memory_space<vmem>>, %arg13: memref<128x128xbf16, #tpu.memory_space<vmem>>, %arg14: memref<256x128xf32, #tpu.memory_space<vmem>>) attributes {dimension_semantics = [#tpu.dimension_semantics<parallel>], iteration_bounds = array<i64: 4>, scalar_prefetch = 0 : i64, scratch_operands = 0 : i64, tpu.core_type = #tpu.core_type<tc>, window_params = [{transform_indices = @transform_0, window_bounds = array<i64: 256, 32>}, {pipeline_mode = #tpu.pipeline_mode<synchronous>, transform_indices = @transform_1, window_bounds = array<i64: 19, 128>}, {pipeline_mode = #tpu.pipeline_mode<synchronous>, transform_indices = @transform_2, window_bounds = array<i64: 128, 384>}, {pipeline_mode = #tpu.pipeline_mode<synchronous>, transform_indices = @transform_3, window_bounds = array<i64: 1, 384>}, {pipeline_mode = #tpu.pipeline_mode<synchronous>, transform_indices = @transform_4, window_bounds = array<i64: 128, 16>}, {pipeline_mode = #tpu.pipeline_mode<synchronous>, transform_indices = @transform_5, window_bounds = array<i64: 16, 16>}, {pipeline_mode = #tpu.pipeline_mode<synchronous>, transform_indices = @transform_6, window_bounds = array<i64: 16, 128>}, {pipeline_mode = #tpu.pipeline_mode<synchronous>, transform_indices = @transform_7, window_bounds = array<i64: 128, 128>}, {pipeline_mode = #tpu.pipeline_mode<synchronous>, transform_indices = @transform_8, window_bounds = array<i64: 128, 128>}, {pipeline_mode = #tpu.pipeline_mode<synchronous>, transform_indices = @transform_9, window_bounds = array<i64: 128, 128>}, {pipeline_mode = #tpu.pipeline_mode<synchronous>, transform_indices = @transform_10, window_bounds = array<i64: 1, 128>}, {pipeline_mode = #tpu.pipeline_mode<synchronous>, transform_indices = @transform_11, window_bounds = array<i64: 128, 128>}, {pipeline_mode = #tpu.pipeline_mode<synchronous>, transform_indices = @transform_12, window_bounds = array<i64: 128, 128>}, {transform_indices = @transform_13, window_bounds = array<i64: 256, 128>}]} {
    %c0 = arith.constant 0 : index
    %c0_0 = arith.constant 0 : index
    %0 = vector.load %arg1[%c0, %c0_0] : memref<256x32xf32, #tpu.memory_space<vmem>>, vector<256x32xf32>
    %cst = arith.constant 0.000000e+00 : f32
    %1 = vector.broadcast %cst : f32 to vector<256x96xf32>
    %2 = tpu.concatenate %0, %1 in 1 : vector<256x32xf32>, vector<256x96xf32> -> vector<256x128xf32>
    %c0_1 = arith.constant 0 : index
    %c0_2 = arith.constant 0 : index
    %3 = vector.load %arg2[%c0_1, %c0_2] : memref<19x128xf32, #tpu.memory_space<vmem>>, vector<19x128xf32>
    %4 = tpu.iota {dimensions = array<i32: 1>} : vector<1x128xi32>
    %c32_i32 = arith.constant 32 : i32
    %5 = vector.broadcast %c32_i32 : i32 to vector<1x128xi32>
    %6 = arith.cmpi slt, %4, %5 : vector<1x128xi32>
    %7 = arith.extui %6 : vector<1x128xi1> to vector<1x128xi32>
    %8 = arith.sitofp %7 : vector<1x128xi32> to vector<1x128xf32>
    %9 = vector.extract_strided_slice %3 {offsets = [0, 0], sizes = [1, 128], strides = [1, 1]} : vector<19x128xf32> to vector<1x128xf32>
    %10 = vector.extract_strided_slice %3 {offsets = [1, 0], sizes = [1, 128], strides = [1, 1]} : vector<19x128xf32> to vector<1x128xf32>
    %cst_3 = arith.constant dense<0.000000e+00> : vector<256xf32>
    %11 = vector.multi_reduction <add>, %2, %cst_3 [1] : vector<256x128xf32> to vector<256xf32>
    %12 = vector.shape_cast %11 : vector<256xf32> to vector<256x1xf32>
    %cst_4 = arith.constant 3.125000e-02 : f32
    %13 = vector.broadcast %cst_4 : f32 to vector<256x1xf32>
    %14 = arith.mulf %12, %13 : vector<256x1xf32>
    %15 = vector.broadcast %14 : vector<256x1xf32> to vector<256x128xf32>
    %16 = arith.subf %2, %15 : vector<256x128xf32>
    %17 = vector.broadcast %8 : vector<1x128xf32> to vector<256x128xf32>
    %18 = arith.mulf %16, %17 : vector<256x128xf32>
    %19 = arith.mulf %18, %18 : vector<256x128xf32>
    %cst_5 = arith.constant dense<0.000000e+00> : vector<256xf32>
    %20 = vector.multi_reduction <add>, %19, %cst_5 [1] : vector<256x128xf32> to vector<256xf32>
    %21 = vector.shape_cast %20 : vector<256xf32> to vector<256x1xf32>
    %cst_6 = arith.constant 3.125000e-02 : f32
    %22 = vector.broadcast %cst_6 : f32 to vector<256x1xf32>
    %23 = arith.mulf %21, %22 : vector<256x1xf32>
    %cst_7 = arith.constant 9.99999974E-6 : f32
    %24 = vector.broadcast %cst_7 : f32 to vector<256x1xf32>
    %25 = arith.addf %23, %24 : vector<256x1xf32>
    %26 = math.rsqrt %25 : vector<256x1xf32>
    %27 = vector.broadcast %26 : vector<256x1xf32> to vector<256x128xf32>
    %28 = arith.mulf %18, %27 : vector<256x128xf32>
    %29 = vector.broadcast %9 : vector<1x128xf32> to vector<256x128xf32>
    %30 = arith.mulf %28, %29 : vector<256x128xf32>
    %31 = vector.broadcast %10 : vector<1x128xf32> to vector<256x128xf32>
    %32 = arith.addf %30, %31 : vector<256x128xf32>
    %c0_8 = arith.constant 0 : index
    %c0_9 = arith.constant 0 : index
    %33 = vector.load %arg3[%c0_8, %c0_9] : memref<128x384xbf16, #tpu.memory_space<vmem>>, vector<128x384xbf16>
    %34 = arith.truncf %32 : vector<256x128xf32> to vector<256x128xbf16>
    %cst_10 = arith.constant dense<0.000000e+00> : vector<256x384xf32>
    %35 = tpu.matmul %34, %33, %cst_10 {dimension_numbers = #tpu.dot_dimension_numbers<[1], [0], [0], [1], [0, 0, 1, 1], [], []>} : vector<256x128xbf16>, vector<128x384xbf16>, vector<256x384xf32> -> vector<256x384xf32>
    %c0_11 = arith.constant 0 : index
    %c0_12 = arith.constant 0 : index
    %36 = vector.load %arg4[%c0_11, %c0_12] : memref<1x384xf32, #tpu.memory_space<vmem>>, vector<1x384xf32>
    %37 = vector.broadcast %36 : vector<1x384xf32> to vector<256x384xf32>
    %38 = arith.addf %35, %37 : vector<256x384xf32>
    %39 = vector.extract_strided_slice %38 {offsets = [0, 0], sizes = [256, 128], strides = [1, 1]} : vector<256x384xf32> to vector<256x128xf32>
    %40 = vector.extract_strided_slice %38 {offsets = [0, 128], sizes = [256, 128], strides = [1, 1]} : vector<256x384xf32> to vector<256x128xf32>
    %41 = vector.extract_strided_slice %38 {offsets = [0, 256], sizes = [256, 128], strides = [1, 1]} : vector<256x384xf32> to vector<256x128xf32>
    %42 = arith.mulf %39, %40 : vector<256x128xf32>
    %c0_13 = arith.constant 0 : index
    %c0_14 = arith.constant 0 : index
    %43 = vector.load %arg5[%c0_13, %c0_14] : memref<128x16xbf16, #tpu.memory_space<vmem>>, vector<128x16xbf16>
    %44 = arith.truncf %42 : vector<256x128xf32> to vector<256x128xbf16>
    %cst_15 = arith.constant dense<0.000000e+00> : vector<256x16xf32>
    %45 = tpu.matmul %44, %43, %cst_15 {dimension_numbers = #tpu.dot_dimension_numbers<[1], [0], [0], [1], [0, 0, 1, 1], [], []>} : vector<256x128xbf16>, vector<128x16xbf16>, vector<256x16xf32> -> vector<256x16xf32>
    %cst_16 = arith.constant dense<0xFF800000> : vector<256xf32>
    %46 = vector.multi_reduction <maximumf>, %45, %cst_16 [1] : vector<256x16xf32> to vector<256xf32>
    %47 = vector.shape_cast %46 : vector<256xf32> to vector<256x1xf32>
    %48 = vector.broadcast %47 : vector<256x1xf32> to vector<256x16xf32>
    %49 = arith.subf %45, %48 : vector<256x16xf32>
    %50 = math.exp %49 : vector<256x16xf32>
    %c0_17 = arith.constant 0 : index
    %c0_18 = arith.constant 0 : index
    %51 = vector.load %arg6[%c0_17, %c0_18] : memref<16x16xf32, #tpu.memory_space<vmem>>, vector<16x16xf32>
    %cst_19 = arith.constant dense<0.000000e+00> : vector<256x16xf32>
    %52 = tpu.matmul %50, %51, %cst_19 {dimension_numbers = #tpu.dot_dimension_numbers<[1], [0], [0], [1], [0, 0, 1, 1], [], []>} : vector<256x16xf32>, vector<16x16xf32>, vector<256x16xf32> -> vector<256x16xf32>
    %53 = tpu.reciprocal %52 {approx = true} : vector<256x16xf32> -> vector<256x16xf32>
    %54 = arith.mulf %50, %53 : vector<256x16xf32>
    %c0_20 = arith.constant 0 : index
    %c0_21 = arith.constant 0 : index
    %55 = vector.load %arg7[%c0_20, %c0_21] : memref<16x128xbf16, #tpu.memory_space<vmem>>, vector<16x128xbf16>
    %56 = arith.truncf %54 : vector<256x16xf32> to vector<256x16xbf16>
    %cst_22 = arith.constant dense<0.000000e+00> : vector<256x128xf32>
    %57 = tpu.matmul %56, %55, %cst_22 {dimension_numbers = #tpu.dot_dimension_numbers<[1], [0], [0], [1], [0, 0, 1, 1], [], []>} : vector<256x16xbf16>, vector<16x128xbf16>, vector<256x128xf32> -> vector<256x128xf32>
    %58 = arith.mulf %57, %41 : vector<256x128xf32>
    %c0_23 = arith.constant 0 : index
    %c0_24 = arith.constant 0 : index
    %59 = vector.load %arg8[%c0_23, %c0_24] : memref<128x128xbf16, #tpu.memory_space<vmem>>, vector<128x128xbf16>
    %60 = arith.truncf %58 : vector<256x128xf32> to vector<256x128xbf16>
    %cst_25 = arith.constant dense<0.000000e+00> : vector<256x128xf32>
    %61 = tpu.matmul %60, %59, %cst_25 {dimension_numbers = #tpu.dot_dimension_numbers<[1], [0], [0], [1], [0, 0, 1, 1], [], []>} : vector<256x128xbf16>, vector<128x128xbf16>, vector<256x128xf32> -> vector<256x128xf32>
    %62 = vector.extract_strided_slice %3 {offsets = [2, 0], sizes = [1, 128], strides = [1, 1]} : vector<19x128xf32> to vector<1x128xf32>
    %63 = vector.broadcast %62 : vector<1x128xf32> to vector<256x128xf32>
    %64 = arith.mulf %63, %61 : vector<256x128xf32>
    %65 = arith.addf %2, %64 : vector<256x128xf32>
    %66 = vector.extract_strided_slice %3 {offsets = [3, 0], sizes = [1, 128], strides = [1, 1]} : vector<19x128xf32> to vector<1x128xf32>
    %67 = vector.extract_strided_slice %3 {offsets = [4, 0], sizes = [1, 128], strides = [1, 1]} : vector<19x128xf32> to vector<1x128xf32>
    %cst_26 = arith.constant dense<0.000000e+00> : vector<256xf32>
    %68 = vector.multi_reduction <add>, %65, %cst_26 [1] : vector<256x128xf32> to vector<256xf32>
    %69 = vector.shape_cast %68 : vector<256xf32> to vector<256x1xf32>
    %cst_27 = arith.constant 3.125000e-02 : f32
    %70 = vector.broadcast %cst_27 : f32 to vector<256x1xf32>
    %71 = arith.mulf %69, %70 : vector<256x1xf32>
    %72 = vector.broadcast %71 : vector<256x1xf32> to vector<256x128xf32>
    %73 = arith.subf %65, %72 : vector<256x128xf32>
    %74 = vector.broadcast %8 : vector<1x128xf32> to vector<256x128xf32>
    %75 = arith.mulf %73, %74 : vector<256x128xf32>
    %76 = arith.mulf %75, %75 : vector<256x128xf32>
    %cst_28 = arith.constant dense<0.000000e+00> : vector<256xf32>
    %77 = vector.multi_reduction <add>, %76, %cst_28 [1] : vector<256x128xf32> to vector<256xf32>
    %78 = vector.shape_cast %77 : vector<256xf32> to vector<256x1xf32>
    %cst_29 = arith.constant 3.125000e-02 : f32
    %79 = vector.broadcast %cst_29 : f32 to vector<256x1xf32>
    %80 = arith.mulf %78, %79 : vector<256x1xf32>
    %cst_30 = arith.constant 9.99999974E-6 : f32
    %81 = vector.broadcast %cst_30 : f32 to vector<256x1xf32>
    %82 = arith.addf %80, %81 : vector<256x1xf32>
    %83 = math.rsqrt %82 : vector<256x1xf32>
    %84 = vector.broadcast %83 : vector<256x1xf32> to vector<256x128xf32>
    %85 = arith.mulf %75, %84 : vector<256x128xf32>
    %86 = vector.broadcast %66 : vector<1x128xf32> to vector<256x128xf32>
    %87 = arith.mulf %85, %86 : vector<256x128xf32>
    %88 = vector.broadcast %67 : vector<1x128xf32> to vector<256x128xf32>
    %89 = arith.addf %87, %88 : vector<256x128xf32>
    %c0_31 = arith.constant 0 : index
    %c0_32 = arith.constant 0 : index
    %90 = vector.load %arg9[%c0_31, %c0_32] : memref<128x128xbf16, #tpu.memory_space<vmem>>, vector<128x128xbf16>
    %91 = arith.truncf %89 : vector<256x128xf32> to vector<256x128xbf16>
    %cst_33 = arith.constant dense<0.000000e+00> : vector<256x128xf32>
    %92 = tpu.matmul %91, %90, %cst_33 {dimension_numbers = #tpu.dot_dimension_numbers<[1], [0], [0], [1], [0, 0, 1, 1], [], []>} : vector<256x128xbf16>, vector<128x128xbf16>, vector<256x128xf32> -> vector<256x128xf32>
    %93 = vector.extract_strided_slice %3 {offsets = [5, 0], sizes = [1, 128], strides = [1, 1]} : vector<19x128xf32> to vector<1x128xf32>
    %94 = vector.broadcast %93 : vector<1x128xf32> to vector<256x128xf32>
    %95 = arith.addf %92, %94 : vector<256x128xf32>
    %96 = vector.extract_strided_slice %3 {offsets = [6, 0], sizes = [1, 128], strides = [1, 1]} : vector<19x128xf32> to vector<1x128xf32>
    %97 = vector.broadcast %96 : vector<1x128xf32> to vector<256x128xf32>
    %98 = arith.mulf %95, %97 : vector<256x128xf32>
    %99 = vector.extract_strided_slice %3 {offsets = [7, 0], sizes = [1, 128], strides = [1, 1]} : vector<19x128xf32> to vector<1x128xf32>
    %100 = vector.broadcast %99 : vector<1x128xf32> to vector<256x128xf32>
    %101 = arith.addf %98, %100 : vector<256x128xf32>
    %102 = vector.extract_strided_slice %3 {offsets = [8, 0], sizes = [1, 128], strides = [1, 1]} : vector<19x128xf32> to vector<1x128xf32>
    %103 = vector.broadcast %102 : vector<1x128xf32> to vector<256x128xf32>
    %104 = arith.mulf %101, %103 : vector<256x128xf32>
    %105 = vector.extract_strided_slice %3 {offsets = [9, 0], sizes = [1, 128], strides = [1, 1]} : vector<19x128xf32> to vector<1x128xf32>
    %106 = vector.broadcast %105 : vector<1x128xf32> to vector<256x128xf32>
    %107 = arith.addf %104, %106 : vector<256x128xf32>
    %108 = vector.extract_strided_slice %3 {offsets = [10, 0], sizes = [1, 128], strides = [1, 1]} : vector<19x128xf32> to vector<1x128xf32>
    %109 = vector.broadcast %108 : vector<1x128xf32> to vector<256x128xf32>
    %110 = arith.mulf %109, %107 : vector<256x128xf32>
    %111 = arith.addf %95, %110 : vector<256x128xf32>
    %112 = vector.extract_strided_slice %3 {offsets = [11, 0], sizes = [1, 128], strides = [1, 1]} : vector<19x128xf32> to vector<1x128xf32>
    %113 = vector.broadcast %112 : vector<1x128xf32> to vector<256x128xf32>
    %114 = arith.mulf %111, %113 : vector<256x128xf32>
    %115 = vector.extract_strided_slice %3 {offsets = [12, 0], sizes = [1, 128], strides = [1, 1]} : vector<19x128xf32> to vector<1x128xf32>
    %116 = vector.broadcast %115 : vector<1x128xf32> to vector<256x128xf32>
    %117 = arith.addf %114, %116 : vector<256x128xf32>
    %c0_34 = arith.constant 0 : index
    %c0_35 = arith.constant 0 : index
    %118 = vector.load %arg10[%c0_34, %c0_35] : memref<128x128xbf16, #tpu.memory_space<vmem>>, vector<128x128xbf16>
    %119 = arith.truncf %117 : vector<256x128xf32> to vector<256x128xbf16>
    %cst_36 = arith.constant dense<0.000000e+00> : vector<256x128xf32>
    %120 = tpu.matmul %119, %118, %cst_36 {dimension_numbers = #tpu.dot_dimension_numbers<[1], [0], [0], [1], [0, 0, 1, 1], [], []>} : vector<256x128xbf16>, vector<128x128xbf16>, vector<256x128xf32> -> vector<256x128xf32>
    %c0_37 = arith.constant 0 : index
    %c0_38 = arith.constant 0 : index
    %121 = vector.load %arg11[%c0_37, %c0_38] : memref<1x128xf32, #tpu.memory_space<vmem>>, vector<1x128xf32>
    %122 = vector.broadcast %121 : vector<1x128xf32> to vector<256x128xf32>
    %123 = arith.addf %120, %122 : vector<256x128xf32>
    %124 = arith.mulf %123, %123 : vector<256x128xf32>
    %125 = arith.mulf %123, %124 : vector<256x128xf32>
    %cst_39 = arith.constant 4.471500e-02 : f32
    %126 = vector.broadcast %cst_39 : f32 to vector<256x128xf32>
    %127 = arith.mulf %126, %125 : vector<256x128xf32>
    %128 = arith.addf %123, %127 : vector<256x128xf32>
    %cst_40 = arith.constant 0.797884583 : f32
    %129 = vector.broadcast %cst_40 : f32 to vector<256x128xf32>
    %130 = arith.mulf %129, %128 : vector<256x128xf32>
    %131 = math.tanh %130 : vector<256x128xf32>
    %cst_41 = arith.constant 1.000000e+00 : f32
    %132 = vector.broadcast %cst_41 : f32 to vector<256x128xf32>
    %133 = arith.addf %132, %131 : vector<256x128xf32>
    %cst_42 = arith.constant 5.000000e-01 : f32
    %134 = vector.broadcast %cst_42 : f32 to vector<256x128xf32>
    %135 = arith.mulf %134, %133 : vector<256x128xf32>
    %136 = arith.mulf %123, %135 : vector<256x128xf32>
    %c0_43 = arith.constant 0 : index
    %c0_44 = arith.constant 0 : index
    %137 = vector.load %arg12[%c0_43, %c0_44] : memref<128x128xbf16, #tpu.memory_space<vmem>>, vector<128x128xbf16>
    %138 = arith.truncf %136 : vector<256x128xf32> to vector<256x128xbf16>
    %cst_45 = arith.constant dense<0.000000e+00> : vector<256x128xf32>
    %139 = tpu.matmul %138, %137, %cst_45 {dimension_numbers = #tpu.dot_dimension_numbers<[1], [0], [0], [1], [0, 0, 1, 1], [], []>} : vector<256x128xbf16>, vector<128x128xbf16>, vector<256x128xf32> -> vector<256x128xf32>
    %140 = vector.extract_strided_slice %3 {offsets = [13, 0], sizes = [1, 128], strides = [1, 1]} : vector<19x128xf32> to vector<1x128xf32>
    %141 = vector.broadcast %140 : vector<1x128xf32> to vector<256x128xf32>
    %142 = arith.addf %139, %141 : vector<256x128xf32>
    %143 = vector.extract_strided_slice %3 {offsets = [14, 0], sizes = [1, 128], strides = [1, 1]} : vector<19x128xf32> to vector<1x128xf32>
    %144 = vector.broadcast %143 : vector<1x128xf32> to vector<256x128xf32>
    %145 = arith.mulf %144, %142 : vector<256x128xf32>
    %146 = arith.addf %111, %145 : vector<256x128xf32>
    %147 = vector.extract_strided_slice %3 {offsets = [15, 0], sizes = [1, 128], strides = [1, 1]} : vector<19x128xf32> to vector<1x128xf32>
    %148 = vector.broadcast %147 : vector<1x128xf32> to vector<256x128xf32>
    %149 = arith.mulf %146, %148 : vector<256x128xf32>
    %150 = vector.extract_strided_slice %3 {offsets = [16, 0], sizes = [1, 128], strides = [1, 1]} : vector<19x128xf32> to vector<1x128xf32>
    %151 = vector.broadcast %150 : vector<1x128xf32> to vector<256x128xf32>
    %152 = arith.addf %149, %151 : vector<256x128xf32>
    %c0_46 = arith.constant 0 : index
    %c0_47 = arith.constant 0 : index
    %153 = vector.load %arg13[%c0_46, %c0_47] : memref<128x128xbf16, #tpu.memory_space<vmem>>, vector<128x128xbf16>
    %154 = arith.truncf %152 : vector<256x128xf32> to vector<256x128xbf16>
    %cst_48 = arith.constant dense<0.000000e+00> : vector<256x128xf32>
    %155 = tpu.matmul %154, %153, %cst_48 {dimension_numbers = #tpu.dot_dimension_numbers<[1], [0], [0], [1], [0, 0, 1, 1], [], []>} : vector<256x128xbf16>, vector<128x128xbf16>, vector<256x128xf32> -> vector<256x128xf32>
    %156 = vector.extract_strided_slice %3 {offsets = [17, 0], sizes = [1, 128], strides = [1, 1]} : vector<19x128xf32> to vector<1x128xf32>
    %157 = vector.broadcast %156 : vector<1x128xf32> to vector<256x128xf32>
    %158 = arith.addf %155, %157 : vector<256x128xf32>
    %159 = vector.extract_strided_slice %3 {offsets = [18, 0], sizes = [1, 128], strides = [1, 1]} : vector<19x128xf32> to vector<1x128xf32>
    %160 = vector.broadcast %159 : vector<1x128xf32> to vector<256x128xf32>
    %161 = arith.mulf %160, %158 : vector<256x128xf32>
    %162 = arith.addf %65, %161 : vector<256x128xf32>
    %c0_49 = arith.constant 0 : index
    %c0_50 = arith.constant 0 : index
    %163 = vector.load %arg14[%c0_49, %c0_50] : memref<256x128xf32, #tpu.memory_space<vmem>>, vector<256x128xf32>
    tpu.vector_store %arg14[%c0_49, %c0_50], %162 {strides = array<i32>} : memref<256x128xf32, #tpu.memory_space<vmem>>, vector<256x128xf32>,
    return
  }
  func.func @transform_0(%arg0: i32) -> (i32, i32) {
    %c0_i32 = arith.constant 0 : i32
    %c0_i32_0 = arith.constant 0 : i32
    return %arg0, %c0_i32 : i32, i32
  }
  func.func @transform_1(%arg0: i32) -> (i32, i32) {
    %c0_i32 = arith.constant 0 : i32
    %c0_i32_0 = arith.constant 0 : i32
    %c0_i32_1 = arith.constant 0 : i32
    return %c0_i32, %c0_i32_0 : i32, i32
  }
  func.func @transform_2(%arg0: i32) -> (i32, i32) {
    %c0_i32 = arith.constant 0 : i32
    %c0_i32_0 = arith.constant 0 : i32
    %c0_i32_1 = arith.constant 0 : i32
    return %c0_i32, %c0_i32_0 : i32, i32
  }
  func.func @transform_3(%arg0: i32) -> (i32, i32) {
    %c0_i32 = arith.constant 0 : i32
    %c0_i32_0 = arith.constant 0 : i32
    %c0_i32_1 = arith.constant 0 : i32
    return %c0_i32, %c0_i32_0 : i32, i32
  }
  func.func @transform_4(%arg0: i32) -> (i32, i32) {
    %c0_i32 = arith.constant 0 : i32
    %c0_i32_0 = arith.constant 0 : i32
    %c0_i32_1 = arith.constant 0 : i32
    return %c0_i32, %c0_i32_0 : i32, i32
  }
  func.func @transform_5(%arg0: i32) -> (i32, i32) {
    %c0_i32 = arith.constant 0 : i32
    %c0_i32_0 = arith.constant 0 : i32
    %c0_i32_1 = arith.constant 0 : i32
    return %c0_i32, %c0_i32_0 : i32, i32
  }
  func.func @transform_6(%arg0: i32) -> (i32, i32) {
    %c0_i32 = arith.constant 0 : i32
    %c0_i32_0 = arith.constant 0 : i32
    %c0_i32_1 = arith.constant 0 : i32
    return %c0_i32, %c0_i32_0 : i32, i32
  }
  func.func @transform_7(%arg0: i32) -> (i32, i32) {
    %c0_i32 = arith.constant 0 : i32
    %c0_i32_0 = arith.constant 0 : i32
    %c0_i32_1 = arith.constant 0 : i32
    return %c0_i32, %c0_i32_0 : i32, i32
  }
  func.func @transform_8(%arg0: i32) -> (i32, i32) {
    %c0_i32 = arith.constant 0 : i32
    %c0_i32_0 = arith.constant 0 : i32
    %c0_i32_1 = arith.constant 0 : i32
    return %c0_i32, %c0_i32_0 : i32, i32
  }
  func.func @transform_9(%arg0: i32) -> (i32, i32) {
    %c0_i32 = arith.constant 0 : i32
    %c0_i32_0 = arith.constant 0 : i32
    %c0_i32_1 = arith.constant 0 : i32
    return %c0_i32, %c0_i32_0 : i32, i32
  }
  func.func @transform_10(%arg0: i32) -> (i32, i32) {
    %c0_i32 = arith.constant 0 : i32
    %c0_i32_0 = arith.constant 0 : i32
    %c0_i32_1 = arith.constant 0 : i32
    return %c0_i32, %c0_i32_0 : i32, i32
  }
  func.func @transform_11(%arg0: i32) -> (i32, i32) {
    %c0_i32 = arith.constant 0 : i32
    %c0_i32_0 = arith.constant 0 : i32
    %c0_i32_1 = arith.constant 0 : i32
    return %c0_i32, %c0_i32_0 : i32, i32
  }
  func.func @transform_12(%arg0: i32) -> (i32, i32) {
    %c0_i32 = arith.constant 0 : i32
    %c0_i32_0 = arith.constant 0 : i32
    %c0_i32_1 = arith.constant 0 : i32
    return %c0_i32, %c0_i32_0 : i32, i32
  }
  func.func @transform_13(%arg0: i32) -> (i32, i32) {
    %c0_i32 = arith.constant 0 : i32
    %c0_i32_0 = arith.constant 0 : i32
    return %arg0, %c0_i32 : i32, i32
  }
}

module attributes {stable_mosaic.version = 11 : i64} {
  func.func @kernel(%arg0: i32, %arg1: memref<256x32xf32, #tpu.memory_space<vmem>>, %arg2: memref<19x128xf32, #tpu.memory_space<vmem>>, %arg3: memref<128x384xbf16, #tpu.memory_space<vmem>>, %arg4: memref<1x384xf32, #tpu.memory_space<vmem>>, %arg5: memref<128x16xbf16, #tpu.memory_space<vmem>>, %arg6: memref<16x16xf32, #tpu.memory_space<vmem>>, %arg7: memref<16x128xbf16, #tpu.memory_space<vmem>>, %arg8: memref<128x128xbf16, #tpu.memory_space<vmem>>, %arg9: memref<128x128xbf16, #tpu.memory_space<vmem>>, %arg10: memref<128x128xbf16, #tpu.memory_space<vmem>>, %arg11: memref<1x128xf32, #tpu.memory_space<vmem>>, %arg12: memref<128x128xbf16, #tpu.memory_space<vmem>>, %arg13: memref<128x128xbf16, #tpu.memory_space<vmem>>, %arg14: memref<256x128xf32, #tpu.memory_space<vmem>>) attributes {dimension_semantics = [#tpu.dimension_semantics<parallel>], iteration_bounds = array<i64: 4>, scalar_prefetch = 0 : i64, scratch_operands = 0 : i64, tpu.core_type = #tpu.core_type<tc>, window_params = [{transform_indices = @transform_0, window_bounds = array<i64: 256, 32>}, {pipeline_mode = #tpu.pipeline_mode<synchronous>, transform_indices = @transform_1, window_bounds = array<i64: 19, 128>}, {pipeline_mode = #tpu.pipeline_mode<synchronous>, transform_indices = @transform_2, window_bounds = array<i64: 128, 384>}, {pipeline_mode = #tpu.pipeline_mode<synchronous>, transform_indices = @transform_3, window_bounds = array<i64: 1, 384>}, {pipeline_mode = #tpu.pipeline_mode<synchronous>, transform_indices = @transform_4, window_bounds = array<i64: 128, 16>}, {pipeline_mode = #tpu.pipeline_mode<synchronous>, transform_indices = @transform_5, window_bounds = array<i64: 16, 16>}, {pipeline_mode = #tpu.pipeline_mode<synchronous>, transform_indices = @transform_6, window_bounds = array<i64: 16, 128>}, {pipeline_mode = #tpu.pipeline_mode<synchronous>, transform_indices = @transform_7, window_bounds = array<i64: 128, 128>}, {pipeline_mode = #tpu.pipeline_mode<synchronous>, transform_indices = @transform_8, window_bounds = array<i64: 128, 128>}, {pipeline_mode = #tpu.pipeline_mode<synchronous>, transform_indices = @transform_9, window_bounds = array<i64: 128, 128>}, {pipeline_mode = #tpu.pipeline_mode<synchronous>, transform_indices = @transform_10, window_bounds = array<i64: 1, 128>}, {pipeline_mode = #tpu.pipeline_mode<synchronous>, transform_indices = @transform_11, window_bounds = array<i64: 128, 128>}, {pipeline_mode = #tpu.pipeline_mode<synchronous>, transform_indices = @transform_12, window_bounds = array<i64: 128, 128>}, {transform_indices = @transform_13, window_bounds = array<i64: 256, 128>}]} {
    %c0 = arith.constant 0 : index
    %c0_0 = arith.constant 0 : index
    %0 = vector.load %arg1[%c0, %c0_0] : memref<256x32xf32, #tpu.memory_space<vmem>>, vector<256x32xf32>
    %cst = arith.constant 0.000000e+00 : f32
    %1 = vector.broadcast %cst : f32 to vector<256x96xf32>
    %2 = tpu.concatenate %0, %1 in 1 : vector<256x32xf32>, vector<256x96xf32> -> vector<256x128xf32>
    %c0_1 = arith.constant 0 : index
    %c0_2 = arith.constant 0 : index
    %3 = vector.load %arg2[%c0_1, %c0_2] : memref<19x128xf32, #tpu.memory_space<vmem>>, vector<19x128xf32>
    %4 = tpu.iota {dimensions = array<i32: 1>} : vector<1x128xi32>
    %c32_i32 = arith.constant 32 : i32
    %5 = vector.broadcast %c32_i32 : i32 to vector<1x128xi32>
    %6 = arith.cmpi slt, %4, %5 : vector<1x128xi32>
    %7 = arith.extui %6 : vector<1x128xi1> to vector<1x128xi32>
    %8 = arith.sitofp %7 : vector<1x128xi32> to vector<1x128xf32>
    %9 = vector.extract_strided_slice %3 {offsets = [0, 0], sizes = [1, 128], strides = [1, 1]} : vector<19x128xf32> to vector<1x128xf32>
    %10 = vector.extract_strided_slice %3 {offsets = [1, 0], sizes = [1, 128], strides = [1, 1]} : vector<19x128xf32> to vector<1x128xf32>
    %cst_3 = arith.constant dense<0.000000e+00> : vector<256xf32>
    %11 = vector.multi_reduction <add>, %2, %cst_3 [1] : vector<256x128xf32> to vector<256xf32>
    %12 = vector.shape_cast %11 : vector<256xf32> to vector<256x1xf32>
    %cst_4 = arith.constant 3.125000e-02 : f32
    %13 = vector.broadcast %cst_4 : f32 to vector<256x1xf32>
    %14 = arith.mulf %12, %13 : vector<256x1xf32>
    %15 = vector.broadcast %14 : vector<256x1xf32> to vector<256x128xf32>
    %16 = arith.subf %2, %15 : vector<256x128xf32>
    %17 = vector.broadcast %8 : vector<1x128xf32> to vector<256x128xf32>
    %18 = arith.mulf %16, %17 : vector<256x128xf32>
    %19 = arith.mulf %18, %18 : vector<256x128xf32>
    %cst_5 = arith.constant dense<0.000000e+00> : vector<256xf32>
    %20 = vector.multi_reduction <add>, %19, %cst_5 [1] : vector<256x128xf32> to vector<256xf32>
    %21 = vector.shape_cast %20 : vector<256xf32> to vector<256x1xf32>
    %cst_6 = arith.constant 3.125000e-02 : f32
    %22 = vector.broadcast %cst_6 : f32 to vector<256x1xf32>
    %23 = arith.mulf %21, %22 : vector<256x1xf32>
    %cst_7 = arith.constant 9.99999974E-6 : f32
    %24 = vector.broadcast %cst_7 : f32 to vector<256x1xf32>
    %25 = arith.addf %23, %24 : vector<256x1xf32>
    %26 = math.rsqrt %25 : vector<256x1xf32>
    %27 = vector.broadcast %26 : vector<256x1xf32> to vector<256x128xf32>
    %28 = arith.mulf %18, %27 : vector<256x128xf32>
    %29 = vector.broadcast %9 : vector<1x128xf32> to vector<256x128xf32>
    %30 = arith.mulf %28, %29 : vector<256x128xf32>
    %31 = vector.broadcast %10 : vector<1x128xf32> to vector<256x128xf32>
    %32 = arith.addf %30, %31 : vector<256x128xf32>
    %c0_8 = arith.constant 0 : index
    %c0_9 = arith.constant 0 : index
    %33 = vector.load %arg3[%c0_8, %c0_9] : memref<128x384xbf16, #tpu.memory_space<vmem>>, vector<128x384xbf16>
    %34 = arith.truncf %32 : vector<256x128xf32> to vector<256x128xbf16>
    %cst_10 = arith.constant dense<0.000000e+00> : vector<256x384xf32>
    %35 = tpu.matmul %34, %33, %cst_10 {dimension_numbers = #tpu.dot_dimension_numbers<[1], [0], [0], [1], [0, 0, 1, 1], [], []>} : vector<256x128xbf16>, vector<128x384xbf16>, vector<256x384xf32> -> vector<256x384xf32>
    %c0_11 = arith.constant 0 : index
    %c0_12 = arith.constant 0 : index
    %36 = vector.load %arg4[%c0_11, %c0_12] : memref<1x384xf32, #tpu.memory_space<vmem>>, vector<1x384xf32>
    %37 = vector.broadcast %36 : vector<1x384xf32> to vector<256x384xf32>
    %38 = arith.addf %35, %37 : vector<256x384xf32>
    %39 = vector.extract_strided_slice %38 {offsets = [0, 0], sizes = [256, 128], strides = [1, 1]} : vector<256x384xf32> to vector<256x128xf32>
    %40 = vector.extract_strided_slice %38 {offsets = [0, 128], sizes = [256, 128], strides = [1, 1]} : vector<256x384xf32> to vector<256x128xf32>
    %41 = vector.extract_strided_slice %38 {offsets = [0, 256], sizes = [256, 128], strides = [1, 1]} : vector<256x384xf32> to vector<256x128xf32>
    %42 = arith.mulf %39, %40 : vector<256x128xf32>
    %c0_13 = arith.constant 0 : index
    %c0_14 = arith.constant 0 : index
    %43 = vector.load %arg5[%c0_13, %c0_14] : memref<128x16xbf16, #tpu.memory_space<vmem>>, vector<128x16xbf16>
    %44 = arith.truncf %42 : vector<256x128xf32> to vector<256x128xbf16>
    %cst_15 = arith.constant dense<0.000000e+00> : vector<256x16xf32>
    %45 = tpu.matmul %44, %43, %cst_15 {dimension_numbers = #tpu.dot_dimension_numbers<[1], [0], [0], [1], [0, 0, 1, 1], [], []>} : vector<256x128xbf16>, vector<128x16xbf16>, vector<256x16xf32> -> vector<256x16xf32>
    %cst_16 = arith.constant dense<0xFF800000> : vector<256xf32>
    %46 = vector.multi_reduction <maximumf>, %45, %cst_16 [1] : vector<256x16xf32> to vector<256xf32>
    %47 = vector.shape_cast %46 : vector<256xf32> to vector<256x1xf32>
    %48 = vector.broadcast %47 : vector<256x1xf32> to vector<256x16xf32>
    %49 = arith.subf %45, %48 : vector<256x16xf32>
    %50 = math.exp %49 : vector<256x16xf32>
    %c0_17 = arith.constant 0 : index
    %c0_18 = arith.constant 0 : index
    %51 = vector.load %arg6[%c0_17, %c0_18] : memref<16x16xf32, #tpu.memory_space<vmem>>, vector<16x16xf32>
    %cst_19 = arith.constant dense<0.000000e+00> : vector<256x16xf32>
    %52 = tpu.matmul %50, %51, %cst_19 {dimension_numbers = #tpu.dot_dimension_numbers<[1], [0], [0], [1], [0, 0, 1, 1], [], []>} : vector<256x16xf32>, vector<16x16xf32>, vector<256x16xf32> -> vector<256x16xf32>
    %53 = tpu.reciprocal %52 {approx = true} : vector<256x16xf32> -> vector<256x16xf32>
    %54 = arith.mulf %50, %53 : vector<256x16xf32>
    %c0_20 = arith.constant 0 : index
    %c0_21 = arith.constant 0 : index
    %55 = vector.load %arg7[%c0_20, %c0_21] : memref<16x128xbf16, #tpu.memory_space<vmem>>, vector<16x128xbf16>
    %56 = arith.truncf %54 : vector<256x16xf32> to vector<256x16xbf16>
    %cst_22 = arith.constant dense<0.000000e+00> : vector<256x128xf32>
    %57 = tpu.matmul %56, %55, %cst_22 {dimension_numbers = #tpu.dot_dimension_numbers<[1], [0], [0], [1], [0, 0, 1, 1], [], []>} : vector<256x16xbf16>, vector<16x128xbf16>, vector<256x128xf32> -> vector<256x128xf32>
    %58 = arith.mulf %57, %41 : vector<256x128xf32>
    %c0_23 = arith.constant 0 : index
    %c0_24 = arith.constant 0 : index
    %59 = vector.load %arg8[%c0_23, %c0_24] : memref<128x128xbf16, #tpu.memory_space<vmem>>, vector<128x128xbf16>
    %60 = arith.truncf %58 : vector<256x128xf32> to vector<256x128xbf16>
    %cst_25 = arith.constant dense<0.000000e+00> : vector<256x128xf32>
    %61 = tpu.matmul %60, %59, %cst_25 {dimension_numbers = #tpu.dot_dimension_numbers<[1], [0], [0], [1], [0, 0, 1, 1], [], []>} : vector<256x128xbf16>, vector<128x128xbf16>, vector<256x128xf32> -> vector<256x128xf32>
    %62 = vector.extract_strided_slice %3 {offsets = [2, 0], sizes = [1, 128], strides = [1, 1]} : vector<19x128xf32> to vector<1x128xf32>
    %63 = vector.broadcast %62 : vector<1x128xf32> to vector<256x128xf32>
    %64 = arith.mulf %63, %61 : vector<256x128xf32>
    %65 = arith.addf %2, %64 : vector<256x128xf32>
    %66 = vector.extract_strided_slice %3 {offsets = [3, 0], sizes = [1, 128], strides = [1, 1]} : vector<19x128xf32> to vector<1x128xf32>
    %67 = vector.extract_strided_slice %3 {offsets = [4, 0], sizes = [1, 128], strides = [1, 1]} : vector<19x128xf32> to vector<1x128xf32>
    %cst_26 = arith.constant dense<0.000000e+00> : vector<256xf32>
    %68 = vector.multi_reduction <add>, %65, %cst_26 [1] : vector<256x128xf32> to vector<256xf32>
    %69 = vector.shape_cast %68 : vector<256xf32> to vector<256x1xf32>
    %cst_27 = arith.constant 3.125000e-02 : f32
    %70 = vector.broadcast %cst_27 : f32 to vector<256x1xf32>
    %71 = arith.mulf %69, %70 : vector<256x1xf32>
    %72 = vector.broadcast %71 : vector<256x1xf32> to vector<256x128xf32>
    %73 = arith.subf %65, %72 : vector<256x128xf32>
    %74 = vector.broadcast %8 : vector<1x128xf32> to vector<256x128xf32>
    %75 = arith.mulf %73, %74 : vector<256x128xf32>
    %76 = arith.mulf %75, %75 : vector<256x128xf32>
    %cst_28 = arith.constant dense<0.000000e+00> : vector<256xf32>
    %77 = vector.multi_reduction <add>, %76, %cst_28 [1] : vector<256x128xf32> to vector<256xf32>
    %78 = vector.shape_cast %77 : vector<256xf32> to vector<256x1xf32>
    %cst_29 = arith.constant 3.125000e-02 : f32
    %79 = vector.broadcast %cst_29 : f32 to vector<256x1xf32>
    %80 = arith.mulf %78, %79 : vector<256x1xf32>
    %cst_30 = arith.constant 9.99999974E-6 : f32
    %81 = vector.broadcast %cst_30 : f32 to vector<256x1xf32>
    %82 = arith.addf %80, %81 : vector<256x1xf32>
    %83 = math.rsqrt %82 : vector<256x1xf32>
    %84 = vector.broadcast %83 : vector<256x1xf32> to vector<256x128xf32>
    %85 = arith.mulf %75, %84 : vector<256x128xf32>
    %86 = vector.broadcast %66 : vector<1x128xf32> to vector<256x128xf32>
    %87 = arith.mulf %85, %86 : vector<256x128xf32>
    %88 = vector.broadcast %67 : vector<1x128xf32> to vector<256x128xf32>
    %89 = arith.addf %87, %88 : vector<256x128xf32>
    %c0_31 = arith.constant 0 : index
    %c0_32 = arith.constant 0 : index
    %90 = vector.load %arg9[%c0_31, %c0_32] : memref<128x128xbf16, #tpu.memory_space<vmem>>, vector<128x128xbf16>
    %91 = arith.truncf %89 : vector<256x128xf32> to vector<256x128xbf16>
    %cst_33 = arith.constant dense<0.000000e+00> : vector<256x128xf32>
    %92 = tpu.matmul %91, %90, %cst_33 {dimension_numbers = #tpu.dot_dimension_numbers<[1], [0], [0], [1], [0, 0, 1, 1], [], []>} : vector<256x128xbf16>, vector<128x128xbf16>, vector<256x128xf32> -> vector<256x128xf32>
    %93 = vector.extract_strided_slice %3 {offsets = [5, 0], sizes = [1, 128], strides = [1, 1]} : vector<19x128xf32> to vector<1x128xf32>
    %94 = vector.broadcast %93 : vector<1x128xf32> to vector<256x128xf32>
    %95 = arith.addf %92, %94 : vector<256x128xf32>
    %96 = vector.extract_strided_slice %3 {offsets = [6, 0], sizes = [1, 128], strides = [1, 1]} : vector<19x128xf32> to vector<1x128xf32>
    %97 = vector.broadcast %96 : vector<1x128xf32> to vector<256x128xf32>
    %98 = arith.mulf %95, %97 : vector<256x128xf32>
    %99 = vector.extract_strided_slice %3 {offsets = [7, 0], sizes = [1, 128], strides = [1, 1]} : vector<19x128xf32> to vector<1x128xf32>
    %100 = vector.broadcast %99 : vector<1x128xf32> to vector<256x128xf32>
    %101 = arith.addf %98, %100 : vector<256x128xf32>
    %102 = vector.extract_strided_slice %3 {offsets = [8, 0], sizes = [1, 128], strides = [1, 1]} : vector<19x128xf32> to vector<1x128xf32>
    %103 = vector.broadcast %102 : vector<1x128xf32> to vector<256x128xf32>
    %104 = arith.mulf %101, %103 : vector<256x128xf32>
    %105 = vector.extract_strided_slice %3 {offsets = [9, 0], sizes = [1, 128], strides = [1, 1]} : vector<19x128xf32> to vector<1x128xf32>
    %106 = vector.broadcast %105 : vector<1x128xf32> to vector<256x128xf32>
    %107 = arith.addf %104, %106 : vector<256x128xf32>
    %108 = vector.extract_strided_slice %3 {offsets = [10, 0], sizes = [1, 128], strides = [1, 1]} : vector<19x128xf32> to vector<1x128xf32>
    %109 = vector.broadcast %108 : vector<1x128xf32> to vector<256x128xf32>
    %110 = arith.mulf %109, %107 : vector<256x128xf32>
    %111 = arith.addf %95, %110 : vector<256x128xf32>
    %112 = vector.extract_strided_slice %3 {offsets = [11, 0], sizes = [1, 128], strides = [1, 1]} : vector<19x128xf32> to vector<1x128xf32>
    %113 = vector.broadcast %112 : vector<1x128xf32> to vector<256x128xf32>
    %114 = arith.mulf %111, %113 : vector<256x128xf32>
    %115 = vector.extract_strided_slice %3 {offsets = [12, 0], sizes = [1, 128], strides = [1, 1]} : vector<19x128xf32> to vector<1x128xf32>
    %116 = vector.broadcast %115 : vector<1x128xf32> to vector<256x128xf32>
    %117 = arith.addf %114, %116 : vector<256x128xf32>
    %c0_34 = arith.constant 0 : index
    %c0_35 = arith.constant 0 : index
    %118 = vector.load %arg10[%c0_34, %c0_35] : memref<128x128xbf16, #tpu.memory_space<vmem>>, vector<128x128xbf16>
    %119 = arith.truncf %117 : vector<256x128xf32> to vector<256x128xbf16>
    %cst_36 = arith.constant dense<0.000000e+00> : vector<256x128xf32>
    %120 = tpu.matmul %119, %118, %cst_36 {dimension_numbers = #tpu.dot_dimension_numbers<[1], [0], [0], [1], [0, 0, 1, 1], [], []>} : vector<256x128xbf16>, vector<128x128xbf16>, vector<256x128xf32> -> vector<256x128xf32>
    %c0_37 = arith.constant 0 : index
    %c0_38 = arith.constant 0 : index
    %121 = vector.load %arg11[%c0_37, %c0_38] : memref<1x128xf32, #tpu.memory_space<vmem>>, vector<1x128xf32>
    %122 = vector.broadcast %121 : vector<1x128xf32> to vector<256x128xf32>
    %123 = arith.addf %120, %122 : vector<256x128xf32>
    %124 = arith.mulf %123, %123 : vector<256x128xf32>
    %125 = arith.mulf %123, %124 : vector<256x128xf32>
    %cst_39 = arith.constant 4.471500e-02 : f32
    %126 = vector.broadcast %cst_39 : f32 to vector<256x128xf32>
    %127 = arith.mulf %126, %125 : vector<256x128xf32>
    %128 = arith.addf %123, %127 : vector<256x128xf32>
    %cst_40 = arith.constant 0.797884583 : f32
    %129 = vector.broadcast %cst_40 : f32 to vector<256x128xf32>
    %130 = arith.mulf %129, %128 : vector<256x128xf32>
    %131 = math.tanh %130 : vector<256x128xf32>
    %cst_41 = arith.constant 1.000000e+00 : f32
    %132 = vector.broadcast %cst_41 : f32 to vector<256x128xf32>
    %133 = arith.addf %132, %131 : vector<256x128xf32>
    %cst_42 = arith.constant 5.000000e-01 : f32
    %134 = vector.broadcast %cst_42 : f32 to vector<256x128xf32>
    %135 = arith.mulf %134, %133 : vector<256x128xf32>
    %136 = arith.mulf %123, %135 : vector<256x128xf32>
    %c0_43 = arith.constant 0 : index
    %c0_44 = arith.constant 0 : index
    %137 = vector.load %arg12[%c0_43, %c0_44] : memref<128x128xbf16, #tpu.memory_space<vmem>>, vector<128x128xbf16>
    %138 = arith.truncf %136 : vector<256x128xf32> to vector<256x128xbf16>
    %cst_45 = arith.constant dense<0.000000e+00> : vector<256x128xf32>
    %139 = tpu.matmul %138, %137, %cst_45 {dimension_numbers = #tpu.dot_dimension_numbers<[1], [0], [0], [1], [0, 0, 1, 1], [], []>} : vector<256x128xbf16>, vector<128x128xbf16>, vector<256x128xf32> -> vector<256x128xf32>
    %140 = vector.extract_strided_slice %3 {offsets = [13, 0], sizes = [1, 128], strides = [1, 1]} : vector<19x128xf32> to vector<1x128xf32>
    %141 = vector.broadcast %140 : vector<1x128xf32> to vector<256x128xf32>
    %142 = arith.addf %139, %141 : vector<256x128xf32>
    %143 = vector.extract_strided_slice %3 {offsets = [14, 0], sizes = [1, 128], strides = [1, 1]} : vector<19x128xf32> to vector<1x128xf32>
    %144 = vector.broadcast %143 : vector<1x128xf32> to vector<256x128xf32>
    %145 = arith.mulf %144, %142 : vector<256x128xf32>
    %146 = arith.addf %111, %145 : vector<256x128xf32>
    %147 = vector.extract_strided_slice %3 {offsets = [15, 0], sizes = [1, 128], strides = [1, 1]} : vector<19x128xf32> to vector<1x128xf32>
    %148 = vector.broadcast %147 : vector<1x128xf32> to vector<256x128xf32>
    %149 = arith.mulf %146, %148 : vector<256x128xf32>
    %150 = vector.extract_strided_slice %3 {offsets = [16, 0], sizes = [1, 128], strides = [1, 1]} : vector<19x128xf32> to vector<1x128xf32>
    %151 = vector.broadcast %150 : vector<1x128xf32> to vector<256x128xf32>
    %152 = arith.addf %149, %151 : vector<256x128xf32>
    %c0_46 = arith.constant 0 : index
    %c0_47 = arith.constant 0 : index
    %153 = vector.load %arg13[%c0_46, %c0_47] : memref<128x128xbf16, #tpu.memory_space<vmem>>, vector<128x128xbf16>
    %154 = arith.truncf %152 : vector<256x128xf32> to vector<256x128xbf16>
    %cst_48 = arith.constant dense<0.000000e+00> : vector<256x128xf32>
    %155 = tpu.matmul %154, %153, %cst_48 {dimension_numbers = #tpu.dot_dimension_numbers<[1], [0], [0], [1], [0, 0, 1, 1], [], []>} : vector<256x128xbf16>, vector<128x128xbf16>, vector<256x128xf32> -> vector<256x128xf32>
    %156 = vector.extract_strided_slice %3 {offsets = [17, 0], sizes = [1, 128], strides = [1, 1]} : vector<19x128xf32> to vector<1x128xf32>
    %157 = vector.broadcast %156 : vector<1x128xf32> to vector<256x128xf32>
    %158 = arith.addf %155, %157 : vector<256x128xf32>
    %159 = vector.extract_strided_slice %3 {offsets = [18, 0], sizes = [1, 128], strides = [1, 1]} : vector<19x128xf32> to vector<1x128xf32>
    %160 = vector.broadcast %159 : vector<1x128xf32> to vector<256x128xf32>
    %161 = arith.mulf %160, %158 : vector<256x128xf32>
    %162 = arith.addf %65, %161 : vector<256x128xf32>
    %c0_49 = arith.constant 0 : index
    %c0_50 = arith.constant 0 : index
    %163 = vector.load %arg14[%c0_49, %c0_50] : memref<256x128xf32, #tpu.memory_space<vmem>>, vector<256x128xf32>
    tpu.vector_store %arg14[%c0_49, %c0_50], %162 {strides = array<i32>} : memref<256x128xf32, #tpu.memory_space<vmem>>, vector<256x128xf32>,
    return
  }
  func.func @transform_0(%arg0: i32) -> (i32, i32) {
    %c0_i32 = arith.constant 0 : i32
    %c0_i32_0 = arith.constant 0 : i32
    return %arg0, %c0_i32 : i32, i32
  }
  func.func @transform_1(%arg0: i32) -> (i32, i32) {
    %c0_i32 = arith.constant 0 : i32
    %c0_i32_0 = arith.constant 0 : i32
    %c0_i32_1 = arith.constant 0 : i32
    return %c0_i32, %c0_i32_0 : i32, i32
  }
  func.func @transform_2(%arg0: i32) -> (i32, i32) {
    %c0_i32 = arith.constant 0 : i32
    %c0_i32_0 = arith.constant 0 : i32
    %c0_i32_1 = arith.constant 0 : i32
    return %c0_i32, %c0_i32_0 : i32, i32
  }
  func.func @transform_3(%arg0: i32) -> (i32, i32) {
    %c0_i32 = arith.constant 0 : i32
    %c0_i32_0 = arith.constant 0 : i32
    %c0_i32_1 = arith.constant 0 : i32
    return %c0_i32, %c0_i32_0 : i32, i32
  }
  func.func @transform_4(%arg0: i32) -> (i32, i32) {
    %c0_i32 = arith.constant 0 : i32
    %c0_i32_0 = arith.constant 0 : i32
    %c0_i32_1 = arith.constant 0 : i32
    return %c0_i32, %c0_i32_0 : i32, i32
  }
  func.func @transform_5(%arg0: i32) -> (i32, i32) {
    %c0_i32 = arith.constant 0 : i32
    %c0_i32_0 = arith.constant 0 : i32
    %c0_i32_1 = arith.constant 0 : i32
    return %c0_i32, %c0_i32_0 : i32, i32
  }
  func.func @transform_6(%arg0: i32) -> (i32, i32) {
    %c0_i32 = arith.constant 0 : i32
    %c0_i32_0 = arith.constant 0 : i32
    %c0_i32_1 = arith.constant 0 : i32
    return %c0_i32, %c0_i32_0 : i32, i32
  }
  func.func @transform_7(%arg0: i32) -> (i32, i32) {
    %c0_i32 = arith.constant 0 : i32
    %c0_i32_0 = arith.constant 0 : i32
    %c0_i32_1 = arith.constant 0 : i32
    return %c0_i32, %c0_i32_0 : i32, i32
  }
  func.func @transform_8(%arg0: i32) -> (i32, i32) {
    %c0_i32 = arith.constant 0 : i32
    %c0_i32_0 = arith.constant 0 : i32
    %c0_i32_1 = arith.constant 0 : i32
    return %c0_i32, %c0_i32_0 : i32, i32
  }
  func.func @transform_9(%arg0: i32) -> (i32, i32) {
    %c0_i32 = arith.constant 0 : i32
    %c0_i32_0 = arith.constant 0 : i32
    %c0_i32_1 = arith.constant 0 : i32
    return %c0_i32, %c0_i32_0 : i32, i32
  }
  func.func @transform_10(%arg0: i32) -> (i32, i32) {
    %c0_i32 = arith.constant 0 : i32
    %c0_i32_0 = arith.constant 0 : i32
    %c0_i32_1 = arith.constant 0 : i32
    return %c0_i32, %c0_i32_0 : i32, i32
  }
  func.func @transform_11(%arg0: i32) -> (i32, i32) {
    %c0_i32 = arith.constant 0 : i32
    %c0_i32_0 = arith.constant 0 : i32
    %c0_i32_1 = arith.constant 0 : i32
    return %c0_i32, %c0_i32_0 : i32, i32
  }
  func.func @transform_12(%arg0: i32) -> (i32, i32) {
    %c0_i32 = arith.constant 0 : i32
    %c0_i32_0 = arith.constant 0 : i32
    %c0_i32_1 = arith.constant 0 : i32
    return %c0_i32, %c0_i32_0 : i32, i32
  }
  func.func @transform_13(%arg0: i32) -> (i32, i32) {
    %c0_i32 = arith.constant 0 : i32
    %c0_i32_0 = arith.constant 0 : i32
    return %arg0, %c0_i32 : i32, i32
  }
}

</mosaic_0001>

<llo_original>
// kernel: tpu_custom_call.1
$region0: #{tpu_custom_call.1}
  #allocation0 [shape = 'u32[]', space=smem, size = 0x4, offset = 0x4, fixed_abs, tag = 'smem constant byte address 0x4 - core index']
  #allocation1 [shape = 'u32[144,128]{1,0:T(1,128)}', space=vmem, size = 0x12000, scoped, tag = 'internal scratch']
  %s0 = inlined_call_operand.vmem [shape: f32[1024,32], index: 0, kind: input, shape index: {}]
  %s1 = inlined_call_operand.vmem [shape: f32[19,128], index: 1, kind: input, shape index: {}]
  %s2 = inlined_call_operand.vmem [shape: bf16[128,384], index: 2, kind: input, shape index: {}]
  %s3 = inlined_call_operand.vmem [shape: f32[1,384], index: 3, kind: input, shape index: {}]
  %s4 = inlined_call_operand.vmem [shape: bf16[128,16], index: 4, kind: input, shape index: {}]
  %s5 = inlined_call_operand.vmem [shape: f32[16,16], index: 5, kind: input, shape index: {}]
  %s6 = inlined_call_operand.vmem [shape: bf16[16,128], index: 6, kind: input, shape index: {}]
  %s7 = inlined_call_operand.vmem [shape: bf16[128,128], index: 7, kind: input, shape index: {}]
  %s8 = inlined_call_operand.vmem [shape: bf16[128,128], index: 8, kind: input, shape index: {}]
  %s9 = inlined_call_operand.vmem [shape: bf16[128,128], index: 9, kind: input, shape index: {}]
  %s10 = inlined_call_operand.vmem [shape: f32[1,128], index: 10, kind: input, shape index: {}]
  %s11 = inlined_call_operand.vmem [shape: bf16[128,128], index: 11, kind: input, shape index: {}]
  %s12 = inlined_call_operand.vmem [shape: bf16[128,128], index: 12, kind: input, shape index: {}]
  %s13 = inlined_call_operand.hbm [shape: f32[1024,128], index: 13, kind: output, shape index: {}]
  %s14 = sld [smem:[#allocation0]]
  $region85: #{tpu_custom_call.1} parent=0
    _
  %s16 = ssub.s32 1, %s14
  %s17 = scalar_select 0, %s16, %s14
  $region1: #{tpu_custom_call.1} parent=0
    #allocation2 [shape = 'u8[262144]{0}', space=vmem, size = 0x40000, scoped, tag = 'output window, operand 0']
    #allocation3 [shape = 's32[2]{0}', space=sflag, size = 0x8, scoped, tag = 'scoped memory for tpu_custom_call.1']
    %18 = vsyncpa [#allocation3], 0
    %s19 = scalar_lea.sflag [#allocation3], 1
    %20 = vsyncpa %s19, 0
    loop: start=0, step=1, limit=6
    $region2: #{tpu_custom_call.1} parent=1 // loop_pre_header
      _
    $region3: #{tpu_custom_call.1} parent=1 // loop_header
      %s22 = sphi 0, %s26
      %p23 = scmp.ge.s32.totalorder %s22, 6
      %s32 = sphi 0, %s34
      %s35 = sphi 0, %s32
      %s36 = sphi 0, %s35
      %s52 = sphi 0, %s36
      %s56 = sphi 0, %s56
      %s58 = sphi 0, %s56
      %s59 = sphi 0, %s58
      %s73 = sphi 0, %s59
      %s77 = sphi 0, %s77
      %s79 = sphi 0, %s77
      %s80 = sphi 0, %s79
      %s94 = sphi 0, %s80
      %s98 = sphi 0, %s98
      %s100 = sphi 0, %s98
      %s101 = sphi 0, %s100
      %s115 = sphi 0, %s101
      %s119 = sphi 0, %s119
      %s121 = sphi 0, %s119
      %s122 = sphi 0, %s121
      %s136 = sphi 0, %s122
      %s140 = sphi 0, %s140
      %s142 = sphi 0, %s140
      %s143 = sphi 0, %s142
      %s157 = sphi 0, %s143
      %s161 = sphi 0, %s161
      %s163 = sphi 0, %s161
      %s164 = sphi 0, %s163
      %s178 = sphi 0, %s164
      %s182 = sphi 0, %s182
      %s184 = sphi 0, %s182
      %s185 = sphi 0, %s184
      %s199 = sphi 0, %s185
      %s203 = sphi 0, %s203
      %s205 = sphi 0, %s203
      %s206 = sphi 0, %s205
      %s220 = sphi 0, %s206
      %s224 = sphi 0, %s224
      %s226 = sphi 0, %s224
      %s227 = sphi 0, %s226
      %s241 = sphi 0, %s227
      %s245 = sphi 0, %s245
      %s247 = sphi 0, %s245
      %s248 = sphi 0, %s247
      %s262 = sphi 0, %s248
      %s266 = sphi 0, %s266
      %s268 = sphi 0, %s266
      %s269 = sphi 0, %s268
      %s283 = sphi 0, %s269
      %s287 = sphi 0, %s287
      %s289 = sphi 0, %s287
      %s290 = sphi 0, %s289
      %s304 = sphi 0, %s290
      %s310 = sphi 0, %s312
      %s313 = sphi 0, %s310
      %s314 = sphi 0, %s313
      %s330 = sphi 0, %s314
    $region4: #{tpu_custom_call.1} parent=1 // loop_header_branch
      %25 = sbr.rel (%p23) target = $region8
    $region5: #{tpu_custom_call.1} parent=1 // loop_body
      %s27 = ssub.s32 %s22, 1
      %s28 = ssub.s32 %s22, 2
      %s29 = sadd.s32 %s22, 1
      %s30 = ssub.s32 %s22, %s29
      %p31 = scmp.eq.s32.totalorder %s30, 0
      %s33 = sadd.s32 %s32, 1
      %s34 = scalar_select %p31, %s32, %s33
      %p37 = pneg %p31
      %p38 = scmp.eq.s32.totalorder %s22, 3
      %p39 = por %p37, %p38
      %p40 = scmp.ne.s32.totalorder %s32, %s35
      %p41 = scmp.eq.s32.totalorder %s22, 0
      %p42 = por %p40, %p41
      %p43 = scmp.ne.s32.totalorder %s32, %s35
      %p44 = scmp.eq.s32.totalorder %s27, 3
      %p45 = por %p43, %p44
      %p46 = scmp.ne.s32.totalorder %s35, %s36
      %p47 = scmp.eq.s32.totalorder %s27, 0
      %p48 = por %p46, %p47
      %p49 = scmp.ne.s32.totalorder %s35, %s36
      %p50 = scmp.eq.s32.totalorder %s28, 3
      %p51 = por %p49, %p50
      %p53 = scmp.ne.s32.totalorder %s36, %s52
      %p54 = scmp.eq.s32.totalorder %s28, 0
      %p55 = por %p53, %p54
      %s57 = sadd.s32 %s56, 1
      %p60 = scmp.eq.s32.totalorder %s22, 3
      %p61 = scmp.ne.s32.totalorder %s56, %s58
      %p62 = scmp.eq.s32.totalorder %s22, 0
      %p63 = por %p61, %p62
      %p64 = scmp.ne.s32.totalorder %s56, %s58
      %p65 = scmp.eq.s32.totalorder %s27, 3
      %p66 = por %p64, %p65
      %p67 = scmp.ne.s32.totalorder %s58, %s59
      %p68 = scmp.eq.s32.totalorder %s27, 0
      %p69 = por %p67, %p68
      %p70 = scmp.ne.s32.totalorder %s58, %s59
      %p71 = scmp.eq.s32.totalorder %s28, 3
      %p72 = por %p70, %p71
      %p74 = scmp.ne.s32.totalorder %s59, %s73
      %p75 = scmp.eq.s32.totalorder %s28, 0
      %p76 = por %p74, %p75
      %s78 = sadd.s32 %s77, 1
      %p81 = scmp.eq.s32.totalorder %s22, 3
      %p82 = scmp.ne.s32.totalorder %s77, %s79
      %p83 = scmp.eq.s32.totalorder %s22, 0
      %p84 = por %p82, %p83
      %p85 = scmp.ne.s32.totalorder %s77, %s79
      %p86 = scmp.eq.s32.totalorder %s27, 3
      %p87 = por %p85, %p86
      %p88 = scmp.ne.s32.totalorder %s79, %s80
      %p89 = scmp.eq.s32.totalorder %s27, 0
      %p90 = por %p88, %p89
      %p91 = scmp.ne.s32.totalorder %s79, %s80
      %p92 = scmp.eq.s32.totalorder %s28, 3
      %p93 = por %p91, %p92
      %p95 = scmp.ne.s32.totalorder %s80, %s94
      %p96 = scmp.eq.s32.totalorder %s28, 0
      %p97 = por %p95, %p96
      %s99 = sadd.s32 %s98, 1
      %p102 = scmp.eq.s32.totalorder %s22, 3
      %p103 = scmp.ne.s32.totalorder %s98, %s100
      %p104 = scmp.eq.s32.totalorder %s22, 0
      %p105 = por %p103, %p104
      %p106 = scmp.ne.s32.totalorder %s98, %s100
      %p107 = scmp.eq.s32.totalorder %s27, 3
      %p108 = por %p106, %p107
      %p109 = scmp.ne.s32.totalorder %s100, %s101
      %p110 = scmp.eq.s32.totalorder %s27, 0
      %p111 = por %p109, %p110
      %p112 = scmp.ne.s32.totalorder %s100, %s101
      %p113 = scmp.eq.s32.totalorder %s28, 3
      %p114 = por %p112, %p113
      %p116 = scmp.ne.s32.totalorder %s101, %s115
      %p117 = scmp.eq.s32.totalorder %s28, 0
      %p118 = por %p116, %p117
      %s120 = sadd.s32 %s119, 1
      %p123 = scmp.eq.s32.totalorder %s22, 3
      %p124 = scmp.ne.s32.totalorder %s119, %s121
      %p125 = scmp.eq.s32.totalorder %s22, 0
      %p126 = por %p124, %p125
      %p127 = scmp.ne.s32.totalorder %s119, %s121
      %p128 = scmp.eq.s32.totalorder %s27, 3
      %p129 = por %p127, %p128
      %p130 = scmp.ne.s32.totalorder %s121, %s122
      %p131 = scmp.eq.s32.totalorder %s27, 0
      %p132 = por %p130, %p131
      %p133 = scmp.ne.s32.totalorder %s121, %s122
      %p134 = scmp.eq.s32.totalorder %s28, 3
      %p135 = por %p133, %p134
      %p137 = scmp.ne.s32.totalorder %s122, %s136
      %p138 = scmp.eq.s32.totalorder %s28, 0
      %p139 = por %p137, %p138
      %s141 = sadd.s32 %s140, 1
      %p144 = scmp.eq.s32.totalorder %s22, 3
      %p145 = scmp.ne.s32.totalorder %s140, %s142
      %p146 = scmp.eq.s32.totalorder %s22, 0
      %p147 = por %p145, %p146
      %p148 = scmp.ne.s32.totalorder %s140, %s142
      %p149 = scmp.eq.s32.totalorder %s27, 3
      %p150 = por %p148, %p149
      %p151 = scmp.ne.s32.totalorder %s142, %s143
      %p152 = scmp.eq.s32.totalorder %s27, 0
      %p153 = por %p151, %p152
      %p154 = scmp.ne.s32.totalorder %s142, %s143
      %p155 = scmp.eq.s32.totalorder %s28, 3
      %p156 = por %p154, %p155
      %p158 = scmp.ne.s32.totalorder %s143, %s157
      %p159 = scmp.eq.s32.totalorder %s28, 0
      %p160 = por %p158, %p159
      %s162 = sadd.s32 %s161, 1
      %p165 = scmp.eq.s32.totalorder %s22, 3
      %p166 = scmp.ne.s32.totalorder %s161, %s163
      %p167 = scmp.eq.s32.totalorder %s22, 0
      %p168 = por %p166, %p167
      %p169 = scmp.ne.s32.totalorder %s161, %s163
      %p170 = scmp.eq.s32.totalorder %s27, 3
      %p171 = por %p169, %p170
      %p172 = scmp.ne.s32.totalorder %s163, %s164
      %p173 = scmp.eq.s32.totalorder %s27, 0
      %p174 = por %p172, %p173
      %p175 = scmp.ne.s32.totalorder %s163, %s164
      %p176 = scmp.eq.s32.totalorder %s28, 3
      %p177 = por %p175, %p176
      %p179 = scmp.ne.s32.totalorder %s164, %s178
      %p180 = scmp.eq.s32.totalorder %s28, 0
      %p181 = por %p179, %p180
      %s183 = sadd.s32 %s182, 1
      %p186 = scmp.eq.s32.totalorder %s22, 3
      %p187 = scmp.ne.s32.totalorder %s182, %s184
      %p188 = scmp.eq.s32.totalorder %s22, 0
      %p189 = por %p187, %p188
      %p190 = scmp.ne.s32.totalorder %s182, %s184
      %p191 = scmp.eq.s32.totalorder %s27, 3
      %p192 = por %p190, %p191
      %p193 = scmp.ne.s32.totalorder %s184, %s185
      %p194 = scmp.eq.s32.totalorder %s27, 0
      %p195 = por %p193, %p194
      %p196 = scmp.ne.s32.totalorder %s184, %s185
      %p197 = scmp.eq.s32.totalorder %s28, 3
      %p198 = por %p196, %p197
      %p200 = scmp.ne.s32.totalorder %s185, %s199
      %p201 = scmp.eq.s32.totalorder %s28, 0
      %p202 = por %p200, %p201
      %s204 = sadd.s32 %s203, 1
      %p207 = scmp.eq.s32.totalorder %s22, 3
      %p208 = scmp.ne.s32.totalorder %s203, %s205
      %p209 = scmp.eq.s32.totalorder %s22, 0
      %p210 = por %p208, %p209
      %p211 = scmp.ne.s32.totalorder %s203, %s205
      %p212 = scmp.eq.s32.totalorder %s27, 3
      %p213 = por %p211, %p212
      %p214 = scmp.ne.s32.totalorder %s205, %s206
      %p215 = scmp.eq.s32.totalorder %s27, 0
      %p216 = por %p214, %p215
      %p217 = scmp.ne.s32.totalorder %s205, %s206
      %p218 = scmp.eq.s32.totalorder %s28, 3
      %p219 = por %p217, %p218
      %p221 = scmp.ne.s32.totalorder %s206, %s220
      %p222 = scmp.eq.s32.totalorder %s28, 0
      %p223 = por %p221, %p222
      %s225 = sadd.s32 %s224, 1
      %p228 = scmp.eq.s32.totalorder %s22, 3
      %p229 = scmp.ne.s32.totalorder %s224, %s226
      %p230 = scmp.eq.s32.totalorder %s22, 0
      %p231 = por %p229, %p230
      %p232 = scmp.ne.s32.totalorder %s224, %s226
      %p233 = scmp.eq.s32.totalorder %s27, 3
      %p234 = por %p232, %p233
      %p235 = scmp.ne.s32.totalorder %s226, %s227
      %p236 = scmp.eq.s32.totalorder %s27, 0
      %p237 = por %p235, %p236
      %p238 = scmp.ne.s32.totalorder %s226, %s227
      %p239 = scmp.eq.s32.totalorder %s28, 3
      %p240 = por %p238, %p239
      %p242 = scmp.ne.s32.totalorder %s227, %s241
      %p243 = scmp.eq.s32.totalorder %s28, 0
      %p244 = por %p242, %p243
      %s246 = sadd.s32 %s245, 1
      %p249 = scmp.eq.s32.totalorder %s22, 3
      %p250 = scmp.ne.s32.totalorder %s245, %s247
      %p251 = scmp.eq.s32.totalorder %s22, 0
      %p252 = por %p250, %p251
      %p253 = scmp.ne.s32.totalorder %s245, %s247
      %p254 = scmp.eq.s32.totalorder %s27, 3
      %p255 = por %p253, %p254
      %p256 = scmp.ne.s32.totalorder %s247, %s248
      %p257 = scmp.eq.s32.totalorder %s27, 0
      %p258 = por %p256, %p257
      %p259 = scmp.ne.s32.totalorder %s247, %s248
      %p260 = scmp.eq.s32.totalorder %s28, 3
      %p261 = por %p259, %p260
      %p263 = scmp.ne.s32.totalorder %s248, %s262
      %p264 = scmp.eq.s32.totalorder %s28, 0
      %p265 = por %p263, %p264
      %s267 = sadd.s32 %s266, 1
      %p270 = scmp.eq.s32.totalorder %s22, 3
      %p271 = scmp.ne.s32.totalorder %s266, %s268
      %p272 = scmp.eq.s32.totalorder %s22, 0
      %p273 = por %p271, %p272
      %p274 = scmp.ne.s32.totalorder %s266, %s268
      %p275 = scmp.eq.s32.totalorder %s27, 3
      %p276 = por %p274, %p275
      %p277 = scmp.ne.s32.totalorder %s268, %s269
      %p278 = scmp.eq.s32.totalorder %s27, 0
      %p279 = por %p277, %p278
      %p280 = scmp.ne.s32.totalorder %s268, %s269
      %p281 = scmp.eq.s32.totalorder %s28, 3
      %p282 = por %p280, %p281
      %p284 = scmp.ne.s32.totalorder %s269, %s283
      %p285 = scmp.eq.s32.totalorder %s28, 0
      %p286 = por %p284, %p285
      %s288 = sadd.s32 %s287, 1
      %p291 = scmp.eq.s32.totalorder %s22, 3
      %p292 = scmp.ne.s32.totalorder %s287, %s289
      %p293 = scmp.eq.s32.totalorder %s22, 0
      %p294 = por %p292, %p293
      %p295 = scmp.ne.s32.totalorder %s287, %s289
      %p296 = scmp.eq.s32.totalorder %s27, 3
      %p297 = por %p295, %p296
      %p298 = scmp.ne.s32.totalorder %s289, %s290
      %p299 = scmp.eq.s32.totalorder %s27, 0
      %p300 = por %p298, %p299
      %p301 = scmp.ne.s32.totalorder %s289, %s290
      %p302 = scmp.eq.s32.totalorder %s28, 3
      %p303 = por %p301, %p302
      %p305 = scmp.ne.s32.totalorder %s290, %s304
      %p306 = scmp.eq.s32.totalorder %s28, 0
      %p307 = por %p305, %p306
      %s308 = ssub.s32 %s22, %s29
      %p309 = scmp.eq.s32.totalorder %s308, 0
      %s311 = sadd.s32 %s310, 1
      %s312 = scalar_select %p309, %s310, %s311
      %p315 = pneg %p309
      %p316 = scmp.eq.s32.totalorder %s22, 3
      %p317 = por %p315, %p316
      %p318 = scmp.ne.s32.totalorder %s310, %s313
      %p319 = scmp.eq.s32.totalorder %s22, 0
      %p320 = por %p318, %p319
      %p321 = scmp.ne.s32.totalorder %s310, %s313
      %p322 = scmp.eq.s32.totalorder %s27, 3
      %p323 = por %p321, %p322
      %p324 = scmp.ne.s32.totalorder %s313, %s314
      %p325 = scmp.eq.s32.totalorder %s27, 0
      %p326 = por %p324, %p325
      %p327 = scmp.ne.s32.totalorder %s313, %s314
      %p328 = scmp.eq.s32.totalorder %s28, 3
      %p329 = por %p327, %p328
      %p331 = scmp.ne.s32.totalorder %s314, %s330
      %p332 = scmp.eq.s32.totalorder %s28, 0
      %p333 = por %p331, %p332
      %p334 = scmp.le.s32.totalorder 1, %s22
      %p335 = scmp.lt.s32.totalorder %s22, 5
      %p336 = pnand %p334, %p335
      %p337 = pneg %p336
      // Predicated region
      $region9: #{tpu_custom_call.1} parent=5 // pred_check
        _
      $region10: #{tpu_custom_call.1} parent=5 // pred_check_branch
        %339 = sbr.rel (%p336) target = $region12
      $region11: #{tpu_custom_call.1} parent=5 // pred_region
        %s340 = ssub.s32 %s22, 1
        // Predicated region
        $region13: #{tpu_custom_call.1} parent=11 // pred_check
          %p341 = pneg %p69
        $region14: #{tpu_custom_call.1} parent=11 // pred_check_branch
          %343 = sbr.rel (%p341) target = $region16
        $region15: #{tpu_custom_call.1} parent=11 // pred_region
          _
        $region16: #{tpu_custom_call.1} parent=11 // pred_fallthru
          _
        // Predicated region
        $region17: #{tpu_custom_call.1} parent=11 // pred_check
          %p344 = pneg %p90
        $region18: #{tpu_custom_call.1} parent=11 // pred_check_branch
          %346 = sbr.rel (%p344) target = $region20
        $region19: #{tpu_custom_call.1} parent=11 // pred_region
          _
        $region20: #{tpu_custom_call.1} parent=11 // pred_fallthru
          _
        // Predicated region
        $region21: #{tpu_custom_call.1} parent=11 // pred_check
          %p347 = pneg %p111
        $region22: #{tpu_custom_call.1} parent=11 // pred_check_branch
          %349 = sbr.rel (%p347) target = $region24
        $region23: #{tpu_custom_call.1} parent=11 // pred_region
          _
        $region24: #{tpu_custom_call.1} parent=11 // pred_fallthru
          _
        // Predicated region
        $region25: #{tpu_custom_call.1} parent=11 // pred_check
          %p350 = pneg %p132
        $region26: #{tpu_custom_call.1} parent=11 // pred_check_branch
          %352 = sbr.rel (%p350) target = $region28
        $region27: #{tpu_custom_call.1} parent=11 // pred_region
          _
        $region28: #{tpu_custom_call.1} parent=11 // pred_fallthru
          _
        // Predicated region
        $region29: #{tpu_custom_call.1} parent=11 // pred_check
          %p353 = pneg %p153
        $region30: #{tpu_custom_call.1} parent=11 // pred_check_branch
          %355 = sbr.rel (%p353) target = $region32
        $region31: #{tpu_custom_call.1} parent=11 // pred_region
          _
        $region32: #{tpu_custom_call.1} parent=11 // pred_fallthru
          _
        // Predicated region
        $region33: #{tpu_custom_call.1} parent=11 // pred_check
          %p356 = pneg %p174
        $region34: #{tpu_custom_call.1} parent=11 // pred_check_branch
          %358 = sbr.rel (%p356) target = $region36
        $region35: #{tpu_custom_call.1} parent=11 // pred_region
          _
        $region36: #{tpu_custom_call.1} parent=11 // pred_fallthru
          _
        // Predicated region
        $region37: #{tpu_custom_call.1} parent=11 // pred_check
          %p359 = pneg %p195
        $region38: #{tpu_custom_call.1} parent=11 // pred_check_branch
          %361 = sbr.rel (%p359) target = $region40
        $region39: #{tpu_custom_call.1} parent=11 // pred_region
          _
        $region40: #{tpu_custom_call.1} parent=11 // pred_fallthru
          _
        // Predicated region
        $region41: #{tpu_custom_call.1} parent=11 // pred_check
          %p362 = pneg %p216
        $region42: #{tpu_custom_call.1} parent=11 // pred_check_branch
          %364 = sbr.rel (%p362) target = $region44
        $region43: #{tpu_custom_call.1} parent=11 // pred_region
          _
        $region44: #{tpu_custom_call.1} parent=11 // pred_fallthru
          _
        // Predicated region
        $region45: #{tpu_custom_call.1} parent=11 // pred_check
          %p365 = pneg %p237
        $region46: #{tpu_custom_call.1} parent=11 // pred_check_branch
          %367 = sbr.rel (%p365) target = $region48
        $region47: #{tpu_custom_call.1} parent=11 // pred_region
          _
        $region48: #{tpu_custom_call.1} parent=11 // pred_fallthru
          _
        // Predicated region
        $region49: #{tpu_custom_call.1} parent=11 // pred_check
          %p368 = pneg %p258
        $region50: #{tpu_custom_call.1} parent=11 // pred_check_branch
          %370 = sbr.rel (%p368) target = $region52
        $region51: #{tpu_custom_call.1} parent=11 // pred_region
          _
        $region52: #{tpu_custom_call.1} parent=11 // pred_fallthru
          _
        // Predicated region
        $region53: #{tpu_custom_call.1} parent=11 // pred_check
          %p371 = pneg %p279
        $region54: #{tpu_custom_call.1} parent=11 // pred_check_branch
          %373 = sbr.rel (%p371) target = $region56
        $region55: #{tpu_custom_call.1} parent=11 // pred_region
          _
        $region56: #{tpu_custom_call.1} parent=11 // pred_fallthru
          _
        // Predicated region
        $region57: #{tpu_custom_call.1} parent=11 // pred_check
          %p374 = pneg %p300
        $region58: #{tpu_custom_call.1} parent=11 // pred_check_branch
          %376 = sbr.rel (%p374) target = $region60
        $region59: #{tpu_custom_call.1} parent=11 // pred_region
          _
        $region60: #{tpu_custom_call.1} parent=11 // pred_fallthru
          _
      $region12: #{tpu_custom_call.1} parent=5 // pred_fallthru
        _
      %p377 = scmp.lt.s32.totalorder %s22, 4
      // Predicated region
      $region61: #{tpu_custom_call.1} parent=5 // pred_check
        %p378 = pneg %p377
      $region62: #{tpu_custom_call.1} parent=5 // pred_check_branch
        %380 = sbr.rel (%p378) target = $region64
      $region63: #{tpu_custom_call.1} parent=5 // pred_region
        // Predicated region
        $region65: #{tpu_custom_call.1} parent=63 // pred_check
          %p381 = pneg %p42
        $region66: #{tpu_custom_call.1} parent=63 // pred_check_branch
          %383 = sbr.rel (%p381) target = $region68
        $region67: #{tpu_custom_call.1} parent=63 // pred_region
          %s384 = smul.u32 32, %s22
          %p385 = scmp.lt.s32.totalorder %s384, 127
          %s386 = scalar_select %p385, %s384, 127
          %s387 = smul.addr %s386, 8
          %s388 = scalar_lea.vmem %s0, %s387
          %s389 = smul.u32 32, %s22
        $region68: #{tpu_custom_call.1} parent=63 // pred_fallthru
          _
      $region64: #{tpu_custom_call.1} parent=5 // pred_fallthru
        _
      %p390 = scmp.le.s32.totalorder 1, %s22
      %p391 = scmp.lt.s32.totalorder %s22, 5
      %p392 = pnand %p390, %p391
      %p393 = pneg %p392
      // Predicated region
      $region69: #{tpu_custom_call.1} parent=5 // pred_check
        _
      $region70: #{tpu_custom_call.1} parent=5 // pred_check_branch
        %395 = sbr.rel (%p392) target = $region72
      $region71: #{tpu_custom_call.1} parent=5 // pred_region
        %s396 = ssub.s32 %s22, 1
        %s397 = smul.u32 32, %s27
        %p398 = scmp.lt.s32.totalorder %s397, 127
        %s399 = scalar_select %p398, %s397, 127
        %s400 = smul.addr %s399, 8
        %s401 = scalar_lea.vmem %s0, %s400
        %p402 = pneg %p48
        %p403 = pneg %p45
        %p404 = pneg %p69
        %p405 = pneg %p66
        %p406 = pneg %p90
        %p407 = pneg %p87
        %p408 = pneg %p111
        %p409 = pneg %p108
        %p410 = pneg %p132
        %p411 = pneg %p129
        %p412 = pneg %p153
        %p413 = pneg %p150
        %p414 = pneg %p174
        %p415 = pneg %p171
        %p416 = pneg %p195
        %p417 = pneg %p192
        %p418 = pneg %p216
        %p419 = pneg %p213
        %p420 = pneg %p237
        %p421 = pneg %p234
        %p422 = pneg %p258
        %p423 = pneg %p255
        %p424 = pneg %p279
        %p425 = pneg %p276
        %p426 = pneg %p300
        %p427 = pneg %p297
        %p428 = pneg %p326
        %p429 = pneg %p323
        %s430 = sand.u32 %s313, 1
        %s431 = scalar_lea.sflag [#allocation3], %s430
        %s432 = sand.u32 %s313, 1
        %s433 = smul.addr %s432, 256
        %s434 = scalar_lea.vmem [#allocation2], %s433
        %s435 = smul.u32 32, %s27
        %p436 = scmp.lt.s32.totalorder %s435, 127
        %s437 = scalar_select %p436, %s435, 127
        %s438 = smul.addr %s437, 8
        %s439 = scalar_lea.vmem %s0, %s438
        %s440 = smul.u32 32, %s27
        %s441 = smul.u32 32, %s27
        %v443 = vld [vmem:[%s439] sm:$0xff]
        %v444 = vld [vmem:[%s439 + $0x8] sm:$0xff]
        %v445 = vld [vmem:[%s439 + $0x10] sm:$0xff]
        %v446 = vld [vmem:[%s439 + $0x18] sm:$0xff]
        %v447 = vld [vmem:[%s439 + $0x20] sm:$0xff]
        %v448 = vld [vmem:[%s439 + $0x28] sm:$0xff]
        %v449 = vld [vmem:[%s439 + $0x30] sm:$0xff]
        %v450 = vld [vmem:[%s439 + $0x38] sm:$0xff]
        %v451 = vld [vmem:[%s439 + $0x40] sm:$0xff]
        %v452 = vld [vmem:[%s439 + $0x48] sm:$0xff]
        %v453 = vld [vmem:[%s439 + $0x50] sm:$0xff]
        %v454 = vld [vmem:[%s439 + $0x58] sm:$0xff]
        %v455 = vld [vmem:[%s439 + $0x60] sm:$0xff]
        %v456 = vld [vmem:[%s439 + $0x68] sm:$0xff]
        %v457 = vld [vmem:[%s439 + $0x70] sm:$0xff]
        %v458 = vld [vmem:[%s439 + $0x78] sm:$0xff]
        %v459 = vld [vmem:[%s439 + $0x80] sm:$0xff]
        %v460 = vld [vmem:[%s439 + $0x88] sm:$0xff]
        %v461 = vld [vmem:[%s439 + $0x90] sm:$0xff]
        %v462 = vld [vmem:[%s439 + $0x98] sm:$0xff]
        %v463 = vld [vmem:[%s439 + $0xa0] sm:$0xff]
        %v464 = vld [vmem:[%s439 + $0xa8] sm:$0xff]
        %v465 = vld [vmem:[%s439 + $0xb0] sm:$0xff]
        %v466 = vld [vmem:[%s439 + $0xb8] sm:$0xff]
        %v467 = vld [vmem:[%s439 + $0xc0] sm:$0xff]
        %v468 = vld [vmem:[%s439 + $0xc8] sm:$0xff]
        %v469 = vld [vmem:[%s439 + $0xd0] sm:$0xff]
        %v470 = vld [vmem:[%s439 + $0xd8] sm:$0xff]
        %v471 = vld [vmem:[%s439 + $0xe0] sm:$0xff]
        %v472 = vld [vmem:[%s439 + $0xe8] sm:$0xff]
        %v473 = vld [vmem:[%s439 + $0xf0] sm:$0xff]
        %v474 = vld [vmem:[%s439 + $0xf8] sm:$0xff]
        %vm475 = vcmask 261120
        %v476 = vsel %vm475, %v443, 0.0
        %v477 = vsel %vm475, %v444, 0.0
        %v478 = vsel %vm475, %v445, 0.0
        %v479 = vsel %vm475, %v446, 0.0
        %v480 = vsel %vm475, %v447, 0.0
        %v481 = vsel %vm475, %v448, 0.0
        %v482 = vsel %vm475, %v449, 0.0
        %v483 = vsel %vm475, %v450, 0.0
        %v484 = vsel %vm475, %v451, 0.0
        %v485 = vsel %vm475, %v452, 0.0
        %v486 = vsel %vm475, %v453, 0.0
        %v487 = vsel %vm475, %v454, 0.0
        %v488 = vsel %vm475, %v455, 0.0
        %v489 = vsel %vm475, %v456, 0.0
        %v490 = vsel %vm475, %v457, 0.0
        %v491 = vsel %vm475, %v458, 0.0
        %v492 = vsel %vm475, %v459, 0.0
        %v493 = vsel %vm475, %v460, 0.0
        %v494 = vsel %vm475, %v461, 0.0
        %v495 = vsel %vm475, %v462, 0.0
        %v496 = vsel %vm475, %v463, 0.0
        %v497 = vsel %vm475, %v464, 0.0
        %v498 = vsel %vm475, %v465, 0.0
        %v499 = vsel %vm475, %v466, 0.0
        %v500 = vsel %vm475, %v467, 0.0
        %v501 = vsel %vm475, %v468, 0.0
        %v502 = vsel %vm475, %v469, 0.0
        %v503 = vsel %vm475, %v470, 0.0
        %v504 = vsel %vm475, %v471, 0.0
        %v505 = vsel %vm475, %v472, 0.0
        %v506 = vsel %vm475, %v473, 0.0
        %v507 = vsel %vm475, %v474, 0.0
        %v508 = vld [vmem:[%s1] sm:$0xff]
        %v509 = vld [vmem:[%s1 + $0x8] sm:$0xff]
        %v510 = vld [vmem:[%s1 + $0x10] sm:$0x7]
        %v511 = vlaneseq
        %v512 = vand.u32 %v511, 127
        %vm513 = vcmp.lt.s32.totalorder %v512, 32
        %v514 = vsel %vm513, 1, 0
        %v515 = vcvt.s32.f32 %v514
        %516 = vadd.xlane.f32.xlu0 %v476
        %v517 = vpop.xlane.xlu0 %516
        %518 = vadd.xlane.f32.xlu0 %v477
        %v519 = vpop.xlane.xlu0 %518
        %520 = vadd.xlane.f32.xlu0 %v478
        %v521 = vpop.xlane.xlu0 %520
        %522 = vadd.xlane.f32.xlu0 %v479
        %v523 = vpop.xlane.xlu0 %522
        %524 = vadd.xlane.f32.xlu0 %v480
        %v525 = vpop.xlane.xlu0 %524
        %526 = vadd.xlane.f32.xlu0 %v481
        %v527 = vpop.xlane.xlu0 %526
        %528 = vadd.xlane.f32.xlu0 %v482
        %v529 = vpop.xlane.xlu0 %528
        %530 = vadd.xlane.f32.xlu0 %v483
        %v531 = vpop.xlane.xlu0 %530
        %532 = vadd.xlane.f32.xlu0 %v484
        %v533 = vpop.xlane.xlu0 %532
        %534 = vadd.xlane.f32.xlu0 %v485
        %v535 = vpop.xlane.xlu0 %534
        %536 = vadd.xlane.f32.xlu0 %v486
        %v537 = vpop.xlane.xlu0 %536
        %538 = vadd.xlane.f32.xlu0 %v487
        %v539 = vpop.xlane.xlu0 %538
        %540 = vadd.xlane.f32.xlu0 %v488
        %v541 = vpop.xlane.xlu0 %540
        %542 = vadd.xlane.f32.xlu0 %v489
        %v543 = vpop.xlane.xlu0 %542
        %544 = vadd.xlane.f32.xlu0 %v490
        %v545 = vpop.xlane.xlu0 %544
        %546 = vadd.xlane.f32.xlu0 %v491
        %v547 = vpop.xlane.xlu0 %546
        %548 = vadd.xlane.f32.xlu0 %v492
        %v549 = vpop.xlane.xlu0 %548
        %550 = vadd.xlane.f32.xlu0 %v493
        %v551 = vpop.xlane.xlu0 %550
        %552 = vadd.xlane.f32.xlu0 %v494
        %v553 = vpop.xlane.xlu0 %552
        %554 = vadd.xlane.f32.xlu0 %v495
        %v555 = vpop.xlane.xlu0 %554
        %556 = vadd.xlane.f32.xlu0 %v496
        %v557 = vpop.xlane.xlu0 %556
        %558 = vadd.xlane.f32.xlu0 %v497
        %v559 = vpop.xlane.xlu0 %558
        %560 = vadd.xlane.f32.xlu0 %v498
        %v561 = vpop.xlane.xlu0 %560
        %562 = vadd.xlane.f32.xlu0 %v499
        %v563 = vpop.xlane.xlu0 %562
        %564 = vadd.xlane.f32.xlu0 %v500
        %v565 = vpop.xlane.xlu0 %564
        %566 = vadd.xlane.f32.xlu0 %v501
        %v567 = vpop.xlane.xlu0 %566
        %568 = vadd.xlane.f32.xlu0 %v502
        %v569 = vpop.xlane.xlu0 %568
        %570 = vadd.xlane.f32.xlu0 %v503
        %v571 = vpop.xlane.xlu0 %570
        %572 = vadd.xlane.f32.xlu0 %v504
        %v573 = vpop.xlane.xlu0 %572
        %574 = vadd.xlane.f32.xlu0 %v505
        %v575 = vpop.xlane.xlu0 %574
        %576 = vadd.xlane.f32.xlu0 %v506
        %v577 = vpop.xlane.xlu0 %576
        %578 = vadd.xlane.f32.xlu0 %v507
        %v579 = vpop.xlane.xlu0 %578
        %v580 = vmul.f32 %v517, 0.03125
        %v581 = vmul.f32 %v519, 0.03125
        %v582 = vmul.f32 %v521, 0.03125
        %v583 = vmul.f32 %v523, 0.03125
        %v584 = vmul.f32 %v525, 0.03125
        %v585 = vmul.f32 %v527, 0.03125
        %v586 = vmul.f32 %v529, 0.03125
        %v587 = vmul.f32 %v531, 0.03125
        %v588 = vmul.f32 %v533, 0.03125
        %v589 = vmul.f32 %v535, 0.03125
        %v590 = vmul.f32 %v537, 0.03125
        %v591 = vmul.f32 %v539, 0.03125
        %v592 = vmul.f32 %v541, 0.03125
        %v593 = vmul.f32 %v543, 0.03125
        %v594 = vmul.f32 %v545, 0.03125
        %v595 = vmul.f32 %v547, 0.03125
        %v596 = vmul.f32 %v549, 0.03125
        %v597 = vmul.f32 %v551, 0.03125
        %v598 = vmul.f32 %v553, 0.03125
        %v599 = vmul.f32 %v555, 0.03125
        %v600 = vmul.f32 %v557, 0.03125
        %v601 = vmul.f32 %v559, 0.03125
        %v602 = vmul.f32 %v561, 0.03125
        %v603 = vmul.f32 %v563, 0.03125
        %v604 = vmul.f32 %v565, 0.03125
        %v605 = vmul.f32 %v567, 0.03125
        %v606 = vmul.f32 %v569, 0.03125
        %v607 = vmul.f32 %v571, 0.03125
        %v608 = vmul.f32 %v573, 0.03125
        %v609 = vmul.f32 %v575, 0.03125
        %v610 = vmul.f32 %v577, 0.03125
        %v611 = vmul.f32 %v579, 0.03125
        %v612 = vsub.f32 %v476, %v580
        %v613 = vsub.f32 %v477, %v581
        %v614 = vsub.f32 %v478, %v582
        %v615 = vsub.f32 %v479, %v583
        %v616 = vsub.f32 %v480, %v584
        %v617 = vsub.f32 %v481, %v585
        %v618 = vsub.f32 %v482, %v586
        %v619 = vsub.f32 %v483, %v587
        %v620 = vsub.f32 %v484, %v588
        %v621 = vsub.f32 %v485, %v589
        %v622 = vsub.f32 %v486, %v590
        %v623 = vsub.f32 %v487, %v591
        %v624 = vsub.f32 %v488, %v592
        %v625 = vsub.f32 %v489, %v593
        %v626 = vsub.f32 %v490, %v594
        %v627 = vsub.f32 %v491, %v595
        %v628 = vsub.f32 %v492, %v596
        %v629 = vsub.f32 %v493, %v597
        %v630 = vsub.f32 %v494, %v598
        %v631 = vsub.f32 %v495, %v599
        %v632 = vsub.f32 %v496, %v600
        %v633 = vsub.f32 %v497, %v601
        %v634 = vsub.f32 %v498, %v602
        %v635 = vsub.f32 %v499, %v603
        %v636 = vsub.f32 %v500, %v604
        %v637 = vsub.f32 %v501, %v605
        %v638 = vsub.f32 %v502, %v606
        %v639 = vsub.f32 %v503, %v607
        %v640 = vsub.f32 %v504, %v608
        %v641 = vsub.f32 %v505, %v609
        %v642 = vsub.f32 %v506, %v610
        %v643 = vsub.f32 %v507, %v611
        %v644 = vmul.f32 %v612, %v515
        %v645 = vmul.f32 %v613, %v515
        %v646 = vmul.f32 %v614, %v515
        %v647 = vmul.f32 %v615, %v515
        %v648 = vmul.f32 %v616, %v515
        %v649 = vmul.f32 %v617, %v515
        %v650 = vmul.f32 %v618, %v515
        %v651 = vmul.f32 %v619, %v515
        %v652 = vmul.f32 %v620, %v515
        %v653 = vmul.f32 %v621, %v515
        %v654 = vmul.f32 %v622, %v515
        %v655 = vmul.f32 %v623, %v515
        %v656 = vmul.f32 %v624, %v515
        %v657 = vmul.f32 %v625, %v515
        %v658 = vmul.f32 %v626, %v515
        %v659 = vmul.f32 %v627, %v515
        %v660 = vmul.f32 %v628, %v515
        %v661 = vmul.f32 %v629, %v515
        %v662 = vmul.f32 %v630, %v515
        %v663 = vmul.f32 %v631, %v515
        %v664 = vmul.f32 %v632, %v515
        %v665 = vmul.f32 %v633, %v515
        %v666 = vmul.f32 %v634, %v515
        %v667 = vmul.f32 %v635, %v515
        %v668 = vmul.f32 %v636, %v515
        %v669 = vmul.f32 %v637, %v515
        %v670 = vmul.f32 %v638, %v515
        %v671 = vmul.f32 %v639, %v515
        %v672 = vmul.f32 %v640, %v515
        %v673 = vmul.f32 %v641, %v515
        %v674 = vmul.f32 %v642, %v515
        %v675 = vmul.f32 %v643, %v515
        %v676 = vmul.f32 %v644, %v644
        %v677 = vmul.f32 %v645, %v645
        %v678 = vmul.f32 %v646, %v646
        %v679 = vmul.f32 %v647, %v647
        %v680 = vmul.f32 %v648, %v648
        %v681 = vmul.f32 %v649, %v649
        %v682 = vmul.f32 %v650, %v650
        %v683 = vmul.f32 %v651, %v651
        %v684 = vmul.f32 %v652, %v652
        %v685 = vmul.f32 %v653, %v653
        %v686 = vmul.f32 %v654, %v654
        %v687 = vmul.f32 %v655, %v655
        %v688 = vmul.f32 %v656, %v656
        %v689 = vmul.f32 %v657, %v657
        %v690 = vmul.f32 %v658, %v658
        %v691 = vmul.f32 %v659, %v659
        %v692 = vmul.f32 %v660, %v660
        %v693 = vmul.f32 %v661, %v661
        %v694 = vmul.f32 %v662, %v662
        %v695 = vmul.f32 %v663, %v663
        %v696 = vmul.f32 %v664, %v664
        %v697 = vmul.f32 %v665, %v665
        %v698 = vmul.f32 %v666, %v666
        %v699 = vmul.f32 %v667, %v667
        %v700 = vmul.f32 %v668, %v668
        %v701 = vmul.f32 %v669, %v669
        %v702 = vmul.f32 %v670, %v670
        %v703 = vmul.f32 %v671, %v671
        %v704 = vmul.f32 %v672, %v672
        %v705 = vmul.f32 %v673, %v673
        %v706 = vmul.f32 %v674, %v674
        %v707 = vmul.f32 %v675, %v675
        %708 = vadd.xlane.f32.xlu0 %v676
        %v709 = vpop.xlane.xlu0 %708
        %710 = vadd.xlane.f32.xlu0 %v677
        %v711 = vpop.xlane.xlu0 %710
        %712 = vadd.xlane.f32.xlu0 %v678
        %v713 = vpop.xlane.xlu0 %712
        %714 = vadd.xlane.f32.xlu0 %v679
        %v715 = vpop.xlane.xlu0 %714
        %716 = vadd.xlane.f32.xlu0 %v680
        %v717 = vpop.xlane.xlu0 %716
        %718 = vadd.xlane.f32.xlu0 %v681
        %v719 = vpop.xlane.xlu0 %718
        %720 = vadd.xlane.f32.xlu0 %v682
        %v721 = vpop.xlane.xlu0 %720
        %722 = vadd.xlane.f32.xlu0 %v683
        %v723 = vpop.xlane.xlu0 %722
        %724 = vadd.xlane.f32.xlu0 %v684
        %v725 = vpop.xlane.xlu0 %724
        %726 = vadd.xlane.f32.xlu0 %v685
        %v727 = vpop.xlane.xlu0 %726
        %728 = vadd.xlane.f32.xlu0 %v686
        %v729 = vpop.xlane.xlu0 %728
        %730 = vadd.xlane.f32.xlu0 %v687
        %v731 = vpop.xlane.xlu0 %730
        %732 = vadd.xlane.f32.xlu0 %v688
        %v733 = vpop.xlane.xlu0 %732
        %734 = vadd.xlane.f32.xlu0 %v689
        %v735 = vpop.xlane.xlu0 %734
        %736 = vadd.xlane.f32.xlu0 %v690
        %v737 = vpop.xlane.xlu0 %736
        %738 = vadd.xlane.f32.xlu0 %v691
        %v739 = vpop.xlane.xlu0 %738
        %740 = vadd.xlane.f32.xlu0 %v692
        %v741 = vpop.xlane.xlu0 %740
        %742 = vadd.xlane.f32.xlu0 %v693
        %v743 = vpop.xlane.xlu0 %742
        %744 = vadd.xlane.f32.xlu0 %v694
        %v745 = vpop.xlane.xlu0 %744
        %746 = vadd.xlane.f32.xlu0 %v695
        %v747 = vpop.xlane.xlu0 %746
        %748 = vadd.xlane.f32.xlu0 %v696
        %v749 = vpop.xlane.xlu0 %748
        %750 = vadd.xlane.f32.xlu0 %v697
        %v751 = vpop.xlane.xlu0 %750
        %752 = vadd.xlane.f32.xlu0 %v698
        %v753 = vpop.xlane.xlu0 %752
        %754 = vadd.xlane.f32.xlu0 %v699
        %v755 = vpop.xlane.xlu0 %754
        %756 = vadd.xlane.f32.xlu0 %v700
        %v757 = vpop.xlane.xlu0 %756
        %758 = vadd.xlane.f32.xlu0 %v701
        %v759 = vpop.xlane.xlu0 %758
        %760 = vadd.xlane.f32.xlu0 %v702
        %v761 = vpop.xlane.xlu0 %760
        %762 = vadd.xlane.f32.xlu0 %v703
        %v763 = vpop.xlane.xlu0 %762
        %764 = vadd.xlane.f32.xlu0 %v704
        %v765 = vpop.xlane.xlu0 %764
        %766 = vadd.xlane.f32.xlu0 %v705
        %v767 = vpop.xlane.xlu0 %766
        %768 = vadd.xlane.f32.xlu0 %v706
        %v769 = vpop.xlane.xlu0 %768
        %770 = vadd.xlane.f32.xlu0 %v707
        %v771 = vpop.xlane.xlu0 %770
        %v772 = vmul.f32 %v709, 0.03125
        %v773 = vmul.f32 %v711, 0.03125
        %v774 = vmul.f32 %v713, 0.03125
        %v775 = vmul.f32 %v715, 0.03125
        %v776 = vmul.f32 %v717, 0.03125
        %v777 = vmul.f32 %v719, 0.03125
        %v778 = vmul.f32 %v721, 0.03125
        %v779 = vmul.f32 %v723, 0.03125
        %v780 = vmul.f32 %v725, 0.03125
        %v781 = vmul.f32 %v727, 0.03125
        %v782 = vmul.f32 %v729, 0.03125
        %v783 = vmul.f32 %v731, 0.03125
        %v784 = vmul.f32 %v733, 0.03125
        %v785 = vmul.f32 %v735, 0.03125
        %v786 = vmul.f32 %v737, 0.03125
        %v787 = vmul.f32 %v739, 0.03125
        %v788 = vmul.f32 %v741, 0.03125
        %v789 = vmul.f32 %v743, 0.03125
        %v790 = vmul.f32 %v745, 0.03125
        %v791 = vmul.f32 %v747, 0.03125
        %v792 = vmul.f32 %v749, 0.03125
        %v793 = vmul.f32 %v751, 0.03125
        %v794 = vmul.f32 %v753, 0.03125
        %v795 = vmul.f32 %v755, 0.03125
        %v796 = vmul.f32 %v757, 0.03125
        %v797 = vmul.f32 %v759, 0.03125
        %v798 = vmul.f32 %v761, 0.03125
        %v799 = vmul.f32 %v763, 0.03125
        %v800 = vmul.f32 %v765, 0.03125
        %v801 = vmul.f32 %v767, 0.03125
        %v802 = vmul.f32 %v769, 0.03125
        %v803 = vmul.f32 %v771, 0.03125
        %v804 = vadd.f32 %v772, 1e-05
        %v805 = vadd.f32 %v773, 1e-05
        %v806 = vadd.f32 %v774, 1e-05
        %v807 = vadd.f32 %v775, 1e-05
        %v808 = vadd.f32 %v776, 1e-05
        %v809 = vadd.f32 %v777, 1e-05
        %v810 = vadd.f32 %v778, 1e-05
        %v811 = vadd.f32 %v779, 1e-05
        %v812 = vadd.f32 %v780, 1e-05
        %v813 = vadd.f32 %v781, 1e-05
        %v814 = vadd.f32 %v782, 1e-05
        %v815 = vadd.f32 %v783, 1e-05
        %v816 = vadd.f32 %v784, 1e-05
        %v817 = vadd.f32 %v785, 1e-05
        %v818 = vadd.f32 %v786, 1e-05
        %v819 = vadd.f32 %v787, 1e-05
        %v820 = vadd.f32 %v788, 1e-05
        %v821 = vadd.f32 %v789, 1e-05
        %v822 = vadd.f32 %v790, 1e-05
        %v823 = vadd.f32 %v791, 1e-05
        %v824 = vadd.f32 %v792, 1e-05
        %v825 = vadd.f32 %v793, 1e-05
        %v826 = vadd.f32 %v794, 1e-05
        %v827 = vadd.f32 %v795, 1e-05
        %v828 = vadd.f32 %v796, 1e-05
        %v829 = vadd.f32 %v797, 1e-05
        %v830 = vadd.f32 %v798, 1e-05
        %v831 = vadd.f32 %v799, 1e-05
        %v832 = vadd.f32 %v800, 1e-05
        %v833 = vadd.f32 %v801, 1e-05
        %v834 = vadd.f32 %v802, 1e-05
        %v835 = vadd.f32 %v803, 1e-05
        %v836 = vrsqrt.pop %v804
        %v837 = vrsqrt.pop %v805
        %v838 = vrsqrt.pop %v806
        %v839 = vrsqrt.pop %v807
        %v840 = vrsqrt.pop %v808
        %v841 = vrsqrt.pop %v809
        %v842 = vrsqrt.pop %v810
        %v843 = vrsqrt.pop %v811
        %v844 = vrsqrt.pop %v812
        %v845 = vrsqrt.pop %v813
        %v846 = vrsqrt.pop %v814
        %v847 = vrsqrt.pop %v815
        %v848 = vrsqrt.pop %v816
        %v849 = vrsqrt.pop %v817
        %v850 = vrsqrt.pop %v818
        %v851 = vrsqrt.pop %v819
        %v852 = vrsqrt.pop %v820
        %v853 = vrsqrt.pop %v821
        %v854 = vrsqrt.pop %v822
        %v855 = vrsqrt.pop %v823
        %v856 = vrsqrt.pop %v824
        %v857 = vrsqrt.pop %v825
        %v858 = vrsqrt.pop %v826
        %v859 = vrsqrt.pop %v827
        %v860 = vrsqrt.pop %v828
        %v861 = vrsqrt.pop %v829
        %v862 = vrsqrt.pop %v830
        %v863 = vrsqrt.pop %v831
        %v864 = vrsqrt.pop %v832
        %v865 = vrsqrt.pop %v833
        %v866 = vrsqrt.pop %v834
        %v867 = vrsqrt.pop %v835
        %v868 = vmul.f32 %v644, %v836
        %v869 = vmul.f32 %v645, %v837
        %v870 = vmul.f32 %v646, %v838
        %v871 = vmul.f32 %v647, %v839
        %v872 = vmul.f32 %v648, %v840
        %v873 = vmul.f32 %v649, %v841
        %v874 = vmul.f32 %v650, %v842
        %v875 = vmul.f32 %v651, %v843
        %v876 = vmul.f32 %v652, %v844
        %v877 = vmul.f32 %v653, %v845
        %v878 = vmul.f32 %v654, %v846
        %v879 = vmul.f32 %v655, %v847
        %v880 = vmul.f32 %v656, %v848
        %v881 = vmul.f32 %v657, %v849
        %v882 = vmul.f32 %v658, %v850
        %v883 = vmul.f32 %v659, %v851
        %v884 = vmul.f32 %v660, %v852
        %v885 = vmul.f32 %v661, %v853
        %v886 = vmul.f32 %v662, %v854
        %v887 = vmul.f32 %v663, %v855
        %v888 = vmul.f32 %v664, %v856
        %v889 = vmul.f32 %v665, %v857
        %v890 = vmul.f32 %v666, %v858
        %v891 = vmul.f32 %v667, %v859
        %v892 = vmul.f32 %v668, %v860
        %v893 = vmul.f32 %v669, %v861
        %v894 = vmul.f32 %v670, %v862
        %v895 = vmul.f32 %v671, %v863
        %v896 = vmul.f32 %v672, %v864
        %v897 = vmul.f32 %v673, %v865
        %v898 = vmul.f32 %v674, %v866
        %v899 = vmul.f32 %v675, %v867
        %v900 = vlaneseq
        %v901 = vshrl.u32 %v900, 7
        %v902 = vsub.s32 0, %v901
        %v903 = vrot.slane %v508, %v902
        %v904 = vmul.f32 %v868, %v903
        %v905 = vmul.f32 %v869, %v903
        %v906 = vmul.f32 %v870, %v903
        %v907 = vmul.f32 %v871, %v903
        %v908 = vmul.f32 %v872, %v903
        %v909 = vmul.f32 %v873, %v903
        %v910 = vmul.f32 %v874, %v903
        %v911 = vmul.f32 %v875, %v903
        %v912 = vmul.f32 %v876, %v903
        %v913 = vmul.f32 %v877, %v903
        %v914 = vmul.f32 %v878, %v903
        %v915 = vmul.f32 %v879, %v903
        %v916 = vmul.f32 %v880, %v903
        %v917 = vmul.f32 %v881, %v903
        %v918 = vmul.f32 %v882, %v903
        %v919 = vmul.f32 %v883, %v903
        %v920 = vmul.f32 %v884, %v903
        %v921 = vmul.f32 %v885, %v903
        %v922 = vmul.f32 %v886, %v903
        %v923 = vmul.f32 %v887, %v903
        %v924 = vmul.f32 %v888, %v903
        %v925 = vmul.f32 %v889, %v903
        %v926 = vmul.f32 %v890, %v903
        %v927 = vmul.f32 %v891, %v903
        %v928 = vmul.f32 %v892, %v903
        %v929 = vmul.f32 %v893, %v903
        %v930 = vmul.f32 %v894, %v903
        %v931 = vmul.f32 %v895, %v903
        %v932 = vmul.f32 %v896, %v903
        %v933 = vmul.f32 %v897, %v903
        %v934 = vmul.f32 %v898, %v903
        %v935 = vmul.f32 %v899, %v903
        %v936 = vlaneseq
        %v937 = vshrl.u32 %v936, 7
        %v938 = vsub.s32 1, %v937
        %v939 = vrot.slane %v508, %v938
        %v940 = vadd.f32 %v904, %v939
        %v941 = vadd.f32 %v905, %v939
        %v942 = vadd.f32 %v906, %v939
        %v943 = vadd.f32 %v907, %v939
        %v944 = vadd.f32 %v908, %v939
        %v945 = vadd.f32 %v909, %v939
        %v946 = vadd.f32 %v910, %v939
        %v947 = vadd.f32 %v911, %v939
        %v948 = vadd.f32 %v912, %v939
        %v949 = vadd.f32 %v913, %v939
        %v950 = vadd.f32 %v914, %v939
        %v951 = vadd.f32 %v915, %v939
        %v952 = vadd.f32 %v916, %v939
        %v953 = vadd.f32 %v917, %v939
        %v954 = vadd.f32 %v918, %v939
        %v955 = vadd.f32 %v919, %v939
        %v956 = vadd.f32 %v920, %v939
        %v957 = vadd.f32 %v921, %v939
        %v958 = vadd.f32 %v922, %v939
        %v959 = vadd.f32 %v923, %v939
        %v960 = vadd.f32 %v924, %v939
        %v961 = vadd.f32 %v925, %v939
        %v962 = vadd.f32 %v926, %v939
        %v963 = vadd.f32 %v927, %v939
        %v964 = vadd.f32 %v928, %v939
        %v965 = vadd.f32 %v929, %v939
        %v966 = vadd.f32 %v930, %v939
        %v967 = vadd.f32 %v931, %v939
        %v968 = vadd.f32 %v932, %v939
        %v969 = vadd.f32 %v933, %v939
        %v970 = vadd.f32 %v934, %v939
        %v971 = vadd.f32 %v935, %v939
        %v972 = vld [vmem:[%s2] sm:$0xff]
        %v973 = vld [vmem:[%s2 + $0x8] sm:$0xf]
        %v974 = vld [vmem:[%s2 + $0xc] sm:$0xff]
        %v975 = vld [vmem:[%s2 + $0x14] sm:$0xf]
        %v976 = vld [vmem:[%s2 + $0x18] sm:$0xff]
        %v977 = vld [vmem:[%s2 + $0x20] sm:$0xf]
        %v978 = vld [vmem:[%s2 + $0x24] sm:$0xff]
        %v979 = vld [vmem:[%s2 + $0x2c] sm:$0xf]
        %v980 = vld [vmem:[%s2 + $0x30] sm:$0xff]
        %v981 = vld [vmem:[%s2 + $0x38] sm:$0xf]
        %v982 = vld [vmem:[%s2 + $0x3c] sm:$0xff]
        %v983 = vld [vmem:[%s2 + $0x44] sm:$0xf]
        %v984 = vld [vmem:[%s2 + $0x48] sm:$0xff]
        %v985 = vld [vmem:[%s2 + $0x50] sm:$0xf]
        %v986 = vld [vmem:[%s2 + $0x54] sm:$0xff]
        %v987 = vld [vmem:[%s2 + $0x5c] sm:$0xf]
        %v988 = vld [vmem:[%s2 + $0x60] sm:$0xff]
        %v989 = vld [vmem:[%s2 + $0x68] sm:$0xf]
        %v990 = vld [vmem:[%s2 + $0x6c] sm:$0xff]
        %v991 = vld [vmem:[%s2 + $0x74] sm:$0xf]
        %v992 = vld [vmem:[%s2 + $0x78] sm:$0xff]
        %v993 = vld [vmem:[%s2 + $0x80] sm:$0xf]
        %v994 = vld [vmem:[%s2 + $0x84] sm:$0xff]
        %v995 = vld [vmem:[%s2 + $0x8c] sm:$0xf]
        %v996 = vld [vmem:[%s2 + $0x90] sm:$0xff]
        %v997 = vld [vmem:[%s2 + $0x98] sm:$0xf]
        %v998 = vld [vmem:[%s2 + $0x9c] sm:$0xff]
        %v999 = vld [vmem:[%s2 + $0xa4] sm:$0xf]
        %v1000 = vld [vmem:[%s2 + $0xa8] sm:$0xff]
        %v1001 = vld [vmem:[%s2 + $0xb0] sm:$0xf]
        %v1002 = vld [vmem:[%s2 + $0xb4] sm:$0xff]
        %v1003 = vld [vmem:[%s2 + $0xbc] sm:$0xf]
        %v1004 = vpack.c.bf16 %v941, %v940
        %v1005 = vpack.c.bf16 %v943, %v942
        %v1006 = vpack.c.bf16 %v945, %v944
        %v1007 = vpack.c.bf16 %v947, %v946
        %v1008 = vpack.c.bf16 %v949, %v948
        %v1009 = vpack.c.bf16 %v951, %v950
        %v1010 = vpack.c.bf16 %v953, %v952
        %v1011 = vpack.c.bf16 %v955, %v954
        %v1012 = vpack.c.bf16 %v957, %v956
        %v1013 = vpack.c.bf16 %v959, %v958
        %v1014 = vpack.c.bf16 %v961, %v960
        %v1015 = vpack.c.bf16 %v963, %v962
        %v1016 = vpack.c.bf16 %v965, %v964
        %v1017 = vpack.c.bf16 %v967, %v966
        %v1018 = vpack.c.bf16 %v969, %v968
        %v1019 = vpack.c.bf16 %v971, %v970
        %v1020 = vld [vmem:[%s3] sm:$0x7]
        %v1022 = vlaneseq
        %v1023 = vshrl.u32 %v1022, 7
        %v1024 = vsub.s32 0, %v1023
        %v1025 = vrot.slane %v1020, %v1024
        %v1026 = vlaneseq
        %v1027 = vshrl.u32 %v1026, 7
        %v1028 = vsub.s32 1, %v1027
        %v1029 = vrot.slane %v1020, %v1028
        %v1030 = vlaneseq
        %v1031 = vshrl.u32 %v1030, 7
        %v1032 = vsub.s32 2, %v1031
        %v1033 = vrot.slane %v1020, %v1032
        %v1069 = vunpack.c.l.b16 %v972
        %v1070 = vunpack.c.h.b16 %v972
        %v1071 = vunpack.c.l.b16 %v973
        %v1072 = vunpack.c.l.b16 %v974
        %v1073 = vunpack.c.h.b16 %v974
        %v1074 = vunpack.c.l.b16 %v975
        %v1075 = vunpack.c.l.b16 %v976
        %v1076 = vunpack.c.h.b16 %v976
        %v1077 = vunpack.c.l.b16 %v977
        %v1078 = vunpack.c.l.b16 %v978
        %v1079 = vunpack.c.h.b16 %v978
        %v1080 = vunpack.c.l.b16 %v979
        %v1081 = vunpack.c.l.b16 %v980
        %v1082 = vunpack.c.h.b16 %v980
        %v1083 = vunpack.c.l.b16 %v981
        %v1084 = vunpack.c.l.b16 %v982
        %v1085 = vunpack.c.h.b16 %v982
        %v1086 = vunpack.c.l.b16 %v983
        %v1087 = vunpack.c.l.b16 %v984
        %v1088 = vunpack.c.h.b16 %v984
        %v1089 = vunpack.c.l.b16 %v985
        %v1090 = vunpack.c.l.b16 %v986
        %v1091 = vunpack.c.h.b16 %v986
        %v1092 = vunpack.c.l.b16 %v987
        %v1093 = vunpack.c.l.b16 %v988
        %v1094 = vunpack.c.h.b16 %v988
        %v1095 = vunpack.c.l.b16 %v989
        %v1096 = vunpack.c.l.b16 %v990
        %v1097 = vunpack.c.h.b16 %v990
        %v1098 = vunpack.c.l.b16 %v991
        %v1099 = vunpack.c.l.b16 %v992
        %v1100 = vunpack.c.h.b16 %v992
        %v1101 = vunpack.c.l.b16 %v993
        %v1102 = vunpack.c.l.b16 %v994
        %v1103 = vunpack.c.h.b16 %v994
        %v1104 = vunpack.c.l.b16 %v995
        %v1105 = vunpack.c.l.b16 %v996
        %v1106 = vunpack.c.h.b16 %v996
        %v1107 = vunpack.c.l.b16 %v997
        %v1108 = vunpack.c.l.b16 %v998
        %v1109 = vunpack.c.h.b16 %v998
        %v1110 = vunpack.c.l.b16 %v999
        %v1111 = vunpack.c.l.b16 %v1000
        %v1112 = vunpack.c.h.b16 %v1000
        %v1113 = vunpack.c.l.b16 %v1001
        %v1114 = vunpack.c.l.b16 %v1002
        %v1115 = vunpack.c.h.b16 %v1002
        %v1116 = vunpack.c.l.b16 %v1003
        %v1117 = vpack.c.b16 %v1072, %v1069
        %v1118 = vpack.c.b16 %v1073, %v1070
        %v1119 = vpack.c.b16 %v1074, %v1071
        %v1120 = vpack.c.b16 %v1078, %v1075
        %v1121 = vpack.c.b16 %v1079, %v1076
        %v1122 = vpack.c.b16 %v1080, %v1077
        %v1123 = vpack.c.b16 %v1084, %v1081
        %v1124 = vpack.c.b16 %v1085, %v1082
        %v1125 = vpack.c.b16 %v1086, %v1083
        %v1126 = vpack.c.b16 %v1090, %v1087
        %v1127 = vpack.c.b16 %v1091, %v1088
        %v1128 = vpack.c.b16 %v1092, %v1089
        %v1129 = vpack.c.b16 %v1096, %v1093
        %v1130 = vpack.c.b16 %v1097, %v1094
        %v1131 = vpack.c.b16 %v1098, %v1095
        %v1132 = vpack.c.b16 %v1102, %v1099
        %v1133 = vpack.c.b16 %v1103, %v1100
        %v1134 = vpack.c.b16 %v1104, %v1101
        %v1135 = vpack.c.b16 %v1108, %v1105
        %v1136 = vpack.c.b16 %v1109, %v1106
        %v1137 = vpack.c.b16 %v1110, %v1107
        %v1138 = vpack.c.b16 %v1114, %v1111
        %v1139 = vpack.c.b16 %v1115, %v1112
        %v1140 = vpack.c.b16 %v1116, %v1113
        %1165 = vmatprep.subr.bf16.mxu0 %v1118
        %1166 = vmatpush1.bf16.msra.mxu0 %v1117
        %1167 = vmatprep.subr.bf16.mxu0 %v1121
        %1168 = vmatpush1.bf16.msra.mxu0 %v1120
        %1169 = vmatprep.subr.bf16.mxu0 %v1124
        %1170 = vmatpush1.bf16.msra.mxu0 %v1123
        %1171 = vmatprep.subr.bf16.mxu0 %v1127
        %1172 = vmatpush1.bf16.msra.mxu0 %v1126
        %1173 = vmatprep.subr.bf16.mxu0 %v1130
        %1174 = vmatpush1.bf16.msra.mxu0 %v1129
        %1175 = vmatprep.subr.bf16.mxu0 %v1133
        %1176 = vmatpush1.bf16.msra.mxu0 %v1132
        %1177 = vmatprep.subr.bf16.mxu0 %v1136
        %1178 = vmatpush1.bf16.msra.mxu0 %v1135
        %1179 = vmatprep.subr.bf16.mxu0 %v1139
        %1180 = vmatpush1.bf16.msra.mxu0 %v1138
        %1181 = vmatprep.subr.bf16.mxu0 0
        %1182 = vmatpush1.bf16.msra.mxu0 0
        %1183 = vmatprep.subr.bf16.mxu0 0
        %1184 = vmatpush1.bf16.msra.mxu0 0
        %1185 = vmatprep.subr.bf16.mxu0 0
        %1186 = vmatpush1.bf16.msra.mxu0 0
        %1187 = vmatprep.subr.bf16.mxu0 0
        %1188 = vmatpush1.bf16.msra.mxu0 0
        %1189 = vmatprep.subr.bf16.mxu0 0
        %1190 = vmatpush1.bf16.msra.mxu0 0
        %1191 = vmatprep.subr.bf16.mxu0 0
        %1192 = vmatpush1.bf16.msra.mxu0 0
        %1193 = vmatprep.subr.bf16.mxu0 0
        %1194 = vmatpush1.bf16.msra.mxu0 0
        %1195 = vmatprep.subr.bf16.mxu0 0
        %1196 = vmatpush1.bf16.msra.mxu0 0
        %1197 = vmatprep.mubr.bf16.mxu0 0
        %1198 = vmatmul.mubr.bf16.gmra.mrb[0].mxu0 %v1004
        %v1199 = vpop.f32.mrb[0].mxu0
        %v1200 = vadd.f32 %v1025, %v1199
        %v1201 = vpop.f32.mrb[0].mxu0
        %v1202 = vadd.f32 %v1029, %v1201
        %v1203 = vpop.f32.mrb[0].mxu0
        %v1204 = vadd.f32 %v1025, %v1203
        %v1205 = vpop.f32.mrb[0].mxu0
        %v1206 = vadd.f32 %v1029, %v1205
        %1207 = vmatprep.mubr.bf16.mxu0 0
        %1208 = vmatmul.mubr.bf16.gmra.mrb[0].mxu0 %v1005
        %v1209 = vpop.f32.mrb[0].mxu0
        %v1210 = vadd.f32 %v1025, %v1209
        %v1211 = vpop.f32.mrb[0].mxu0
        %v1212 = vadd.f32 %v1029, %v1211
        %v1213 = vpop.f32.mrb[0].mxu0
        %v1214 = vadd.f32 %v1025, %v1213
        %v1215 = vpop.f32.mrb[0].mxu0
        %v1216 = vadd.f32 %v1029, %v1215
        %1217 = vmatprep.mubr.bf16.mxu0 0
        %1218 = vmatmul.mubr.bf16.gmra.mrb[0].mxu0 %v1006
        %v1219 = vpop.f32.mrb[0].mxu0
        %v1220 = vadd.f32 %v1025, %v1219
        %v1221 = vpop.f32.mrb[0].mxu0
        %v1222 = vadd.f32 %v1029, %v1221
        %v1223 = vpop.f32.mrb[0].mxu0
        %v1224 = vadd.f32 %v1025, %v1223
        %v1225 = vpop.f32.mrb[0].mxu0
        %v1226 = vadd.f32 %v1029, %v1225
        %1227 = vmatprep.mubr.bf16.mxu0 0
        %1228 = vmatmul.mubr.bf16.gmra.mrb[0].mxu0 %v1007
        %v1229 = vpop.f32.mrb[0].mxu0
        %v1230 = vadd.f32 %v1025, %v1229
        %v1231 = vpop.f32.mrb[0].mxu0
        %v1232 = vadd.f32 %v1029, %v1231
        %v1233 = vpop.f32.mrb[0].mxu0
        %v1234 = vadd.f32 %v1025, %v1233
        %v1235 = vpop.f32.mrb[0].mxu0
        %v1236 = vadd.f32 %v1029, %v1235
        %1237 = vmatprep.mubr.bf16.mxu0 0
        %1238 = vmatmul.mubr.bf16.gmra.mrb[0].mxu0 %v1008
        %v1239 = vpop.f32.mrb[0].mxu0
        %v1240 = vadd.f32 %v1025, %v1239
        %v1241 = vpop.f32.mrb[0].mxu0
        %v1242 = vadd.f32 %v1029, %v1241
        %v1243 = vpop.f32.mrb[0].mxu0
        %v1244 = vadd.f32 %v1025, %v1243
        %v1245 = vpop.f32.mrb[0].mxu0
        %v1246 = vadd.f32 %v1029, %v1245
        %1247 = vmatprep.mubr.bf16.mxu0 0
        %1248 = vmatmul.mubr.bf16.gmra.mrb[0].mxu0 %v1009
        %v1249 = vpop.f32.mrb[0].mxu0
        %v1250 = vadd.f32 %v1025, %v1249
        %v1251 = vpop.f32.mrb[0].mxu0
        %v1252 = vadd.f32 %v1029, %v1251
        %v1253 = vpop.f32.mrb[0].mxu0
        %v1254 = vadd.f32 %v1025, %v1253
        %v1255 = vpop.f32.mrb[0].mxu0
        %v1256 = vadd.f32 %v1029, %v1255
        %1257 = vmatprep.mubr.bf16.mxu0 0
        %1258 = vmatmul.mubr.bf16.gmra.mrb[0].mxu0 %v1010
        %v1259 = vpop.f32.mrb[0].mxu0
        %v1260 = vadd.f32 %v1025, %v1259
        %v1261 = vpop.f32.mrb[0].mxu0
        %v1262 = vadd.f32 %v1029, %v1261
        %v1263 = vpop.f32.mrb[0].mxu0
        %v1264 = vadd.f32 %v1025, %v1263
        %v1265 = vpop.f32.mrb[0].mxu0
        %v1266 = vadd.f32 %v1029, %v1265
        %1267 = vmatprep.mubr.bf16.mxu0 0
        %1268 = vmatmul.mubr.bf16.gmra.mrb[0].mxu0 %v1011
        %v1269 = vpop.f32.mrb[0].mxu0
        %v1270 = vadd.f32 %v1025, %v1269
        %v1271 = vpop.f32.mrb[0].mxu0
        %v1272 = vadd.f32 %v1029, %v1271
        %v1273 = vpop.f32.mrb[0].mxu0
        %v1274 = vadd.f32 %v1025, %v1273
        %v1275 = vpop.f32.mrb[0].mxu0
        %v1276 = vadd.f32 %v1029, %v1275
        %1277 = vmatprep.mubr.bf16.mxu0 0
        %1278 = vmatmul.mubr.bf16.gmra.mrb[0].mxu0 %v1012
        %v1279 = vpop.f32.mrb[0].mxu0
        %v1280 = vadd.f32 %v1025, %v1279
        %v1281 = vpop.f32.mrb[0].mxu0
        %v1282 = vadd.f32 %v1029, %v1281
        %v1283 = vpop.f32.mrb[0].mxu0
        %v1284 = vadd.f32 %v1025, %v1283
        %v1285 = vpop.f32.mrb[0].mxu0
        %v1286 = vadd.f32 %v1029, %v1285
        %1287 = vmatprep.mubr.bf16.mxu0 0
        %1288 = vmatmul.mubr.bf16.gmra.mrb[0].mxu0 %v1013
        %v1289 = vpop.f32.mrb[0].mxu0
        %v1290 = vadd.f32 %v1025, %v1289
        %v1291 = vpop.f32.mrb[0].mxu0
        %v1292 = vadd.f32 %v1029, %v1291
        %v1293 = vpop.f32.mrb[0].mxu0
        %v1294 = vadd.f32 %v1025, %v1293
        %v1295 = vpop.f32.mrb[0].mxu0
        %v1296 = vadd.f32 %v1029, %v1295
        %1297 = vmatprep.mubr.bf16.mxu0 0
        %1298 = vmatmul.mubr.bf16.gmra.mrb[0].mxu0 %v1014
        %v1299 = vpop.f32.mrb[0].mxu0
        %v1300 = vadd.f32 %v1025, %v1299
        %v1301 = vpop.f32.mrb[0].mxu0
        %v1302 = vadd.f32 %v1029, %v1301
        %v1303 = vpop.f32.mrb[0].mxu0
        %v1304 = vadd.f32 %v1025, %v1303
        %v1305 = vpop.f32.mrb[0].mxu0
        %v1306 = vadd.f32 %v1029, %v1305
        %1307 = vmatprep.mubr.bf16.mxu0 0
        %1308 = vmatmul.mubr.bf16.gmra.mrb[0].mxu0 %v1015
        %v1309 = vpop.f32.mrb[0].mxu0
        %v1310 = vadd.f32 %v1025, %v1309
        %v1311 = vpop.f32.mrb[0].mxu0
        %v1312 = vadd.f32 %v1029, %v1311
        %v1313 = vpop.f32.mrb[0].mxu0
        %v1314 = vadd.f32 %v1025, %v1313
        %v1315 = vpop.f32.mrb[0].mxu0
        %v1316 = vadd.f32 %v1029, %v1315
        %1317 = vmatprep.mubr.bf16.mxu0 0
        %1318 = vmatmul.mubr.bf16.gmra.mrb[0].mxu0 %v1016
        %v1319 = vpop.f32.mrb[0].mxu0
        %v1320 = vadd.f32 %v1025, %v1319
        %v1321 = vpop.f32.mrb[0].mxu0
        %v1322 = vadd.f32 %v1029, %v1321
        %v1323 = vpop.f32.mrb[0].mxu0
        %v1324 = vadd.f32 %v1025, %v1323
        %v1325 = vpop.f32.mrb[0].mxu0
        %v1326 = vadd.f32 %v1029, %v1325
        %1327 = vmatprep.mubr.bf16.mxu0 0
        %1328 = vmatmul.mubr.bf16.gmra.mrb[0].mxu0 %v1017
        %v1329 = vpop.f32.mrb[0].mxu0
        %v1330 = vadd.f32 %v1025, %v1329
        %v1331 = vpop.f32.mrb[0].mxu0
        %v1332 = vadd.f32 %v1029, %v1331
        %v1333 = vpop.f32.mrb[0].mxu0
        %v1334 = vadd.f32 %v1025, %v1333
        %v1335 = vpop.f32.mrb[0].mxu0
        %v1336 = vadd.f32 %v1029, %v1335
        %1337 = vmatprep.mubr.bf16.mxu0 0
        %1338 = vmatmul.mubr.bf16.gmra.mrb[0].mxu0 %v1018
        %v1339 = vpop.f32.mrb[0].mxu0
        %v1340 = vadd.f32 %v1025, %v1339
        %v1341 = vpop.f32.mrb[0].mxu0
        %v1342 = vadd.f32 %v1029, %v1341
        %v1343 = vpop.f32.mrb[0].mxu0
        %v1344 = vadd.f32 %v1025, %v1343
        %v1345 = vpop.f32.mrb[0].mxu0
        %v1346 = vadd.f32 %v1029, %v1345
        %1347 = vmatprep.mubr.bf16.mxu0 0
        %1348 = vmatmul.mubr.bf16.gmra.mrb[0].mxu0 %v1019
        %v1349 = vpop.f32.mrb[0].mxu0
        %v1350 = vadd.f32 %v1025, %v1349
        %v1351 = vpop.f32.mrb[0].mxu0
        %v1352 = vadd.f32 %v1029, %v1351
        %v1353 = vpop.f32.mrb[0].mxu0
        %v1354 = vadd.f32 %v1025, %v1353
        %v1355 = vpop.f32.mrb[0].mxu0
        %v1356 = vadd.f32 %v1029, %v1355
        %1357 = vdwg.mxu0
        %1358 = vmatprep.subr.bf16.mxu0 0
        %1359 = vmatpush1.bf16.msra.mxu0 %v1119
        %1360 = vmatprep.subr.bf16.mxu0 0
        %1361 = vmatpush1.bf16.msra.mxu0 %v1122
        %1362 = vmatprep.subr.bf16.mxu0 0
        %1363 = vmatpush1.bf16.msra.mxu0 %v1125
        %1364 = vmatprep.subr.bf16.mxu0 0
        %1365 = vmatpush1.bf16.msra.mxu0 %v1128
        %1366 = vmatprep.subr.bf16.mxu0 0
        %1367 = vmatpush1.bf16.msra.mxu0 %v1131
        %1368 = vmatprep.subr.bf16.mxu0 0
        %1369 = vmatpush1.bf16.msra.mxu0 %v1134
        %1370 = vmatprep.subr.bf16.mxu0 0
        %1371 = vmatpush1.bf16.msra.mxu0 %v1137
        %1372 = vmatprep.subr.bf16.mxu0 0
        %1373 = vmatpush1.bf16.msra.mxu0 %v1140
        %1374 = vmatprep.subr.bf16.mxu0 0
        %1375 = vmatpush1.bf16.msra.mxu0 0
        %1376 = vmatprep.subr.bf16.mxu0 0
        %1377 = vmatpush1.bf16.msra.mxu0 0
        %1378 = vmatprep.subr.bf16.mxu0 0
        %1379 = vmatpush1.bf16.msra.mxu0 0
        %1380 = vmatprep.subr.bf16.mxu0 0
        %1381 = vmatpush1.bf16.msra.mxu0 0
        %1382 = vmatprep.subr.bf16.mxu0 0
        %1383 = vmatpush1.bf16.msra.mxu0 0
        %1384 = vmatprep.subr.bf16.mxu0 0
        %1385 = vmatpush1.bf16.msra.mxu0 0
        %1386 = vmatprep.subr.bf16.mxu0 0
        %1387 = vmatpush1.bf16.msra.mxu0 0
        %1388 = vmatprep.subr.bf16.mxu0 0
        %1389 = vmatpush1.bf16.msra.mxu0 0
        %1390 = vmatprep.mubr.bf16.mxu0 0
        %1391 = vmatmul.mubr.bf16.gmra.mrb[0].mxu0 %v1004
        %v1392 = vpop.f32.mrb[0].mxu0
        %v1393 = vadd.f32 %v1033, %v1392
        %v1394 = vpop.f32.mrb[0].mxu0
        %v1395 = vpop.f32.mrb[0].mxu0
        %v1396 = vadd.f32 %v1033, %v1395
        %v1397 = vpop.f32.mrb[0].mxu0
        %1398 = vmatprep.mubr.bf16.mxu0 0
        %1399 = vmatmul.mubr.bf16.gmra.mrb[0].mxu0 %v1005
        %v1400 = vpop.f32.mrb[0].mxu0
        %v1401 = vadd.f32 %v1033, %v1400
        %v1402 = vpop.f32.mrb[0].mxu0
        %v1403 = vpop.f32.mrb[0].mxu0
        %v1404 = vadd.f32 %v1033, %v1403
        %v1405 = vpop.f32.mrb[0].mxu0
        %1406 = vmatprep.mubr.bf16.mxu0 0
        %1407 = vmatmul.mubr.bf16.gmra.mrb[0].mxu0 %v1006
        %v1408 = vpop.f32.mrb[0].mxu0
        %v1409 = vadd.f32 %v1033, %v1408
        %v1410 = vpop.f32.mrb[0].mxu0
        %v1411 = vpop.f32.mrb[0].mxu0
        %v1412 = vadd.f32 %v1033, %v1411
        %v1413 = vpop.f32.mrb[0].mxu0
        %1414 = vmatprep.mubr.bf16.mxu0 0
        %1415 = vmatmul.mubr.bf16.gmra.mrb[0].mxu0 %v1007
        %v1416 = vpop.f32.mrb[0].mxu0
        %v1417 = vadd.f32 %v1033, %v1416
        %v1418 = vpop.f32.mrb[0].mxu0
        %v1419 = vpop.f32.mrb[0].mxu0
        %v1420 = vadd.f32 %v1033, %v1419
        %v1421 = vpop.f32.mrb[0].mxu0
        %1422 = vmatprep.mubr.bf16.mxu0 0
        %1423 = vmatmul.mubr.bf16.gmra.mrb[0].mxu0 %v1008
        %v1424 = vpop.f32.mrb[0].mxu0
        %v1425 = vadd.f32 %v1033, %v1424
        %v1426 = vpop.f32.mrb[0].mxu0
        %v1427 = vpop.f32.mrb[0].mxu0
        %v1428 = vadd.f32 %v1033, %v1427
        %v1429 = vpop.f32.mrb[0].mxu0
        %1430 = vmatprep.mubr.bf16.mxu0 0
        %1431 = vmatmul.mubr.bf16.gmra.mrb[0].mxu0 %v1009
        %v1432 = vpop.f32.mrb[0].mxu0
        %v1433 = vadd.f32 %v1033, %v1432
        %v1434 = vpop.f32.mrb[0].mxu0
        %v1435 = vpop.f32.mrb[0].mxu0
        %v1436 = vadd.f32 %v1033, %v1435
        %v1437 = vpop.f32.mrb[0].mxu0
        %1438 = vmatprep.mubr.bf16.mxu0 0
        %1439 = vmatmul.mubr.bf16.gmra.mrb[0].mxu0 %v1010
        %v1440 = vpop.f32.mrb[0].mxu0
        %v1441 = vadd.f32 %v1033, %v1440
        %v1442 = vpop.f32.mrb[0].mxu0
        %v1443 = vpop.f32.mrb[0].mxu0
        %v1444 = vadd.f32 %v1033, %v1443
        %v1445 = vpop.f32.mrb[0].mxu0
        %1446 = vmatprep.mubr.bf16.mxu0 0
        %1447 = vmatmul.mubr.bf16.gmra.mrb[0].mxu0 %v1011
        %v1448 = vpop.f32.mrb[0].mxu0
        %v1449 = vadd.f32 %v1033, %v1448
        %v1450 = vpop.f32.mrb[0].mxu0
        %v1451 = vpop.f32.mrb[0].mxu0
        %v1452 = vadd.f32 %v1033, %v1451
        %v1453 = vpop.f32.mrb[0].mxu0
        %1454 = vmatprep.mubr.bf16.mxu0 0
        %1455 = vmatmul.mubr.bf16.gmra.mrb[0].mxu0 %v1012
        %v1456 = vpop.f32.mrb[0].mxu0
        %v1457 = vadd.f32 %v1033, %v1456
        %v1458 = vpop.f32.mrb[0].mxu0
        %v1459 = vpop.f32.mrb[0].mxu0
        %v1460 = vadd.f32 %v1033, %v1459
        %v1461 = vpop.f32.mrb[0].mxu0
        %1462 = vmatprep.mubr.bf16.mxu0 0
        %1463 = vmatmul.mubr.bf16.gmra.mrb[0].mxu0 %v1013
        %v1464 = vpop.f32.mrb[0].mxu0
        %v1465 = vadd.f32 %v1033, %v1464
        %v1466 = vpop.f32.mrb[0].mxu0
        %v1467 = vpop.f32.mrb[0].mxu0
        %v1468 = vadd.f32 %v1033, %v1467
        %v1469 = vpop.f32.mrb[0].mxu0
        %1470 = vmatprep.mubr.bf16.mxu0 0
        %1471 = vmatmul.mubr.bf16.gmra.mrb[0].mxu0 %v1014
        %v1472 = vpop.f32.mrb[0].mxu0
        %v1473 = vadd.f32 %v1033, %v1472
        %v1474 = vpop.f32.mrb[0].mxu0
        %v1475 = vpop.f32.mrb[0].mxu0
        %v1476 = vadd.f32 %v1033, %v1475
        %v1477 = vpop.f32.mrb[0].mxu0
        %1478 = vmatprep.mubr.bf16.mxu0 0
        %1479 = vmatmul.mubr.bf16.gmra.mrb[0].mxu0 %v1015
        %v1480 = vpop.f32.mrb[0].mxu0
        %v1481 = vadd.f32 %v1033, %v1480
        %v1482 = vpop.f32.mrb[0].mxu0
        %v1483 = vpop.f32.mrb[0].mxu0
        %v1484 = vadd.f32 %v1033, %v1483
        %v1485 = vpop.f32.mrb[0].mxu0
        %1486 = vmatprep.mubr.bf16.mxu0 0
        %1487 = vmatmul.mubr.bf16.gmra.mrb[0].mxu0 %v1016
        %v1488 = vpop.f32.mrb[0].mxu0
        %v1489 = vadd.f32 %v1033, %v1488
        %v1490 = vpop.f32.mrb[0].mxu0
        %v1491 = vpop.f32.mrb[0].mxu0
        %v1492 = vadd.f32 %v1033, %v1491
        %v1493 = vpop.f32.mrb[0].mxu0
        %1494 = vmatprep.mubr.bf16.mxu0 0
        %1495 = vmatmul.mubr.bf16.gmra.mrb[0].mxu0 %v1017
        %v1496 = vpop.f32.mrb[0].mxu0
        %v1497 = vadd.f32 %v1033, %v1496
        %v1498 = vpop.f32.mrb[0].mxu0
        %v1499 = vpop.f32.mrb[0].mxu0
        %v1500 = vadd.f32 %v1033, %v1499
        %v1501 = vpop.f32.mrb[0].mxu0
        %1502 = vmatprep.mubr.bf16.mxu0 0
        %1503 = vmatmul.mubr.bf16.gmra.mrb[0].mxu0 %v1018
        %v1504 = vpop.f32.mrb[0].mxu0
        %v1505 = vadd.f32 %v1033, %v1504
        %v1506 = vpop.f32.mrb[0].mxu0
        %v1507 = vpop.f32.mrb[0].mxu0
        %v1508 = vadd.f32 %v1033, %v1507
        %v1509 = vpop.f32.mrb[0].mxu0
        %1510 = vmatprep.mubr.bf16.mxu0 0
        %1511 = vmatmul.mubr.bf16.gmra.mrb[0].mxu0 %v1019
        %v1512 = vpop.f32.mrb[0].mxu0
        %v1513 = vadd.f32 %v1033, %v1512
        %v1514 = vpop.f32.mrb[0].mxu0
        %v1515 = vpop.f32.mrb[0].mxu0
        %v1516 = vadd.f32 %v1033, %v1515
        %v1517 = vpop.f32.mrb[0].mxu0
        %1518 = vdwg.mxu0
        %v1519 = vmul.f32 %v1200, %v1202
        %v1520 = vmul.f32 %v1204, %v1206
        %v1521 = vmul.f32 %v1210, %v1212
        %v1522 = vmul.f32 %v1214, %v1216
        %v1523 = vmul.f32 %v1220, %v1222
        %v1524 = vmul.f32 %v1224, %v1226
        %v1525 = vmul.f32 %v1230, %v1232
        %v1526 = vmul.f32 %v1234, %v1236
        %v1527 = vmul.f32 %v1240, %v1242
        %v1528 = vmul.f32 %v1244, %v1246
        %v1529 = vmul.f32 %v1250, %v1252
        %v1530 = vmul.f32 %v1254, %v1256
        %v1531 = vmul.f32 %v1260, %v1262
        %v1532 = vmul.f32 %v1264, %v1266
        %v1533 = vmul.f32 %v1270, %v1272
        %v1534 = vmul.f32 %v1274, %v1276
        %v1535 = vmul.f32 %v1280, %v1282
        %v1536 = vmul.f32 %v1284, %v1286
        %v1537 = vmul.f32 %v1290, %v1292
        %v1538 = vmul.f32 %v1294, %v1296
        %v1539 = vmul.f32 %v1300, %v1302
        %v1540 = vmul.f32 %v1304, %v1306
        %v1541 = vmul.f32 %v1310, %v1312
        %v1542 = vmul.f32 %v1314, %v1316
        %v1543 = vmul.f32 %v1320, %v1322
        %v1544 = vmul.f32 %v1324, %v1326
        %v1545 = vmul.f32 %v1330, %v1332
        %v1546 = vmul.f32 %v1334, %v1336
        %v1547 = vmul.f32 %v1340, %v1342
        %v1548 = vmul.f32 %v1344, %v1346
        %v1549 = vmul.f32 %v1350, %v1352
        %v1550 = vmul.f32 %v1354, %v1356
        %v1551 = vld [vmem:[%s4] sm:$0xf]
        %v1552 = vld [vmem:[%s4 + $0x4] sm:$0xf]
        %v1553 = vld [vmem:[%s4 + $0x8] sm:$0xf]
        %v1554 = vld [vmem:[%s4 + $0xc] sm:$0xf]
        %v1555 = vld [vmem:[%s4 + $0x10] sm:$0xf]
        %v1556 = vld [vmem:[%s4 + $0x14] sm:$0xf]
        %v1557 = vld [vmem:[%s4 + $0x18] sm:$0xf]
        %v1558 = vld [vmem:[%s4 + $0x1c] sm:$0xf]
        %v1559 = vld [vmem:[%s4 + $0x20] sm:$0xf]
        %v1560 = vld [vmem:[%s4 + $0x24] sm:$0xf]
        %v1561 = vld [vmem:[%s4 + $0x28] sm:$0xf]
        %v1562 = vld [vmem:[%s4 + $0x2c] sm:$0xf]
        %v1563 = vld [vmem:[%s4 + $0x30] sm:$0xf]
        %v1564 = vld [vmem:[%s4 + $0x34] sm:$0xf]
        %v1565 = vld [vmem:[%s4 + $0x38] sm:$0xf]
        %v1566 = vld [vmem:[%s4 + $0x3c] sm:$0xf]
        %v1567 = vpack.c.bf16 %v1520, %v1519
        %v1568 = vpack.c.bf16 %v1522, %v1521
        %v1569 = vpack.c.bf16 %v1524, %v1523
        %v1570 = vpack.c.bf16 %v1526, %v1525
        %v1571 = vpack.c.bf16 %v1528, %v1527
        %v1572 = vpack.c.bf16 %v1530, %v1529
        %v1573 = vpack.c.bf16 %v1532, %v1531
        %v1574 = vpack.c.bf16 %v1534, %v1533
        %v1575 = vpack.c.bf16 %v1536, %v1535
        %v1576 = vpack.c.bf16 %v1538, %v1537
        %v1577 = vpack.c.bf16 %v1540, %v1539
        %v1578 = vpack.c.bf16 %v1542, %v1541
        %v1579 = vpack.c.bf16 %v1544, %v1543
        %v1580 = vpack.c.bf16 %v1546, %v1545
        %v1581 = vpack.c.bf16 %v1548, %v1547
        %v1582 = vpack.c.bf16 %v1550, %v1549
        %v1599 = vunpack.c.l.b16 %v1551
        %v1600 = vunpack.c.l.b16 %v1552
        %v1601 = vunpack.c.l.b16 %v1553
        %v1602 = vunpack.c.l.b16 %v1554
        %v1603 = vunpack.c.l.b16 %v1555
        %v1604 = vunpack.c.l.b16 %v1556
        %v1605 = vunpack.c.l.b16 %v1557
        %v1606 = vunpack.c.l.b16 %v1558
        %v1607 = vunpack.c.l.b16 %v1559
        %v1608 = vunpack.c.l.b16 %v1560
        %v1609 = vunpack.c.l.b16 %v1561
        %v1610 = vunpack.c.l.b16 %v1562
        %v1611 = vunpack.c.l.b16 %v1563
        %v1612 = vunpack.c.l.b16 %v1564
        %v1613 = vunpack.c.l.b16 %v1565
        %v1614 = vunpack.c.l.b16 %v1566
        %v1615 = vpack.c.b16 %v1600, %v1599
        %v1616 = vpack.c.b16 %v1602, %v1601
        %v1617 = vpack.c.b16 %v1604, %v1603
        %v1618 = vpack.c.b16 %v1606, %v1605
        %v1619 = vpack.c.b16 %v1608, %v1607
        %v1620 = vpack.c.b16 %v1610, %v1609
        %v1621 = vpack.c.b16 %v1612, %v1611
        %v1622 = vpack.c.b16 %v1614, %v1613
        %1631 = vmatprep.subr.bf16.mxu0 0
        %1632 = vmatpush1.bf16.msra.mxu0 %v1615
        %1633 = vmatprep.subr.bf16.mxu0 0
        %1634 = vmatpush1.bf16.msra.mxu0 %v1616
        %1635 = vmatprep.subr.bf16.mxu0 0
        %1636 = vmatpush1.bf16.msra.mxu0 %v1617
        %1637 = vmatprep.subr.bf16.mxu0 0
        %1638 = vmatpush1.bf16.msra.mxu0 %v1618
        %1639 = vmatprep.subr.bf16.mxu0 0
        %1640 = vmatpush1.bf16.msra.mxu0 %v1619
        %1641 = vmatprep.subr.bf16.mxu0 0
        %1642 = vmatpush1.bf16.msra.mxu0 %v1620
        %1643 = vmatprep.subr.bf16.mxu0 0
        %1644 = vmatpush1.bf16.msra.mxu0 %v1621
        %1645 = vmatprep.subr.bf16.mxu0 0
        %1646 = vmatpush1.bf16.msra.mxu0 %v1622
        %1647 = vmatprep.subr.bf16.mxu0 0
        %1648 = vmatpush1.bf16.msra.mxu0 0
        %1649 = vmatprep.subr.bf16.mxu0 0
        %1650 = vmatpush1.bf16.msra.mxu0 0
        %1651 = vmatprep.subr.bf16.mxu0 0
        %1652 = vmatpush1.bf16.msra.mxu0 0
        %1653 = vmatprep.subr.bf16.mxu0 0
        %1654 = vmatpush1.bf16.msra.mxu0 0
        %1655 = vmatprep.subr.bf16.mxu0 0
        %1656 = vmatpush1.bf16.msra.mxu0 0
        %1657 = vmatprep.subr.bf16.mxu0 0
        %1658 = vmatpush1.bf16.msra.mxu0 0
        %1659 = vmatprep.subr.bf16.mxu0 0
        %1660 = vmatpush1.bf16.msra.mxu0 0
        %1661 = vmatprep.subr.bf16.mxu0 0
        %1662 = vmatpush1.bf16.msra.mxu0 0
        %1663 = vmatprep.mubr.bf16.mxu0 0
        %1664 = vmatmul.mubr.bf16.gmra.mrb[0].mxu0 %v1567
        %v1665 = vpop.f32.mrb[0].mxu0
        %v1666 = vadd.f32 0.0, %v1665
        %v1667 = vpop.f32.mrb[0].mxu0
        %v1668 = vpop.f32.mrb[0].mxu0
        %v1669 = vadd.f32 0.0, %v1668
        %v1670 = vpop.f32.mrb[0].mxu0
        %1671 = vmatprep.mubr.bf16.mxu0 0
        %1672 = vmatmul.mubr.bf16.gmra.mrb[0].mxu0 %v1568
        %v1673 = vpop.f32.mrb[0].mxu0
        %v1674 = vadd.f32 0.0, %v1673
        %v1675 = vpop.f32.mrb[0].mxu0
        %v1676 = vpop.f32.mrb[0].mxu0
        %v1677 = vadd.f32 0.0, %v1676
        %v1678 = vpop.f32.mrb[0].mxu0
        %1679 = vmatprep.mubr.bf16.mxu0 0
        %1680 = vmatmul.mubr.bf16.gmra.mrb[0].mxu0 %v1569
        %v1681 = vpop.f32.mrb[0].mxu0
        %v1682 = vadd.f32 0.0, %v1681
        %v1683 = vpop.f32.mrb[0].mxu0
        %v1684 = vpop.f32.mrb[0].mxu0
        %v1685 = vadd.f32 0.0, %v1684
        %v1686 = vpop.f32.mrb[0].mxu0
        %1687 = vmatprep.mubr.bf16.mxu0 0
        %1688 = vmatmul.mubr.bf16.gmra.mrb[0].mxu0 %v1570
        %v1689 = vpop.f32.mrb[0].mxu0
        %v1690 = vadd.f32 0.0, %v1689
        %v1691 = vpop.f32.mrb[0].mxu0
        %v1692 = vpop.f32.mrb[0].mxu0
        %v1693 = vadd.f32 0.0, %v1692
        %v1694 = vpop.f32.mrb[0].mxu0
        %1695 = vmatprep.mubr.bf16.mxu0 0
        %1696 = vmatmul.mubr.bf16.gmra.mrb[0].mxu0 %v1571
        %v1697 = vpop.f32.mrb[0].mxu0
        %v1698 = vadd.f32 0.0, %v1697
        %v1699 = vpop.f32.mrb[0].mxu0
        %v1700 = vpop.f32.mrb[0].mxu0
        %v1701 = vadd.f32 0.0, %v1700
        %v1702 = vpop.f32.mrb[0].mxu0
        %1703 = vmatprep.mubr.bf16.mxu0 0
        %1704 = vmatmul.mubr.bf16.gmra.mrb[0].mxu0 %v1572
        %v1705 = vpop.f32.mrb[0].mxu0
        %v1706 = vadd.f32 0.0, %v1705
        %v1707 = vpop.f32.mrb[0].mxu0
        %v1708 = vpop.f32.mrb[0].mxu0
        %v1709 = vadd.f32 0.0, %v1708
        %v1710 = vpop.f32.mrb[0].mxu0
        %1711 = vmatprep.mubr.bf16.mxu0 0
        %1712 = vmatmul.mubr.bf16.gmra.mrb[0].mxu0 %v1573
        %v1713 = vpop.f32.mrb[0].mxu0
        %v1714 = vadd.f32 0.0, %v1713
        %v1715 = vpop.f32.mrb[0].mxu0
        %v1716 = vpop.f32.mrb[0].mxu0
        %v1717 = vadd.f32 0.0, %v1716
        %v1718 = vpop.f32.mrb[0].mxu0
        %1719 = vmatprep.mubr.bf16.mxu0 0
        %1720 = vmatmul.mubr.bf16.gmra.mrb[0].mxu0 %v1574
        %v1721 = vpop.f32.mrb[0].mxu0
        %v1722 = vadd.f32 0.0, %v1721
        %v1723 = vpop.f32.mrb[0].mxu0
        %v1724 = vpop.f32.mrb[0].mxu0
        %v1725 = vadd.f32 0.0, %v1724
        %v1726 = vpop.f32.mrb[0].mxu0
        %1727 = vmatprep.mubr.bf16.mxu0 0
        %1728 = vmatmul.mubr.bf16.gmra.mrb[0].mxu0 %v1575
        %v1729 = vpop.f32.mrb[0].mxu0
        %v1730 = vadd.f32 0.0, %v1729
        %v1731 = vpop.f32.mrb[0].mxu0
        %v1732 = vpop.f32.mrb[0].mxu0
        %v1733 = vadd.f32 0.0, %v1732
        %v1734 = vpop.f32.mrb[0].mxu0
        %1735 = vmatprep.mubr.bf16.mxu0 0
        %1736 = vmatmul.mubr.bf16.gmra.mrb[0].mxu0 %v1576
        %v1737 = vpop.f32.mrb[0].mxu0
        %v1738 = vadd.f32 0.0, %v1737
        %v1739 = vpop.f32.mrb[0].mxu0
        %v1740 = vpop.f32.mrb[0].mxu0
        %v1741 = vadd.f32 0.0, %v1740
        %v1742 = vpop.f32.mrb[0].mxu0
        %1743 = vmatprep.mubr.bf16.mxu0 0
        %1744 = vmatmul.mubr.bf16.gmra.mrb[0].mxu0 %v1577
        %v1745 = vpop.f32.mrb[0].mxu0
        %v1746 = vadd.f32 0.0, %v1745
        %v1747 = vpop.f32.mrb[0].mxu0
        %v1748 = vpop.f32.mrb[0].mxu0
        %v1749 = vadd.f32 0.0, %v1748
        %v1750 = vpop.f32.mrb[0].mxu0
        %1751 = vmatprep.mubr.bf16.mxu0 0
        %1752 = vmatmul.mubr.bf16.gmra.mrb[0].mxu0 %v1578
        %v1753 = vpop.f32.mrb[0].mxu0
        %v1754 = vadd.f32 0.0, %v1753
        %v1755 = vpop.f32.mrb[0].mxu0
        %v1756 = vpop.f32.mrb[0].mxu0
        %v1757 = vadd.f32 0.0, %v1756
        %v1758 = vpop.f32.mrb[0].mxu0
        %1759 = vmatprep.mubr.bf16.mxu0 0
        %1760 = vmatmul.mubr.bf16.gmra.mrb[0].mxu0 %v1579
        %v1761 = vpop.f32.mrb[0].mxu0
        %v1762 = vadd.f32 0.0, %v1761
        %v1763 = vpop.f32.mrb[0].mxu0
        %v1764 = vpop.f32.mrb[0].mxu0
        %v1765 = vadd.f32 0.0, %v1764
        %v1766 = vpop.f32.mrb[0].mxu0
        %1767 = vmatprep.mubr.bf16.mxu0 0
        %1768 = vmatmul.mubr.bf16.gmra.mrb[0].mxu0 %v1580
        %v1769 = vpop.f32.mrb[0].mxu0
        %v1770 = vadd.f32 0.0, %v1769
        %v1771 = vpop.f32.mrb[0].mxu0
        %v1772 = vpop.f32.mrb[0].mxu0
        %v1773 = vadd.f32 0.0, %v1772
        %v1774 = vpop.f32.mrb[0].mxu0
        %1775 = vmatprep.mubr.bf16.mxu0 0
        %1776 = vmatmul.mubr.bf16.gmra.mrb[0].mxu0 %v1581
        %v1777 = vpop.f32.mrb[0].mxu0
        %v1778 = vadd.f32 0.0, %v1777
        %v1779 = vpop.f32.mrb[0].mxu0
        %v1780 = vpop.f32.mrb[0].mxu0
        %v1781 = vadd.f32 0.0, %v1780
        %v1782 = vpop.f32.mrb[0].mxu0
        %1783 = vmatprep.mubr.bf16.mxu0 0
        %1784 = vmatmul.mubr.bf16.gmra.mrb[0].mxu0 %v1582
        %v1785 = vpop.f32.mrb[0].mxu0
        %v1786 = vadd.f32 0.0, %v1785
        %v1787 = vpop.f32.mrb[0].mxu0
        %v1788 = vpop.f32.mrb[0].mxu0
        %v1789 = vadd.f32 0.0, %v1788
        %v1790 = vpop.f32.mrb[0].mxu0
        %1791 = vdwg.mxu0
        %vm1792 = vcmask 130048
        %v1793 = vsel %vm1792, %v1666, -inf
        %1794 = vmax.xlane.f32.xlu0 %v1793
        %v1795 = vpop.xlane.xlu0 %1794
        %v1796 = vsel %vm1792, %v1669, -inf
        %1797 = vmax.xlane.f32.xlu0 %v1796
        %v1798 = vpop.xlane.xlu0 %1797
        %v1799 = vsel %vm1792, %v1674, -inf
        %1800 = vmax.xlane.f32.xlu0 %v1799
        %v1801 = vpop.xlane.xlu0 %1800
        %v1802 = vsel %vm1792, %v1677, -inf
        %1803 = vmax.xlane.f32.xlu0 %v1802
        %v1804 = vpop.xlane.xlu0 %1803
        %v1805 = vsel %vm1792, %v1682, -inf
        %1806 = vmax.xlane.f32.xlu0 %v1805
        %v1807 = vpop.xlane.xlu0 %1806
        %v1808 = vsel %vm1792, %v1685, -inf
        %1809 = vmax.xlane.f32.xlu0 %v1808
        %v1810 = vpop.xlane.xlu0 %1809
        %v1811 = vsel %vm1792, %v1690, -inf
        %1812 = vmax.xlane.f32.xlu0 %v1811
        %v1813 = vpop.xlane.xlu0 %1812
        %v1814 = vsel %vm1792, %v1693, -inf
        %1815 = vmax.xlane.f32.xlu0 %v1814
        %v1816 = vpop.xlane.xlu0 %1815
        %v1817 = vsel %vm1792, %v1698, -inf
        %1818 = vmax.xlane.f32.xlu0 %v1817
        %v1819 = vpop.xlane.xlu0 %1818
        %v1820 = vsel %vm1792, %v1701, -inf
        %1821 = vmax.xlane.f32.xlu0 %v1820
        %v1822 = vpop.xlane.xlu0 %1821
        %v1823 = vsel %vm1792, %v1706, -inf
        %1824 = vmax.xlane.f32.xlu0 %v1823
        %v1825 = vpop.xlane.xlu0 %1824
        %v1826 = vsel %vm1792, %v1709, -inf
        %1827 = vmax.xlane.f32.xlu0 %v1826
        %v1828 = vpop.xlane.xlu0 %1827
        %v1829 = vsel %vm1792, %v1714, -inf
        %1830 = vmax.xlane.f32.xlu0 %v1829
        %v1831 = vpop.xlane.xlu0 %1830
        %v1832 = vsel %vm1792, %v1717, -inf
        %1833 = vmax.xlane.f32.xlu0 %v1832
        %v1834 = vpop.xlane.xlu0 %1833
        %v1835 = vsel %vm1792, %v1722, -inf
        %1836 = vmax.xlane.f32.xlu0 %v1835
        %v1837 = vpop.xlane.xlu0 %1836
        %v1838 = vsel %vm1792, %v1725, -inf
        %1839 = vmax.xlane.f32.xlu0 %v1838
        %v1840 = vpop.xlane.xlu0 %1839
        %v1841 = vsel %vm1792, %v1730, -inf
        %1842 = vmax.xlane.f32.xlu0 %v1841
        %v1843 = vpop.xlane.xlu0 %1842
        %v1844 = vsel %vm1792, %v1733, -inf
        %1845 = vmax.xlane.f32.xlu0 %v1844
        %v1846 = vpop.xlane.xlu0 %1845
        %v1847 = vsel %vm1792, %v1738, -inf
        %1848 = vmax.xlane.f32.xlu0 %v1847
        %v1849 = vpop.xlane.xlu0 %1848
        %v1850 = vsel %vm1792, %v1741, -inf
        %1851 = vmax.xlane.f32.xlu0 %v1850
        %v1852 = vpop.xlane.xlu0 %1851
        %v1853 = vsel %vm1792, %v1746, -inf
        %1854 = vmax.xlane.f32.xlu0 %v1853
        %v1855 = vpop.xlane.xlu0 %1854
        %v1856 = vsel %vm1792, %v1749, -inf
        %1857 = vmax.xlane.f32.xlu0 %v1856
        %v1858 = vpop.xlane.xlu0 %1857
        %v1859 = vsel %vm1792, %v1754, -inf
        %1860 = vmax.xlane.f32.xlu0 %v1859
        %v1861 = vpop.xlane.xlu0 %1860
        %v1862 = vsel %vm1792, %v1757, -inf
        %1863 = vmax.xlane.f32.xlu0 %v1862
        %v1864 = vpop.xlane.xlu0 %1863
        %v1865 = vsel %vm1792, %v1762, -inf
        %1866 = vmax.xlane.f32.xlu0 %v1865
        %v1867 = vpop.xlane.xlu0 %1866
        %v1868 = vsel %vm1792, %v1765, -inf
        %1869 = vmax.xlane.f32.xlu0 %v1868
        %v1870 = vpop.xlane.xlu0 %1869
        %v1871 = vsel %vm1792, %v1770, -inf
        %1872 = vmax.xlane.f32.xlu0 %v1871
        %v1873 = vpop.xlane.xlu0 %1872
        %v1874 = vsel %vm1792, %v1773, -inf
        %1875 = vmax.xlane.f32.xlu0 %v1874
        %v1876 = vpop.xlane.xlu0 %1875
        %v1877 = vsel %vm1792, %v1778, -inf
        %1878 = vmax.xlane.f32.xlu0 %v1877
        %v1879 = vpop.xlane.xlu0 %1878
        %v1880 = vsel %vm1792, %v1781, -inf
        %1881 = vmax.xlane.f32.xlu0 %v1880
        %v1882 = vpop.xlane.xlu0 %1881
        %v1883 = vsel %vm1792, %v1786, -inf
        %1884 = vmax.xlane.f32.xlu0 %v1883
        %v1885 = vpop.xlane.xlu0 %1884
        %v1886 = vsel %vm1792, %v1789, -inf
        %1887 = vmax.xlane.f32.xlu0 %v1886
        %v1888 = vpop.xlane.xlu0 %1887
        %v1889 = vsub.f32 %v1666, %v1795
        %v1890 = vsub.f32 %v1669, %v1798
        %v1891 = vsub.f32 %v1674, %v1801
        %v1892 = vsub.f32 %v1677, %v1804
        %v1893 = vsub.f32 %v1682, %v1807
        %v1894 = vsub.f32 %v1685, %v1810
        %v1895 = vsub.f32 %v1690, %v1813
        %v1896 = vsub.f32 %v1693, %v1816
        %v1897 = vsub.f32 %v1698, %v1819
        %v1898 = vsub.f32 %v1701, %v1822
        %v1899 = vsub.f32 %v1706, %v1825
        %v1900 = vsub.f32 %v1709, %v1828
        %v1901 = vsub.f32 %v1714, %v1831
        %v1902 = vsub.f32 %v1717, %v1834
        %v1903 = vsub.f32 %v1722, %v1837
        %v1904 = vsub.f32 %v1725, %v1840
        %v1905 = vsub.f32 %v1730, %v1843
        %v1906 = vsub.f32 %v1733, %v1846
        %v1907 = vsub.f32 %v1738, %v1849
        %v1908 = vsub.f32 %v1741, %v1852
        %v1909 = vsub.f32 %v1746, %v1855
        %v1910 = vsub.f32 %v1749, %v1858
        %v1911 = vsub.f32 %v1754, %v1861
        %v1912 = vsub.f32 %v1757, %v1864
        %v1913 = vsub.f32 %v1762, %v1867
        %v1914 = vsub.f32 %v1765, %v1870
        %v1915 = vsub.f32 %v1770, %v1873
        %v1916 = vsub.f32 %v1773, %v1876
        %v1917 = vsub.f32 %v1778, %v1879
        %v1918 = vsub.f32 %v1781, %v1882
        %v1919 = vsub.f32 %v1786, %v1885
        %v1920 = vsub.f32 %v1789, %v1888
        %v1921 = vmul.f32 %v1889, 1.442695
        %v1922 = vpow.pop %v1921
        %v1923 = vmul.f32 %v1890, 1.442695
        %v1924 = vpow.pop %v1923
        %v1925 = vmul.f32 %v1891, 1.442695
        %v1926 = vpow.pop %v1925
        %v1927 = vmul.f32 %v1892, 1.442695
        %v1928 = vpow.pop %v1927
        %v1929 = vmul.f32 %v1893, 1.442695
        %v1930 = vpow.pop %v1929
        %v1931 = vmul.f32 %v1894, 1.442695
        %v1932 = vpow.pop %v1931
        %v1933 = vmul.f32 %v1895, 1.442695
        %v1934 = vpow.pop %v1933
        %v1935 = vmul.f32 %v1896, 1.442695
        %v1936 = vpow.pop %v1935
        %v1937 = vmul.f32 %v1897, 1.442695
        %v1938 = vpow.pop %v1937
        %v1939 = vmul.f32 %v1898, 1.442695
        %v1940 = vpow.pop %v1939
        %v1941 = vmul.f32 %v1899, 1.442695
        %v1942 = vpow.pop %v1941
        %v1943 = vmul.f32 %v1900, 1.442695
        %v1944 = vpow.pop %v1943
        %v1945 = vmul.f32 %v1901, 1.442695
        %v1946 = vpow.pop %v1945
        %v1947 = vmul.f32 %v1902, 1.442695
        %v1948 = vpow.pop %v1947
        %v1949 = vmul.f32 %v1903, 1.442695
        %v1950 = vpow.pop %v1949
        %v1951 = vmul.f32 %v1904, 1.442695
        %v1952 = vpow.pop %v1951
        %v1953 = vmul.f32 %v1905, 1.442695
        %v1954 = vpow.pop %v1953
        %v1955 = vmul.f32 %v1906, 1.442695
        %v1956 = vpow.pop %v1955
        %v1957 = vmul.f32 %v1907, 1.442695
        %v1958 = vpow.pop %v1957
        %v1959 = vmul.f32 %v1908, 1.442695
        %v1960 = vpow.pop %v1959
        %v1961 = vmul.f32 %v1909, 1.442695
        %v1962 = vpow.pop %v1961
        %v1963 = vmul.f32 %v1910, 1.442695
        %v1964 = vpow.pop %v1963
        %v1965 = vmul.f32 %v1911, 1.442695
        %v1966 = vpow.pop %v1965
        %v1967 = vmul.f32 %v1912, 1.442695
        %v1968 = vpow.pop %v1967
        %v1969 = vmul.f32 %v1913, 1.442695
        %v1970 = vpow.pop %v1969
        %v1971 = vmul.f32 %v1914, 1.442695
        %v1972 = vpow.pop %v1971
        %v1973 = vmul.f32 %v1915, 1.442695
        %v1974 = vpow.pop %v1973
        %v1975 = vmul.f32 %v1916, 1.442695
        %v1976 = vpow.pop %v1975
        %v1977 = vmul.f32 %v1917, 1.442695
        %v1978 = vpow.pop %v1977
        %v1979 = vmul.f32 %v1918, 1.442695
        %v1980 = vpow.pop %v1979
        %v1981 = vmul.f32 %v1919, 1.442695
        %v1982 = vpow.pop %v1981
        %v1983 = vmul.f32 %v1920, 1.442695
        %v1984 = vpow.pop %v1983
        %v1985 = vld [vmem:[%s5] sm:$0xff]
        %v1986 = vld [vmem:[%s5 + $0x8] sm:$0xff]
        %v1988 = vsel %vm1792, %v1922, 0
        %v1991 = vsel %vm1792, %v1924, 0
        %v1994 = vsel %vm1792, %v1926, 0
        %v1997 = vsel %vm1792, %v1928, 0
        %v2000 = vsel %vm1792, %v1930, 0
        %v2003 = vsel %vm1792, %v1932, 0
        %v2006 = vsel %vm1792, %v1934, 0
        %v2009 = vsel %vm1792, %v1936, 0
        %v2012 = vsel %vm1792, %v1938, 0
        %v2015 = vsel %vm1792, %v1940, 0
        %v2018 = vsel %vm1792, %v1942, 0
        %v2021 = vsel %vm1792, %v1944, 0
        %v2024 = vsel %vm1792, %v1946, 0
        %v2027 = vsel %vm1792, %v1948, 0
        %v2030 = vsel %vm1792, %v1950, 0
        %v2033 = vsel %vm1792, %v1952, 0
        %v2036 = vsel %vm1792, %v1954, 0
        %v2039 = vsel %vm1792, %v1956, 0
        %v2042 = vsel %vm1792, %v1958, 0
        %v2045 = vsel %vm1792, %v1960, 0
        %v2048 = vsel %vm1792, %v1962, 0
        %v2051 = vsel %vm1792, %v1964, 0
        %v2054 = vsel %vm1792, %v1966, 0
        %v2057 = vsel %vm1792, %v1968, 0
        %v2060 = vsel %vm1792, %v1970, 0
        %v2063 = vsel %vm1792, %v1972, 0
        %v2066 = vsel %vm1792, %v1974, 0
        %v2069 = vsel %vm1792, %v1976, 0
        %v2072 = vsel %vm1792, %v1978, 0
        %v2075 = vsel %vm1792, %v1980, 0
        %v2078 = vsel %vm1792, %v1982, 0
        %v2081 = vsel %vm1792, %v1984, 0
        %2083 = vmatprep.subr.mxu0 0.0
        %2084 = vmatpush1.msra.mxu0 %v1985
        %2085 = vmatprep.subr.mxu0 0.0
        %2086 = vmatpush1.msra.mxu0 %v1986
        %2087 = vmatprep.subr.mxu0 0.0
        %2088 = vmatpush1.msra.mxu0 0.0
        %2089 = vmatprep.subr.mxu0 0.0
        %2090 = vmatpush1.msra.mxu0 0.0
        %2091 = vmatprep.subr.mxu0 0.0
        %2092 = vmatpush1.msra.mxu0 0.0
        %2093 = vmatprep.subr.mxu0 0.0
        %2094 = vmatpush1.msra.mxu0 0.0
        %2095 = vmatprep.subr.mxu0 0.0
        %2096 = vmatpush1.msra.mxu0 0.0
        %2097 = vmatprep.subr.mxu0 0.0
        %2098 = vmatpush1.msra.mxu0 0.0
        %2099 = vmatprep.subr.mxu0 0.0
        %2100 = vmatpush1.msra.mxu0 0.0
        %2101 = vmatprep.subr.mxu0 0.0
        %2102 = vmatpush1.msra.mxu0 0.0
        %2103 = vmatprep.subr.mxu0 0.0
        %2104 = vmatpush1.msra.mxu0 0.0
        %2105 = vmatprep.subr.mxu0 0.0
        %2106 = vmatpush1.msra.mxu0 0.0
        %2107 = vmatprep.subr.mxu0 0.0
        %2108 = vmatpush1.msra.mxu0 0.0
        %2109 = vmatprep.subr.mxu0 0.0
        %2110 = vmatpush1.msra.mxu0 0.0
        %2111 = vmatprep.subr.mxu0 0.0
        %2112 = vmatpush1.msra.mxu0 0.0
        %2113 = vmatprep.subr.mxu0 0.0
        %2114 = vmatpush1.msra.mxu0 0.0
        %2115 = vmatprep.subr.mxu0 0.0
        %2116 = vmatpush1.msra.mxu0 0.0
        %2117 = vmatprep.subr.mxu0 0.0
        %2118 = vmatpush1.msra.mxu0 0.0
        %2119 = vmatprep.subr.mxu0 0.0
        %2120 = vmatpush1.msra.mxu0 0.0
        %2121 = vmatprep.subr.mxu0 0.0
        %2122 = vmatpush1.msra.mxu0 0.0
        %2123 = vmatprep.subr.mxu0 0.0
        %2124 = vmatpush1.msra.mxu0 0.0
        %2125 = vmatprep.subr.mxu0 0.0
        %2126 = vmatpush1.msra.mxu0 0.0
        %2127 = vmatprep.subr.mxu0 0.0
        %2128 = vmatpush1.msra.mxu0 0.0
        %2129 = vmatprep.subr.mxu0 0.0
        %2130 = vmatpush1.msra.mxu0 0.0
        %2131 = vmatprep.subr.mxu0 0.0
        %2132 = vmatpush1.msra.mxu0 0.0
        %2133 = vmatprep.subr.mxu0 0.0
        %2134 = vmatpush1.msra.mxu0 0.0
        %2135 = vmatprep.subr.mxu0 0.0
        %2136 = vmatpush1.msra.mxu0 0.0
        %2137 = vmatprep.subr.mxu0 0.0
        %2138 = vmatpush1.msra.mxu0 0.0
        %2139 = vmatprep.subr.mxu0 0.0
        %2140 = vmatpush1.msra.mxu0 0.0
        %2141 = vmatprep.subr.mxu0 0.0
        %2142 = vmatpush1.msra.mxu0 0.0
        %2143 = vmatprep.subr.mxu0 0.0
        %2144 = vmatpush1.msra.mxu0 0.0
        %2145 = vmatprep.subr.mxu0 0.0
        %2146 = vmatpush1.msra.mxu0 0.0
        %2147 = vmatprep.mubr.f32.mxu0 0.0
        %2148 = vmatmul.mubr.f32.gmra.mrb[0].mxu0 %v1988
        %v2149 = vpop.f32.mrb[0].mxu0
        %v2150 = vadd.f32 0.0, %v2149
        %v2151 = vpop.f32.mrb[0].mxu0
        %2152 = vmatprep.mubr.f32.mxu0 0.0
        %2153 = vmatmul.mubr.f32.gmra.mrb[0].mxu0 %v1991
        %v2154 = vpop.f32.mrb[0].mxu0
        %v2155 = vadd.f32 0.0, %v2154
        %v2156 = vpop.f32.mrb[0].mxu0
        %2157 = vmatprep.mubr.f32.mxu0 0.0
        %2158 = vmatmul.mubr.f32.gmra.mrb[0].mxu0 %v1994
        %v2159 = vpop.f32.mrb[0].mxu0
        %v2160 = vadd.f32 0.0, %v2159
        %v2161 = vpop.f32.mrb[0].mxu0
        %2162 = vmatprep.mubr.f32.mxu0 0.0
        %2163 = vmatmul.mubr.f32.gmra.mrb[0].mxu0 %v1997
        %v2164 = vpop.f32.mrb[0].mxu0
        %v2165 = vadd.f32 0.0, %v2164
        %v2166 = vpop.f32.mrb[0].mxu0
        %2167 = vmatprep.mubr.f32.mxu0 0.0
        %2168 = vmatmul.mubr.f32.gmra.mrb[0].mxu0 %v2000
        %v2169 = vpop.f32.mrb[0].mxu0
        %v2170 = vadd.f32 0.0, %v2169
        %v2171 = vpop.f32.mrb[0].mxu0
        %2172 = vmatprep.mubr.f32.mxu0 0.0
        %2173 = vmatmul.mubr.f32.gmra.mrb[0].mxu0 %v2003
        %v2174 = vpop.f32.mrb[0].mxu0
        %v2175 = vadd.f32 0.0, %v2174
        %v2176 = vpop.f32.mrb[0].mxu0
        %2177 = vmatprep.mubr.f32.mxu0 0.0
        %2178 = vmatmul.mubr.f32.gmra.mrb[0].mxu0 %v2006
        %v2179 = vpop.f32.mrb[0].mxu0
        %v2180 = vadd.f32 0.0, %v2179
        %v2181 = vpop.f32.mrb[0].mxu0
        %2182 = vmatprep.mubr.f32.mxu0 0.0
        %2183 = vmatmul.mubr.f32.gmra.mrb[0].mxu0 %v2009
        %v2184 = vpop.f32.mrb[0].mxu0
        %v2185 = vadd.f32 0.0, %v2184
        %v2186 = vpop.f32.mrb[0].mxu0
        %2187 = vmatprep.mubr.f32.mxu0 0.0
        %2188 = vmatmul.mubr.f32.gmra.mrb[0].mxu0 %v2012
        %v2189 = vpop.f32.mrb[0].mxu0
        %v2190 = vadd.f32 0.0, %v2189
        %v2191 = vpop.f32.mrb[0].mxu0
        %2192 = vmatprep.mubr.f32.mxu0 0.0
        %2193 = vmatmul.mubr.f32.gmra.mrb[0].mxu0 %v2015
        %v2194 = vpop.f32.mrb[0].mxu0
        %v2195 = vadd.f32 0.0, %v2194
        %v2196 = vpop.f32.mrb[0].mxu0
        %2197 = vmatprep.mubr.f32.mxu0 0.0
        %2198 = vmatmul.mubr.f32.gmra.mrb[0].mxu0 %v2018
        %v2199 = vpop.f32.mrb[0].mxu0
        %v2200 = vadd.f32 0.0, %v2199
        %v2201 = vpop.f32.mrb[0].mxu0
        %2202 = vmatprep.mubr.f32.mxu0 0.0
        %2203 = vmatmul.mubr.f32.gmra.mrb[0].mxu0 %v2021
        %v2204 = vpop.f32.mrb[0].mxu0
        %v2205 = vadd.f32 0.0, %v2204
        %v2206 = vpop.f32.mrb[0].mxu0
        %2207 = vmatprep.mubr.f32.mxu0 0.0
        %2208 = vmatmul.mubr.f32.gmra.mrb[0].mxu0 %v2024
        %v2209 = vpop.f32.mrb[0].mxu0
        %v2210 = vadd.f32 0.0, %v2209
        %v2211 = vpop.f32.mrb[0].mxu0
        %2212 = vmatprep.mubr.f32.mxu0 0.0
        %2213 = vmatmul.mubr.f32.gmra.mrb[0].mxu0 %v2027
        %v2214 = vpop.f32.mrb[0].mxu0
        %v2215 = vadd.f32 0.0, %v2214
        %v2216 = vpop.f32.mrb[0].mxu0
        %2217 = vmatprep.mubr.f32.mxu0 0.0
        %2218 = vmatmul.mubr.f32.gmra.mrb[0].mxu0 %v2030
        %v2219 = vpop.f32.mrb[0].mxu0
        %v2220 = vadd.f32 0.0, %v2219
        %v2221 = vpop.f32.mrb[0].mxu0
        %2222 = vmatprep.mubr.f32.mxu0 0.0
        %2223 = vmatmul.mubr.f32.gmra.mrb[0].mxu0 %v2033
        %v2224 = vpop.f32.mrb[0].mxu0
        %v2225 = vadd.f32 0.0, %v2224
        %v2226 = vpop.f32.mrb[0].mxu0
        %2227 = vmatprep.mubr.f32.mxu0 0.0
        %2228 = vmatmul.mubr.f32.gmra.mrb[0].mxu0 %v2036
        %v2229 = vpop.f32.mrb[0].mxu0
        %v2230 = vadd.f32 0.0, %v2229
        %v2231 = vpop.f32.mrb[0].mxu0
        %2232 = vmatprep.mubr.f32.mxu0 0.0
        %2233 = vmatmul.mubr.f32.gmra.mrb[0].mxu0 %v2039
        %v2234 = vpop.f32.mrb[0].mxu0
        %v2235 = vadd.f32 0.0, %v2234
        %v2236 = vpop.f32.mrb[0].mxu0
        %2237 = vmatprep.mubr.f32.mxu0 0.0
        %2238 = vmatmul.mubr.f32.gmra.mrb[0].mxu0 %v2042
        %v2239 = vpop.f32.mrb[0].mxu0
        %v2240 = vadd.f32 0.0, %v2239
        %v2241 = vpop.f32.mrb[0].mxu0
        %2242 = vmatprep.mubr.f32.mxu0 0.0
        %2243 = vmatmul.mubr.f32.gmra.mrb[0].mxu0 %v2045
        %v2244 = vpop.f32.mrb[0].mxu0
        %v2245 = vadd.f32 0.0, %v2244
        %v2246 = vpop.f32.mrb[0].mxu0
        %2247 = vmatprep.mubr.f32.mxu0 0.0
        %2248 = vmatmul.mubr.f32.gmra.mrb[0].mxu0 %v2048
        %v2249 = vpop.f32.mrb[0].mxu0
        %v2250 = vadd.f32 0.0, %v2249
        %v2251 = vpop.f32.mrb[0].mxu0
        %2252 = vmatprep.mubr.f32.mxu0 0.0
        %2253 = vmatmul.mubr.f32.gmra.mrb[0].mxu0 %v2051
        %v2254 = vpop.f32.mrb[0].mxu0
        %v2255 = vadd.f32 0.0, %v2254
        %v2256 = vpop.f32.mrb[0].mxu0
        %2257 = vmatprep.mubr.f32.mxu0 0.0
        %2258 = vmatmul.mubr.f32.gmra.mrb[0].mxu0 %v2054
        %v2259 = vpop.f32.mrb[0].mxu0
        %v2260 = vadd.f32 0.0, %v2259
        %v2261 = vpop.f32.mrb[0].mxu0
        %2262 = vmatprep.mubr.f32.mxu0 0.0
        %2263 = vmatmul.mubr.f32.gmra.mrb[0].mxu0 %v2057
        %v2264 = vpop.f32.mrb[0].mxu0
        %v2265 = vadd.f32 0.0, %v2264
        %v2266 = vpop.f32.mrb[0].mxu0
        %2267 = vmatprep.mubr.f32.mxu0 0.0
        %2268 = vmatmul.mubr.f32.gmra.mrb[0].mxu0 %v2060
        %v2269 = vpop.f32.mrb[0].mxu0
        %v2270 = vadd.f32 0.0, %v2269
        %v2271 = vpop.f32.mrb[0].mxu0
        %2272 = vmatprep.mubr.f32.mxu0 0.0
        %2273 = vmatmul.mubr.f32.gmra.mrb[0].mxu0 %v2063
        %v2274 = vpop.f32.mrb[0].mxu0
        %v2275 = vadd.f32 0.0, %v2274
        %v2276 = vpop.f32.mrb[0].mxu0
        %2277 = vmatprep.mubr.f32.mxu0 0.0
        %2278 = vmatmul.mubr.f32.gmra.mrb[0].mxu0 %v2066
        %v2279 = vpop.f32.mrb[0].mxu0
        %v2280 = vadd.f32 0.0, %v2279
        %v2281 = vpop.f32.mrb[0].mxu0
        %2282 = vmatprep.mubr.f32.mxu0 0.0
        %2283 = vmatmul.mubr.f32.gmra.mrb[0].mxu0 %v2069
        %v2284 = vpop.f32.mrb[0].mxu0
        %v2285 = vadd.f32 0.0, %v2284
        %v2286 = vpop.f32.mrb[0].mxu0
        %2287 = vmatprep.mubr.f32.mxu0 0.0
        %2288 = vmatmul.mubr.f32.gmra.mrb[0].mxu0 %v2072
        %v2289 = vpop.f32.mrb[0].mxu0
        %v2290 = vadd.f32 0.0, %v2289
        %v2291 = vpop.f32.mrb[0].mxu0
        %2292 = vmatprep.mubr.f32.mxu0 0.0
        %2293 = vmatmul.mubr.f32.gmra.mrb[0].mxu0 %v2075
        %v2294 = vpop.f32.mrb[0].mxu0
        %v2295 = vadd.f32 0.0, %v2294
        %v2296 = vpop.f32.mrb[0].mxu0
        %2297 = vmatprep.mubr.f32.mxu0 0.0
        %2298 = vmatmul.mubr.f32.gmra.mrb[0].mxu0 %v2078
        %v2299 = vpop.f32.mrb[0].mxu0
        %v2300 = vadd.f32 0.0, %v2299
        %v2301 = vpop.f32.mrb[0].mxu0
        %2302 = vmatprep.mubr.f32.mxu0 0.0
        %2303 = vmatmul.mubr.f32.gmra.mrb[0].mxu0 %v2081
        %v2304 = vpop.f32.mrb[0].mxu0
        %v2305 = vadd.f32 0.0, %v2304
        %v2306 = vpop.f32.mrb[0].mxu0
        %2307 = vdwg.mxu0
        %v2308 = vrcp.pop %v2150
        %v2309 = vrcp.pop %v2155
        %v2310 = vrcp.pop %v2160
        %v2311 = vrcp.pop %v2165
        %v2312 = vrcp.pop %v2170
        %v2313 = vrcp.pop %v2175
        %v2314 = vrcp.pop %v2180
        %v2315 = vrcp.pop %v2185
        %v2316 = vrcp.pop %v2190
        %v2317 = vrcp.pop %v2195
        %v2318 = vrcp.pop %v2200
        %v2319 = vrcp.pop %v2205
        %v2320 = vrcp.pop %v2210
        %v2321 = vrcp.pop %v2215
        %v2322 = vrcp.pop %v2220
        %v2323 = vrcp.pop %v2225
        %v2324 = vrcp.pop %v2230
        %v2325 = vrcp.pop %v2235
        %v2326 = vrcp.pop %v2240
        %v2327 = vrcp.pop %v2245
        %v2328 = vrcp.pop %v2250
        %v2329 = vrcp.pop %v2255
        %v2330 = vrcp.pop %v2260
        %v2331 = vrcp.pop %v2265
        %v2332 = vrcp.pop %v2270
        %v2333 = vrcp.pop %v2275
        %v2334 = vrcp.pop %v2280
        %v2335 = vrcp.pop %v2285
        %v2336 = vrcp.pop %v2290
        %v2337 = vrcp.pop %v2295
        %v2338 = vrcp.pop %v2300
        %v2339 = vrcp.pop %v2305
        %v2340 = vmul.f32 %v1922, %v2308
        %v2341 = vmul.f32 %v1924, %v2309
        %v2342 = vmul.f32 %v1926, %v2310
        %v2343 = vmul.f32 %v1928, %v2311
        %v2344 = vmul.f32 %v1930, %v2312
        %v2345 = vmul.f32 %v1932, %v2313
        %v2346 = vmul.f32 %v1934, %v2314
        %v2347 = vmul.f32 %v1936, %v2315
        %v2348 = vmul.f32 %v1938, %v2316
        %v2349 = vmul.f32 %v1940, %v2317
        %v2350 = vmul.f32 %v1942, %v2318
        %v2351 = vmul.f32 %v1944, %v2319
        %v2352 = vmul.f32 %v1946, %v2320
        %v2353 = vmul.f32 %v1948, %v2321
        %v2354 = vmul.f32 %v1950, %v2322
        %v2355 = vmul.f32 %v1952, %v2323
        %v2356 = vmul.f32 %v1954, %v2324
        %v2357 = vmul.f32 %v1956, %v2325
        %v2358 = vmul.f32 %v1958, %v2326
        %v2359 = vmul.f32 %v1960, %v2327
        %v2360 = vmul.f32 %v1962, %v2328
        %v2361 = vmul.f32 %v1964, %v2329
        %v2362 = vmul.f32 %v1966, %v2330
        %v2363 = vmul.f32 %v1968, %v2331
        %v2364 = vmul.f32 %v1970, %v2332
        %v2365 = vmul.f32 %v1972, %v2333
        %v2366 = vmul.f32 %v1974, %v2334
        %v2367 = vmul.f32 %v1976, %v2335
        %v2368 = vmul.f32 %v1978, %v2336
        %v2369 = vmul.f32 %v1980, %v2337
        %v2370 = vmul.f32 %v1982, %v2338
        %v2371 = vmul.f32 %v1984, %v2339
        %v2372 = vld [vmem:[%s6] sm:$0xf]
        %v2373 = vld [vmem:[%s6 + $0x4] sm:$0xf]
        %v2374 = vpack.c.bf16 %v2341, %v2340
        %v2375 = vpack.c.bf16 %v2343, %v2342
        %v2376 = vpack.c.bf16 %v2345, %v2344
        %v2377 = vpack.c.bf16 %v2347, %v2346
        %v2378 = vpack.c.bf16 %v2349, %v2348
        %v2379 = vpack.c.bf16 %v2351, %v2350
        %v2380 = vpack.c.bf16 %v2353, %v2352
        %v2381 = vpack.c.bf16 %v2355, %v2354
        %v2382 = vpack.c.bf16 %v2357, %v2356
        %v2383 = vpack.c.bf16 %v2359, %v2358
        %v2384 = vpack.c.bf16 %v2361, %v2360
        %v2385 = vpack.c.bf16 %v2363, %v2362
        %v2386 = vpack.c.bf16 %v2365, %v2364
        %v2387 = vpack.c.bf16 %v2367, %v2366
        %v2388 = vpack.c.bf16 %v2369, %v2368
        %v2389 = vpack.c.bf16 %v2371, %v2370
        %v2392 = vunpack.c.l.b16 %v2372
        %v2393 = vunpack.c.l.b16 %v2373
        %v2394 = vpack.c.b16 %v2393, %v2392
        %v2397 = vsel %vm1792, %v2374, 0
        %v2400 = vsel %vm1792, %v2375, 0
        %v2403 = vsel %vm1792, %v2376, 0
        %v2406 = vsel %vm1792, %v2377, 0
        %v2409 = vsel %vm1792, %v2378, 0
        %v2412 = vsel %vm1792, %v2379, 0
        %v2415 = vsel %vm1792, %v2380, 0
        %v2418 = vsel %vm1792, %v2381, 0
        %v2421 = vsel %vm1792, %v2382, 0
        %v2424 = vsel %vm1792, %v2383, 0
        %v2427 = vsel %vm1792, %v2384, 0
        %v2430 = vsel %vm1792, %v2385, 0
        %v2433 = vsel %vm1792, %v2386, 0
        %v2436 = vsel %vm1792, %v2387, 0
        %v2439 = vsel %vm1792, %v2388, 0
        %v2442 = vsel %vm1792, %v2389, 0
        %2444 = vmatprep.subr.bf16.mxu0 0
        %2445 = vmatpush1.bf16.msra.mxu0 %v2394
        %2446 = vmatprep.subr.bf16.mxu0 0
        %2447 = vmatpush1.bf16.msra.mxu0 0
        %2448 = vmatprep.subr.bf16.mxu0 0
        %2449 = vmatpush1.bf16.msra.mxu0 0
        %2450 = vmatprep.subr.bf16.mxu0 0
        %2451 = vmatpush1.bf16.msra.mxu0 0
        %2452 = vmatprep.subr.bf16.mxu0 0
        %2453 = vmatpush1.bf16.msra.mxu0 0
        %2454 = vmatprep.subr.bf16.mxu0 0
        %2455 = vmatpush1.bf16.msra.mxu0 0
        %2456 = vmatprep.subr.bf16.mxu0 0
        %2457 = vmatpush1.bf16.msra.mxu0 0
        %2458 = vmatprep.subr.bf16.mxu0 0
        %2459 = vmatpush1.bf16.msra.mxu0 0
        %2460 = vmatprep.subr.bf16.mxu0 0
        %2461 = vmatpush1.bf16.msra.mxu0 0
        %2462 = vmatprep.subr.bf16.mxu0 0
        %2463 = vmatpush1.bf16.msra.mxu0 0
        %2464 = vmatprep.subr.bf16.mxu0 0
        %2465 = vmatpush1.bf16.msra.mxu0 0
        %2466 = vmatprep.subr.bf16.mxu0 0
        %2467 = vmatpush1.bf16.msra.mxu0 0
        %2468 = vmatprep.subr.bf16.mxu0 0
        %2469 = vmatpush1.bf16.msra.mxu0 0
        %2470 = vmatprep.subr.bf16.mxu0 0
        %2471 = vmatpush1.bf16.msra.mxu0 0
        %2472 = vmatprep.subr.bf16.mxu0 0
        %2473 = vmatpush1.bf16.msra.mxu0 0
        %2474 = vmatprep.subr.bf16.mxu0 0
        %2475 = vmatpush1.bf16.msra.mxu0 0
        %2476 = vmatprep.mubr.bf16.mxu0 0
        %2477 = vmatmul.mubr.bf16.gmra.mrb[0].mxu0 %v2397
        %v2478 = vpop.f32.mrb[0].mxu0
        %v2479 = vadd.f32 0.0, %v2478
        %v2480 = vpop.f32.mrb[0].mxu0
        %v2481 = vpop.f32.mrb[0].mxu0
        %v2482 = vadd.f32 0.0, %v2481
        %v2483 = vpop.f32.mrb[0].mxu0
        %2484 = vmatprep.mubr.bf16.mxu0 0
        %2485 = vmatmul.mubr.bf16.gmra.mrb[0].mxu0 %v2400
        %v2486 = vpop.f32.mrb[0].mxu0
        %v2487 = vadd.f32 0.0, %v2486
        %v2488 = vpop.f32.mrb[0].mxu0
        %v2489 = vpop.f32.mrb[0].mxu0
        %v2490 = vadd.f32 0.0, %v2489
        %v2491 = vpop.f32.mrb[0].mxu0
        %2492 = vmatprep.mubr.bf16.mxu0 0
        %2493 = vmatmul.mubr.bf16.gmra.mrb[0].mxu0 %v2403
        %v2494 = vpop.f32.mrb[0].mxu0
        %v2495 = vadd.f32 0.0, %v2494
        %v2496 = vpop.f32.mrb[0].mxu0
        %v2497 = vpop.f32.mrb[0].mxu0
        %v2498 = vadd.f32 0.0, %v2497
        %v2499 = vpop.f32.mrb[0].mxu0
        %2500 = vmatprep.mubr.bf16.mxu0 0
        %2501 = vmatmul.mubr.bf16.gmra.mrb[0].mxu0 %v2406
        %v2502 = vpop.f32.mrb[0].mxu0
        %v2503 = vadd.f32 0.0, %v2502
        %v2504 = vpop.f32.mrb[0].mxu0
        %v2505 = vpop.f32.mrb[0].mxu0
        %v2506 = vadd.f32 0.0, %v2505
        %v2507 = vpop.f32.mrb[0].mxu0
        %2508 = vmatprep.mubr.bf16.mxu0 0
        %2509 = vmatmul.mubr.bf16.gmra.mrb[0].mxu0 %v2409
        %v2510 = vpop.f32.mrb[0].mxu0
        %v2511 = vadd.f32 0.0, %v2510
        %v2512 = vpop.f32.mrb[0].mxu0
        %v2513 = vpop.f32.mrb[0].mxu0
        %v2514 = vadd.f32 0.0, %v2513
        %v2515 = vpop.f32.mrb[0].mxu0
        %2516 = vmatprep.mubr.bf16.mxu0 0
        %2517 = vmatmul.mubr.bf16.gmra.mrb[0].mxu0 %v2412
        %v2518 = vpop.f32.mrb[0].mxu0
        %v2519 = vadd.f32 0.0, %v2518
        %v2520 = vpop.f32.mrb[0].mxu0
        %v2521 = vpop.f32.mrb[0].mxu0
        %v2522 = vadd.f32 0.0, %v2521
        %v2523 = vpop.f32.mrb[0].mxu0
        %2524 = vmatprep.mubr.bf16.mxu0 0
        %2525 = vmatmul.mubr.bf16.gmra.mrb[0].mxu0 %v2415
        %v2526 = vpop.f32.mrb[0].mxu0
        %v2527 = vadd.f32 0.0, %v2526
        %v2528 = vpop.f32.mrb[0].mxu0
        %v2529 = vpop.f32.mrb[0].mxu0
        %v2530 = vadd.f32 0.0, %v2529
        %v2531 = vpop.f32.mrb[0].mxu0
        %2532 = vmatprep.mubr.bf16.mxu0 0
        %2533 = vmatmul.mubr.bf16.gmra.mrb[0].mxu0 %v2418
        %v2534 = vpop.f32.mrb[0].mxu0
        %v2535 = vadd.f32 0.0, %v2534
        %v2536 = vpop.f32.mrb[0].mxu0
        %v2537 = vpop.f32.mrb[0].mxu0
        %v2538 = vadd.f32 0.0, %v2537
        %v2539 = vpop.f32.mrb[0].mxu0
        %2540 = vmatprep.mubr.bf16.mxu0 0
        %2541 = vmatmul.mubr.bf16.gmra.mrb[0].mxu0 %v2421
        %v2542 = vpop.f32.mrb[0].mxu0
        %v2543 = vadd.f32 0.0, %v2542
        %v2544 = vpop.f32.mrb[0].mxu0
        %v2545 = vpop.f32.mrb[0].mxu0
        %v2546 = vadd.f32 0.0, %v2545
        %v2547 = vpop.f32.mrb[0].mxu0
        %2548 = vmatprep.mubr.bf16.mxu0 0
        %2549 = vmatmul.mubr.bf16.gmra.mrb[0].mxu0 %v2424
        %v2550 = vpop.f32.mrb[0].mxu0
        %v2551 = vadd.f32 0.0, %v2550
        %v2552 = vpop.f32.mrb[0].mxu0
        %v2553 = vpop.f32.mrb[0].mxu0
        %v2554 = vadd.f32 0.0, %v2553
        %v2555 = vpop.f32.mrb[0].mxu0
        %2556 = vmatprep.mubr.bf16.mxu0 0
        %2557 = vmatmul.mubr.bf16.gmra.mrb[0].mxu0 %v2427
        %v2558 = vpop.f32.mrb[0].mxu0
        %v2559 = vadd.f32 0.0, %v2558
        %v2560 = vpop.f32.mrb[0].mxu0
        %v2561 = vpop.f32.mrb[0].mxu0
        %v2562 = vadd.f32 0.0, %v2561
        %v2563 = vpop.f32.mrb[0].mxu0
        %2564 = vmatprep.mubr.bf16.mxu0 0
        %2565 = vmatmul.mubr.bf16.gmra.mrb[0].mxu0 %v2430
        %v2566 = vpop.f32.mrb[0].mxu0
        %v2567 = vadd.f32 0.0, %v2566
        %v2568 = vpop.f32.mrb[0].mxu0
        %v2569 = vpop.f32.mrb[0].mxu0
        %v2570 = vadd.f32 0.0, %v2569
        %v2571 = vpop.f32.mrb[0].mxu0
        %2572 = vmatprep.mubr.bf16.mxu0 0
        %2573 = vmatmul.mubr.bf16.gmra.mrb[0].mxu0 %v2433
        %v2574 = vpop.f32.mrb[0].mxu0
        %v2575 = vadd.f32 0.0, %v2574
        %v2576 = vpop.f32.mrb[0].mxu0
        %v2577 = vpop.f32.mrb[0].mxu0
        %v2578 = vadd.f32 0.0, %v2577
        %v2579 = vpop.f32.mrb[0].mxu0
        %2580 = vmatprep.mubr.bf16.mxu0 0
        %2581 = vmatmul.mubr.bf16.gmra.mrb[0].mxu0 %v2436
        %v2582 = vpop.f32.mrb[0].mxu0
        %v2583 = vadd.f32 0.0, %v2582
        %v2584 = vpop.f32.mrb[0].mxu0
        %v2585 = vpop.f32.mrb[0].mxu0
        %v2586 = vadd.f32 0.0, %v2585
        %v2587 = vpop.f32.mrb[0].mxu0
        %2588 = vmatprep.mubr.bf16.mxu0 0
        %2589 = vmatmul.mubr.bf16.gmra.mrb[0].mxu0 %v2439
        %v2590 = vpop.f32.mrb[0].mxu0
        %v2591 = vadd.f32 0.0, %v2590
        %v2592 = vpop.f32.mrb[0].mxu0
        %v2593 = vpop.f32.mrb[0].mxu0
        %v2594 = vadd.f32 0.0, %v2593
        %v2595 = vpop.f32.mrb[0].mxu0
        %2596 = vmatprep.mubr.bf16.mxu0 0
        %2597 = vmatmul.mubr.bf16.gmra.mrb[0].mxu0 %v2442
        %v2598 = vpop.f32.mrb[0].mxu0
        %v2599 = vadd.f32 0.0, %v2598
        %v2600 = vpop.f32.mrb[0].mxu0
        %v2601 = vpop.f32.mrb[0].mxu0
        %v2602 = vadd.f32 0.0, %v2601
        %v2603 = vpop.f32.mrb[0].mxu0
        %2604 = vdwg.mxu0
        %v2605 = vmul.f32 %v2479, %v1393
        %v2606 = vmul.f32 %v2482, %v1396
        %v2607 = vmul.f32 %v2487, %v1401
        %v2608 = vmul.f32 %v2490, %v1404
        %v2609 = vmul.f32 %v2495, %v1409
        %v2610 = vmul.f32 %v2498, %v1412
        %v2611 = vmul.f32 %v2503, %v1417
        %v2612 = vmul.f32 %v2506, %v1420
        %v2613 = vmul.f32 %v2511, %v1425
        %v2614 = vmul.f32 %v2514, %v1428
        %v2615 = vmul.f32 %v2519, %v1433
        %v2616 = vmul.f32 %v2522, %v1436
        %v2617 = vmul.f32 %v2527, %v1441
        %v2618 = vmul.f32 %v2530, %v1444
        %v2619 = vmul.f32 %v2535, %v1449
        %v2620 = vmul.f32 %v2538, %v1452
        %v2621 = vmul.f32 %v2543, %v1457
        %v2622 = vmul.f32 %v2546, %v1460
        %v2623 = vmul.f32 %v2551, %v1465
        %v2624 = vmul.f32 %v2554, %v1468
        %v2625 = vmul.f32 %v2559, %v1473
        %v2626 = vmul.f32 %v2562, %v1476
        %v2627 = vmul.f32 %v2567, %v1481
        %v2628 = vmul.f32 %v2570, %v1484
        %v2629 = vmul.f32 %v2575, %v1489
        %v2630 = vmul.f32 %v2578, %v1492
        %v2631 = vmul.f32 %v2583, %v1497
        %v2632 = vmul.f32 %v2586, %v1500
        %v2633 = vmul.f32 %v2591, %v1505
        %v2634 = vmul.f32 %v2594, %v1508
        %v2635 = vmul.f32 %v2599, %v1513
        %v2636 = vmul.f32 %v2602, %v1516
        %v2637 = vld [vmem:[%s7] sm:$0xf]
        %v2638 = vld [vmem:[%s7 + $0x4] sm:$0xf]
        %v2639 = vld [vmem:[%s7 + $0x8] sm:$0xf]
        %v2640 = vld [vmem:[%s7 + $0xc] sm:$0xf]
        %v2641 = vld [vmem:[%s7 + $0x10] sm:$0xf]
        %v2642 = vld [vmem:[%s7 + $0x14] sm:$0xf]
        %v2643 = vld [vmem:[%s7 + $0x18] sm:$0xf]
        %v2644 = vld [vmem:[%s7 + $0x1c] sm:$0xf]
        %v2645 = vld [vmem:[%s7 + $0x20] sm:$0xf]
        %v2646 = vld [vmem:[%s7 + $0x24] sm:$0xf]
        %v2647 = vld [vmem:[%s7 + $0x28] sm:$0xf]
        %v2648 = vld [vmem:[%s7 + $0x2c] sm:$0xf]
        %v2649 = vld [vmem:[%s7 + $0x30] sm:$0xf]
        %v2650 = vld [vmem:[%s7 + $0x34] sm:$0xf]
        %v2651 = vld [vmem:[%s7 + $0x38] sm:$0xf]
        %v2652 = vld [vmem:[%s7 + $0x3c] sm:$0xf]
        %v2653 = vpack.c.bf16 %v2606, %v2605
        %v2654 = vpack.c.bf16 %v2608, %v2607
        %v2655 = vpack.c.bf16 %v2610, %v2609
        %v2656 = vpack.c.bf16 %v2612, %v2611
        %v2657 = vpack.c.bf16 %v2614, %v2613
        %v2658 = vpack.c.bf16 %v2616, %v2615
        %v2659 = vpack.c.bf16 %v2618, %v2617
        %v2660 = vpack.c.bf16 %v2620, %v2619
        %v2661 = vpack.c.bf16 %v2622, %v2621
        %v2662 = vpack.c.bf16 %v2624, %v2623
        %v2663 = vpack.c.bf16 %v2626, %v2625
        %v2664 = vpack.c.bf16 %v2628, %v2627
        %v2665 = vpack.c.bf16 %v2630, %v2629
        %v2666 = vpack.c.bf16 %v2632, %v2631
        %v2667 = vpack.c.bf16 %v2634, %v2633
        %v2668 = vpack.c.bf16 %v2636, %v2635
        %v2685 = vunpack.c.l.b16 %v2637
        %v2686 = vunpack.c.l.b16 %v2638
        %v2687 = vunpack.c.l.b16 %v2639
        %v2688 = vunpack.c.l.b16 %v2640
        %v2689 = vunpack.c.l.b16 %v2641
        %v2690 = vunpack.c.l.b16 %v2642
        %v2691 = vunpack.c.l.b16 %v2643
        %v2692 = vunpack.c.l.b16 %v2644
        %v2693 = vunpack.c.l.b16 %v2645
        %v2694 = vunpack.c.l.b16 %v2646
        %v2695 = vunpack.c.l.b16 %v2647
        %v2696 = vunpack.c.l.b16 %v2648
        %v2697 = vunpack.c.l.b16 %v2649
        %v2698 = vunpack.c.l.b16 %v2650
        %v2699 = vunpack.c.l.b16 %v2651
        %v2700 = vunpack.c.l.b16 %v2652
        %v2701 = vpack.c.b16 %v2686, %v2685
        %v2702 = vpack.c.b16 %v2688, %v2687
        %v2703 = vpack.c.b16 %v2690, %v2689
        %v2704 = vpack.c.b16 %v2692, %v2691
        %v2705 = vpack.c.b16 %v2694, %v2693
        %v2706 = vpack.c.b16 %v2696, %v2695
        %v2707 = vpack.c.b16 %v2698, %v2697
        %v2708 = vpack.c.b16 %v2700, %v2699
        %2717 = vmatprep.subr.bf16.mxu0 0
        %2718 = vmatpush1.bf16.msra.mxu0 %v2701
        %2719 = vmatprep.subr.bf16.mxu0 0
        %2720 = vmatpush1.bf16.msra.mxu0 %v2702
        %2721 = vmatprep.subr.bf16.mxu0 0
        %2722 = vmatpush1.bf16.msra.mxu0 %v2703
        %2723 = vmatprep.subr.bf16.mxu0 0
        %2724 = vmatpush1.bf16.msra.mxu0 %v2704
        %2725 = vmatprep.subr.bf16.mxu0 0
        %2726 = vmatpush1.bf16.msra.mxu0 %v2705
        %2727 = vmatprep.subr.bf16.mxu0 0
        %2728 = vmatpush1.bf16.msra.mxu0 %v2706
        %2729 = vmatprep.subr.bf16.mxu0 0
        %2730 = vmatpush1.bf16.msra.mxu0 %v2707
        %2731 = vmatprep.subr.bf16.mxu0 0
        %2732 = vmatpush1.bf16.msra.mxu0 %v2708
        %2733 = vmatprep.subr.bf16.mxu0 0
        %2734 = vmatpush1.bf16.msra.mxu0 0
        %2735 = vmatprep.subr.bf16.mxu0 0
        %2736 = vmatpush1.bf16.msra.mxu0 0
        %2737 = vmatprep.subr.bf16.mxu0 0
        %2738 = vmatpush1.bf16.msra.mxu0 0
        %2739 = vmatprep.subr.bf16.mxu0 0
        %2740 = vmatpush1.bf16.msra.mxu0 0
        %2741 = vmatprep.subr.bf16.mxu0 0
        %2742 = vmatpush1.bf16.msra.mxu0 0
        %2743 = vmatprep.subr.bf16.mxu0 0
        %2744 = vmatpush1.bf16.msra.mxu0 0
        %2745 = vmatprep.subr.bf16.mxu0 0
        %2746 = vmatpush1.bf16.msra.mxu0 0
        %2747 = vmatprep.subr.bf16.mxu0 0
        %2748 = vmatpush1.bf16.msra.mxu0 0
        %2749 = vmatprep.mubr.bf16.mxu0 0
        %2750 = vmatmul.mubr.bf16.gmra.mrb[0].mxu0 %v2653
        %v2751 = vpop.f32.mrb[0].mxu0
        %v2752 = vadd.f32 0.0, %v2751
        %v2753 = vpop.f32.mrb[0].mxu0
        %v2754 = vpop.f32.mrb[0].mxu0
        %v2755 = vadd.f32 0.0, %v2754
        %v2756 = vpop.f32.mrb[0].mxu0
        %2757 = vmatprep.mubr.bf16.mxu0 0
        %2758 = vmatmul.mubr.bf16.gmra.mrb[0].mxu0 %v2654
        %v2759 = vpop.f32.mrb[0].mxu0
        %v2760 = vadd.f32 0.0, %v2759
        %v2761 = vpop.f32.mrb[0].mxu0
        %v2762 = vpop.f32.mrb[0].mxu0
        %v2763 = vadd.f32 0.0, %v2762
        %v2764 = vpop.f32.mrb[0].mxu0
        %2765 = vmatprep.mubr.bf16.mxu0 0
        %2766 = vmatmul.mubr.bf16.gmra.mrb[0].mxu0 %v2655
        %v2767 = vpop.f32.mrb[0].mxu0
        %v2768 = vadd.f32 0.0, %v2767
        %v2769 = vpop.f32.mrb[0].mxu0
        %v2770 = vpop.f32.mrb[0].mxu0
        %v2771 = vadd.f32 0.0, %v2770
        %v2772 = vpop.f32.mrb[0].mxu0
        %2773 = vmatprep.mubr.bf16.mxu0 0
        %2774 = vmatmul.mubr.bf16.gmra.mrb[0].mxu0 %v2656
        %v2775 = vpop.f32.mrb[0].mxu0
        %v2776 = vadd.f32 0.0, %v2775
        %v2777 = vpop.f32.mrb[0].mxu0
        %v2778 = vpop.f32.mrb[0].mxu0
        %v2779 = vadd.f32 0.0, %v2778
        %v2780 = vpop.f32.mrb[0].mxu0
        %2781 = vmatprep.mubr.bf16.mxu0 0
        %2782 = vmatmul.mubr.bf16.gmra.mrb[0].mxu0 %v2657
        %v2783 = vpop.f32.mrb[0].mxu0
        %v2784 = vadd.f32 0.0, %v2783
        %v2785 = vpop.f32.mrb[0].mxu0
        %v2786 = vpop.f32.mrb[0].mxu0
        %v2787 = vadd.f32 0.0, %v2786
        %v2788 = vpop.f32.mrb[0].mxu0
        %2789 = vmatprep.mubr.bf16.mxu0 0
        %2790 = vmatmul.mubr.bf16.gmra.mrb[0].mxu0 %v2658
        %v2791 = vpop.f32.mrb[0].mxu0
        %v2792 = vadd.f32 0.0, %v2791
        %v2793 = vpop.f32.mrb[0].mxu0
        %v2794 = vpop.f32.mrb[0].mxu0
        %v2795 = vadd.f32 0.0, %v2794
        %v2796 = vpop.f32.mrb[0].mxu0
        %2797 = vmatprep.mubr.bf16.mxu0 0
        %2798 = vmatmul.mubr.bf16.gmra.mrb[0].mxu0 %v2659
        %v2799 = vpop.f32.mrb[0].mxu0
        %v2800 = vadd.f32 0.0, %v2799
        %v2801 = vpop.f32.mrb[0].mxu0
        %v2802 = vpop.f32.mrb[0].mxu0
        %v2803 = vadd.f32 0.0, %v2802
        %v2804 = vpop.f32.mrb[0].mxu0
        %2805 = vmatprep.mubr.bf16.mxu0 0
        %2806 = vmatmul.mubr.bf16.gmra.mrb[0].mxu0 %v2660
        %v2807 = vpop.f32.mrb[0].mxu0
        %v2808 = vadd.f32 0.0, %v2807
        %v2809 = vpop.f32.mrb[0].mxu0
        %v2810 = vpop.f32.mrb[0].mxu0
        %v2811 = vadd.f32 0.0, %v2810
        %v2812 = vpop.f32.mrb[0].mxu0
        %2813 = vmatprep.mubr.bf16.mxu0 0
        %2814 = vmatmul.mubr.bf16.gmra.mrb[0].mxu0 %v2661
        %v2815 = vpop.f32.mrb[0].mxu0
        %v2816 = vadd.f32 0.0, %v2815
        %v2817 = vpop.f32.mrb[0].mxu0
        %v2818 = vpop.f32.mrb[0].mxu0
        %v2819 = vadd.f32 0.0, %v2818
        %v2820 = vpop.f32.mrb[0].mxu0
        %2821 = vmatprep.mubr.bf16.mxu0 0
        %2822 = vmatmul.mubr.bf16.gmra.mrb[0].mxu0 %v2662
        %v2823 = vpop.f32.mrb[0].mxu0
        %v2824 = vadd.f32 0.0, %v2823
        %v2825 = vpop.f32.mrb[0].mxu0
        %v2826 = vpop.f32.mrb[0].mxu0
        %v2827 = vadd.f32 0.0, %v2826
        %v2828 = vpop.f32.mrb[0].mxu0
        %2829 = vmatprep.mubr.bf16.mxu0 0
        %2830 = vmatmul.mubr.bf16.gmra.mrb[0].mxu0 %v2663
        %v2831 = vpop.f32.mrb[0].mxu0
        %v2832 = vadd.f32 0.0, %v2831
        %v2833 = vpop.f32.mrb[0].mxu0
        %v2834 = vpop.f32.mrb[0].mxu0
        %v2835 = vadd.f32 0.0, %v2834
        %v2836 = vpop.f32.mrb[0].mxu0
        %2837 = vmatprep.mubr.bf16.mxu0 0
        %2838 = vmatmul.mubr.bf16.gmra.mrb[0].mxu0 %v2664
        %v2839 = vpop.f32.mrb[0].mxu0
        %v2840 = vadd.f32 0.0, %v2839
        %v2841 = vpop.f32.mrb[0].mxu0
        %v2842 = vpop.f32.mrb[0].mxu0
        %v2843 = vadd.f32 0.0, %v2842
        %v2844 = vpop.f32.mrb[0].mxu0
        %2845 = vmatprep.mubr.bf16.mxu0 0
        %2846 = vmatmul.mubr.bf16.gmra.mrb[0].mxu0 %v2665
        %v2847 = vpop.f32.mrb[0].mxu0
        %v2848 = vadd.f32 0.0, %v2847
        %v2849 = vpop.f32.mrb[0].mxu0
        %v2850 = vpop.f32.mrb[0].mxu0
        %v2851 = vadd.f32 0.0, %v2850
        %v2852 = vpop.f32.mrb[0].mxu0
        %2853 = vmatprep.mubr.bf16.mxu0 0
        %2854 = vmatmul.mubr.bf16.gmra.mrb[0].mxu0 %v2666
        %v2855 = vpop.f32.mrb[0].mxu0
        %v2856 = vadd.f32 0.0, %v2855
        %v2857 = vpop.f32.mrb[0].mxu0
        %v2858 = vpop.f32.mrb[0].mxu0
        %v2859 = vadd.f32 0.0, %v2858
        %v2860 = vpop.f32.mrb[0].mxu0
        %2861 = vmatprep.mubr.bf16.mxu0 0
        %2862 = vmatmul.mubr.bf16.gmra.mrb[0].mxu0 %v2667
        %v2863 = vpop.f32.mrb[0].mxu0
        %v2864 = vadd.f32 0.0, %v2863
        %v2865 = vpop.f32.mrb[0].mxu0
        %v2866 = vpop.f32.mrb[0].mxu0
        %v2867 = vadd.f32 0.0, %v2866
        %v2868 = vpop.f32.mrb[0].mxu0
        %2869 = vmatprep.mubr.bf16.mxu0 0
        %2870 = vmatmul.mubr.bf16.gmra.mrb[0].mxu0 %v2668
        %v2871 = vpop.f32.mrb[0].mxu0
        %v2872 = vadd.f32 0.0, %v2871
        %v2873 = vpop.f32.mrb[0].mxu0
        %v2874 = vpop.f32.mrb[0].mxu0
        %v2875 = vadd.f32 0.0, %v2874
        %v2876 = vpop.f32.mrb[0].mxu0
        %2877 = vdwg.mxu0
        %v2878 = vlaneseq
        %v2879 = vshrl.u32 %v2878, 7
        %v2880 = vsub.s32 2, %v2879
        %v2881 = vrot.slane %v508, %v2880
        %v2882 = vmul.f32 %v2881, %v2752
        %v2883 = vmul.f32 %v2881, %v2755
        %v2884 = vmul.f32 %v2881, %v2760
        %v2885 = vmul.f32 %v2881, %v2763
        %v2886 = vmul.f32 %v2881, %v2768
        %v2887 = vmul.f32 %v2881, %v2771
        %v2888 = vmul.f32 %v2881, %v2776
        %v2889 = vmul.f32 %v2881, %v2779
        %v2890 = vmul.f32 %v2881, %v2784
        %v2891 = vmul.f32 %v2881, %v2787
        %v2892 = vmul.f32 %v2881, %v2792
        %v2893 = vmul.f32 %v2881, %v2795
        %v2894 = vmul.f32 %v2881, %v2800
        %v2895 = vmul.f32 %v2881, %v2803
        %v2896 = vmul.f32 %v2881, %v2808
        %v2897 = vmul.f32 %v2881, %v2811
        %v2898 = vmul.f32 %v2881, %v2816
        %v2899 = vmul.f32 %v2881, %v2819
        %v2900 = vmul.f32 %v2881, %v2824
        %v2901 = vmul.f32 %v2881, %v2827
        %v2902 = vmul.f32 %v2881, %v2832
        %v2903 = vmul.f32 %v2881, %v2835
        %v2904 = vmul.f32 %v2881, %v2840
        %v2905 = vmul.f32 %v2881, %v2843
        %v2906 = vmul.f32 %v2881, %v2848
        %v2907 = vmul.f32 %v2881, %v2851
        %v2908 = vmul.f32 %v2881, %v2856
        %v2909 = vmul.f32 %v2881, %v2859
        %v2910 = vmul.f32 %v2881, %v2864
        %v2911 = vmul.f32 %v2881, %v2867
        %v2912 = vmul.f32 %v2881, %v2872
        %v2913 = vmul.f32 %v2881, %v2875
        %v2914 = vadd.f32 %v476, %v2882
        %v2915 = vadd.f32 %v477, %v2883
        %v2916 = vadd.f32 %v478, %v2884
        %v2917 = vadd.f32 %v479, %v2885
        %v2918 = vadd.f32 %v480, %v2886
        %v2919 = vadd.f32 %v481, %v2887
        %v2920 = vadd.f32 %v482, %v2888
        %v2921 = vadd.f32 %v483, %v2889
        %v2922 = vadd.f32 %v484, %v2890
        %v2923 = vadd.f32 %v485, %v2891
        %v2924 = vadd.f32 %v486, %v2892
        %v2925 = vadd.f32 %v487, %v2893
        %v2926 = vadd.f32 %v488, %v2894
        %v2927 = vadd.f32 %v489, %v2895
        %v2928 = vadd.f32 %v490, %v2896
        %v2929 = vadd.f32 %v491, %v2897
        %v2930 = vadd.f32 %v492, %v2898
        %v2931 = vadd.f32 %v493, %v2899
        %v2932 = vadd.f32 %v494, %v2900
        %v2933 = vadd.f32 %v495, %v2901
        %v2934 = vadd.f32 %v496, %v2902
        %v2935 = vadd.f32 %v497, %v2903
        %v2936 = vadd.f32 %v498, %v2904
        %v2937 = vadd.f32 %v499, %v2905
        %v2938 = vadd.f32 %v500, %v2906
        %v2939 = vadd.f32 %v501, %v2907
        %v2940 = vadd.f32 %v502, %v2908
        %v2941 = vadd.f32 %v503, %v2909
        %v2942 = vadd.f32 %v504, %v2910
        %v2943 = vadd.f32 %v505, %v2911
        %v2944 = vadd.f32 %v506, %v2912
        %v2945 = vadd.f32 %v507, %v2913
        %2946 = vadd.xlane.f32.xlu0 %v2914
        %v2947 = vpop.xlane.xlu0 %2946
        %2948 = vadd.xlane.f32.xlu0 %v2915
        %v2949 = vpop.xlane.xlu0 %2948
        %2950 = vadd.xlane.f32.xlu0 %v2916
        %v2951 = vpop.xlane.xlu0 %2950
        %2952 = vadd.xlane.f32.xlu0 %v2917
        %v2953 = vpop.xlane.xlu0 %2952
        %2954 = vadd.xlane.f32.xlu0 %v2918
        %v2955 = vpop.xlane.xlu0 %2954
        %2956 = vadd.xlane.f32.xlu0 %v2919
        %v2957 = vpop.xlane.xlu0 %2956
        %2958 = vadd.xlane.f32.xlu0 %v2920
        %v2959 = vpop.xlane.xlu0 %2958
        %2960 = vadd.xlane.f32.xlu0 %v2921
        %v2961 = vpop.xlane.xlu0 %2960
        %2962 = vadd.xlane.f32.xlu0 %v2922
        %v2963 = vpop.xlane.xlu0 %2962
        %2964 = vadd.xlane.f32.xlu0 %v2923
        %v2965 = vpop.xlane.xlu0 %2964
        %2966 = vadd.xlane.f32.xlu0 %v2924
        %v2967 = vpop.xlane.xlu0 %2966
        %2968 = vadd.xlane.f32.xlu0 %v2925
        %v2969 = vpop.xlane.xlu0 %2968
        %2970 = vadd.xlane.f32.xlu0 %v2926
        %v2971 = vpop.xlane.xlu0 %2970
        %2972 = vadd.xlane.f32.xlu0 %v2927
        %v2973 = vpop.xlane.xlu0 %2972
        %2974 = vadd.xlane.f32.xlu0 %v2928
        %v2975 = vpop.xlane.xlu0 %2974
        %2976 = vadd.xlane.f32.xlu0 %v2929
        %v2977 = vpop.xlane.xlu0 %2976
        %2978 = vadd.xlane.f32.xlu0 %v2930
        %v2979 = vpop.xlane.xlu0 %2978
        %2980 = vadd.xlane.f32.xlu0 %v2931
        %v2981 = vpop.xlane.xlu0 %2980
        %2982 = vadd.xlane.f32.xlu0 %v2932
        %v2983 = vpop.xlane.xlu0 %2982
        %2984 = vadd.xlane.f32.xlu0 %v2933
        %v2985 = vpop.xlane.xlu0 %2984
        %2986 = vadd.xlane.f32.xlu0 %v2934
        %v2987 = vpop.xlane.xlu0 %2986
        %2988 = vadd.xlane.f32.xlu0 %v2935
        %v2989 = vpop.xlane.xlu0 %2988
        %2990 = vadd.xlane.f32.xlu0 %v2936
        %v2991 = vpop.xlane.xlu0 %2990
        %2992 = vadd.xlane.f32.xlu0 %v2937
        %v2993 = vpop.xlane.xlu0 %2992
        %2994 = vadd.xlane.f32.xlu0 %v2938
        %v2995 = vpop.xlane.xlu0 %2994
        %2996 = vadd.xlane.f32.xlu0 %v2939
        %v2997 = vpop.xlane.xlu0 %2996
        %2998 = vadd.xlane.f32.xlu0 %v2940
        %v2999 = vpop.xlane.xlu0 %2998
        %3000 = vadd.xlane.f32.xlu0 %v2941
        %v3001 = vpop.xlane.xlu0 %3000
        %3002 = vadd.xlane.f32.xlu0 %v2942
        %v3003 = vpop.xlane.xlu0 %3002
        %3004 = vadd.xlane.f32.xlu0 %v2943
        %v3005 = vpop.xlane.xlu0 %3004
        %3006 = vadd.xlane.f32.xlu0 %v2944
        %v3007 = vpop.xlane.xlu0 %3006
        %3008 = vadd.xlane.f32.xlu0 %v2945
        %v3009 = vpop.xlane.xlu0 %3008
        %v3010 = vmul.f32 %v2947, 0.03125
        %v3011 = vmul.f32 %v2949, 0.03125
        %v3012 = vmul.f32 %v2951, 0.03125
        %v3013 = vmul.f32 %v2953, 0.03125
        %v3014 = vmul.f32 %v2955, 0.03125
        %v3015 = vmul.f32 %v2957, 0.03125
        %v3016 = vmul.f32 %v2959, 0.03125
        %v3017 = vmul.f32 %v2961, 0.03125
        %v3018 = vmul.f32 %v2963, 0.03125
        %v3019 = vmul.f32 %v2965, 0.03125
        %v3020 = vmul.f32 %v2967, 0.03125
        %v3021 = vmul.f32 %v2969, 0.03125
        %v3022 = vmul.f32 %v2971, 0.03125
        %v3023 = vmul.f32 %v2973, 0.03125
        %v3024 = vmul.f32 %v2975, 0.03125
        %v3025 = vmul.f32 %v2977, 0.03125
        %v3026 = vmul.f32 %v2979, 0.03125
        %v3027 = vmul.f32 %v2981, 0.03125
        %v3028 = vmul.f32 %v2983, 0.03125
        %v3029 = vmul.f32 %v2985, 0.03125
        %v3030 = vmul.f32 %v2987, 0.03125
        %v3031 = vmul.f32 %v2989, 0.03125
        %v3032 = vmul.f32 %v2991, 0.03125
        %v3033 = vmul.f32 %v2993, 0.03125
        %v3034 = vmul.f32 %v2995, 0.03125
        %v3035 = vmul.f32 %v2997, 0.03125
        %v3036 = vmul.f32 %v2999, 0.03125
        %v3037 = vmul.f32 %v3001, 0.03125
        %v3038 = vmul.f32 %v3003, 0.03125
        %v3039 = vmul.f32 %v3005, 0.03125
        %v3040 = vmul.f32 %v3007, 0.03125
        %v3041 = vmul.f32 %v3009, 0.03125
        %v3042 = vsub.f32 %v2914, %v3010
        %v3043 = vsub.f32 %v2915, %v3011
        %v3044 = vsub.f32 %v2916, %v3012
        %v3045 = vsub.f32 %v2917, %v3013
        %v3046 = vsub.f32 %v2918, %v3014
        %v3047 = vsub.f32 %v2919, %v3015
        %v3048 = vsub.f32 %v2920, %v3016
        %v3049 = vsub.f32 %v2921, %v3017
        %v3050 = vsub.f32 %v2922, %v3018
        %v3051 = vsub.f32 %v2923, %v3019
        %v3052 = vsub.f32 %v2924, %v3020
        %v3053 = vsub.f32 %v2925, %v3021
        %v3054 = vsub.f32 %v2926, %v3022
        %v3055 = vsub.f32 %v2927, %v3023
        %v3056 = vsub.f32 %v2928, %v3024
        %v3057 = vsub.f32 %v2929, %v3025
        %v3058 = vsub.f32 %v2930, %v3026
        %v3059 = vsub.f32 %v2931, %v3027
        %v3060 = vsub.f32 %v2932, %v3028
        %v3061 = vsub.f32 %v2933, %v3029
        %v3062 = vsub.f32 %v2934, %v3030
        %v3063 = vsub.f32 %v2935, %v3031
        %v3064 = vsub.f32 %v2936, %v3032
        %v3065 = vsub.f32 %v2937, %v3033
        %v3066 = vsub.f32 %v2938, %v3034
        %v3067 = vsub.f32 %v2939, %v3035
        %v3068 = vsub.f32 %v2940, %v3036
        %v3069 = vsub.f32 %v2941, %v3037
        %v3070 = vsub.f32 %v2942, %v3038
        %v3071 = vsub.f32 %v2943, %v3039
        %v3072 = vsub.f32 %v2944, %v3040
        %v3073 = vsub.f32 %v2945, %v3041
        %v3074 = vmul.f32 %v3042, %v515
        %v3075 = vmul.f32 %v3043, %v515
        %v3076 = vmul.f32 %v3044, %v515
        %v3077 = vmul.f32 %v3045, %v515
        %v3078 = vmul.f32 %v3046, %v515
        %v3079 = vmul.f32 %v3047, %v515
        %v3080 = vmul.f32 %v3048, %v515
        %v3081 = vmul.f32 %v3049, %v515
        %v3082 = vmul.f32 %v3050, %v515
        %v3083 = vmul.f32 %v3051, %v515
        %v3084 = vmul.f32 %v3052, %v515
        %v3085 = vmul.f32 %v3053, %v515
        %v3086 = vmul.f32 %v3054, %v515
        %v3087 = vmul.f32 %v3055, %v515
        %v3088 = vmul.f32 %v3056, %v515
        %v3089 = vmul.f32 %v3057, %v515
        %v3090 = vmul.f32 %v3058, %v515
        %v3091 = vmul.f32 %v3059, %v515
        %v3092 = vmul.f32 %v3060, %v515
        %v3093 = vmul.f32 %v3061, %v515
        %v3094 = vmul.f32 %v3062, %v515
        %v3095 = vmul.f32 %v3063, %v515
        %v3096 = vmul.f32 %v3064, %v515
        %v3097 = vmul.f32 %v3065, %v515
        %v3098 = vmul.f32 %v3066, %v515
        %v3099 = vmul.f32 %v3067, %v515
        %v3100 = vmul.f32 %v3068, %v515
        %v3101 = vmul.f32 %v3069, %v515
        %v3102 = vmul.f32 %v3070, %v515
        %v3103 = vmul.f32 %v3071, %v515
        %v3104 = vmul.f32 %v3072, %v515
        %v3105 = vmul.f32 %v3073, %v515
        %v3106 = vmul.f32 %v3074, %v3074
        %v3107 = vmul.f32 %v3075, %v3075
        %v3108 = vmul.f32 %v3076, %v3076
        %v3109 = vmul.f32 %v3077, %v3077
        %v3110 = vmul.f32 %v3078, %v3078
        %v3111 = vmul.f32 %v3079, %v3079
        %v3112 = vmul.f32 %v3080, %v3080
        %v3113 = vmul.f32 %v3081, %v3081
        %v3114 = vmul.f32 %v3082, %v3082
        %v3115 = vmul.f32 %v3083, %v3083
        %v3116 = vmul.f32 %v3084, %v3084
        %v3117 = vmul.f32 %v3085, %v3085
        %v3118 = vmul.f32 %v3086, %v3086
        %v3119 = vmul.f32 %v3087, %v3087
        %v3120 = vmul.f32 %v3088, %v3088
        %v3121 = vmul.f32 %v3089, %v3089
        %v3122 = vmul.f32 %v3090, %v3090
        %v3123 = vmul.f32 %v3091, %v3091
        %v3124 = vmul.f32 %v3092, %v3092
        %v3125 = vmul.f32 %v3093, %v3093
        %v3126 = vmul.f32 %v3094, %v3094
        %v3127 = vmul.f32 %v3095, %v3095
        %v3128 = vmul.f32 %v3096, %v3096
        %v3129 = vmul.f32 %v3097, %v3097
        %v3130 = vmul.f32 %v3098, %v3098
        %v3131 = vmul.f32 %v3099, %v3099
        %v3132 = vmul.f32 %v3100, %v3100
        %v3133 = vmul.f32 %v3101, %v3101
        %v3134 = vmul.f32 %v3102, %v3102
        %v3135 = vmul.f32 %v3103, %v3103
        %v3136 = vmul.f32 %v3104, %v3104
        %v3137 = vmul.f32 %v3105, %v3105
        %3138 = vadd.xlane.f32.xlu0 %v3106
        %v3139 = vpop.xlane.xlu0 %3138
        %3140 = vadd.xlane.f32.xlu0 %v3107
        %v3141 = vpop.xlane.xlu0 %3140
        %3142 = vadd.xlane.f32.xlu0 %v3108
        %v3143 = vpop.xlane.xlu0 %3142
        %3144 = vadd.xlane.f32.xlu0 %v3109
        %v3145 = vpop.xlane.xlu0 %3144
        %3146 = vadd.xlane.f32.xlu0 %v3110
        %v3147 = vpop.xlane.xlu0 %3146
        %3148 = vadd.xlane.f32.xlu0 %v3111
        %v3149 = vpop.xlane.xlu0 %3148
        %3150 = vadd.xlane.f32.xlu0 %v3112
        %v3151 = vpop.xlane.xlu0 %3150
        %3152 = vadd.xlane.f32.xlu0 %v3113
        %v3153 = vpop.xlane.xlu0 %3152
        %3154 = vadd.xlane.f32.xlu0 %v3114
        %v3155 = vpop.xlane.xlu0 %3154
        %3156 = vadd.xlane.f32.xlu0 %v3115
        %v3157 = vpop.xlane.xlu0 %3156
        %3158 = vadd.xlane.f32.xlu0 %v3116
        %v3159 = vpop.xlane.xlu0 %3158
        %3160 = vadd.xlane.f32.xlu0 %v3117
        %v3161 = vpop.xlane.xlu0 %3160
        %3162 = vadd.xlane.f32.xlu0 %v3118
        %v3163 = vpop.xlane.xlu0 %3162
        %3164 = vadd.xlane.f32.xlu0 %v3119
        %v3165 = vpop.xlane.xlu0 %3164
        %3166 = vadd.xlane.f32.xlu0 %v3120
        %v3167 = vpop.xlane.xlu0 %3166
        %3168 = vadd.xlane.f32.xlu0 %v3121
        %v3169 = vpop.xlane.xlu0 %3168
        %3170 = vadd.xlane.f32.xlu0 %v3122
        %v3171 = vpop.xlane.xlu0 %3170
        %3172 = vadd.xlane.f32.xlu0 %v3123
        %v3173 = vpop.xlane.xlu0 %3172
        %3174 = vadd.xlane.f32.xlu0 %v3124
        %v3175 = vpop.xlane.xlu0 %3174
        %3176 = vadd.xlane.f32.xlu0 %v3125
        %v3177 = vpop.xlane.xlu0 %3176
        %3178 = vadd.xlane.f32.xlu0 %v3126
        %v3179 = vpop.xlane.xlu0 %3178
        %3180 = vadd.xlane.f32.xlu0 %v3127
        %v3181 = vpop.xlane.xlu0 %3180
        %3182 = vadd.xlane.f32.xlu0 %v3128
        %v3183 = vpop.xlane.xlu0 %3182
        %3184 = vadd.xlane.f32.xlu0 %v3129
        %v3185 = vpop.xlane.xlu0 %3184
        %3186 = vadd.xlane.f32.xlu0 %v3130
        %v3187 = vpop.xlane.xlu0 %3186
        %3188 = vadd.xlane.f32.xlu0 %v3131
        %v3189 = vpop.xlane.xlu0 %3188
        %3190 = vadd.xlane.f32.xlu0 %v3132
        %v3191 = vpop.xlane.xlu0 %3190
        %3192 = vadd.xlane.f32.xlu0 %v3133
        %v3193 = vpop.xlane.xlu0 %3192
        %3194 = vadd.xlane.f32.xlu0 %v3134
        %v3195 = vpop.xlane.xlu0 %3194
        %3196 = vadd.xlane.f32.xlu0 %v3135
        %v3197 = vpop.xlane.xlu0 %3196
        %3198 = vadd.xlane.f32.xlu0 %v3136
        %v3199 = vpop.xlane.xlu0 %3198
        %3200 = vadd.xlane.f32.xlu0 %v3137
        %v3201 = vpop.xlane.xlu0 %3200
        %v3202 = vmul.f32 %v3139, 0.03125
        %v3203 = vmul.f32 %v3141, 0.03125
        %v3204 = vmul.f32 %v3143, 0.03125
        %v3205 = vmul.f32 %v3145, 0.03125
        %v3206 = vmul.f32 %v3147, 0.03125
        %v3207 = vmul.f32 %v3149, 0.03125
        %v3208 = vmul.f32 %v3151, 0.03125
        %v3209 = vmul.f32 %v3153, 0.03125
        %v3210 = vmul.f32 %v3155, 0.03125
        %v3211 = vmul.f32 %v3157, 0.03125
        %v3212 = vmul.f32 %v3159, 0.03125
        %v3213 = vmul.f32 %v3161, 0.03125
        %v3214 = vmul.f32 %v3163, 0.03125
        %v3215 = vmul.f32 %v3165, 0.03125
        %v3216 = vmul.f32 %v3167, 0.03125
        %v3217 = vmul.f32 %v3169, 0.03125
        %v3218 = vmul.f32 %v3171, 0.03125
        %v3219 = vmul.f32 %v3173, 0.03125
        %v3220 = vmul.f32 %v3175, 0.03125
        %v3221 = vmul.f32 %v3177, 0.03125
        %v3222 = vmul.f32 %v3179, 0.03125
        %v3223 = vmul.f32 %v3181, 0.03125
        %v3224 = vmul.f32 %v3183, 0.03125
        %v3225 = vmul.f32 %v3185, 0.03125
        %v3226 = vmul.f32 %v3187, 0.03125
        %v3227 = vmul.f32 %v3189, 0.03125
        %v3228 = vmul.f32 %v3191, 0.03125
        %v3229 = vmul.f32 %v3193, 0.03125
        %v3230 = vmul.f32 %v3195, 0.03125
        %v3231 = vmul.f32 %v3197, 0.03125
        %v3232 = vmul.f32 %v3199, 0.03125
        %v3233 = vmul.f32 %v3201, 0.03125
        %v3234 = vadd.f32 %v3202, 1e-05
        %v3235 = vadd.f32 %v3203, 1e-05
        %v3236 = vadd.f32 %v3204, 1e-05
        %v3237 = vadd.f32 %v3205, 1e-05
        %v3238 = vadd.f32 %v3206, 1e-05
        %v3239 = vadd.f32 %v3207, 1e-05
        %v3240 = vadd.f32 %v3208, 1e-05
        %v3241 = vadd.f32 %v3209, 1e-05
        %v3242 = vadd.f32 %v3210, 1e-05
        %v3243 = vadd.f32 %v3211, 1e-05
        %v3244 = vadd.f32 %v3212, 1e-05
        %v3245 = vadd.f32 %v3213, 1e-05
        %v3246 = vadd.f32 %v3214, 1e-05
        %v3247 = vadd.f32 %v3215, 1e-05
        %v3248 = vadd.f32 %v3216, 1e-05
        %v3249 = vadd.f32 %v3217, 1e-05
        %v3250 = vadd.f32 %v3218, 1e-05
        %v3251 = vadd.f32 %v3219, 1e-05
        %v3252 = vadd.f32 %v3220, 1e-05
        %v3253 = vadd.f32 %v3221, 1e-05
        %v3254 = vadd.f32 %v3222, 1e-05
        %v3255 = vadd.f32 %v3223, 1e-05
        %v3256 = vadd.f32 %v3224, 1e-05
        %v3257 = vadd.f32 %v3225, 1e-05
        %v3258 = vadd.f32 %v3226, 1e-05
        %v3259 = vadd.f32 %v3227, 1e-05
        %v3260 = vadd.f32 %v3228, 1e-05
        %v3261 = vadd.f32 %v3229, 1e-05
        %v3262 = vadd.f32 %v3230, 1e-05
        %v3263 = vadd.f32 %v3231, 1e-05
        %v3264 = vadd.f32 %v3232, 1e-05
        %v3265 = vadd.f32 %v3233, 1e-05
        %v3266 = vrsqrt.pop %v3234
        %v3267 = vrsqrt.pop %v3235
        %v3268 = vrsqrt.pop %v3236
        %v3269 = vrsqrt.pop %v3237
        %v3270 = vrsqrt.pop %v3238
        %v3271 = vrsqrt.pop %v3239
        %v3272 = vrsqrt.pop %v3240
        %v3273 = vrsqrt.pop %v3241
        %v3274 = vrsqrt.pop %v3242
        %v3275 = vrsqrt.pop %v3243
        %v3276 = vrsqrt.pop %v3244
        %v3277 = vrsqrt.pop %v3245
        %v3278 = vrsqrt.pop %v3246
        %v3279 = vrsqrt.pop %v3247
        %v3280 = vrsqrt.pop %v3248
        %v3281 = vrsqrt.pop %v3249
        %v3282 = vrsqrt.pop %v3250
        %v3283 = vrsqrt.pop %v3251
        %v3284 = vrsqrt.pop %v3252
        %v3285 = vrsqrt.pop %v3253
        %v3286 = vrsqrt.pop %v3254
        %v3287 = vrsqrt.pop %v3255
        %v3288 = vrsqrt.pop %v3256
        %v3289 = vrsqrt.pop %v3257
        %v3290 = vrsqrt.pop %v3258
        %v3291 = vrsqrt.pop %v3259
        %v3292 = vrsqrt.pop %v3260
        %v3293 = vrsqrt.pop %v3261
        %v3294 = vrsqrt.pop %v3262
        %v3295 = vrsqrt.pop %v3263
        %v3296 = vrsqrt.pop %v3264
        %v3297 = vrsqrt.pop %v3265
        %v3298 = vmul.f32 %v3074, %v3266
        %v3299 = vmul.f32 %v3075, %v3267
        %v3300 = vmul.f32 %v3076, %v3268
        %v3301 = vmul.f32 %v3077, %v3269
        %v3302 = vmul.f32 %v3078, %v3270
        %v3303 = vmul.f32 %v3079, %v3271
        %v3304 = vmul.f32 %v3080, %v3272
        %v3305 = vmul.f32 %v3081, %v3273
        %v3306 = vmul.f32 %v3082, %v3274
        %v3307 = vmul.f32 %v3083, %v3275
        %v3308 = vmul.f32 %v3084, %v3276
        %v3309 = vmul.f32 %v3085, %v3277
        %v3310 = vmul.f32 %v3086, %v3278
        %v3311 = vmul.f32 %v3087, %v3279
        %v3312 = vmul.f32 %v3088, %v3280
        %v3313 = vmul.f32 %v3089, %v3281
        %v3314 = vmul.f32 %v3090, %v3282
        %v3315 = vmul.f32 %v3091, %v3283
        %v3316 = vmul.f32 %v3092, %v3284
        %v3317 = vmul.f32 %v3093, %v3285
        %v3318 = vmul.f32 %v3094, %v3286
        %v3319 = vmul.f32 %v3095, %v3287
        %v3320 = vmul.f32 %v3096, %v3288
        %v3321 = vmul.f32 %v3097, %v3289
        %v3322 = vmul.f32 %v3098, %v3290
        %v3323 = vmul.f32 %v3099, %v3291
        %v3324 = vmul.f32 %v3100, %v3292
        %v3325 = vmul.f32 %v3101, %v3293
        %v3326 = vmul.f32 %v3102, %v3294
        %v3327 = vmul.f32 %v3103, %v3295
        %v3328 = vmul.f32 %v3104, %v3296
        %v3329 = vmul.f32 %v3105, %v3297
        %v3330 = vlaneseq
        %v3331 = vshrl.u32 %v3330, 7
        %v3332 = vsub.s32 3, %v3331
        %v3333 = vrot.slane %v508, %v3332
        %v3334 = vmul.f32 %v3298, %v3333
        %v3335 = vmul.f32 %v3299, %v3333
        %v3336 = vmul.f32 %v3300, %v3333
        %v3337 = vmul.f32 %v3301, %v3333
        %v3338 = vmul.f32 %v3302, %v3333
        %v3339 = vmul.f32 %v3303, %v3333
        %v3340 = vmul.f32 %v3304, %v3333
        %v3341 = vmul.f32 %v3305, %v3333
        %v3342 = vmul.f32 %v3306, %v3333
        %v3343 = vmul.f32 %v3307, %v3333
        %v3344 = vmul.f32 %v3308, %v3333
        %v3345 = vmul.f32 %v3309, %v3333
        %v3346 = vmul.f32 %v3310, %v3333
        %v3347 = vmul.f32 %v3311, %v3333
        %v3348 = vmul.f32 %v3312, %v3333
        %v3349 = vmul.f32 %v3313, %v3333
        %v3350 = vmul.f32 %v3314, %v3333
        %v3351 = vmul.f32 %v3315, %v3333
        %v3352 = vmul.f32 %v3316, %v3333
        %v3353 = vmul.f32 %v3317, %v3333
        %v3354 = vmul.f32 %v3318, %v3333
        %v3355 = vmul.f32 %v3319, %v3333
        %v3356 = vmul.f32 %v3320, %v3333
        %v3357 = vmul.f32 %v3321, %v3333
        %v3358 = vmul.f32 %v3322, %v3333
        %v3359 = vmul.f32 %v3323, %v3333
        %v3360 = vmul.f32 %v3324, %v3333
        %v3361 = vmul.f32 %v3325, %v3333
        %v3362 = vmul.f32 %v3326, %v3333
        %v3363 = vmul.f32 %v3327, %v3333
        %v3364 = vmul.f32 %v3328, %v3333
        %v3365 = vmul.f32 %v3329, %v3333
        %v3366 = vlaneseq
        %v3367 = vshrl.u32 %v3366, 7
        %v3368 = vsub.s32 4, %v3367
        %v3369 = vrot.slane %v508, %v3368
        %v3370 = vadd.f32 %v3334, %v3369
        %v3371 = vadd.f32 %v3335, %v3369
        %v3372 = vadd.f32 %v3336, %v3369
        %v3373 = vadd.f32 %v3337, %v3369
        %v3374 = vadd.f32 %v3338, %v3369
        %v3375 = vadd.f32 %v3339, %v3369
        %v3376 = vadd.f32 %v3340, %v3369
        %v3377 = vadd.f32 %v3341, %v3369
        %v3378 = vadd.f32 %v3342, %v3369
        %v3379 = vadd.f32 %v3343, %v3369
        %v3380 = vadd.f32 %v3344, %v3369
        %v3381 = vadd.f32 %v3345, %v3369
        %v3382 = vadd.f32 %v3346, %v3369
        %v3383 = vadd.f32 %v3347, %v3369
        %v3384 = vadd.f32 %v3348, %v3369
        %v3385 = vadd.f32 %v3349, %v3369
        %v3386 = vadd.f32 %v3350, %v3369
        %v3387 = vadd.f32 %v3351, %v3369
        %v3388 = vadd.f32 %v3352, %v3369
        %v3389 = vadd.f32 %v3353, %v3369
        %v3390 = vadd.f32 %v3354, %v3369
        %v3391 = vadd.f32 %v3355, %v3369
        %v3392 = vadd.f32 %v3356, %v3369
        %v3393 = vadd.f32 %v3357, %v3369
        %v3394 = vadd.f32 %v3358, %v3369
        %v3395 = vadd.f32 %v3359, %v3369
        %v3396 = vadd.f32 %v3360, %v3369
        %v3397 = vadd.f32 %v3361, %v3369
        %v3398 = vadd.f32 %v3362, %v3369
        %v3399 = vadd.f32 %v3363, %v3369
        %v3400 = vadd.f32 %v3364, %v3369
        %v3401 = vadd.f32 %v3365, %v3369
        %v3402 = vld [vmem:[%s8] sm:$0xf]
        %v3403 = vld [vmem:[%s8 + $0x4] sm:$0xf]
        %v3404 = vld [vmem:[%s8 + $0x8] sm:$0xf]
        %v3405 = vld [vmem:[%s8 + $0xc] sm:$0xf]
        %v3406 = vld [vmem:[%s8 + $0x10] sm:$0xf]
        %v3407 = vld [vmem:[%s8 + $0x14] sm:$0xf]
        %v3408 = vld [vmem:[%s8 + $0x18] sm:$0xf]
        %v3409 = vld [vmem:[%s8 + $0x1c] sm:$0xf]
        %v3410 = vld [vmem:[%s8 + $0x20] sm:$0xf]
        %v3411 = vld [vmem:[%s8 + $0x24] sm:$0xf]
        %v3412 = vld [vmem:[%s8 + $0x28] sm:$0xf]
        %v3413 = vld [vmem:[%s8 + $0x2c] sm:$0xf]
        %v3414 = vld [vmem:[%s8 + $0x30] sm:$0xf]
        %v3415 = vld [vmem:[%s8 + $0x34] sm:$0xf]
        %v3416 = vld [vmem:[%s8 + $0x38] sm:$0xf]
        %v3417 = vld [vmem:[%s8 + $0x3c] sm:$0xf]
        %v3418 = vpack.c.bf16 %v3371, %v3370
        %v3419 = vpack.c.bf16 %v3373, %v3372
        %v3420 = vpack.c.bf16 %v3375, %v3374
        %v3421 = vpack.c.bf16 %v3377, %v3376
        %v3422 = vpack.c.bf16 %v3379, %v3378
        %v3423 = vpack.c.bf16 %v3381, %v3380
        %v3424 = vpack.c.bf16 %v3383, %v3382
        %v3425 = vpack.c.bf16 %v3385, %v3384
        %v3426 = vpack.c.bf16 %v3387, %v3386
        %v3427 = vpack.c.bf16 %v3389, %v3388
        %v3428 = vpack.c.bf16 %v3391, %v3390
        %v3429 = vpack.c.bf16 %v3393, %v3392
        %v3430 = vpack.c.bf16 %v3395, %v3394
        %v3431 = vpack.c.bf16 %v3397, %v3396
        %v3432 = vpack.c.bf16 %v3399, %v3398
        %v3433 = vpack.c.bf16 %v3401, %v3400
        %v3434 = vlaneseq
        %v3435 = vshrl.u32 %v3434, 7
        %v3436 = vsub.s32 5, %v3435
        %v3437 = vrot.slane %v508, %v3436
        %v3454 = vunpack.c.l.b16 %v3402
        %v3455 = vunpack.c.l.b16 %v3403
        %v3456 = vunpack.c.l.b16 %v3404
        %v3457 = vunpack.c.l.b16 %v3405
        %v3458 = vunpack.c.l.b16 %v3406
        %v3459 = vunpack.c.l.b16 %v3407
        %v3460 = vunpack.c.l.b16 %v3408
        %v3461 = vunpack.c.l.b16 %v3409
        %v3462 = vunpack.c.l.b16 %v3410
        %v3463 = vunpack.c.l.b16 %v3411
        %v3464 = vunpack.c.l.b16 %v3412
        %v3465 = vunpack.c.l.b16 %v3413
        %v3466 = vunpack.c.l.b16 %v3414
        %v3467 = vunpack.c.l.b16 %v3415
        %v3468 = vunpack.c.l.b16 %v3416
        %v3469 = vunpack.c.l.b16 %v3417
        %v3470 = vpack.c.b16 %v3455, %v3454
        %v3471 = vpack.c.b16 %v3457, %v3456
        %v3472 = vpack.c.b16 %v3459, %v3458
        %v3473 = vpack.c.b16 %v3461, %v3460
        %v3474 = vpack.c.b16 %v3463, %v3462
        %v3475 = vpack.c.b16 %v3465, %v3464
        %v3476 = vpack.c.b16 %v3467, %v3466
        %v3477 = vpack.c.b16 %v3469, %v3468
        %3486 = vmatprep.subr.bf16.mxu0 0
        %3487 = vmatpush1.bf16.msra.mxu0 %v3470
        %3488 = vmatprep.subr.bf16.mxu0 0
        %3489 = vmatpush1.bf16.msra.mxu0 %v3471
        %3490 = vmatprep.subr.bf16.mxu0 0
        %3491 = vmatpush1.bf16.msra.mxu0 %v3472
        %3492 = vmatprep.subr.bf16.mxu0 0
        %3493 = vmatpush1.bf16.msra.mxu0 %v3473
        %3494 = vmatprep.subr.bf16.mxu0 0
        %3495 = vmatpush1.bf16.msra.mxu0 %v3474
        %3496 = vmatprep.subr.bf16.mxu0 0
        %3497 = vmatpush1.bf16.msra.mxu0 %v3475
        %3498 = vmatprep.subr.bf16.mxu0 0
        %3499 = vmatpush1.bf16.msra.mxu0 %v3476
        %3500 = vmatprep.subr.bf16.mxu0 0
        %3501 = vmatpush1.bf16.msra.mxu0 %v3477
        %3502 = vmatprep.subr.bf16.mxu0 0
        %3503 = vmatpush1.bf16.msra.mxu0 0
        %3504 = vmatprep.subr.bf16.mxu0 0
        %3505 = vmatpush1.bf16.msra.mxu0 0
        %3506 = vmatprep.subr.bf16.mxu0 0
        %3507 = vmatpush1.bf16.msra.mxu0 0
        %3508 = vmatprep.subr.bf16.mxu0 0
        %3509 = vmatpush1.bf16.msra.mxu0 0
        %3510 = vmatprep.subr.bf16.mxu0 0
        %3511 = vmatpush1.bf16.msra.mxu0 0
        %3512 = vmatprep.subr.bf16.mxu0 0
        %3513 = vmatpush1.bf16.msra.mxu0 0
        %3514 = vmatprep.subr.bf16.mxu0 0
        %3515 = vmatpush1.bf16.msra.mxu0 0
        %3516 = vmatprep.subr.bf16.mxu0 0
        %3517 = vmatpush1.bf16.msra.mxu0 0
        %3518 = vmatprep.mubr.bf16.mxu0 0
        %3519 = vmatmul.mubr.bf16.gmra.mrb[0].mxu0 %v3418
        %v3520 = vpop.f32.mrb[0].mxu0
        %v3521 = vadd.f32 %v3437, %v3520
        %v3522 = vpop.f32.mrb[0].mxu0
        %v3523 = vpop.f32.mrb[0].mxu0
        %v3524 = vadd.f32 %v3437, %v3523
        %v3525 = vpop.f32.mrb[0].mxu0
        %3526 = vmatprep.mubr.bf16.mxu0 0
        %3527 = vmatmul.mubr.bf16.gmra.mrb[0].mxu0 %v3419
        %v3528 = vpop.f32.mrb[0].mxu0
        %v3529 = vadd.f32 %v3437, %v3528
        %v3530 = vpop.f32.mrb[0].mxu0
        %v3531 = vpop.f32.mrb[0].mxu0
        %v3532 = vadd.f32 %v3437, %v3531
        %v3533 = vpop.f32.mrb[0].mxu0
        %3534 = vmatprep.mubr.bf16.mxu0 0
        %3535 = vmatmul.mubr.bf16.gmra.mrb[0].mxu0 %v3420
        %v3536 = vpop.f32.mrb[0].mxu0
        %v3537 = vadd.f32 %v3437, %v3536
        %v3538 = vpop.f32.mrb[0].mxu0
        %v3539 = vpop.f32.mrb[0].mxu0
        %v3540 = vadd.f32 %v3437, %v3539
        %v3541 = vpop.f32.mrb[0].mxu0
        %3542 = vmatprep.mubr.bf16.mxu0 0
        %3543 = vmatmul.mubr.bf16.gmra.mrb[0].mxu0 %v3421
        %v3544 = vpop.f32.mrb[0].mxu0
        %v3545 = vadd.f32 %v3437, %v3544
        %v3546 = vpop.f32.mrb[0].mxu0
        %v3547 = vpop.f32.mrb[0].mxu0
        %v3548 = vadd.f32 %v3437, %v3547
        %v3549 = vpop.f32.mrb[0].mxu0
        %3550 = vmatprep.mubr.bf16.mxu0 0
        %3551 = vmatmul.mubr.bf16.gmra.mrb[0].mxu0 %v3422
        %v3552 = vpop.f32.mrb[0].mxu0
        %v3553 = vadd.f32 %v3437, %v3552
        %v3554 = vpop.f32.mrb[0].mxu0
        %v3555 = vpop.f32.mrb[0].mxu0
        %v3556 = vadd.f32 %v3437, %v3555
        %v3557 = vpop.f32.mrb[0].mxu0
        %3558 = vmatprep.mubr.bf16.mxu0 0
        %3559 = vmatmul.mubr.bf16.gmra.mrb[0].mxu0 %v3423
        %v3560 = vpop.f32.mrb[0].mxu0
        %v3561 = vadd.f32 %v3437, %v3560
        %v3562 = vpop.f32.mrb[0].mxu0
        %v3563 = vpop.f32.mrb[0].mxu0
        %v3564 = vadd.f32 %v3437, %v3563
        %v3565 = vpop.f32.mrb[0].mxu0
        %3566 = vmatprep.mubr.bf16.mxu0 0
        %3567 = vmatmul.mubr.bf16.gmra.mrb[0].mxu0 %v3424
        %v3568 = vpop.f32.mrb[0].mxu0
        %v3569 = vadd.f32 %v3437, %v3568
        %v3570 = vpop.f32.mrb[0].mxu0
        %v3571 = vpop.f32.mrb[0].mxu0
        %v3572 = vadd.f32 %v3437, %v3571
        %v3573 = vpop.f32.mrb[0].mxu0
        %3574 = vmatprep.mubr.bf16.mxu0 0
        %3575 = vmatmul.mubr.bf16.gmra.mrb[0].mxu0 %v3425
        %v3576 = vpop.f32.mrb[0].mxu0
        %v3577 = vadd.f32 %v3437, %v3576
        %v3578 = vpop.f32.mrb[0].mxu0
        %v3579 = vpop.f32.mrb[0].mxu0
        %v3580 = vadd.f32 %v3437, %v3579
        %v3581 = vpop.f32.mrb[0].mxu0
        %3582 = vmatprep.mubr.bf16.mxu0 0
        %3583 = vmatmul.mubr.bf16.gmra.mrb[0].mxu0 %v3426
        %v3584 = vpop.f32.mrb[0].mxu0
        %v3585 = vadd.f32 %v3437, %v3584
        %v3586 = vpop.f32.mrb[0].mxu0
        %v3587 = vpop.f32.mrb[0].mxu0
        %v3588 = vadd.f32 %v3437, %v3587
        %v3589 = vpop.f32.mrb[0].mxu0
        %3590 = vmatprep.mubr.bf16.mxu0 0
        %3591 = vmatmul.mubr.bf16.gmra.mrb[0].mxu0 %v3427
        %v3592 = vpop.f32.mrb[0].mxu0
        %v3593 = vadd.f32 %v3437, %v3592
        %v3594 = vpop.f32.mrb[0].mxu0
        %v3595 = vpop.f32.mrb[0].mxu0
        %v3596 = vadd.f32 %v3437, %v3595
        %v3597 = vpop.f32.mrb[0].mxu0
        %3598 = vmatprep.mubr.bf16.mxu0 0
        %3599 = vmatmul.mubr.bf16.gmra.mrb[0].mxu0 %v3428
        %v3600 = vpop.f32.mrb[0].mxu0
        %v3601 = vadd.f32 %v3437, %v3600
        %v3602 = vpop.f32.mrb[0].mxu0
        %v3603 = vpop.f32.mrb[0].mxu0
        %v3604 = vadd.f32 %v3437, %v3603
        %v3605 = vpop.f32.mrb[0].mxu0
        %3606 = vmatprep.mubr.bf16.mxu0 0
        %3607 = vmatmul.mubr.bf16.gmra.mrb[0].mxu0 %v3429
        %v3608 = vpop.f32.mrb[0].mxu0
        %v3609 = vadd.f32 %v3437, %v3608
        %v3610 = vpop.f32.mrb[0].mxu0
        %v3611 = vpop.f32.mrb[0].mxu0
        %v3612 = vadd.f32 %v3437, %v3611
        %v3613 = vpop.f32.mrb[0].mxu0
        %3614 = vmatprep.mubr.bf16.mxu0 0
        %3615 = vmatmul.mubr.bf16.gmra.mrb[0].mxu0 %v3430
        %v3616 = vpop.f32.mrb[0].mxu0
        %v3617 = vadd.f32 %v3437, %v3616
        %v3618 = vpop.f32.mrb[0].mxu0
        %v3619 = vpop.f32.mrb[0].mxu0
        %v3620 = vadd.f32 %v3437, %v3619
        %v3621 = vpop.f32.mrb[0].mxu0
        %3622 = vmatprep.mubr.bf16.mxu0 0
        %3623 = vmatmul.mubr.bf16.gmra.mrb[0].mxu0 %v3431
        %v3624 = vpop.f32.mrb[0].mxu0
        %v3625 = vadd.f32 %v3437, %v3624
        %v3626 = vpop.f32.mrb[0].mxu0
        %v3627 = vpop.f32.mrb[0].mxu0
        %v3628 = vadd.f32 %v3437, %v3627
        %v3629 = vpop.f32.mrb[0].mxu0
        %3630 = vmatprep.mubr.bf16.mxu0 0
        %3631 = vmatmul.mubr.bf16.gmra.mrb[0].mxu0 %v3432
        %v3632 = vpop.f32.mrb[0].mxu0
        %v3633 = vadd.f32 %v3437, %v3632
        %v3634 = vpop.f32.mrb[0].mxu0
        %v3635 = vpop.f32.mrb[0].mxu0
        %v3636 = vadd.f32 %v3437, %v3635
        %v3637 = vpop.f32.mrb[0].mxu0
        %3638 = vmatprep.mubr.bf16.mxu0 0
        %3639 = vmatmul.mubr.bf16.gmra.mrb[0].mxu0 %v3433
        %v3640 = vpop.f32.mrb[0].mxu0
        %v3641 = vadd.f32 %v3437, %v3640
        %v3642 = vpop.f32.mrb[0].mxu0
        %v3643 = vpop.f32.mrb[0].mxu0
        %v3644 = vadd.f32 %v3437, %v3643
        %v3645 = vpop.f32.mrb[0].mxu0
        %3646 = vdwg.mxu0
        %v3647 = vlaneseq
        %v3648 = vshrl.u32 %v3647, 7
        %v3649 = vsub.s32 6, %v3648
        %v3650 = vrot.slane %v508, %v3649
        %v3651 = vmul.f32 %v3521, %v3650
        %v3652 = vmul.f32 %v3524, %v3650
        %v3653 = vmul.f32 %v3529, %v3650
        %v3654 = vmul.f32 %v3532, %v3650
        %v3655 = vmul.f32 %v3537, %v3650
        %v3656 = vmul.f32 %v3540, %v3650
        %v3657 = vmul.f32 %v3545, %v3650
        %v3658 = vmul.f32 %v3548, %v3650
        %v3659 = vmul.f32 %v3553, %v3650
        %v3660 = vmul.f32 %v3556, %v3650
        %v3661 = vmul.f32 %v3561, %v3650
        %v3662 = vmul.f32 %v3564, %v3650
        %v3663 = vmul.f32 %v3569, %v3650
        %v3664 = vmul.f32 %v3572, %v3650
        %v3665 = vmul.f32 %v3577, %v3650
        %v3666 = vmul.f32 %v3580, %v3650
        %v3667 = vmul.f32 %v3585, %v3650
        %v3668 = vmul.f32 %v3588, %v3650
        %v3669 = vmul.f32 %v3593, %v3650
        %v3670 = vmul.f32 %v3596, %v3650
        %v3671 = vmul.f32 %v3601, %v3650
        %v3672 = vmul.f32 %v3604, %v3650
        %v3673 = vmul.f32 %v3609, %v3650
        %v3674 = vmul.f32 %v3612, %v3650
        %v3675 = vmul.f32 %v3617, %v3650
        %v3676 = vmul.f32 %v3620, %v3650
        %v3677 = vmul.f32 %v3625, %v3650
        %v3678 = vmul.f32 %v3628, %v3650
        %v3679 = vmul.f32 %v3633, %v3650
        %v3680 = vmul.f32 %v3636, %v3650
        %v3681 = vmul.f32 %v3641, %v3650
        %v3682 = vmul.f32 %v3644, %v3650
        %v3683 = vlaneseq
        %v3684 = vshrl.u32 %v3683, 7
        %v3685 = vsub.s32 7, %v3684
        %v3686 = vrot.slane %v508, %v3685
        %v3687 = vadd.f32 %v3651, %v3686
        %v3688 = vadd.f32 %v3652, %v3686
        %v3689 = vadd.f32 %v3653, %v3686
        %v3690 = vadd.f32 %v3654, %v3686
        %v3691 = vadd.f32 %v3655, %v3686
        %v3692 = vadd.f32 %v3656, %v3686
        %v3693 = vadd.f32 %v3657, %v3686
        %v3694 = vadd.f32 %v3658, %v3686
        %v3695 = vadd.f32 %v3659, %v3686
        %v3696 = vadd.f32 %v3660, %v3686
        %v3697 = vadd.f32 %v3661, %v3686
        %v3698 = vadd.f32 %v3662, %v3686
        %v3699 = vadd.f32 %v3663, %v3686
        %v3700 = vadd.f32 %v3664, %v3686
        %v3701 = vadd.f32 %v3665, %v3686
        %v3702 = vadd.f32 %v3666, %v3686
        %v3703 = vadd.f32 %v3667, %v3686
        %v3704 = vadd.f32 %v3668, %v3686
        %v3705 = vadd.f32 %v3669, %v3686
        %v3706 = vadd.f32 %v3670, %v3686
        %v3707 = vadd.f32 %v3671, %v3686
        %v3708 = vadd.f32 %v3672, %v3686
        %v3709 = vadd.f32 %v3673, %v3686
        %v3710 = vadd.f32 %v3674, %v3686
        %v3711 = vadd.f32 %v3675, %v3686
        %v3712 = vadd.f32 %v3676, %v3686
        %v3713 = vadd.f32 %v3677, %v3686
        %v3714 = vadd.f32 %v3678, %v3686
        %v3715 = vadd.f32 %v3679, %v3686
        %v3716 = vadd.f32 %v3680, %v3686
        %v3717 = vadd.f32 %v3681, %v3686
        %v3718 = vadd.f32 %v3682, %v3686
        %v3719 = vlaneseq
        %v3720 = vshrl.u32 %v3719, 7
        %v3721 = vsub.s32 0, %v3720
        %v3722 = vrot.slane %v509, %v3721
        %v3723 = vmul.f32 %v3687, %v3722
        %v3724 = vmul.f32 %v3688, %v3722
        %v3725 = vmul.f32 %v3689, %v3722
        %v3726 = vmul.f32 %v3690, %v3722
        %v3727 = vmul.f32 %v3691, %v3722
        %v3728 = vmul.f32 %v3692, %v3722
        %v3729 = vmul.f32 %v3693, %v3722
        %v3730 = vmul.f32 %v3694, %v3722
        %v3731 = vmul.f32 %v3695, %v3722
        %v3732 = vmul.f32 %v3696, %v3722
        %v3733 = vmul.f32 %v3697, %v3722
        %v3734 = vmul.f32 %v3698, %v3722
        %v3735 = vmul.f32 %v3699, %v3722
        %v3736 = vmul.f32 %v3700, %v3722
        %v3737 = vmul.f32 %v3701, %v3722
        %v3738 = vmul.f32 %v3702, %v3722
        %v3739 = vmul.f32 %v3703, %v3722
        %v3740 = vmul.f32 %v3704, %v3722
        %v3741 = vmul.f32 %v3705, %v3722
        %v3742 = vmul.f32 %v3706, %v3722
        %v3743 = vmul.f32 %v3707, %v3722
        %v3744 = vmul.f32 %v3708, %v3722
        %v3745 = vmul.f32 %v3709, %v3722
        %v3746 = vmul.f32 %v3710, %v3722
        %v3747 = vmul.f32 %v3711, %v3722
        %v3748 = vmul.f32 %v3712, %v3722
        %v3749 = vmul.f32 %v3713, %v3722
        %v3750 = vmul.f32 %v3714, %v3722
        %v3751 = vmul.f32 %v3715, %v3722
        %v3752 = vmul.f32 %v3716, %v3722
        %v3753 = vmul.f32 %v3717, %v3722
        %v3754 = vmul.f32 %v3718, %v3722
        %v3755 = vlaneseq
        %v3756 = vshrl.u32 %v3755, 7
        %v3757 = vsub.s32 1, %v3756
        %v3758 = vrot.slane %v509, %v3757
        %v3759 = vadd.f32 %v3723, %v3758
        %v3760 = vadd.f32 %v3724, %v3758
        %v3761 = vadd.f32 %v3725, %v3758
        %v3762 = vadd.f32 %v3726, %v3758
        %v3763 = vadd.f32 %v3727, %v3758
        %v3764 = vadd.f32 %v3728, %v3758
        %v3765 = vadd.f32 %v3729, %v3758
        %v3766 = vadd.f32 %v3730, %v3758
        %v3767 = vadd.f32 %v3731, %v3758
        %v3768 = vadd.f32 %v3732, %v3758
        %v3769 = vadd.f32 %v3733, %v3758
        %v3770 = vadd.f32 %v3734, %v3758
        %v3771 = vadd.f32 %v3735, %v3758
        %v3772 = vadd.f32 %v3736, %v3758
        %v3773 = vadd.f32 %v3737, %v3758
        %v3774 = vadd.f32 %v3738, %v3758
        %v3775 = vadd.f32 %v3739, %v3758
        %v3776 = vadd.f32 %v3740, %v3758
        %v3777 = vadd.f32 %v3741, %v3758
        %v3778 = vadd.f32 %v3742, %v3758
        %v3779 = vadd.f32 %v3743, %v3758
        %v3780 = vadd.f32 %v3744, %v3758
        %v3781 = vadd.f32 %v3745, %v3758
        %v3782 = vadd.f32 %v3746, %v3758
        %v3783 = vadd.f32 %v3747, %v3758
        %v3784 = vadd.f32 %v3748, %v3758
        %v3785 = vadd.f32 %v3749, %v3758
        %v3786 = vadd.f32 %v3750, %v3758
        %v3787 = vadd.f32 %v3751, %v3758
        %v3788 = vadd.f32 %v3752, %v3758
        %v3789 = vadd.f32 %v3753, %v3758
        %v3790 = vadd.f32 %v3754, %v3758
        %v3791 = vlaneseq
        %v3792 = vshrl.u32 %v3791, 7
        %v3793 = vsub.s32 2, %v3792
        %v3794 = vrot.slane %v509, %v3793
        %v3795 = vmul.f32 %v3794, %v3759
        %v3796 = vmul.f32 %v3794, %v3760
        %v3797 = vmul.f32 %v3794, %v3761
        %v3798 = vmul.f32 %v3794, %v3762
        %v3799 = vmul.f32 %v3794, %v3763
        %v3800 = vmul.f32 %v3794, %v3764
        %v3801 = vmul.f32 %v3794, %v3765
        %v3802 = vmul.f32 %v3794, %v3766
        %v3803 = vmul.f32 %v3794, %v3767
        %v3804 = vmul.f32 %v3794, %v3768
        %v3805 = vmul.f32 %v3794, %v3769
        %v3806 = vmul.f32 %v3794, %v3770
        %v3807 = vmul.f32 %v3794, %v3771
        %v3808 = vmul.f32 %v3794, %v3772
        %v3809 = vmul.f32 %v3794, %v3773
        %v3810 = vmul.f32 %v3794, %v3774
        %v3811 = vmul.f32 %v3794, %v3775
        %v3812 = vmul.f32 %v3794, %v3776
        %v3813 = vmul.f32 %v3794, %v3777
        %v3814 = vmul.f32 %v3794, %v3778
        %v3815 = vmul.f32 %v3794, %v3779
        %v3816 = vmul.f32 %v3794, %v3780
        %v3817 = vmul.f32 %v3794, %v3781
        %v3818 = vmul.f32 %v3794, %v3782
        %v3819 = vmul.f32 %v3794, %v3783
        %v3820 = vmul.f32 %v3794, %v3784
        %v3821 = vmul.f32 %v3794, %v3785
        %v3822 = vmul.f32 %v3794, %v3786
        %v3823 = vmul.f32 %v3794, %v3787
        %v3824 = vmul.f32 %v3794, %v3788
        %v3825 = vmul.f32 %v3794, %v3789
        %v3826 = vmul.f32 %v3794, %v3790
        %v3827 = vadd.f32 %v3521, %v3795
        %v3828 = vadd.f32 %v3524, %v3796
        %v3829 = vadd.f32 %v3529, %v3797
        %v3830 = vadd.f32 %v3532, %v3798
        %v3831 = vadd.f32 %v3537, %v3799
        %v3832 = vadd.f32 %v3540, %v3800
        %v3833 = vadd.f32 %v3545, %v3801
        %v3834 = vadd.f32 %v3548, %v3802
        %v3835 = vadd.f32 %v3553, %v3803
        %v3836 = vadd.f32 %v3556, %v3804
        %v3837 = vadd.f32 %v3561, %v3805
        %v3838 = vadd.f32 %v3564, %v3806
        %v3839 = vadd.f32 %v3569, %v3807
        %v3840 = vadd.f32 %v3572, %v3808
        %v3841 = vadd.f32 %v3577, %v3809
        %v3842 = vadd.f32 %v3580, %v3810
        %v3843 = vadd.f32 %v3585, %v3811
        %v3844 = vadd.f32 %v3588, %v3812
        %v3845 = vadd.f32 %v3593, %v3813
        %v3846 = vadd.f32 %v3596, %v3814
        %v3847 = vadd.f32 %v3601, %v3815
        %v3848 = vadd.f32 %v3604, %v3816
        %v3849 = vadd.f32 %v3609, %v3817
        %v3850 = vadd.f32 %v3612, %v3818
        %v3851 = vadd.f32 %v3617, %v3819
        %v3852 = vadd.f32 %v3620, %v3820
        %v3853 = vadd.f32 %v3625, %v3821
        %v3854 = vadd.f32 %v3628, %v3822
        %v3855 = vadd.f32 %v3633, %v3823
        %v3856 = vadd.f32 %v3636, %v3824
        %v3857 = vadd.f32 %v3641, %v3825
        %v3858 = vadd.f32 %v3644, %v3826
        %v3859 = vlaneseq
        %v3860 = vshrl.u32 %v3859, 7
        %v3861 = vsub.s32 3, %v3860
        %v3862 = vrot.slane %v509, %v3861
        %v3863 = vmul.f32 %v3827, %v3862
        %v3864 = vmul.f32 %v3828, %v3862
        %v3865 = vmul.f32 %v3829, %v3862
        %v3866 = vmul.f32 %v3830, %v3862
        %v3867 = vmul.f32 %v3831, %v3862
        %v3868 = vmul.f32 %v3832, %v3862
        %v3869 = vmul.f32 %v3833, %v3862
        %v3870 = vmul.f32 %v3834, %v3862
        %v3871 = vmul.f32 %v3835, %v3862
        %v3872 = vmul.f32 %v3836, %v3862
        %v3873 = vmul.f32 %v3837, %v3862
        %v3874 = vmul.f32 %v3838, %v3862
        %v3875 = vmul.f32 %v3839, %v3862
        %v3876 = vmul.f32 %v3840, %v3862
        %v3877 = vmul.f32 %v3841, %v3862
        %v3878 = vmul.f32 %v3842, %v3862
        %v3879 = vmul.f32 %v3843, %v3862
        %v3880 = vmul.f32 %v3844, %v3862
        %v3881 = vmul.f32 %v3845, %v3862
        %v3882 = vmul.f32 %v3846, %v3862
        %v3883 = vmul.f32 %v3847, %v3862
        %v3884 = vmul.f32 %v3848, %v3862
        %v3885 = vmul.f32 %v3849, %v3862
        %v3886 = vmul.f32 %v3850, %v3862
        %v3887 = vmul.f32 %v3851, %v3862
        %v3888 = vmul.f32 %v3852, %v3862
        %v3889 = vmul.f32 %v3853, %v3862
        %v3890 = vmul.f32 %v3854, %v3862
        %v3891 = vmul.f32 %v3855, %v3862
        %v3892 = vmul.f32 %v3856, %v3862
        %v3893 = vmul.f32 %v3857, %v3862
        %v3894 = vmul.f32 %v3858, %v3862
        %v3895 = vlaneseq
        %v3896 = vshrl.u32 %v3895, 7
        %v3897 = vsub.s32 4, %v3896
        %v3898 = vrot.slane %v509, %v3897
        %v3899 = vadd.f32 %v3863, %v3898
        %v3900 = vadd.f32 %v3864, %v3898
        %v3901 = vadd.f32 %v3865, %v3898
        %v3902 = vadd.f32 %v3866, %v3898
        %v3903 = vadd.f32 %v3867, %v3898
        %v3904 = vadd.f32 %v3868, %v3898
        %v3905 = vadd.f32 %v3869, %v3898
        %v3906 = vadd.f32 %v3870, %v3898
        %v3907 = vadd.f32 %v3871, %v3898
        %v3908 = vadd.f32 %v3872, %v3898
        %v3909 = vadd.f32 %v3873, %v3898
        %v3910 = vadd.f32 %v3874, %v3898
        %v3911 = vadd.f32 %v3875, %v3898
        %v3912 = vadd.f32 %v3876, %v3898
        %v3913 = vadd.f32 %v3877, %v3898
        %v3914 = vadd.f32 %v3878, %v3898
        %v3915 = vadd.f32 %v3879, %v3898
        %v3916 = vadd.f32 %v3880, %v3898
        %v3917 = vadd.f32 %v3881, %v3898
        %v3918 = vadd.f32 %v3882, %v3898
        %v3919 = vadd.f32 %v3883, %v3898
        %v3920 = vadd.f32 %v3884, %v3898
        %v3921 = vadd.f32 %v3885, %v3898
        %v3922 = vadd.f32 %v3886, %v3898
        %v3923 = vadd.f32 %v3887, %v3898
        %v3924 = vadd.f32 %v3888, %v3898
        %v3925 = vadd.f32 %v3889, %v3898
        %v3926 = vadd.f32 %v3890, %v3898
        %v3927 = vadd.f32 %v3891, %v3898
        %v3928 = vadd.f32 %v3892, %v3898
        %v3929 = vadd.f32 %v3893, %v3898
        %v3930 = vadd.f32 %v3894, %v3898
        %v3931 = vld [vmem:[%s9] sm:$0xf]
        %v3932 = vld [vmem:[%s9 + $0x4] sm:$0xf]
        %v3933 = vld [vmem:[%s9 + $0x8] sm:$0xf]
        %v3934 = vld [vmem:[%s9 + $0xc] sm:$0xf]
        %v3935 = vld [vmem:[%s9 + $0x10] sm:$0xf]
        %v3936 = vld [vmem:[%s9 + $0x14] sm:$0xf]
        %v3937 = vld [vmem:[%s9 + $0x18] sm:$0xf]
        %v3938 = vld [vmem:[%s9 + $0x1c] sm:$0xf]
        %v3939 = vld [vmem:[%s9 + $0x20] sm:$0xf]
        %v3940 = vld [vmem:[%s9 + $0x24] sm:$0xf]
        %v3941 = vld [vmem:[%s9 + $0x28] sm:$0xf]
        %v3942 = vld [vmem:[%s9 + $0x2c] sm:$0xf]
        %v3943 = vld [vmem:[%s9 + $0x30] sm:$0xf]
        %v3944 = vld [vmem:[%s9 + $0x34] sm:$0xf]
        %v3945 = vld [vmem:[%s9 + $0x38] sm:$0xf]
        %v3946 = vld [vmem:[%s9 + $0x3c] sm:$0xf]
        %v3947 = vpack.c.bf16 %v3900, %v3899
        %v3948 = vpack.c.bf16 %v3902, %v3901
        %v3949 = vpack.c.bf16 %v3904, %v3903
        %v3950 = vpack.c.bf16 %v3906, %v3905
        %v3951 = vpack.c.bf16 %v3908, %v3907
        %v3952 = vpack.c.bf16 %v3910, %v3909
        %v3953 = vpack.c.bf16 %v3912, %v3911
        %v3954 = vpack.c.bf16 %v3914, %v3913
        %v3955 = vpack.c.bf16 %v3916, %v3915
        %v3956 = vpack.c.bf16 %v3918, %v3917
        %v3957 = vpack.c.bf16 %v3920, %v3919
        %v3958 = vpack.c.bf16 %v3922, %v3921
        %v3959 = vpack.c.bf16 %v3924, %v3923
        %v3960 = vpack.c.bf16 %v3926, %v3925
        %v3961 = vpack.c.bf16 %v3928, %v3927
        %v3962 = vpack.c.bf16 %v3930, %v3929
        %v3963 = vld [vmem:[%s10] sm:$0x1]
        %v3965 = vlaneseq
        %v3966 = vshrl.u32 %v3965, 7
        %v3967 = vsub.s32 0, %v3966
        %v3968 = vrot.slane %v3963, %v3967
        %v3986 = vunpack.c.l.b16 %v3931
        %v3987 = vunpack.c.l.b16 %v3932
        %v3988 = vunpack.c.l.b16 %v3933
        %v3989 = vunpack.c.l.b16 %v3934
        %v3990 = vunpack.c.l.b16 %v3935
        %v3991 = vunpack.c.l.b16 %v3936
        %v3992 = vunpack.c.l.b16 %v3937
        %v3993 = vunpack.c.l.b16 %v3938
        %v3994 = vunpack.c.l.b16 %v3939
        %v3995 = vunpack.c.l.b16 %v3940
        %v3996 = vunpack.c.l.b16 %v3941
        %v3997 = vunpack.c.l.b16 %v3942
        %v3998 = vunpack.c.l.b16 %v3943
        %v3999 = vunpack.c.l.b16 %v3944
        %v4000 = vunpack.c.l.b16 %v3945
        %v4001 = vunpack.c.l.b16 %v3946
        %v4002 = vpack.c.b16 %v3987, %v3986
        %v4003 = vpack.c.b16 %v3989, %v3988
        %v4004 = vpack.c.b16 %v3991, %v3990
        %v4005 = vpack.c.b16 %v3993, %v3992
        %v4006 = vpack.c.b16 %v3995, %v3994
        %v4007 = vpack.c.b16 %v3997, %v3996
        %v4008 = vpack.c.b16 %v3999, %v3998
        %v4009 = vpack.c.b16 %v4001, %v4000
        %4018 = vmatprep.subr.bf16.mxu0 0
        %4019 = vmatpush1.bf16.msra.mxu0 %v4002
        %4020 = vmatprep.subr.bf16.mxu0 0
        %4021 = vmatpush1.bf16.msra.mxu0 %v4003
        %4022 = vmatprep.subr.bf16.mxu0 0
        %4023 = vmatpush1.bf16.msra.mxu0 %v4004
        %4024 = vmatprep.subr.bf16.mxu0 0
        %4025 = vmatpush1.bf16.msra.mxu0 %v4005
        %4026 = vmatprep.subr.bf16.mxu0 0
        %4027 = vmatpush1.bf16.msra.mxu0 %v4006
        %4028 = vmatprep.subr.bf16.mxu0 0
        %4029 = vmatpush1.bf16.msra.mxu0 %v4007
        %4030 = vmatprep.subr.bf16.mxu0 0
        %4031 = vmatpush1.bf16.msra.mxu0 %v4008
        %4032 = vmatprep.subr.bf16.mxu0 0
        %4033 = vmatpush1.bf16.msra.mxu0 %v4009
        %4034 = vmatprep.subr.bf16.mxu0 0
        %4035 = vmatpush1.bf16.msra.mxu0 0
        %4036 = vmatprep.subr.bf16.mxu0 0
        %4037 = vmatpush1.bf16.msra.mxu0 0
        %4038 = vmatprep.subr.bf16.mxu0 0
        %4039 = vmatpush1.bf16.msra.mxu0 0
        %4040 = vmatprep.subr.bf16.mxu0 0
        %4041 = vmatpush1.bf16.msra.mxu0 0
        %4042 = vmatprep.subr.bf16.mxu0 0
        %4043 = vmatpush1.bf16.msra.mxu0 0
        %4044 = vmatprep.subr.bf16.mxu0 0
        %4045 = vmatpush1.bf16.msra.mxu0 0
        %4046 = vmatprep.subr.bf16.mxu0 0
        %4047 = vmatpush1.bf16.msra.mxu0 0
        %4048 = vmatprep.subr.bf16.mxu0 0
        %4049 = vmatpush1.bf16.msra.mxu0 0
        %4050 = vmatprep.mubr.bf16.mxu0 0
        %4051 = vmatmul.mubr.bf16.gmra.mrb[0].mxu0 %v3947
        %v4052 = vpop.f32.mrb[0].mxu0
        %v4053 = vadd.f32 %v3968, %v4052
        %v4054 = vpop.f32.mrb[0].mxu0
        %v4055 = vpop.f32.mrb[0].mxu0
        %v4056 = vadd.f32 %v3968, %v4055
        %v4057 = vpop.f32.mrb[0].mxu0
        %4058 = vmatprep.mubr.bf16.mxu0 0
        %4059 = vmatmul.mubr.bf16.gmra.mrb[0].mxu0 %v3948
        %v4060 = vpop.f32.mrb[0].mxu0
        %v4061 = vadd.f32 %v3968, %v4060
        %v4062 = vpop.f32.mrb[0].mxu0
        %v4063 = vpop.f32.mrb[0].mxu0
        %v4064 = vadd.f32 %v3968, %v4063
        %v4065 = vpop.f32.mrb[0].mxu0
        %4066 = vmatprep.mubr.bf16.mxu0 0
        %4067 = vmatmul.mubr.bf16.gmra.mrb[0].mxu0 %v3949
        %v4068 = vpop.f32.mrb[0].mxu0
        %v4069 = vadd.f32 %v3968, %v4068
        %v4070 = vpop.f32.mrb[0].mxu0
        %v4071 = vpop.f32.mrb[0].mxu0
        %v4072 = vadd.f32 %v3968, %v4071
        %v4073 = vpop.f32.mrb[0].mxu0
        %4074 = vmatprep.mubr.bf16.mxu0 0
        %4075 = vmatmul.mubr.bf16.gmra.mrb[0].mxu0 %v3950
        %v4076 = vpop.f32.mrb[0].mxu0
        %v4077 = vadd.f32 %v3968, %v4076
        %v4078 = vpop.f32.mrb[0].mxu0
        %v4079 = vpop.f32.mrb[0].mxu0
        %v4080 = vadd.f32 %v3968, %v4079
        %v4081 = vpop.f32.mrb[0].mxu0
        %4082 = vmatprep.mubr.bf16.mxu0 0
        %4083 = vmatmul.mubr.bf16.gmra.mrb[0].mxu0 %v3951
        %v4084 = vpop.f32.mrb[0].mxu0
        %v4085 = vadd.f32 %v3968, %v4084
        %v4086 = vpop.f32.mrb[0].mxu0
        %v4087 = vpop.f32.mrb[0].mxu0
        %v4088 = vadd.f32 %v3968, %v4087
        %v4089 = vpop.f32.mrb[0].mxu0
        %4090 = vmatprep.mubr.bf16.mxu0 0
        %4091 = vmatmul.mubr.bf16.gmra.mrb[0].mxu0 %v3952
        %v4092 = vpop.f32.mrb[0].mxu0
        %v4093 = vadd.f32 %v3968, %v4092
        %v4094 = vpop.f32.mrb[0].mxu0
        %v4095 = vpop.f32.mrb[0].mxu0
        %v4096 = vadd.f32 %v3968, %v4095
        %v4097 = vpop.f32.mrb[0].mxu0
        %4098 = vmatprep.mubr.bf16.mxu0 0
        %4099 = vmatmul.mubr.bf16.gmra.mrb[0].mxu0 %v3953
        %v4100 = vpop.f32.mrb[0].mxu0
        %v4101 = vadd.f32 %v3968, %v4100
        %v4102 = vpop.f32.mrb[0].mxu0
        %v4103 = vpop.f32.mrb[0].mxu0
        %v4104 = vadd.f32 %v3968, %v4103
        %v4105 = vpop.f32.mrb[0].mxu0
        %4106 = vmatprep.mubr.bf16.mxu0 0
        %4107 = vmatmul.mubr.bf16.gmra.mrb[0].mxu0 %v3954
        %v4108 = vpop.f32.mrb[0].mxu0
        %v4109 = vadd.f32 %v3968, %v4108
        %v4110 = vpop.f32.mrb[0].mxu0
        %v4111 = vpop.f32.mrb[0].mxu0
        %v4112 = vadd.f32 %v3968, %v4111
        %v4113 = vpop.f32.mrb[0].mxu0
        %4114 = vmatprep.mubr.bf16.mxu0 0
        %4115 = vmatmul.mubr.bf16.gmra.mrb[0].mxu0 %v3955
        %v4116 = vpop.f32.mrb[0].mxu0
        %v4117 = vadd.f32 %v3968, %v4116
        %v4118 = vpop.f32.mrb[0].mxu0
        %v4119 = vpop.f32.mrb[0].mxu0
        %v4120 = vadd.f32 %v3968, %v4119
        %v4121 = vpop.f32.mrb[0].mxu0
        %4122 = vmatprep.mubr.bf16.mxu0 0
        %4123 = vmatmul.mubr.bf16.gmra.mrb[0].mxu0 %v3956
        %v4124 = vpop.f32.mrb[0].mxu0
        %v4125 = vadd.f32 %v3968, %v4124
        %v4126 = vpop.f32.mrb[0].mxu0
        %v4127 = vpop.f32.mrb[0].mxu0
        %v4128 = vadd.f32 %v3968, %v4127
        %v4129 = vpop.f32.mrb[0].mxu0
        %4130 = vmatprep.mubr.bf16.mxu0 0
        %4131 = vmatmul.mubr.bf16.gmra.mrb[0].mxu0 %v3957
        %v4132 = vpop.f32.mrb[0].mxu0
        %v4133 = vadd.f32 %v3968, %v4132
        %v4134 = vpop.f32.mrb[0].mxu0
        %v4135 = vpop.f32.mrb[0].mxu0
        %v4136 = vadd.f32 %v3968, %v4135
        %v4137 = vpop.f32.mrb[0].mxu0
        %4138 = vmatprep.mubr.bf16.mxu0 0
        %4139 = vmatmul.mubr.bf16.gmra.mrb[0].mxu0 %v3958
        %v4140 = vpop.f32.mrb[0].mxu0
        %v4141 = vadd.f32 %v3968, %v4140
        %v4142 = vpop.f32.mrb[0].mxu0
        %v4143 = vpop.f32.mrb[0].mxu0
        %v4144 = vadd.f32 %v3968, %v4143
        %v4145 = vpop.f32.mrb[0].mxu0
        %4146 = vmatprep.mubr.bf16.mxu0 0
        %4147 = vmatmul.mubr.bf16.gmra.mrb[0].mxu0 %v3959
        %v4148 = vpop.f32.mrb[0].mxu0
        %v4149 = vadd.f32 %v3968, %v4148
        %v4150 = vpop.f32.mrb[0].mxu0
        %v4151 = vpop.f32.mrb[0].mxu0
        %v4152 = vadd.f32 %v3968, %v4151
        %v4153 = vpop.f32.mrb[0].mxu0
        %4154 = vmatprep.mubr.bf16.mxu0 0
        %4155 = vmatmul.mubr.bf16.gmra.mrb[0].mxu0 %v3960
        %v4156 = vpop.f32.mrb[0].mxu0
        %v4157 = vadd.f32 %v3968, %v4156
        %v4158 = vpop.f32.mrb[0].mxu0
        %v4159 = vpop.f32.mrb[0].mxu0
        %v4160 = vadd.f32 %v3968, %v4159
        %v4161 = vpop.f32.mrb[0].mxu0
        %4162 = vmatprep.mubr.bf16.mxu0 0
        %4163 = vmatmul.mubr.bf16.gmra.mrb[0].mxu0 %v3961
        %v4164 = vpop.f32.mrb[0].mxu0
        %v4165 = vadd.f32 %v3968, %v4164
        %v4166 = vpop.f32.mrb[0].mxu0
        %v4167 = vpop.f32.mrb[0].mxu0
        %v4168 = vadd.f32 %v3968, %v4167
        %v4169 = vpop.f32.mrb[0].mxu0
        %4170 = vmatprep.mubr.bf16.mxu0 0
        %4171 = vmatmul.mubr.bf16.gmra.mrb[0].mxu0 %v3962
        %v4172 = vpop.f32.mrb[0].mxu0
        %v4173 = vadd.f32 %v3968, %v4172
        %v4174 = vpop.f32.mrb[0].mxu0
        %v4175 = vpop.f32.mrb[0].mxu0
        %v4176 = vadd.f32 %v3968, %v4175
        %v4177 = vpop.f32.mrb[0].mxu0
        %4178 = vdwg.mxu0
        %v4179 = vmul.f32 %v4053, %v4053
        %v4180 = vmul.f32 %v4056, %v4056
        %v4181 = vmul.f32 %v4061, %v4061
        %v4182 = vmul.f32 %v4064, %v4064
        %v4183 = vmul.f32 %v4069, %v4069
        %v4184 = vmul.f32 %v4072, %v4072
        %v4185 = vmul.f32 %v4077, %v4077
        %v4186 = vmul.f32 %v4080, %v4080
        %v4187 = vmul.f32 %v4085, %v4085
        %v4188 = vmul.f32 %v4088, %v4088
        %v4189 = vmul.f32 %v4093, %v4093
        %v4190 = vmul.f32 %v4096, %v4096
        %v4191 = vmul.f32 %v4101, %v4101
        %v4192 = vmul.f32 %v4104, %v4104
        %v4193 = vmul.f32 %v4109, %v4109
        %v4194 = vmul.f32 %v4112, %v4112
        %v4195 = vmul.f32 %v4117, %v4117
        %v4196 = vmul.f32 %v4120, %v4120
        %v4197 = vmul.f32 %v4125, %v4125
        %v4198 = vmul.f32 %v4128, %v4128
        %v4199 = vmul.f32 %v4133, %v4133
        %v4200 = vmul.f32 %v4136, %v4136
        %v4201 = vmul.f32 %v4141, %v4141
        %v4202 = vmul.f32 %v4144, %v4144
        %v4203 = vmul.f32 %v4149, %v4149
        %v4204 = vmul.f32 %v4152, %v4152
        %v4205 = vmul.f32 %v4157, %v4157
        %v4206 = vmul.f32 %v4160, %v4160
        %v4207 = vmul.f32 %v4165, %v4165
        %v4208 = vmul.f32 %v4168, %v4168
        %v4209 = vmul.f32 %v4173, %v4173
        %v4210 = vmul.f32 %v4176, %v4176
        %v4211 = vmul.f32 %v4053, %v4179
        %v4212 = vmul.f32 %v4056, %v4180
        %v4213 = vmul.f32 %v4061, %v4181
        %v4214 = vmul.f32 %v4064, %v4182
        %v4215 = vmul.f32 %v4069, %v4183
        %v4216 = vmul.f32 %v4072, %v4184
        %v4217 = vmul.f32 %v4077, %v4185
        %v4218 = vmul.f32 %v4080, %v4186
        %v4219 = vmul.f32 %v4085, %v4187
        %v4220 = vmul.f32 %v4088, %v4188
        %v4221 = vmul.f32 %v4093, %v4189
        %v4222 = vmul.f32 %v4096, %v4190
        %v4223 = vmul.f32 %v4101, %v4191
        %v4224 = vmul.f32 %v4104, %v4192
        %v4225 = vmul.f32 %v4109, %v4193
        %v4226 = vmul.f32 %v4112, %v4194
        %v4227 = vmul.f32 %v4117, %v4195
        %v4228 = vmul.f32 %v4120, %v4196
        %v4229 = vmul.f32 %v4125, %v4197
        %v4230 = vmul.f32 %v4128, %v4198
        %v4231 = vmul.f32 %v4133, %v4199
        %v4232 = vmul.f32 %v4136, %v4200
        %v4233 = vmul.f32 %v4141, %v4201
        %v4234 = vmul.f32 %v4144, %v4202
        %v4235 = vmul.f32 %v4149, %v4203
        %v4236 = vmul.f32 %v4152, %v4204
        %v4237 = vmul.f32 %v4157, %v4205
        %v4238 = vmul.f32 %v4160, %v4206
        %v4239 = vmul.f32 %v4165, %v4207
        %v4240 = vmul.f32 %v4168, %v4208
        %v4241 = vmul.f32 %v4173, %v4209
        %v4242 = vmul.f32 %v4176, %v4210
        %v4243 = vmul.f32 %v4211, 0.044715
        %v4244 = vmul.f32 %v4212, 0.044715
        %v4245 = vmul.f32 %v4213, 0.044715
        %v4246 = vmul.f32 %v4214, 0.044715
        %v4247 = vmul.f32 %v4215, 0.044715
        %v4248 = vmul.f32 %v4216, 0.044715
        %v4249 = vmul.f32 %v4217, 0.044715
        %v4250 = vmul.f32 %v4218, 0.044715
        %v4251 = vmul.f32 %v4219, 0.044715
        %v4252 = vmul.f32 %v4220, 0.044715
        %v4253 = vmul.f32 %v4221, 0.044715
        %v4254 = vmul.f32 %v4222, 0.044715
        %v4255 = vmul.f32 %v4223, 0.044715
        %v4256 = vmul.f32 %v4224, 0.044715
        %v4257 = vmul.f32 %v4225, 0.044715
        %v4258 = vmul.f32 %v4226, 0.044715
        %v4259 = vmul.f32 %v4227, 0.044715
        %v4260 = vmul.f32 %v4228, 0.044715
        %v4261 = vmul.f32 %v4229, 0.044715
        %v4262 = vmul.f32 %v4230, 0.044715
        %v4263 = vmul.f32 %v4231, 0.044715
        %v4264 = vmul.f32 %v4232, 0.044715
        %v4265 = vmul.f32 %v4233, 0.044715
        %v4266 = vmul.f32 %v4234, 0.044715
        %v4267 = vmul.f32 %v4235, 0.044715
        %v4268 = vmul.f32 %v4236, 0.044715
        %v4269 = vmul.f32 %v4237, 0.044715
        %v4270 = vmul.f32 %v4238, 0.044715
        %v4271 = vmul.f32 %v4239, 0.044715
        %v4272 = vmul.f32 %v4240, 0.044715
        %v4273 = vmul.f32 %v4241, 0.044715
        %v4274 = vmul.f32 %v4242, 0.044715
        %v4275 = vadd.f32 %v4053, %v4243
        %v4276 = vadd.f32 %v4056, %v4244
        %v4277 = vadd.f32 %v4061, %v4245
        %v4278 = vadd.f32 %v4064, %v4246
        %v4279 = vadd.f32 %v4069, %v4247
        %v4280 = vadd.f32 %v4072, %v4248
        %v4281 = vadd.f32 %v4077, %v4249
        %v4282 = vadd.f32 %v4080, %v4250
        %v4283 = vadd.f32 %v4085, %v4251
        %v4284 = vadd.f32 %v4088, %v4252
        %v4285 = vadd.f32 %v4093, %v4253
        %v4286 = vadd.f32 %v4096, %v4254
        %v4287 = vadd.f32 %v4101, %v4255
        %v4288 = vadd.f32 %v4104, %v4256
        %v4289 = vadd.f32 %v4109, %v4257
        %v4290 = vadd.f32 %v4112, %v4258
        %v4291 = vadd.f32 %v4117, %v4259
        %v4292 = vadd.f32 %v4120, %v4260
        %v4293 = vadd.f32 %v4125, %v4261
        %v4294 = vadd.f32 %v4128, %v4262
        %v4295 = vadd.f32 %v4133, %v4263
        %v4296 = vadd.f32 %v4136, %v4264
        %v4297 = vadd.f32 %v4141, %v4265
        %v4298 = vadd.f32 %v4144, %v4266
        %v4299 = vadd.f32 %v4149, %v4267
        %v4300 = vadd.f32 %v4152, %v4268
        %v4301 = vadd.f32 %v4157, %v4269
        %v4302 = vadd.f32 %v4160, %v4270
        %v4303 = vadd.f32 %v4165, %v4271
        %v4304 = vadd.f32 %v4168, %v4272
        %v4305 = vadd.f32 %v4173, %v4273
        %v4306 = vadd.f32 %v4176, %v4274
        %v4307 = vmul.f32 %v4275, 0.7978846
        %v4308 = vmul.f32 %v4276, 0.7978846
        %v4309 = vmul.f32 %v4277, 0.7978846
        %v4310 = vmul.f32 %v4278, 0.7978846
        %v4311 = vmul.f32 %v4279, 0.7978846
        %v4312 = vmul.f32 %v4280, 0.7978846
        %v4313 = vmul.f32 %v4281, 0.7978846
        %v4314 = vmul.f32 %v4282, 0.7978846
        %v4315 = vmul.f32 %v4283, 0.7978846
        %v4316 = vmul.f32 %v4284, 0.7978846
        %v4317 = vmul.f32 %v4285, 0.7978846
        %v4318 = vmul.f32 %v4286, 0.7978846
        %v4319 = vmul.f32 %v4287, 0.7978846
        %v4320 = vmul.f32 %v4288, 0.7978846
        %v4321 = vmul.f32 %v4289, 0.7978846
        %v4322 = vmul.f32 %v4290, 0.7978846
        %v4323 = vmul.f32 %v4291, 0.7978846
        %v4324 = vmul.f32 %v4292, 0.7978846
        %v4325 = vmul.f32 %v4293, 0.7978846
        %v4326 = vmul.f32 %v4294, 0.7978846
        %v4327 = vmul.f32 %v4295, 0.7978846
        %v4328 = vmul.f32 %v4296, 0.7978846
        %v4329 = vmul.f32 %v4297, 0.7978846
        %v4330 = vmul.f32 %v4298, 0.7978846
        %v4331 = vmul.f32 %v4299, 0.7978846
        %v4332 = vmul.f32 %v4300, 0.7978846
        %v4333 = vmul.f32 %v4301, 0.7978846
        %v4334 = vmul.f32 %v4302, 0.7978846
        %v4335 = vmul.f32 %v4303, 0.7978846
        %v4336 = vmul.f32 %v4304, 0.7978846
        %v4337 = vmul.f32 %v4305, 0.7978846
        %v4338 = vmul.f32 %v4306, 0.7978846
        %v4339 = vtanh.pop %v4307
        %v4340 = vtanh.pop %v4308
        %v4341 = vtanh.pop %v4309
        %v4342 = vtanh.pop %v4310
        %v4343 = vtanh.pop %v4311
        %v4344 = vtanh.pop %v4312
        %v4345 = vtanh.pop %v4313
        %v4346 = vtanh.pop %v4314
        %v4347 = vtanh.pop %v4315
        %v4348 = vtanh.pop %v4316
        %v4349 = vtanh.pop %v4317
        %v4350 = vtanh.pop %v4318
        %v4351 = vtanh.pop %v4319
        %v4352 = vtanh.pop %v4320
        %v4353 = vtanh.pop %v4321
        %v4354 = vtanh.pop %v4322
        %v4355 = vtanh.pop %v4323
        %v4356 = vtanh.pop %v4324
        %v4357 = vtanh.pop %v4325
        %v4358 = vtanh.pop %v4326
        %v4359 = vtanh.pop %v4327
        %v4360 = vtanh.pop %v4328
        %v4361 = vtanh.pop %v4329
        %v4362 = vtanh.pop %v4330
        %v4363 = vtanh.pop %v4331
        %v4364 = vtanh.pop %v4332
        %v4365 = vtanh.pop %v4333
        %v4366 = vtanh.pop %v4334
        %v4367 = vtanh.pop %v4335
        %v4368 = vtanh.pop %v4336
        %v4369 = vtanh.pop %v4337
        %v4370 = vtanh.pop %v4338
        %v4371 = vadd.f32 %v4339, 1.0
        %v4372 = vadd.f32 %v4340, 1.0
        %v4373 = vadd.f32 %v4341, 1.0
        %v4374 = vadd.f32 %v4342, 1.0
        %v4375 = vadd.f32 %v4343, 1.0
        %v4376 = vadd.f32 %v4344, 1.0
        %v4377 = vadd.f32 %v4345, 1.0
        %v4378 = vadd.f32 %v4346, 1.0
        %v4379 = vadd.f32 %v4347, 1.0
        %v4380 = vadd.f32 %v4348, 1.0
        %v4381 = vadd.f32 %v4349, 1.0
        %v4382 = vadd.f32 %v4350, 1.0
        %v4383 = vadd.f32 %v4351, 1.0
        %v4384 = vadd.f32 %v4352, 1.0
        %v4385 = vadd.f32 %v4353, 1.0
        %v4386 = vadd.f32 %v4354, 1.0
        %v4387 = vadd.f32 %v4355, 1.0
        %v4388 = vadd.f32 %v4356, 1.0
        %v4389 = vadd.f32 %v4357, 1.0
        %v4390 = vadd.f32 %v4358, 1.0
        %v4391 = vadd.f32 %v4359, 1.0
        %v4392 = vadd.f32 %v4360, 1.0
        %v4393 = vadd.f32 %v4361, 1.0
        %v4394 = vadd.f32 %v4362, 1.0
        %v4395 = vadd.f32 %v4363, 1.0
        %v4396 = vadd.f32 %v4364, 1.0
        %v4397 = vadd.f32 %v4365, 1.0
        %v4398 = vadd.f32 %v4366, 1.0
        %v4399 = vadd.f32 %v4367, 1.0
        %v4400 = vadd.f32 %v4368, 1.0
        %v4401 = vadd.f32 %v4369, 1.0
        %v4402 = vadd.f32 %v4370, 1.0
        %v4403 = vmul.f32 %v4371, 0.5
        %v4404 = vmul.f32 %v4372, 0.5
        %v4405 = vmul.f32 %v4373, 0.5
        %v4406 = vmul.f32 %v4374, 0.5
        %v4407 = vmul.f32 %v4375, 0.5
        %v4408 = vmul.f32 %v4376, 0.5
        %v4409 = vmul.f32 %v4377, 0.5
        %v4410 = vmul.f32 %v4378, 0.5
        %v4411 = vmul.f32 %v4379, 0.5
        %v4412 = vmul.f32 %v4380, 0.5
        %v4413 = vmul.f32 %v4381, 0.5
        %v4414 = vmul.f32 %v4382, 0.5
        %v4415 = vmul.f32 %v4383, 0.5
        %v4416 = vmul.f32 %v4384, 0.5
        %v4417 = vmul.f32 %v4385, 0.5
        %v4418 = vmul.f32 %v4386, 0.5
        %v4419 = vmul.f32 %v4387, 0.5
        %v4420 = vmul.f32 %v4388, 0.5
        %v4421 = vmul.f32 %v4389, 0.5
        %v4422 = vmul.f32 %v4390, 0.5
        %v4423 = vmul.f32 %v4391, 0.5
        %v4424 = vmul.f32 %v4392, 0.5
        %v4425 = vmul.f32 %v4393, 0.5
        %v4426 = vmul.f32 %v4394, 0.5
        %v4427 = vmul.f32 %v4395, 0.5
        %v4428 = vmul.f32 %v4396, 0.5
        %v4429 = vmul.f32 %v4397, 0.5
        %v4430 = vmul.f32 %v4398, 0.5
        %v4431 = vmul.f32 %v4399, 0.5
        %v4432 = vmul.f32 %v4400, 0.5
        %v4433 = vmul.f32 %v4401, 0.5
        %v4434 = vmul.f32 %v4402, 0.5
        %v4435 = vmul.f32 %v4053, %v4403
        %v4436 = vmul.f32 %v4056, %v4404
        %v4437 = vmul.f32 %v4061, %v4405
        %v4438 = vmul.f32 %v4064, %v4406
        %v4439 = vmul.f32 %v4069, %v4407
        %v4440 = vmul.f32 %v4072, %v4408
        %v4441 = vmul.f32 %v4077, %v4409
        %v4442 = vmul.f32 %v4080, %v4410
        %v4443 = vmul.f32 %v4085, %v4411
        %v4444 = vmul.f32 %v4088, %v4412
        %v4445 = vmul.f32 %v4093, %v4413
        %v4446 = vmul.f32 %v4096, %v4414
        %v4447 = vmul.f32 %v4101, %v4415
        %v4448 = vmul.f32 %v4104, %v4416
        %v4449 = vmul.f32 %v4109, %v4417
        %v4450 = vmul.f32 %v4112, %v4418
        %v4451 = vmul.f32 %v4117, %v4419
        %v4452 = vmul.f32 %v4120, %v4420
        %v4453 = vmul.f32 %v4125, %v4421
        %v4454 = vmul.f32 %v4128, %v4422
        %v4455 = vmul.f32 %v4133, %v4423
        %v4456 = vmul.f32 %v4136, %v4424
        %v4457 = vmul.f32 %v4141, %v4425
        %v4458 = vmul.f32 %v4144, %v4426
        %v4459 = vmul.f32 %v4149, %v4427
        %v4460 = vmul.f32 %v4152, %v4428
        %v4461 = vmul.f32 %v4157, %v4429
        %v4462 = vmul.f32 %v4160, %v4430
        %v4463 = vmul.f32 %v4165, %v4431
        %v4464 = vmul.f32 %v4168, %v4432
        %v4465 = vmul.f32 %v4173, %v4433
        %v4466 = vmul.f32 %v4176, %v4434
        %v4467 = vld [vmem:[%s11] sm:$0xf]
        %v4468 = vld [vmem:[%s11 + $0x4] sm:$0xf]
        %v4469 = vld [vmem:[%s11 + $0x8] sm:$0xf]
        %v4470 = vld [vmem:[%s11 + $0xc] sm:$0xf]
        %v4471 = vld [vmem:[%s11 + $0x10] sm:$0xf]
        %v4472 = vld [vmem:[%s11 + $0x14] sm:$0xf]
        %v4473 = vld [vmem:[%s11 + $0x18] sm:$0xf]
        %v4474 = vld [vmem:[%s11 + $0x1c] sm:$0xf]
        %v4475 = vld [vmem:[%s11 + $0x20] sm:$0xf]
        %v4476 = vld [vmem:[%s11 + $0x24] sm:$0xf]
        %v4477 = vld [vmem:[%s11 + $0x28] sm:$0xf]
        %v4478 = vld [vmem:[%s11 + $0x2c] sm:$0xf]
        %v4479 = vld [vmem:[%s11 + $0x30] sm:$0xf]
        %v4480 = vld [vmem:[%s11 + $0x34] sm:$0xf]
        %v4481 = vld [vmem:[%s11 + $0x38] sm:$0xf]
        %v4482 = vld [vmem:[%s11 + $0x3c] sm:$0xf]
        %v4483 = vpack.c.bf16 %v4436, %v4435
        %v4484 = vpack.c.bf16 %v4438, %v4437
        %v4485 = vpack.c.bf16 %v4440, %v4439
        %v4486 = vpack.c.bf16 %v4442, %v4441
        %v4487 = vpack.c.bf16 %v4444, %v4443
        %v4488 = vpack.c.bf16 %v4446, %v4445
        %v4489 = vpack.c.bf16 %v4448, %v4447
        %v4490 = vpack.c.bf16 %v4450, %v4449
        %v4491 = vpack.c.bf16 %v4452, %v4451
        %v4492 = vpack.c.bf16 %v4454, %v4453
        %v4493 = vpack.c.bf16 %v4456, %v4455
        %v4494 = vpack.c.bf16 %v4458, %v4457
        %v4495 = vpack.c.bf16 %v4460, %v4459
        %v4496 = vpack.c.bf16 %v4462, %v4461
        %v4497 = vpack.c.bf16 %v4464, %v4463
        %v4498 = vpack.c.bf16 %v4466, %v4465
        %v4499 = vlaneseq
        %v4500 = vshrl.u32 %v4499, 7
        %v4501 = vsub.s32 5, %v4500
        %v4502 = vrot.slane %v509, %v4501
        %v4519 = vunpack.c.l.b16 %v4467
        %v4520 = vunpack.c.l.b16 %v4468
        %v4521 = vunpack.c.l.b16 %v4469
        %v4522 = vunpack.c.l.b16 %v4470
        %v4523 = vunpack.c.l.b16 %v4471
        %v4524 = vunpack.c.l.b16 %v4472
        %v4525 = vunpack.c.l.b16 %v4473
        %v4526 = vunpack.c.l.b16 %v4474
        %v4527 = vunpack.c.l.b16 %v4475
        %v4528 = vunpack.c.l.b16 %v4476
        %v4529 = vunpack.c.l.b16 %v4477
        %v4530 = vunpack.c.l.b16 %v4478
        %v4531 = vunpack.c.l.b16 %v4479
        %v4532 = vunpack.c.l.b16 %v4480
        %v4533 = vunpack.c.l.b16 %v4481
        %v4534 = vunpack.c.l.b16 %v4482
        %v4535 = vpack.c.b16 %v4520, %v4519
        %v4536 = vpack.c.b16 %v4522, %v4521
        %v4537 = vpack.c.b16 %v4524, %v4523
        %v4538 = vpack.c.b16 %v4526, %v4525
        %v4539 = vpack.c.b16 %v4528, %v4527
        %v4540 = vpack.c.b16 %v4530, %v4529
        %v4541 = vpack.c.b16 %v4532, %v4531
        %v4542 = vpack.c.b16 %v4534, %v4533
        %4551 = vmatprep.subr.bf16.mxu0 0
        %4552 = vmatpush1.bf16.msra.mxu0 %v4535
        %4553 = vmatprep.subr.bf16.mxu0 0
        %4554 = vmatpush1.bf16.msra.mxu0 %v4536
        %4555 = vmatprep.subr.bf16.mxu0 0
        %4556 = vmatpush1.bf16.msra.mxu0 %v4537
        %4557 = vmatprep.subr.bf16.mxu0 0
        %4558 = vmatpush1.bf16.msra.mxu0 %v4538
        %4559 = vmatprep.subr.bf16.mxu0 0
        %4560 = vmatpush1.bf16.msra.mxu0 %v4539
        %4561 = vmatprep.subr.bf16.mxu0 0
        %4562 = vmatpush1.bf16.msra.mxu0 %v4540
        %4563 = vmatprep.subr.bf16.mxu0 0
        %4564 = vmatpush1.bf16.msra.mxu0 %v4541
        %4565 = vmatprep.subr.bf16.mxu0 0
        %4566 = vmatpush1.bf16.msra.mxu0 %v4542
        %4567 = vmatprep.subr.bf16.mxu0 0
        %4568 = vmatpush1.bf16.msra.mxu0 0
        %4569 = vmatprep.subr.bf16.mxu0 0
        %4570 = vmatpush1.bf16.msra.mxu0 0
        %4571 = vmatprep.subr.bf16.mxu0 0
        %4572 = vmatpush1.bf16.msra.mxu0 0
        %4573 = vmatprep.subr.bf16.mxu0 0
        %4574 = vmatpush1.bf16.msra.mxu0 0
        %4575 = vmatprep.subr.bf16.mxu0 0
        %4576 = vmatpush1.bf16.msra.mxu0 0
        %4577 = vmatprep.subr.bf16.mxu0 0
        %4578 = vmatpush1.bf16.msra.mxu0 0
        %4579 = vmatprep.subr.bf16.mxu0 0
        %4580 = vmatpush1.bf16.msra.mxu0 0
        %4581 = vmatprep.subr.bf16.mxu0 0
        %4582 = vmatpush1.bf16.msra.mxu0 0
        %4583 = vmatprep.mubr.bf16.mxu0 0
        %4584 = vmatmul.mubr.bf16.gmra.mrb[0].mxu0 %v4483
        %v4585 = vpop.f32.mrb[0].mxu0
        %v4586 = vadd.f32 %v4502, %v4585
        %v4587 = vpop.f32.mrb[0].mxu0
        %v4588 = vpop.f32.mrb[0].mxu0
        %v4589 = vadd.f32 %v4502, %v4588
        %v4590 = vpop.f32.mrb[0].mxu0
        %4591 = vmatprep.mubr.bf16.mxu0 0
        %4592 = vmatmul.mubr.bf16.gmra.mrb[0].mxu0 %v4484
        %v4593 = vpop.f32.mrb[0].mxu0
        %v4594 = vadd.f32 %v4502, %v4593
        %v4595 = vpop.f32.mrb[0].mxu0
        %v4596 = vpop.f32.mrb[0].mxu0
        %v4597 = vadd.f32 %v4502, %v4596
        %v4598 = vpop.f32.mrb[0].mxu0
        %4599 = vmatprep.mubr.bf16.mxu0 0
        %4600 = vmatmul.mubr.bf16.gmra.mrb[0].mxu0 %v4485
        %v4601 = vpop.f32.mrb[0].mxu0
        %v4602 = vadd.f32 %v4502, %v4601
        %v4603 = vpop.f32.mrb[0].mxu0
        %v4604 = vpop.f32.mrb[0].mxu0
        %v4605 = vadd.f32 %v4502, %v4604
        %v4606 = vpop.f32.mrb[0].mxu0
        %4607 = vmatprep.mubr.bf16.mxu0 0
        %4608 = vmatmul.mubr.bf16.gmra.mrb[0].mxu0 %v4486
        %v4609 = vpop.f32.mrb[0].mxu0
        %v4610 = vadd.f32 %v4502, %v4609
        %v4611 = vpop.f32.mrb[0].mxu0
        %v4612 = vpop.f32.mrb[0].mxu0
        %v4613 = vadd.f32 %v4502, %v4612
        %v4614 = vpop.f32.mrb[0].mxu0
        %4615 = vmatprep.mubr.bf16.mxu0 0
        %4616 = vmatmul.mubr.bf16.gmra.mrb[0].mxu0 %v4487
        %v4617 = vpop.f32.mrb[0].mxu0
        %v4618 = vadd.f32 %v4502, %v4617
        %v4619 = vpop.f32.mrb[0].mxu0
        %v4620 = vpop.f32.mrb[0].mxu0
        %v4621 = vadd.f32 %v4502, %v4620
        %v4622 = vpop.f32.mrb[0].mxu0
        %4623 = vmatprep.mubr.bf16.mxu0 0
        %4624 = vmatmul.mubr.bf16.gmra.mrb[0].mxu0 %v4488
        %v4625 = vpop.f32.mrb[0].mxu0
        %v4626 = vadd.f32 %v4502, %v4625
        %v4627 = vpop.f32.mrb[0].mxu0
        %v4628 = vpop.f32.mrb[0].mxu0
        %v4629 = vadd.f32 %v4502, %v4628
        %v4630 = vpop.f32.mrb[0].mxu0
        %4631 = vmatprep.mubr.bf16.mxu0 0
        %4632 = vmatmul.mubr.bf16.gmra.mrb[0].mxu0 %v4489
        %v4633 = vpop.f32.mrb[0].mxu0
        %v4634 = vadd.f32 %v4502, %v4633
        %v4635 = vpop.f32.mrb[0].mxu0
        %v4636 = vpop.f32.mrb[0].mxu0
        %v4637 = vadd.f32 %v4502, %v4636
        %v4638 = vpop.f32.mrb[0].mxu0
        %4639 = vmatprep.mubr.bf16.mxu0 0
        %4640 = vmatmul.mubr.bf16.gmra.mrb[0].mxu0 %v4490
        %v4641 = vpop.f32.mrb[0].mxu0
        %v4642 = vadd.f32 %v4502, %v4641
        %v4643 = vpop.f32.mrb[0].mxu0
        %v4644 = vpop.f32.mrb[0].mxu0
        %v4645 = vadd.f32 %v4502, %v4644
        %v4646 = vpop.f32.mrb[0].mxu0
        %4647 = vmatprep.mubr.bf16.mxu0 0
        %4648 = vmatmul.mubr.bf16.gmra.mrb[0].mxu0 %v4491
        %v4649 = vpop.f32.mrb[0].mxu0
        %v4650 = vadd.f32 %v4502, %v4649
        %v4651 = vpop.f32.mrb[0].mxu0
        %v4652 = vpop.f32.mrb[0].mxu0
        %v4653 = vadd.f32 %v4502, %v4652
        %v4654 = vpop.f32.mrb[0].mxu0
        %4655 = vmatprep.mubr.bf16.mxu0 0
        %4656 = vmatmul.mubr.bf16.gmra.mrb[0].mxu0 %v4492
        %v4657 = vpop.f32.mrb[0].mxu0
        %v4658 = vadd.f32 %v4502, %v4657
        %v4659 = vpop.f32.mrb[0].mxu0
        %v4660 = vpop.f32.mrb[0].mxu0
        %v4661 = vadd.f32 %v4502, %v4660
        %v4662 = vpop.f32.mrb[0].mxu0
        %4663 = vmatprep.mubr.bf16.mxu0 0
        %4664 = vmatmul.mubr.bf16.gmra.mrb[0].mxu0 %v4493
        %v4665 = vpop.f32.mrb[0].mxu0
        %v4666 = vadd.f32 %v4502, %v4665
        %v4667 = vpop.f32.mrb[0].mxu0
        %v4668 = vpop.f32.mrb[0].mxu0
        %v4669 = vadd.f32 %v4502, %v4668
        %v4670 = vpop.f32.mrb[0].mxu0
        %4671 = vmatprep.mubr.bf16.mxu0 0
        %4672 = vmatmul.mubr.bf16.gmra.mrb[0].mxu0 %v4494
        %v4673 = vpop.f32.mrb[0].mxu0
        %v4674 = vadd.f32 %v4502, %v4673
        %v4675 = vpop.f32.mrb[0].mxu0
        %v4676 = vpop.f32.mrb[0].mxu0
        %v4677 = vadd.f32 %v4502, %v4676
        %v4678 = vpop.f32.mrb[0].mxu0
        %4679 = vmatprep.mubr.bf16.mxu0 0
        %4680 = vmatmul.mubr.bf16.gmra.mrb[0].mxu0 %v4495
        %v4681 = vpop.f32.mrb[0].mxu0
        %v4682 = vadd.f32 %v4502, %v4681
        %v4683 = vpop.f32.mrb[0].mxu0
        %v4684 = vpop.f32.mrb[0].mxu0
        %v4685 = vadd.f32 %v4502, %v4684
        %v4686 = vpop.f32.mrb[0].mxu0
        %4687 = vmatprep.mubr.bf16.mxu0 0
        %4688 = vmatmul.mubr.bf16.gmra.mrb[0].mxu0 %v4496
        %v4689 = vpop.f32.mrb[0].mxu0
        %v4690 = vadd.f32 %v4502, %v4689
        %v4691 = vpop.f32.mrb[0].mxu0
        %v4692 = vpop.f32.mrb[0].mxu0
        %v4693 = vadd.f32 %v4502, %v4692
        %v4694 = vpop.f32.mrb[0].mxu0
        %4695 = vmatprep.mubr.bf16.mxu0 0
        %4696 = vmatmul.mubr.bf16.gmra.mrb[0].mxu0 %v4497
        %v4697 = vpop.f32.mrb[0].mxu0
        %v4698 = vadd.f32 %v4502, %v4697
        %v4699 = vpop.f32.mrb[0].mxu0
        %v4700 = vpop.f32.mrb[0].mxu0
        %v4701 = vadd.f32 %v4502, %v4700
        %v4702 = vpop.f32.mrb[0].mxu0
        %4703 = vmatprep.mubr.bf16.mxu0 0
        %4704 = vmatmul.mubr.bf16.gmra.mrb[0].mxu0 %v4498
        %v4705 = vpop.f32.mrb[0].mxu0
        %v4706 = vadd.f32 %v4502, %v4705
        %v4707 = vpop.f32.mrb[0].mxu0
        %v4708 = vpop.f32.mrb[0].mxu0
        %v4709 = vadd.f32 %v4502, %v4708
        %v4710 = vpop.f32.mrb[0].mxu0
        %4711 = vdwg.mxu0
        %v4712 = vlaneseq
        %v4713 = vshrl.u32 %v4712, 7
        %v4714 = vsub.s32 6, %v4713
        %v4715 = vrot.slane %v509, %v4714
        %v4716 = vmul.f32 %v4715, %v4586
        %v4717 = vmul.f32 %v4715, %v4589
        %v4718 = vmul.f32 %v4715, %v4594
        %v4719 = vmul.f32 %v4715, %v4597
        %v4720 = vmul.f32 %v4715, %v4602
        %v4721 = vmul.f32 %v4715, %v4605
        %v4722 = vmul.f32 %v4715, %v4610
        %v4723 = vmul.f32 %v4715, %v4613
        %v4724 = vmul.f32 %v4715, %v4618
        %v4725 = vmul.f32 %v4715, %v4621
        %v4726 = vmul.f32 %v4715, %v4626
        %v4727 = vmul.f32 %v4715, %v4629
        %v4728 = vmul.f32 %v4715, %v4634
        %v4729 = vmul.f32 %v4715, %v4637
        %v4730 = vmul.f32 %v4715, %v4642
        %v4731 = vmul.f32 %v4715, %v4645
        %v4732 = vmul.f32 %v4715, %v4650
        %v4733 = vmul.f32 %v4715, %v4653
        %v4734 = vmul.f32 %v4715, %v4658
        %v4735 = vmul.f32 %v4715, %v4661
        %v4736 = vmul.f32 %v4715, %v4666
        %v4737 = vmul.f32 %v4715, %v4669
        %v4738 = vmul.f32 %v4715, %v4674
        %v4739 = vmul.f32 %v4715, %v4677
        %v4740 = vmul.f32 %v4715, %v4682
        %v4741 = vmul.f32 %v4715, %v4685
        %v4742 = vmul.f32 %v4715, %v4690
        %v4743 = vmul.f32 %v4715, %v4693
        %v4744 = vmul.f32 %v4715, %v4698
        %v4745 = vmul.f32 %v4715, %v4701
        %v4746 = vmul.f32 %v4715, %v4706
        %v4747 = vmul.f32 %v4715, %v4709
        %v4748 = vadd.f32 %v3827, %v4716
        %v4749 = vadd.f32 %v3828, %v4717
        %v4750 = vadd.f32 %v3829, %v4718
        %v4751 = vadd.f32 %v3830, %v4719
        %v4752 = vadd.f32 %v3831, %v4720
        %v4753 = vadd.f32 %v3832, %v4721
        %v4754 = vadd.f32 %v3833, %v4722
        %v4755 = vadd.f32 %v3834, %v4723
        %v4756 = vadd.f32 %v3835, %v4724
        %v4757 = vadd.f32 %v3836, %v4725
        %v4758 = vadd.f32 %v3837, %v4726
        %v4759 = vadd.f32 %v3838, %v4727
        %v4760 = vadd.f32 %v3839, %v4728
        %v4761 = vadd.f32 %v3840, %v4729
        %v4762 = vadd.f32 %v3841, %v4730
        %v4763 = vadd.f32 %v3842, %v4731
        %v4764 = vadd.f32 %v3843, %v4732
        %v4765 = vadd.f32 %v3844, %v4733
        %v4766 = vadd.f32 %v3845, %v4734
        %v4767 = vadd.f32 %v3846, %v4735
        %v4768 = vadd.f32 %v3847, %v4736
        %v4769 = vadd.f32 %v3848, %v4737
        %v4770 = vadd.f32 %v3849, %v4738
        %v4771 = vadd.f32 %v3850, %v4739
        %v4772 = vadd.f32 %v3851, %v4740
        %v4773 = vadd.f32 %v3852, %v4741
        %v4774 = vadd.f32 %v3853, %v4742
        %v4775 = vadd.f32 %v3854, %v4743
        %v4776 = vadd.f32 %v3855, %v4744
        %v4777 = vadd.f32 %v3856, %v4745
        %v4778 = vadd.f32 %v3857, %v4746
        %v4779 = vadd.f32 %v3858, %v4747
        %v4780 = vlaneseq
        %v4781 = vshrl.u32 %v4780, 7
        %v4782 = vsub.s32 7, %v4781
        %v4783 = vrot.slane %v509, %v4782
        %v4784 = vmul.f32 %v4748, %v4783
        %v4785 = vmul.f32 %v4749, %v4783
        %v4786 = vmul.f32 %v4750, %v4783
        %v4787 = vmul.f32 %v4751, %v4783
        %v4788 = vmul.f32 %v4752, %v4783
        %v4789 = vmul.f32 %v4753, %v4783
        %v4790 = vmul.f32 %v4754, %v4783
        %v4791 = vmul.f32 %v4755, %v4783
        %v4792 = vmul.f32 %v4756, %v4783
        %v4793 = vmul.f32 %v4757, %v4783
        %v4794 = vmul.f32 %v4758, %v4783
        %v4795 = vmul.f32 %v4759, %v4783
        %v4796 = vmul.f32 %v4760, %v4783
        %v4797 = vmul.f32 %v4761, %v4783
        %v4798 = vmul.f32 %v4762, %v4783
        %v4799 = vmul.f32 %v4763, %v4783
        %v4800 = vmul.f32 %v4764, %v4783
        %v4801 = vmul.f32 %v4765, %v4783
        %v4802 = vmul.f32 %v4766, %v4783
        %v4803 = vmul.f32 %v4767, %v4783
        %v4804 = vmul.f32 %v4768, %v4783
        %v4805 = vmul.f32 %v4769, %v4783
        %v4806 = vmul.f32 %v4770, %v4783
        %v4807 = vmul.f32 %v4771, %v4783
        %v4808 = vmul.f32 %v4772, %v4783
        %v4809 = vmul.f32 %v4773, %v4783
        %v4810 = vmul.f32 %v4774, %v4783
        %v4811 = vmul.f32 %v4775, %v4783
        %v4812 = vmul.f32 %v4776, %v4783
        %v4813 = vmul.f32 %v4777, %v4783
        %v4814 = vmul.f32 %v4778, %v4783
        %v4815 = vmul.f32 %v4779, %v4783
        %v4816 = vlaneseq
        %v4817 = vshrl.u32 %v4816, 7
        %v4818 = vsub.s32 0, %v4817
        %v4819 = vrot.slane %v510, %v4818
        %v4820 = vadd.f32 %v4784, %v4819
        %v4821 = vadd.f32 %v4785, %v4819
        %v4822 = vadd.f32 %v4786, %v4819
        %v4823 = vadd.f32 %v4787, %v4819
        %v4824 = vadd.f32 %v4788, %v4819
        %v4825 = vadd.f32 %v4789, %v4819
        %v4826 = vadd.f32 %v4790, %v4819
        %v4827 = vadd.f32 %v4791, %v4819
        %v4828 = vadd.f32 %v4792, %v4819
        %v4829 = vadd.f32 %v4793, %v4819
        %v4830 = vadd.f32 %v4794, %v4819
        %v4831 = vadd.f32 %v4795, %v4819
        %v4832 = vadd.f32 %v4796, %v4819
        %v4833 = vadd.f32 %v4797, %v4819
        %v4834 = vadd.f32 %v4798, %v4819
        %v4835 = vadd.f32 %v4799, %v4819
        %v4836 = vadd.f32 %v4800, %v4819
        %v4837 = vadd.f32 %v4801, %v4819
        %v4838 = vadd.f32 %v4802, %v4819
        %v4839 = vadd.f32 %v4803, %v4819
        %v4840 = vadd.f32 %v4804, %v4819
        %v4841 = vadd.f32 %v4805, %v4819
        %v4842 = vadd.f32 %v4806, %v4819
        %v4843 = vadd.f32 %v4807, %v4819
        %v4844 = vadd.f32 %v4808, %v4819
        %v4845 = vadd.f32 %v4809, %v4819
        %v4846 = vadd.f32 %v4810, %v4819
        %v4847 = vadd.f32 %v4811, %v4819
        %v4848 = vadd.f32 %v4812, %v4819
        %v4849 = vadd.f32 %v4813, %v4819
        %v4850 = vadd.f32 %v4814, %v4819
        %v4851 = vadd.f32 %v4815, %v4819
        %v4852 = vld [vmem:[%s12] sm:$0xf]
        %v4853 = vld [vmem:[%s12 + $0x4] sm:$0xf]
        %v4854 = vld [vmem:[%s12 + $0x8] sm:$0xf]
        %v4855 = vld [vmem:[%s12 + $0xc] sm:$0xf]
        %v4856 = vld [vmem:[%s12 + $0x10] sm:$0xf]
        %v4857 = vld [vmem:[%s12 + $0x14] sm:$0xf]
        %v4858 = vld [vmem:[%s12 + $0x18] sm:$0xf]
        %v4859 = vld [vmem:[%s12 + $0x1c] sm:$0xf]
        %v4860 = vld [vmem:[%s12 + $0x20] sm:$0xf]
        %v4861 = vld [vmem:[%s12 + $0x24] sm:$0xf]
        %v4862 = vld [vmem:[%s12 + $0x28] sm:$0xf]
        %v4863 = vld [vmem:[%s12 + $0x2c] sm:$0xf]
        %v4864 = vld [vmem:[%s12 + $0x30] sm:$0xf]
        %v4865 = vld [vmem:[%s12 + $0x34] sm:$0xf]
        %v4866 = vld [vmem:[%s12 + $0x38] sm:$0xf]
        %v4867 = vld [vmem:[%s12 + $0x3c] sm:$0xf]
        %v4868 = vpack.c.bf16 %v4821, %v4820
        %v4869 = vpack.c.bf16 %v4823, %v4822
        %v4870 = vpack.c.bf16 %v4825, %v4824
        %v4871 = vpack.c.bf16 %v4827, %v4826
        %v4872 = vpack.c.bf16 %v4829, %v4828
        %v4873 = vpack.c.bf16 %v4831, %v4830
        %v4874 = vpack.c.bf16 %v4833, %v4832
        %v4875 = vpack.c.bf16 %v4835, %v4834
        %v4876 = vpack.c.bf16 %v4837, %v4836
        %v4877 = vpack.c.bf16 %v4839, %v4838
        %v4878 = vpack.c.bf16 %v4841, %v4840
        %v4879 = vpack.c.bf16 %v4843, %v4842
        %v4880 = vpack.c.bf16 %v4845, %v4844
        %v4881 = vpack.c.bf16 %v4847, %v4846
        %v4882 = vpack.c.bf16 %v4849, %v4848
        %v4883 = vpack.c.bf16 %v4851, %v4850
        %v4884 = vlaneseq
        %v4885 = vshrl.u32 %v4884, 7
        %v4886 = vsub.s32 1, %v4885
        %v4887 = vrot.slane %v510, %v4886
        %v4904 = vunpack.c.l.b16 %v4852
        %v4905 = vunpack.c.l.b16 %v4853
        %v4906 = vunpack.c.l.b16 %v4854
        %v4907 = vunpack.c.l.b16 %v4855
        %v4908 = vunpack.c.l.b16 %v4856
        %v4909 = vunpack.c.l.b16 %v4857
        %v4910 = vunpack.c.l.b16 %v4858
        %v4911 = vunpack.c.l.b16 %v4859
        %v4912 = vunpack.c.l.b16 %v4860
        %v4913 = vunpack.c.l.b16 %v4861
        %v4914 = vunpack.c.l.b16 %v4862
        %v4915 = vunpack.c.l.b16 %v4863
        %v4916 = vunpack.c.l.b16 %v4864
        %v4917 = vunpack.c.l.b16 %v4865
        %v4918 = vunpack.c.l.b16 %v4866
        %v4919 = vunpack.c.l.b16 %v4867
        %v4920 = vpack.c.b16 %v4905, %v4904
        %v4921 = vpack.c.b16 %v4907, %v4906
        %v4922 = vpack.c.b16 %v4909, %v4908
        %v4923 = vpack.c.b16 %v4911, %v4910
        %v4924 = vpack.c.b16 %v4913, %v4912
        %v4925 = vpack.c.b16 %v4915, %v4914
        %v4926 = vpack.c.b16 %v4917, %v4916
        %v4927 = vpack.c.b16 %v4919, %v4918
        %4936 = vmatprep.subr.bf16.mxu0 0
        %4937 = vmatpush1.bf16.msra.mxu0 %v4920
        %4938 = vmatprep.subr.bf16.mxu0 0
        %4939 = vmatpush1.bf16.msra.mxu0 %v4921
        %4940 = vmatprep.subr.bf16.mxu0 0
        %4941 = vmatpush1.bf16.msra.mxu0 %v4922
        %4942 = vmatprep.subr.bf16.mxu0 0
        %4943 = vmatpush1.bf16.msra.mxu0 %v4923
        %4944 = vmatprep.subr.bf16.mxu0 0
        %4945 = vmatpush1.bf16.msra.mxu0 %v4924
        %4946 = vmatprep.subr.bf16.mxu0 0
        %4947 = vmatpush1.bf16.msra.mxu0 %v4925
        %4948 = vmatprep.subr.bf16.mxu0 0
        %4949 = vmatpush1.bf16.msra.mxu0 %v4926
        %4950 = vmatprep.subr.bf16.mxu0 0
        %4951 = vmatpush1.bf16.msra.mxu0 %v4927
        %4952 = vmatprep.subr.bf16.mxu0 0
        %4953 = vmatpush1.bf16.msra.mxu0 0
        %4954 = vmatprep.subr.bf16.mxu0 0
        %4955 = vmatpush1.bf16.msra.mxu0 0
        %4956 = vmatprep.subr.bf16.mxu0 0
        %4957 = vmatpush1.bf16.msra.mxu0 0
        %4958 = vmatprep.subr.bf16.mxu0 0
        %4959 = vmatpush1.bf16.msra.mxu0 0
        %4960 = vmatprep.subr.bf16.mxu0 0
        %4961 = vmatpush1.bf16.msra.mxu0 0
        %4962 = vmatprep.subr.bf16.mxu0 0
        %4963 = vmatpush1.bf16.msra.mxu0 0
        %4964 = vmatprep.subr.bf16.mxu0 0
        %4965 = vmatpush1.bf16.msra.mxu0 0
        %4966 = vmatprep.subr.bf16.mxu0 0
        %4967 = vmatpush1.bf16.msra.mxu0 0
        %4968 = vmatprep.mubr.bf16.mxu0 0
        %4969 = vmatmul.mubr.bf16.gmra.mrb[0].mxu0 %v4868
        %v4970 = vpop.f32.mrb[0].mxu0
        %v4971 = vadd.f32 %v4887, %v4970
        %v4972 = vpop.f32.mrb[0].mxu0
        %v4973 = vpop.f32.mrb[0].mxu0
        %v4974 = vadd.f32 %v4887, %v4973
        %v4975 = vpop.f32.mrb[0].mxu0
        %4976 = vmatprep.mubr.bf16.mxu0 0
        %4977 = vmatmul.mubr.bf16.gmra.mrb[0].mxu0 %v4869
        %v4978 = vpop.f32.mrb[0].mxu0
        %v4979 = vadd.f32 %v4887, %v4978
        %v4980 = vpop.f32.mrb[0].mxu0
        %v4981 = vpop.f32.mrb[0].mxu0
        %v4982 = vadd.f32 %v4887, %v4981
        %v4983 = vpop.f32.mrb[0].mxu0
        %4984 = vmatprep.mubr.bf16.mxu0 0
        %4985 = vmatmul.mubr.bf16.gmra.mrb[0].mxu0 %v4870
        %v4986 = vpop.f32.mrb[0].mxu0
        %v4987 = vadd.f32 %v4887, %v4986
        %v4988 = vpop.f32.mrb[0].mxu0
        %v4989 = vpop.f32.mrb[0].mxu0
        %v4990 = vadd.f32 %v4887, %v4989
        %v4991 = vpop.f32.mrb[0].mxu0
        %4992 = vmatprep.mubr.bf16.mxu0 0
        %4993 = vmatmul.mubr.bf16.gmra.mrb[0].mxu0 %v4871
        %v4994 = vpop.f32.mrb[0].mxu0
        %v4995 = vadd.f32 %v4887, %v4994
        %v4996 = vpop.f32.mrb[0].mxu0
        %v4997 = vpop.f32.mrb[0].mxu0
        %v4998 = vadd.f32 %v4887, %v4997
        %v4999 = vpop.f32.mrb[0].mxu0
        %5000 = vmatprep.mubr.bf16.mxu0 0
        %5001 = vmatmul.mubr.bf16.gmra.mrb[0].mxu0 %v4872
        %v5002 = vpop.f32.mrb[0].mxu0
        %v5003 = vadd.f32 %v4887, %v5002
        %v5004 = vpop.f32.mrb[0].mxu0
        %v5005 = vpop.f32.mrb[0].mxu0
        %v5006 = vadd.f32 %v4887, %v5005
        %v5007 = vpop.f32.mrb[0].mxu0
        %5008 = vmatprep.mubr.bf16.mxu0 0
        %5009 = vmatmul.mubr.bf16.gmra.mrb[0].mxu0 %v4873
        %v5010 = vpop.f32.mrb[0].mxu0
        %v5011 = vadd.f32 %v4887, %v5010
        %v5012 = vpop.f32.mrb[0].mxu0
        %v5013 = vpop.f32.mrb[0].mxu0
        %v5014 = vadd.f32 %v4887, %v5013
        %v5015 = vpop.f32.mrb[0].mxu0
        %5016 = vmatprep.mubr.bf16.mxu0 0
        %5017 = vmatmul.mubr.bf16.gmra.mrb[0].mxu0 %v4874
        %v5018 = vpop.f32.mrb[0].mxu0
        %v5019 = vadd.f32 %v4887, %v5018
        %v5020 = vpop.f32.mrb[0].mxu0
        %v5021 = vpop.f32.mrb[0].mxu0
        %v5022 = vadd.f32 %v4887, %v5021
        %v5023 = vpop.f32.mrb[0].mxu0
        %5024 = vmatprep.mubr.bf16.mxu0 0
        %5025 = vmatmul.mubr.bf16.gmra.mrb[0].mxu0 %v4875
        %v5026 = vpop.f32.mrb[0].mxu0
        %v5027 = vadd.f32 %v4887, %v5026
        %v5028 = vpop.f32.mrb[0].mxu0
        %v5029 = vpop.f32.mrb[0].mxu0
        %v5030 = vadd.f32 %v4887, %v5029
        %v5031 = vpop.f32.mrb[0].mxu0
        %5032 = vmatprep.mubr.bf16.mxu0 0
        %5033 = vmatmul.mubr.bf16.gmra.mrb[0].mxu0 %v4876
        %v5034 = vpop.f32.mrb[0].mxu0
        %v5035 = vadd.f32 %v4887, %v5034
        %v5036 = vpop.f32.mrb[0].mxu0
        %v5037 = vpop.f32.mrb[0].mxu0
        %v5038 = vadd.f32 %v4887, %v5037
        %v5039 = vpop.f32.mrb[0].mxu0
        %5040 = vmatprep.mubr.bf16.mxu0 0
        %5041 = vmatmul.mubr.bf16.gmra.mrb[0].mxu0 %v4877
        %v5042 = vpop.f32.mrb[0].mxu0
        %v5043 = vadd.f32 %v4887, %v5042
        %v5044 = vpop.f32.mrb[0].mxu0
        %v5045 = vpop.f32.mrb[0].mxu0
        %v5046 = vadd.f32 %v4887, %v5045
        %v5047 = vpop.f32.mrb[0].mxu0
        %5048 = vmatprep.mubr.bf16.mxu0 0
        %5049 = vmatmul.mubr.bf16.gmra.mrb[0].mxu0 %v4878
        %v5050 = vpop.f32.mrb[0].mxu0
        %v5051 = vadd.f32 %v4887, %v5050
        %v5052 = vpop.f32.mrb[0].mxu0
        %v5053 = vpop.f32.mrb[0].mxu0
        %v5054 = vadd.f32 %v4887, %v5053
        %v5055 = vpop.f32.mrb[0].mxu0
        %5056 = vmatprep.mubr.bf16.mxu0 0
        %5057 = vmatmul.mubr.bf16.gmra.mrb[0].mxu0 %v4879
        %v5058 = vpop.f32.mrb[0].mxu0
        %v5059 = vadd.f32 %v4887, %v5058
        %v5060 = vpop.f32.mrb[0].mxu0
        %v5061 = vpop.f32.mrb[0].mxu0
        %v5062 = vadd.f32 %v4887, %v5061
        %v5063 = vpop.f32.mrb[0].mxu0
        %5064 = vmatprep.mubr.bf16.mxu0 0
        %5065 = vmatmul.mubr.bf16.gmra.mrb[0].mxu0 %v4880
        %v5066 = vpop.f32.mrb[0].mxu0
        %v5067 = vadd.f32 %v4887, %v5066
        %v5068 = vpop.f32.mrb[0].mxu0
        %v5069 = vpop.f32.mrb[0].mxu0
        %v5070 = vadd.f32 %v4887, %v5069
        %v5071 = vpop.f32.mrb[0].mxu0
        %5072 = vmatprep.mubr.bf16.mxu0 0
        %5073 = vmatmul.mubr.bf16.gmra.mrb[0].mxu0 %v4881
        %v5074 = vpop.f32.mrb[0].mxu0
        %v5075 = vadd.f32 %v4887, %v5074
        %v5076 = vpop.f32.mrb[0].mxu0
        %v5077 = vpop.f32.mrb[0].mxu0
        %v5078 = vadd.f32 %v4887, %v5077
        %v5079 = vpop.f32.mrb[0].mxu0
        %5080 = vmatprep.mubr.bf16.mxu0 0
        %5081 = vmatmul.mubr.bf16.gmra.mrb[0].mxu0 %v4882
        %v5082 = vpop.f32.mrb[0].mxu0
        %v5083 = vadd.f32 %v4887, %v5082
        %v5084 = vpop.f32.mrb[0].mxu0
        %v5085 = vpop.f32.mrb[0].mxu0
        %v5086 = vadd.f32 %v4887, %v5085
        %v5087 = vpop.f32.mrb[0].mxu0
        %5088 = vmatprep.mubr.bf16.mxu0 0
        %5089 = vmatmul.mubr.bf16.gmra.mrb[0].mxu0 %v4883
        %v5090 = vpop.f32.mrb[0].mxu0
        %v5091 = vadd.f32 %v4887, %v5090
        %v5092 = vpop.f32.mrb[0].mxu0
        %v5093 = vpop.f32.mrb[0].mxu0
        %v5094 = vadd.f32 %v4887, %v5093
        %v5095 = vpop.f32.mrb[0].mxu0
        %5096 = vdwg.mxu0
        %v5097 = vlaneseq
        %v5098 = vshrl.u32 %v5097, 7
        %v5099 = vsub.s32 2, %v5098
        %v5100 = vrot.slane %v510, %v5099
        %v5101 = vmul.f32 %v5100, %v4971
        %v5102 = vmul.f32 %v5100, %v4974
        %v5103 = vmul.f32 %v5100, %v4979
        %v5104 = vmul.f32 %v5100, %v4982
        %v5105 = vmul.f32 %v5100, %v4987
        %v5106 = vmul.f32 %v5100, %v4990
        %v5107 = vmul.f32 %v5100, %v4995
        %v5108 = vmul.f32 %v5100, %v4998
        %v5109 = vmul.f32 %v5100, %v5003
        %v5110 = vmul.f32 %v5100, %v5006
        %v5111 = vmul.f32 %v5100, %v5011
        %v5112 = vmul.f32 %v5100, %v5014
        %v5113 = vmul.f32 %v5100, %v5019
        %v5114 = vmul.f32 %v5100, %v5022
        %v5115 = vmul.f32 %v5100, %v5027
        %v5116 = vmul.f32 %v5100, %v5030
        %v5117 = vmul.f32 %v5100, %v5035
        %v5118 = vmul.f32 %v5100, %v5038
        %v5119 = vmul.f32 %v5100, %v5043
        %v5120 = vmul.f32 %v5100, %v5046
        %v5121 = vmul.f32 %v5100, %v5051
        %v5122 = vmul.f32 %v5100, %v5054
        %v5123 = vmul.f32 %v5100, %v5059
        %v5124 = vmul.f32 %v5100, %v5062
        %v5125 = vmul.f32 %v5100, %v5067
        %v5126 = vmul.f32 %v5100, %v5070
        %v5127 = vmul.f32 %v5100, %v5075
        %v5128 = vmul.f32 %v5100, %v5078
        %v5129 = vmul.f32 %v5100, %v5083
        %v5130 = vmul.f32 %v5100, %v5086
        %v5131 = vmul.f32 %v5100, %v5091
        %v5132 = vmul.f32 %v5100, %v5094
        %v5133 = vadd.f32 %v2914, %v5101
        %v5134 = vadd.f32 %v2915, %v5102
        %v5135 = vadd.f32 %v2916, %v5103
        %v5136 = vadd.f32 %v2917, %v5104
        %v5137 = vadd.f32 %v2918, %v5105
        %v5138 = vadd.f32 %v2919, %v5106
        %v5139 = vadd.f32 %v2920, %v5107
        %v5140 = vadd.f32 %v2921, %v5108
        %v5141 = vadd.f32 %v2922, %v5109
        %v5142 = vadd.f32 %v2923, %v5110
        %v5143 = vadd.f32 %v2924, %v5111
        %v5144 = vadd.f32 %v2925, %v5112
        %v5145 = vadd.f32 %v2926, %v5113
        %v5146 = vadd.f32 %v2927, %v5114
        %v5147 = vadd.f32 %v2928, %v5115
        %v5148 = vadd.f32 %v2929, %v5116
        %v5149 = vadd.f32 %v2930, %v5117
        %v5150 = vadd.f32 %v2931, %v5118
        %v5151 = vadd.f32 %v2932, %v5119
        %v5152 = vadd.f32 %v2933, %v5120
        %v5153 = vadd.f32 %v2934, %v5121
        %v5154 = vadd.f32 %v2935, %v5122
        %v5155 = vadd.f32 %v2936, %v5123
        %v5156 = vadd.f32 %v2937, %v5124
        %v5157 = vadd.f32 %v2938, %v5125
        %v5158 = vadd.f32 %v2939, %v5126
        %v5159 = vadd.f32 %v2940, %v5127
        %v5160 = vadd.f32 %v2941, %v5128
        %v5161 = vadd.f32 %v2942, %v5129
        %v5162 = vadd.f32 %v2943, %v5130
        %v5163 = vadd.f32 %v2944, %v5131
        %v5164 = vadd.f32 %v2945, %v5132
        %5165 = vst [vmem:[%s434] sm:$0xff] %v5133
        %5166 = vst [vmem:[%s434 + $0x8] sm:$0xff] %v5134
        %5167 = vst [vmem:[%s434 + $0x10] sm:$0xff] %v5135
        %5168 = vst [vmem:[%s434 + $0x18] sm:$0xff] %v5136
        %5169 = vst [vmem:[%s434 + $0x20] sm:$0xff] %v5137
        %5170 = vst [vmem:[%s434 + $0x28] sm:$0xff] %v5138
        %5171 = vst [vmem:[%s434 + $0x30] sm:$0xff] %v5139
        %5172 = vst [vmem:[%s434 + $0x38] sm:$0xff] %v5140
        %5173 = vst [vmem:[%s434 + $0x40] sm:$0xff] %v5141
        %5174 = vst [vmem:[%s434 + $0x48] sm:$0xff] %v5142
        %5175 = vst [vmem:[%s434 + $0x50] sm:$0xff] %v5143
        %5176 = vst [vmem:[%s434 + $0x58] sm:$0xff] %v5144
        %5177 = vst [vmem:[%s434 + $0x60] sm:$0xff] %v5145
        %5178 = vst [vmem:[%s434 + $0x68] sm:$0xff] %v5146
        %5179 = vst [vmem:[%s434 + $0x70] sm:$0xff] %v5147
        %5180 = vst [vmem:[%s434 + $0x78] sm:$0xff] %v5148
        %5181 = vst [vmem:[%s434 + $0x80] sm:$0xff] %v5149
        %5182 = vst [vmem:[%s434 + $0x88] sm:$0xff] %v5150
        %5183 = vst [vmem:[%s434 + $0x90] sm:$0xff] %v5151
        %5184 = vst [vmem:[%s434 + $0x98] sm:$0xff] %v5152
        %5185 = vst [vmem:[%s434 + $0xa0] sm:$0xff] %v5153
        %5186 = vst [vmem:[%s434 + $0xa8] sm:$0xff] %v5154
        %5187 = vst [vmem:[%s434 + $0xb0] sm:$0xff] %v5155
        %5188 = vst [vmem:[%s434 + $0xb8] sm:$0xff] %v5156
        %5189 = vst [vmem:[%s434 + $0xc0] sm:$0xff] %v5157
        %5190 = vst [vmem:[%s434 + $0xc8] sm:$0xff] %v5158
        %5191 = vst [vmem:[%s434 + $0xd0] sm:$0xff] %v5159
        %5192 = vst [vmem:[%s434 + $0xd8] sm:$0xff] %v5160
        %5193 = vst [vmem:[%s434 + $0xe0] sm:$0xff] %v5161
        %5194 = vst [vmem:[%s434 + $0xe8] sm:$0xff] %v5162
        %5195 = vst [vmem:[%s434 + $0xf0] sm:$0xff] %v5163
        %5196 = vst [vmem:[%s434 + $0xf8] sm:$0xff] %v5164
        %s5197 = sand.u32 %s313, 1
        %s5198 = scalar_lea.sflag [#allocation3], %s5197
        %s5199 = sand.u32 %s313, 1
        %s5200 = smul.addr %s5199, 256
        %s5201 = scalar_lea.vmem [#allocation2], %s5200
        // Predicated region
        $region73: #{tpu_custom_call.1} parent=71 // pred_check
          %p5202 = pneg %p323
        $region74: #{tpu_custom_call.1} parent=71 // pred_check_branch
          %5204 = sbr.rel (%p5202) target = $region76
        $region75: #{tpu_custom_call.1} parent=71 // pred_region
          %s5205 = smul.u32 32, %s27
          %s5207 = ssub.s32 4096, 4096
          %5208 = vsyncadd %s5198, %s5207
          %s5209 = smul.addr %s5205, 128
          %s5210 = scalar_lea.hbm %s13, %s5209
          %s5211 = sshll.u32 %s5201, 4
          %s5212 = int_to_ptr.vmem [resolvable:$true] %s5211
          %5217 = dma.vmem_to_hbm [thread:$0]  %s5212, 4096, %s5210, %s5198, 128, 128, 8
        $region76: #{tpu_custom_call.1} parent=71 // pred_fallthru
          _
      $region72: #{tpu_custom_call.1} parent=5 // pred_fallthru
        _
      %p5218 = scmp.le.s32.totalorder 2, %s22
      // Predicated region
      $region77: #{tpu_custom_call.1} parent=5 // pred_check
        %p5219 = pneg %p5218
      $region78: #{tpu_custom_call.1} parent=5 // pred_check_branch
        %5221 = sbr.rel (%p5219) target = $region80
      $region79: #{tpu_custom_call.1} parent=5 // pred_region
        %s5222 = ssub.s32 %s22, 2
        // Predicated region
        $region81: #{tpu_custom_call.1} parent=79 // pred_check
          %p5223 = pneg %p329
        $region82: #{tpu_custom_call.1} parent=79 // pred_check_branch
          %5225 = sbr.rel (%p5223) target = $region84
        $region83: #{tpu_custom_call.1} parent=79 // pred_region
          %s5226 = sand.u32 %s314, 1
          %s5227 = scalar_lea.sflag [#allocation3], %s5226
          %s5228 = sand.u32 %s314, 1
          %s5229 = smul.addr %s5228, 256
          %s5230 = scalar_lea.vmem [#allocation2], %s5229
          %5231 = dma.done %s5227, 4096
        $region84: #{tpu_custom_call.1} parent=79 // pred_fallthru
          _
      $region80: #{tpu_custom_call.1} parent=5 // pred_fallthru
        _
    $region6: #{tpu_custom_call.1} parent=1 // loop_footer
      %s26 = sadd.s32 1, %s22
    $region7: #{tpu_custom_call.1} parent=1 // loop_footer_branch
      %21 = sbr.rel target = $region3
    $region8: #{tpu_custom_call.1} parent=1 // loop_exit
      _
    %5232 = vsyncpa [#allocation3], 1
    %s5233 = scalar_lea.sflag [#allocation3], 1
    %5234 = vsyncpa %s5233, 1

// kernel: tpu_custom_call.1
$region0: #{tpu_custom_call.1}
  #allocation0 [shape = 'u32[]', space=smem, size = 0x4, offset = 0x4, fixed_abs, tag = 'smem constant byte address 0x4 - core index']
  #allocation1 [shape = 'u32[144,128]{1,0:T(1,128)}', space=vmem, size = 0x12000, scoped, tag = 'internal scratch']
  %s0 = inlined_call_operand.vmem [shape: f32[1024,32], index: 0, kind: input, shape index: {}]
  %s1 = inlined_call_operand.vmem [shape: f32[19,128], index: 1, kind: input, shape index: {}]
  %s2 = inlined_call_operand.vmem [shape: bf16[128,384], index: 2, kind: input, shape index: {}]
  %s3 = inlined_call_operand.vmem [shape: f32[1,384], index: 3, kind: input, shape index: {}]
  %s4 = inlined_call_operand.vmem [shape: bf16[128,16], index: 4, kind: input, shape index: {}]
  %s5 = inlined_call_operand.vmem [shape: f32[16,16], index: 5, kind: input, shape index: {}]
  %s6 = inlined_call_operand.vmem [shape: bf16[16,128], index: 6, kind: input, shape index: {}]
  %s7 = inlined_call_operand.vmem [shape: bf16[128,128], index: 7, kind: input, shape index: {}]
  %s8 = inlined_call_operand.vmem [shape: bf16[128,128], index: 8, kind: input, shape index: {}]
  %s9 = inlined_call_operand.vmem [shape: bf16[128,128], index: 9, kind: input, shape index: {}]
  %s10 = inlined_call_operand.vmem [shape: f32[1,128], index: 10, kind: input, shape index: {}]
  %s11 = inlined_call_operand.vmem [shape: bf16[128,128], index: 11, kind: input, shape index: {}]
  %s12 = inlined_call_operand.vmem [shape: bf16[128,128], index: 12, kind: input, shape index: {}]
  %s13 = inlined_call_operand.hbm [shape: f32[1024,128], index: 13, kind: output, shape index: {}]
  %s14 = sld [smem:[#allocation0]]
  $region85: #{tpu_custom_call.1} parent=0
    _
  %s16 = ssub.s32 1, %s14
  %s17 = scalar_select 0, %s16, %s14
  $region1: #{tpu_custom_call.1} parent=0
    #allocation2 [shape = 'u8[262144]{0}', space=vmem, size = 0x40000, scoped, tag = 'output window, operand 0']
    #allocation3 [shape = 's32[2]{0}', space=sflag, size = 0x8, scoped, tag = 'scoped memory for tpu_custom_call.1']
    %18 = vsyncpa [#allocation3], 0
    %s19 = scalar_lea.sflag [#allocation3], 1
    %20 = vsyncpa %s19, 0
    loop: start=0, step=1, limit=6
    $region2: #{tpu_custom_call.1} parent=1 // loop_pre_header
      _
    $region3: #{tpu_custom_call.1} parent=1 // loop_header
      %s22 = sphi 0, %s26
      %p23 = scmp.ge.s32.totalorder %s22, 6
      %s32 = sphi 0, %s34
      %s35 = sphi 0, %s32
      %s36 = sphi 0, %s35
      %s52 = sphi 0, %s36
      %s56 = sphi 0, %s56
      %s58 = sphi 0, %s56
      %s59 = sphi 0, %s58
      %s73 = sphi 0, %s59
      %s77 = sphi 0, %s77
      %s79 = sphi 0, %s77
      %s80 = sphi 0, %s79
      %s94 = sphi 0, %s80
      %s98 = sphi 0, %s98
      %s100 = sphi 0, %s98
      %s101 = sphi 0, %s100
      %s115 = sphi 0, %s101
      %s119 = sphi 0, %s119
      %s121 = sphi 0, %s119
      %s122 = sphi 0, %s121
      %s136 = sphi 0, %s122
      %s140 = sphi 0, %s140
      %s142 = sphi 0, %s140
      %s143 = sphi 0, %s142
      %s157 = sphi 0, %s143
      %s161 = sphi 0, %s161
      %s163 = sphi 0, %s161
      %s164 = sphi 0, %s163
      %s178 = sphi 0, %s164
      %s182 = sphi 0, %s182
      %s184 = sphi 0, %s182
      %s185 = sphi 0, %s184
      %s199 = sphi 0, %s185
      %s203 = sphi 0, %s203
      %s205 = sphi 0, %s203
      %s206 = sphi 0, %s205
      %s220 = sphi 0, %s206
      %s224 = sphi 0, %s224
      %s226 = sphi 0, %s224
      %s227 = sphi 0, %s226
      %s241 = sphi 0, %s227
      %s245 = sphi 0, %s245
      %s247 = sphi 0, %s245
      %s248 = sphi 0, %s247
      %s262 = sphi 0, %s248
      %s266 = sphi 0, %s266
      %s268 = sphi 0, %s266
      %s269 = sphi 0, %s268
      %s283 = sphi 0, %s269
      %s287 = sphi 0, %s287
      %s289 = sphi 0, %s287
      %s290 = sphi 0, %s289
      %s304 = sphi 0, %s290
      %s310 = sphi 0, %s312
      %s313 = sphi 0, %s310
      %s314 = sphi 0, %s313
      %s330 = sphi 0, %s314
    $region4: #{tpu_custom_call.1} parent=1 // loop_header_branch
      %25 = sbr.rel (%p23) target = $region8
    $region5: #{tpu_custom_call.1} parent=1 // loop_body
      %s27 = ssub.s32 %s22, 1
      %s28 = ssub.s32 %s22, 2
      %s29 = sadd.s32 %s22, 1
      %s30 = ssub.s32 %s22, %s29
      %p31 = scmp.eq.s32.totalorder %s30, 0
      %s33 = sadd.s32 %s32, 1
      %s34 = scalar_select %p31, %s32, %s33
      %p37 = pneg %p31
      %p38 = scmp.eq.s32.totalorder %s22, 3
      %p39 = por %p37, %p38
      %p40 = scmp.ne.s32.totalorder %s32, %s35
      %p41 = scmp.eq.s32.totalorder %s22, 0
      %p42 = por %p40, %p41
      %p43 = scmp.ne.s32.totalorder %s32, %s35
      %p44 = scmp.eq.s32.totalorder %s27, 3
      %p45 = por %p43, %p44
      %p46 = scmp.ne.s32.totalorder %s35, %s36
      %p47 = scmp.eq.s32.totalorder %s27, 0
      %p48 = por %p46, %p47
      %p49 = scmp.ne.s32.totalorder %s35, %s36
      %p50 = scmp.eq.s32.totalorder %s28, 3
      %p51 = por %p49, %p50
      %p53 = scmp.ne.s32.totalorder %s36, %s52
      %p54 = scmp.eq.s32.totalorder %s28, 0
      %p55 = por %p53, %p54
      %s57 = sadd.s32 %s56, 1
      %p60 = scmp.eq.s32.totalorder %s22, 3
      %p61 = scmp.ne.s32.totalorder %s56, %s58
      %p62 = scmp.eq.s32.totalorder %s22, 0
      %p63 = por %p61, %p62
      %p64 = scmp.ne.s32.totalorder %s56, %s58
      %p65 = scmp.eq.s32.totalorder %s27, 3
      %p66 = por %p64, %p65
      %p67 = scmp.ne.s32.totalorder %s58, %s59
      %p68 = scmp.eq.s32.totalorder %s27, 0
      %p69 = por %p67, %p68
      %p70 = scmp.ne.s32.totalorder %s58, %s59
      %p71 = scmp.eq.s32.totalorder %s28, 3
      %p72 = por %p70, %p71
      %p74 = scmp.ne.s32.totalorder %s59, %s73
      %p75 = scmp.eq.s32.totalorder %s28, 0
      %p76 = por %p74, %p75
      %s78 = sadd.s32 %s77, 1
      %p81 = scmp.eq.s32.totalorder %s22, 3
      %p82 = scmp.ne.s32.totalorder %s77, %s79
      %p83 = scmp.eq.s32.totalorder %s22, 0
      %p84 = por %p82, %p83
      %p85 = scmp.ne.s32.totalorder %s77, %s79
      %p86 = scmp.eq.s32.totalorder %s27, 3
      %p87 = por %p85, %p86
      %p88 = scmp.ne.s32.totalorder %s79, %s80
      %p89 = scmp.eq.s32.totalorder %s27, 0
      %p90 = por %p88, %p89
      %p91 = scmp.ne.s32.totalorder %s79, %s80
      %p92 = scmp.eq.s32.totalorder %s28, 3
      %p93 = por %p91, %p92
      %p95 = scmp.ne.s32.totalorder %s80, %s94
      %p96 = scmp.eq.s32.totalorder %s28, 0
      %p97 = por %p95, %p96
      %s99 = sadd.s32 %s98, 1
      %p102 = scmp.eq.s32.totalorder %s22, 3
      %p103 = scmp.ne.s32.totalorder %s98, %s100
      %p104 = scmp.eq.s32.totalorder %s22, 0
      %p105 = por %p103, %p104
      %p106 = scmp.ne.s32.totalorder %s98, %s100
      %p107 = scmp.eq.s32.totalorder %s27, 3
      %p108 = por %p106, %p107
      %p109 = scmp.ne.s32.totalorder %s100, %s101
      %p110 = scmp.eq.s32.totalorder %s27, 0
      %p111 = por %p109, %p110
      %p112 = scmp.ne.s32.totalorder %s100, %s101
      %p113 = scmp.eq.s32.totalorder %s28, 3
      %p114 = por %p112, %p113
      %p116 = scmp.ne.s32.totalorder %s101, %s115
      %p117 = scmp.eq.s32.totalorder %s28, 0
      %p118 = por %p116, %p117
      %s120 = sadd.s32 %s119, 1
      %p123 = scmp.eq.s32.totalorder %s22, 3
      %p124 = scmp.ne.s32.totalorder %s119, %s121
      %p125 = scmp.eq.s32.totalorder %s22, 0
      %p126 = por %p124, %p125
      %p127 = scmp.ne.s32.totalorder %s119, %s121
      %p128 = scmp.eq.s32.totalorder %s27, 3
      %p129 = por %p127, %p128
      %p130 = scmp.ne.s32.totalorder %s121, %s122
      %p131 = scmp.eq.s32.totalorder %s27, 0
      %p132 = por %p130, %p131
      %p133 = scmp.ne.s32.totalorder %s121, %s122
      %p134 = scmp.eq.s32.totalorder %s28, 3
      %p135 = por %p133, %p134
      %p137 = scmp.ne.s32.totalorder %s122, %s136
      %p138 = scmp.eq.s32.totalorder %s28, 0
      %p139 = por %p137, %p138
      %s141 = sadd.s32 %s140, 1
      %p144 = scmp.eq.s32.totalorder %s22, 3
      %p145 = scmp.ne.s32.totalorder %s140, %s142
      %p146 = scmp.eq.s32.totalorder %s22, 0
      %p147 = por %p145, %p146
      %p148 = scmp.ne.s32.totalorder %s140, %s142
      %p149 = scmp.eq.s32.totalorder %s27, 3
      %p150 = por %p148, %p149
      %p151 = scmp.ne.s32.totalorder %s142, %s143
      %p152 = scmp.eq.s32.totalorder %s27, 0
      %p153 = por %p151, %p152
      %p154 = scmp.ne.s32.totalorder %s142, %s143
      %p155 = scmp.eq.s32.totalorder %s28, 3
      %p156 = por %p154, %p155
      %p158 = scmp.ne.s32.totalorder %s143, %s157
      %p159 = scmp.eq.s32.totalorder %s28, 0
      %p160 = por %p158, %p159
      %s162 = sadd.s32 %s161, 1
      %p165 = scmp.eq.s32.totalorder %s22, 3
      %p166 = scmp.ne.s32.totalorder %s161, %s163
      %p167 = scmp.eq.s32.totalorder %s22, 0
      %p168 = por %p166, %p167
      %p169 = scmp.ne.s32.totalorder %s161, %s163
      %p170 = scmp.eq.s32.totalorder %s27, 3
      %p171 = por %p169, %p170
      %p172 = scmp.ne.s32.totalorder %s163, %s164
      %p173 = scmp.eq.s32.totalorder %s27, 0
      %p174 = por %p172, %p173
      %p175 = scmp.ne.s32.totalorder %s163, %s164
      %p176 = scmp.eq.s32.totalorder %s28, 3
      %p177 = por %p175, %p176
      %p179 = scmp.ne.s32.totalorder %s164, %s178
      %p180 = scmp.eq.s32.totalorder %s28, 0
      %p181 = por %p179, %p180
      %s183 = sadd.s32 %s182, 1
      %p186 = scmp.eq.s32.totalorder %s22, 3
      %p187 = scmp.ne.s32.totalorder %s182, %s184
      %p188 = scmp.eq.s32.totalorder %s22, 0
      %p189 = por %p187, %p188
      %p190 = scmp.ne.s32.totalorder %s182, %s184
      %p191 = scmp.eq.s32.totalorder %s27, 3
      %p192 = por %p190, %p191
      %p193 = scmp.ne.s32.totalorder %s184, %s185
      %p194 = scmp.eq.s32.totalorder %s27, 0
      %p195 = por %p193, %p194
      %p196 = scmp.ne.s32.totalorder %s184, %s185
      %p197 = scmp.eq.s32.totalorder %s28, 3
      %p198 = por %p196, %p197
      %p200 = scmp.ne.s32.totalorder %s185, %s199
      %p201 = scmp.eq.s32.totalorder %s28, 0
      %p202 = por %p200, %p201
      %s204 = sadd.s32 %s203, 1
      %p207 = scmp.eq.s32.totalorder %s22, 3
      %p208 = scmp.ne.s32.totalorder %s203, %s205
      %p209 = scmp.eq.s32.totalorder %s22, 0
      %p210 = por %p208, %p209
      %p211 = scmp.ne.s32.totalorder %s203, %s205
      %p212 = scmp.eq.s32.totalorder %s27, 3
      %p213 = por %p211, %p212
      %p214 = scmp.ne.s32.totalorder %s205, %s206
      %p215 = scmp.eq.s32.totalorder %s27, 0
      %p216 = por %p214, %p215
      %p217 = scmp.ne.s32.totalorder %s205, %s206
      %p218 = scmp.eq.s32.totalorder %s28, 3
      %p219 = por %p217, %p218
      %p221 = scmp.ne.s32.totalorder %s206, %s220
      %p222 = scmp.eq.s32.totalorder %s28, 0
      %p223 = por %p221, %p222
      %s225 = sadd.s32 %s224, 1
      %p228 = scmp.eq.s32.totalorder %s22, 3
      %p229 = scmp.ne.s32.totalorder %s224, %s226
      %p230 = scmp.eq.s32.totalorder %s22, 0
      %p231 = por %p229, %p230
      %p232 = scmp.ne.s32.totalorder %s224, %s226
      %p233 = scmp.eq.s32.totalorder %s27, 3
      %p234 = por %p232, %p233
      %p235 = scmp.ne.s32.totalorder %s226, %s227
      %p236 = scmp.eq.s32.totalorder %s27, 0
      %p237 = por %p235, %p236
      %p238 = scmp.ne.s32.totalorder %s226, %s227
      %p239 = scmp.eq.s32.totalorder %s28, 3
      %p240 = por %p238, %p239
      %p242 = scmp.ne.s32.totalorder %s227, %s241
      %p243 = scmp.eq.s32.totalorder %s28, 0
      %p244 = por %p242, %p243
      %s246 = sadd.s32 %s245, 1
      %p249 = scmp.eq.s32.totalorder %s22, 3
      %p250 = scmp.ne.s32.totalorder %s245, %s247
      %p251 = scmp.eq.s32.totalorder %s22, 0
      %p252 = por %p250, %p251
      %p253 = scmp.ne.s32.totalorder %s245, %s247
      %p254 = scmp.eq.s32.totalorder %s27, 3
      %p255 = por %p253, %p254
      %p256 = scmp.ne.s32.totalorder %s247, %s248
      %p257 = scmp.eq.s32.totalorder %s27, 0
      %p258 = por %p256, %p257
      %p259 = scmp.ne.s32.totalorder %s247, %s248
      %p260 = scmp.eq.s32.totalorder %s28, 3
      %p261 = por %p259, %p260
      %p263 = scmp.ne.s32.totalorder %s248, %s262
      %p264 = scmp.eq.s32.totalorder %s28, 0
      %p265 = por %p263, %p264
      %s267 = sadd.s32 %s266, 1
      %p270 = scmp.eq.s32.totalorder %s22, 3
      %p271 = scmp.ne.s32.totalorder %s266, %s268
      %p272 = scmp.eq.s32.totalorder %s22, 0
      %p273 = por %p271, %p272
      %p274 = scmp.ne.s32.totalorder %s266, %s268
      %p275 = scmp.eq.s32.totalorder %s27, 3
      %p276 = por %p274, %p275
      %p277 = scmp.ne.s32.totalorder %s268, %s269
      %p278 = scmp.eq.s32.totalorder %s27, 0
      %p279 = por %p277, %p278
      %p280 = scmp.ne.s32.totalorder %s268, %s269
      %p281 = scmp.eq.s32.totalorder %s28, 3
      %p282 = por %p280, %p281
      %p284 = scmp.ne.s32.totalorder %s269, %s283
      %p285 = scmp.eq.s32.totalorder %s28, 0
      %p286 = por %p284, %p285
      %s288 = sadd.s32 %s287, 1
      %p291 = scmp.eq.s32.totalorder %s22, 3
      %p292 = scmp.ne.s32.totalorder %s287, %s289
      %p293 = scmp.eq.s32.totalorder %s22, 0
      %p294 = por %p292, %p293
      %p295 = scmp.ne.s32.totalorder %s287, %s289
      %p296 = scmp.eq.s32.totalorder %s27, 3
      %p297 = por %p295, %p296
      %p298 = scmp.ne.s32.totalorder %s289, %s290
      %p299 = scmp.eq.s32.totalorder %s27, 0
      %p300 = por %p298, %p299
      %p301 = scmp.ne.s32.totalorder %s289, %s290
      %p302 = scmp.eq.s32.totalorder %s28, 3
      %p303 = por %p301, %p302
      %p305 = scmp.ne.s32.totalorder %s290, %s304
      %p306 = scmp.eq.s32.totalorder %s28, 0
      %p307 = por %p305, %p306
      %s308 = ssub.s32 %s22, %s29
      %p309 = scmp.eq.s32.totalorder %s308, 0
      %s311 = sadd.s32 %s310, 1
      %s312 = scalar_select %p309, %s310, %s311
      %p315 = pneg %p309
      %p316 = scmp.eq.s32.totalorder %s22, 3
      %p317 = por %p315, %p316
      %p318 = scmp.ne.s32.totalorder %s310, %s313
      %p319 = scmp.eq.s32.totalorder %s22, 0
      %p320 = por %p318, %p319
      %p321 = scmp.ne.s32.totalorder %s310, %s313
      %p322 = scmp.eq.s32.totalorder %s27, 3
      %p323 = por %p321, %p322
      %p324 = scmp.ne.s32.totalorder %s313, %s314
      %p325 = scmp.eq.s32.totalorder %s27, 0
      %p326 = por %p324, %p325
      %p327 = scmp.ne.s32.totalorder %s313, %s314
      %p328 = scmp.eq.s32.totalorder %s28, 3
      %p329 = por %p327, %p328
      %p331 = scmp.ne.s32.totalorder %s314, %s330
      %p332 = scmp.eq.s32.totalorder %s28, 0
      %p333 = por %p331, %p332
      %p334 = scmp.le.s32.totalorder 1, %s22
      %p335 = scmp.lt.s32.totalorder %s22, 5
      %p336 = pnand %p334, %p335
      %p337 = pneg %p336
      // Predicated region
      $region9: #{tpu_custom_call.1} parent=5 // pred_check
        _
      $region10: #{tpu_custom_call.1} parent=5 // pred_check_branch
        %339 = sbr.rel (%p336) target = $region12
      $region11: #{tpu_custom_call.1} parent=5 // pred_region
        %s340 = ssub.s32 %s22, 1
        // Predicated region
        $region13: #{tpu_custom_call.1} parent=11 // pred_check
          %p341 = pneg %p69
        $region14: #{tpu_custom_call.1} parent=11 // pred_check_branch
          %343 = sbr.rel (%p341) target = $region16
        $region15: #{tpu_custom_call.1} parent=11 // pred_region
          _
        $region16: #{tpu_custom_call.1} parent=11 // pred_fallthru
          _
        // Predicated region
        $region17: #{tpu_custom_call.1} parent=11 // pred_check
          %p344 = pneg %p90
        $region18: #{tpu_custom_call.1} parent=11 // pred_check_branch
          %346 = sbr.rel (%p344) target = $region20
        $region19: #{tpu_custom_call.1} parent=11 // pred_region
          _
        $region20: #{tpu_custom_call.1} parent=11 // pred_fallthru
          _
        // Predicated region
        $region21: #{tpu_custom_call.1} parent=11 // pred_check
          %p347 = pneg %p111
        $region22: #{tpu_custom_call.1} parent=11 // pred_check_branch
          %349 = sbr.rel (%p347) target = $region24
        $region23: #{tpu_custom_call.1} parent=11 // pred_region
          _
        $region24: #{tpu_custom_call.1} parent=11 // pred_fallthru
          _
        // Predicated region
        $region25: #{tpu_custom_call.1} parent=11 // pred_check
          %p350 = pneg %p132
        $region26: #{tpu_custom_call.1} parent=11 // pred_check_branch
          %352 = sbr.rel (%p350) target = $region28
        $region27: #{tpu_custom_call.1} parent=11 // pred_region
          _
        $region28: #{tpu_custom_call.1} parent=11 // pred_fallthru
          _
        // Predicated region
        $region29: #{tpu_custom_call.1} parent=11 // pred_check
          %p353 = pneg %p153
        $region30: #{tpu_custom_call.1} parent=11 // pred_check_branch
          %355 = sbr.rel (%p353) target = $region32
        $region31: #{tpu_custom_call.1} parent=11 // pred_region
          _
        $region32: #{tpu_custom_call.1} parent=11 // pred_fallthru
          _
        // Predicated region
        $region33: #{tpu_custom_call.1} parent=11 // pred_check
          %p356 = pneg %p174
        $region34: #{tpu_custom_call.1} parent=11 // pred_check_branch
          %358 = sbr.rel (%p356) target = $region36
        $region35: #{tpu_custom_call.1} parent=11 // pred_region
          _
        $region36: #{tpu_custom_call.1} parent=11 // pred_fallthru
          _
        // Predicated region
        $region37: #{tpu_custom_call.1} parent=11 // pred_check
          %p359 = pneg %p195
        $region38: #{tpu_custom_call.1} parent=11 // pred_check_branch
          %361 = sbr.rel (%p359) target = $region40
        $region39: #{tpu_custom_call.1} parent=11 // pred_region
          _
        $region40: #{tpu_custom_call.1} parent=11 // pred_fallthru
          _
        // Predicated region
        $region41: #{tpu_custom_call.1} parent=11 // pred_check
          %p362 = pneg %p216
        $region42: #{tpu_custom_call.1} parent=11 // pred_check_branch
          %364 = sbr.rel (%p362) target = $region44
        $region43: #{tpu_custom_call.1} parent=11 // pred_region
          _
        $region44: #{tpu_custom_call.1} parent=11 // pred_fallthru
          _
        // Predicated region
        $region45: #{tpu_custom_call.1} parent=11 // pred_check
          %p365 = pneg %p237
        $region46: #{tpu_custom_call.1} parent=11 // pred_check_branch
          %367 = sbr.rel (%p365) target = $region48
        $region47: #{tpu_custom_call.1} parent=11 // pred_region
          _
        $region48: #{tpu_custom_call.1} parent=11 // pred_fallthru
          _
        // Predicated region
        $region49: #{tpu_custom_call.1} parent=11 // pred_check
          %p368 = pneg %p258
        $region50: #{tpu_custom_call.1} parent=11 // pred_check_branch
          %370 = sbr.rel (%p368) target = $region52
        $region51: #{tpu_custom_call.1} parent=11 // pred_region
          _
        $region52: #{tpu_custom_call.1} parent=11 // pred_fallthru
          _
        // Predicated region
        $region53: #{tpu_custom_call.1} parent=11 // pred_check
          %p371 = pneg %p279
        $region54: #{tpu_custom_call.1} parent=11 // pred_check_branch
          %373 = sbr.rel (%p371) target = $region56
        $region55: #{tpu_custom_call.1} parent=11 // pred_region
          _
        $region56: #{tpu_custom_call.1} parent=11 // pred_fallthru
          _
        // Predicated region
        $region57: #{tpu_custom_call.1} parent=11 // pred_check
          %p374 = pneg %p300
        $region58: #{tpu_custom_call.1} parent=11 // pred_check_branch
          %376 = sbr.rel (%p374) target = $region60
        $region59: #{tpu_custom_call.1} parent=11 // pred_region
          _
        $region60: #{tpu_custom_call.1} parent=11 // pred_fallthru
          _
      $region12: #{tpu_custom_call.1} parent=5 // pred_fallthru
        _
      %p377 = scmp.lt.s32.totalorder %s22, 4
      // Predicated region
      $region61: #{tpu_custom_call.1} parent=5 // pred_check
        %p378 = pneg %p377
      $region62: #{tpu_custom_call.1} parent=5 // pred_check_branch
        %380 = sbr.rel (%p378) target = $region64
      $region63: #{tpu_custom_call.1} parent=5 // pred_region
        // Predicated region
        $region65: #{tpu_custom_call.1} parent=63 // pred_check
          %p381 = pneg %p42
        $region66: #{tpu_custom_call.1} parent=63 // pred_check_branch
          %383 = sbr.rel (%p381) target = $region68
        $region67: #{tpu_custom_call.1} parent=63 // pred_region
          %s384 = smul.u32 32, %s22
          %p385 = scmp.lt.s32.totalorder %s384, 127
          %s386 = scalar_select %p385, %s384, 127
          %s387 = smul.addr %s386, 8
          %s388 = scalar_lea.vmem %s0, %s387
          %s389 = smul.u32 32, %s22
        $region68: #{tpu_custom_call.1} parent=63 // pred_fallthru
          _
      $region64: #{tpu_custom_call.1} parent=5 // pred_fallthru
        _
      %p390 = scmp.le.s32.totalorder 1, %s22
      %p391 = scmp.lt.s32.totalorder %s22, 5
      %p392 = pnand %p390, %p391
      %p393 = pneg %p392
      // Predicated region
      $region69: #{tpu_custom_call.1} parent=5 // pred_check
        _
      $region70: #{tpu_custom_call.1} parent=5 // pred_check_branch
        %395 = sbr.rel (%p392) target = $region72
      $region71: #{tpu_custom_call.1} parent=5 // pred_region
        %s396 = ssub.s32 %s22, 1
        %s397 = smul.u32 32, %s27
        %p398 = scmp.lt.s32.totalorder %s397, 127
        %s399 = scalar_select %p398, %s397, 127
        %s400 = smul.addr %s399, 8
        %s401 = scalar_lea.vmem %s0, %s400
        %p402 = pneg %p48
        %p403 = pneg %p45
        %p404 = pneg %p69
        %p405 = pneg %p66
        %p406 = pneg %p90
        %p407 = pneg %p87
        %p408 = pneg %p111
        %p409 = pneg %p108
        %p410 = pneg %p132
        %p411 = pneg %p129
        %p412 = pneg %p153
        %p413 = pneg %p150
        %p414 = pneg %p174
        %p415 = pneg %p171
        %p416 = pneg %p195
        %p417 = pneg %p192
        %p418 = pneg %p216
        %p419 = pneg %p213
        %p420 = pneg %p237
        %p421 = pneg %p234
        %p422 = pneg %p258
        %p423 = pneg %p255
        %p424 = pneg %p279
        %p425 = pneg %p276
        %p426 = pneg %p300
        %p427 = pneg %p297
        %p428 = pneg %p326
        %p429 = pneg %p323
        %s430 = sand.u32 %s313, 1
        %s431 = scalar_lea.sflag [#allocation3], %s430
        %s432 = sand.u32 %s313, 1
        %s433 = smul.addr %s432, 256
        %s434 = scalar_lea.vmem [#allocation2], %s433
        %s435 = smul.u32 32, %s27
        %p436 = scmp.lt.s32.totalorder %s435, 127
        %s437 = scalar_select %p436, %s435, 127
        %s438 = smul.addr %s437, 8
        %s439 = scalar_lea.vmem %s0, %s438
        %s440 = smul.u32 32, %s27
        %s441 = smul.u32 32, %s27
        %v443 = vld [vmem:[%s439] sm:$0xff]
        %v444 = vld [vmem:[%s439 + $0x8] sm:$0xff]
        %v445 = vld [vmem:[%s439 + $0x10] sm:$0xff]
        %v446 = vld [vmem:[%s439 + $0x18] sm:$0xff]
        %v447 = vld [vmem:[%s439 + $0x20] sm:$0xff]
        %v448 = vld [vmem:[%s439 + $0x28] sm:$0xff]
        %v449 = vld [vmem:[%s439 + $0x30] sm:$0xff]
        %v450 = vld [vmem:[%s439 + $0x38] sm:$0xff]
        %v451 = vld [vmem:[%s439 + $0x40] sm:$0xff]
        %v452 = vld [vmem:[%s439 + $0x48] sm:$0xff]
        %v453 = vld [vmem:[%s439 + $0x50] sm:$0xff]
        %v454 = vld [vmem:[%s439 + $0x58] sm:$0xff]
        %v455 = vld [vmem:[%s439 + $0x60] sm:$0xff]
        %v456 = vld [vmem:[%s439 + $0x68] sm:$0xff]
        %v457 = vld [vmem:[%s439 + $0x70] sm:$0xff]
        %v458 = vld [vmem:[%s439 + $0x78] sm:$0xff]
        %v459 = vld [vmem:[%s439 + $0x80] sm:$0xff]
        %v460 = vld [vmem:[%s439 + $0x88] sm:$0xff]
        %v461 = vld [vmem:[%s439 + $0x90] sm:$0xff]
        %v462 = vld [vmem:[%s439 + $0x98] sm:$0xff]
        %v463 = vld [vmem:[%s439 + $0xa0] sm:$0xff]
        %v464 = vld [vmem:[%s439 + $0xa8] sm:$0xff]
        %v465 = vld [vmem:[%s439 + $0xb0] sm:$0xff]
        %v466 = vld [vmem:[%s439 + $0xb8] sm:$0xff]
        %v467 = vld [vmem:[%s439 + $0xc0] sm:$0xff]
        %v468 = vld [vmem:[%s439 + $0xc8] sm:$0xff]
        %v469 = vld [vmem:[%s439 + $0xd0] sm:$0xff]
        %v470 = vld [vmem:[%s439 + $0xd8] sm:$0xff]
        %v471 = vld [vmem:[%s439 + $0xe0] sm:$0xff]
        %v472 = vld [vmem:[%s439 + $0xe8] sm:$0xff]
        %v473 = vld [vmem:[%s439 + $0xf0] sm:$0xff]
        %v474 = vld [vmem:[%s439 + $0xf8] sm:$0xff]
        %vm475 = vcmask 261120
        %v476 = vsel %vm475, %v443, 0.0
        %v477 = vsel %vm475, %v444, 0.0
        %v478 = vsel %vm475, %v445, 0.0
        %v479 = vsel %vm475, %v446, 0.0
        %v480 = vsel %vm475, %v447, 0.0
        %v481 = vsel %vm475, %v448, 0.0
        %v482 = vsel %vm475, %v449, 0.0
        %v483 = vsel %vm475, %v450, 0.0
        %v484 = vsel %vm475, %v451, 0.0
        %v485 = vsel %vm475, %v452, 0.0
        %v486 = vsel %vm475, %v453, 0.0
        %v487 = vsel %vm475, %v454, 0.0
        %v488 = vsel %vm475, %v455, 0.0
        %v489 = vsel %vm475, %v456, 0.0
        %v490 = vsel %vm475, %v457, 0.0
        %v491 = vsel %vm475, %v458, 0.0
        %v492 = vsel %vm475, %v459, 0.0
        %v493 = vsel %vm475, %v460, 0.0
        %v494 = vsel %vm475, %v461, 0.0
        %v495 = vsel %vm475, %v462, 0.0
        %v496 = vsel %vm475, %v463, 0.0
        %v497 = vsel %vm475, %v464, 0.0
        %v498 = vsel %vm475, %v465, 0.0
        %v499 = vsel %vm475, %v466, 0.0
        %v500 = vsel %vm475, %v467, 0.0
        %v501 = vsel %vm475, %v468, 0.0
        %v502 = vsel %vm475, %v469, 0.0
        %v503 = vsel %vm475, %v470, 0.0
        %v504 = vsel %vm475, %v471, 0.0
        %v505 = vsel %vm475, %v472, 0.0
        %v506 = vsel %vm475, %v473, 0.0
        %v507 = vsel %vm475, %v474, 0.0
        %v508 = vld [vmem:[%s1] sm:$0xff]
        %v509 = vld [vmem:[%s1 + $0x8] sm:$0xff]
        %v510 = vld [vmem:[%s1 + $0x10] sm:$0x7]
        %v511 = vlaneseq
        %v512 = vand.u32 %v511, 127
        %vm513 = vcmp.lt.s32.totalorder %v512, 32
        %v514 = vsel %vm513, 1, 0
        %v515 = vcvt.s32.f32 %v514
        %516 = vadd.xlane.f32.xlu0 %v476
        %v517 = vpop.xlane.xlu0 %516
        %518 = vadd.xlane.f32.xlu0 %v477
        %v519 = vpop.xlane.xlu0 %518
        %520 = vadd.xlane.f32.xlu0 %v478
        %v521 = vpop.xlane.xlu0 %520
        %522 = vadd.xlane.f32.xlu0 %v479
        %v523 = vpop.xlane.xlu0 %522
        %524 = vadd.xlane.f32.xlu0 %v480
        %v525 = vpop.xlane.xlu0 %524
        %526 = vadd.xlane.f32.xlu0 %v481
        %v527 = vpop.xlane.xlu0 %526
        %528 = vadd.xlane.f32.xlu0 %v482
        %v529 = vpop.xlane.xlu0 %528
        %530 = vadd.xlane.f32.xlu0 %v483
        %v531 = vpop.xlane.xlu0 %530
        %532 = vadd.xlane.f32.xlu0 %v484
        %v533 = vpop.xlane.xlu0 %532
        %534 = vadd.xlane.f32.xlu0 %v485
        %v535 = vpop.xlane.xlu0 %534
        %536 = vadd.xlane.f32.xlu0 %v486
        %v537 = vpop.xlane.xlu0 %536
        %538 = vadd.xlane.f32.xlu0 %v487
        %v539 = vpop.xlane.xlu0 %538
        %540 = vadd.xlane.f32.xlu0 %v488
        %v541 = vpop.xlane.xlu0 %540
        %542 = vadd.xlane.f32.xlu0 %v489
        %v543 = vpop.xlane.xlu0 %542
        %544 = vadd.xlane.f32.xlu0 %v490
        %v545 = vpop.xlane.xlu0 %544
        %546 = vadd.xlane.f32.xlu0 %v491
        %v547 = vpop.xlane.xlu0 %546
        %548 = vadd.xlane.f32.xlu0 %v492
        %v549 = vpop.xlane.xlu0 %548
        %550 = vadd.xlane.f32.xlu0 %v493
        %v551 = vpop.xlane.xlu0 %550
        %552 = vadd.xlane.f32.xlu0 %v494
        %v553 = vpop.xlane.xlu0 %552
        %554 = vadd.xlane.f32.xlu0 %v495
        %v555 = vpop.xlane.xlu0 %554
        %556 = vadd.xlane.f32.xlu0 %v496
        %v557 = vpop.xlane.xlu0 %556
        %558 = vadd.xlane.f32.xlu0 %v497
        %v559 = vpop.xlane.xlu0 %558
        %560 = vadd.xlane.f32.xlu0 %v498
        %v561 = vpop.xlane.xlu0 %560
        %562 = vadd.xlane.f32.xlu0 %v499
        %v563 = vpop.xlane.xlu0 %562
        %564 = vadd.xlane.f32.xlu0 %v500
        %v565 = vpop.xlane.xlu0 %564
        %566 = vadd.xlane.f32.xlu0 %v501
        %v567 = vpop.xlane.xlu0 %566
        %568 = vadd.xlane.f32.xlu0 %v502
        %v569 = vpop.xlane.xlu0 %568
        %570 = vadd.xlane.f32.xlu0 %v503
        %v571 = vpop.xlane.xlu0 %570
        %572 = vadd.xlane.f32.xlu0 %v504
        %v573 = vpop.xlane.xlu0 %572
        %574 = vadd.xlane.f32.xlu0 %v505
        %v575 = vpop.xlane.xlu0 %574
        %576 = vadd.xlane.f32.xlu0 %v506
        %v577 = vpop.xlane.xlu0 %576
        %578 = vadd.xlane.f32.xlu0 %v507
        %v579 = vpop.xlane.xlu0 %578
        %v580 = vmul.f32 %v517, 0.03125
        %v581 = vmul.f32 %v519, 0.03125
        %v582 = vmul.f32 %v521, 0.03125
        %v583 = vmul.f32 %v523, 0.03125
        %v584 = vmul.f32 %v525, 0.03125
        %v585 = vmul.f32 %v527, 0.03125
        %v586 = vmul.f32 %v529, 0.03125
        %v587 = vmul.f32 %v531, 0.03125
        %v588 = vmul.f32 %v533, 0.03125
        %v589 = vmul.f32 %v535, 0.03125
        %v590 = vmul.f32 %v537, 0.03125
        %v591 = vmul.f32 %v539, 0.03125
        %v592 = vmul.f32 %v541, 0.03125
        %v593 = vmul.f32 %v543, 0.03125
        %v594 = vmul.f32 %v545, 0.03125
        %v595 = vmul.f32 %v547, 0.03125
        %v596 = vmul.f32 %v549, 0.03125
        %v597 = vmul.f32 %v551, 0.03125
        %v598 = vmul.f32 %v553, 0.03125
        %v599 = vmul.f32 %v555, 0.03125
        %v600 = vmul.f32 %v557, 0.03125
        %v601 = vmul.f32 %v559, 0.03125
        %v602 = vmul.f32 %v561, 0.03125
        %v603 = vmul.f32 %v563, 0.03125
        %v604 = vmul.f32 %v565, 0.03125
        %v605 = vmul.f32 %v567, 0.03125
        %v606 = vmul.f32 %v569, 0.03125
        %v607 = vmul.f32 %v571, 0.03125
        %v608 = vmul.f32 %v573, 0.03125
        %v609 = vmul.f32 %v575, 0.03125
        %v610 = vmul.f32 %v577, 0.03125
        %v611 = vmul.f32 %v579, 0.03125
        %v612 = vsub.f32 %v476, %v580
        %v613 = vsub.f32 %v477, %v581
        %v614 = vsub.f32 %v478, %v582
        %v615 = vsub.f32 %v479, %v583
        %v616 = vsub.f32 %v480, %v584
        %v617 = vsub.f32 %v481, %v585
        %v618 = vsub.f32 %v482, %v586
        %v619 = vsub.f32 %v483, %v587
        %v620 = vsub.f32 %v484, %v588
        %v621 = vsub.f32 %v485, %v589
        %v622 = vsub.f32 %v486, %v590
        %v623 = vsub.f32 %v487, %v591
        %v624 = vsub.f32 %v488, %v592
        %v625 = vsub.f32 %v489, %v593
        %v626 = vsub.f32 %v490, %v594
        %v627 = vsub.f32 %v491, %v595
        %v628 = vsub.f32 %v492, %v596
        %v629 = vsub.f32 %v493, %v597
        %v630 = vsub.f32 %v494, %v598
        %v631 = vsub.f32 %v495, %v599
        %v632 = vsub.f32 %v496, %v600
        %v633 = vsub.f32 %v497, %v601
        %v634 = vsub.f32 %v498, %v602
        %v635 = vsub.f32 %v499, %v603
        %v636 = vsub.f32 %v500, %v604
        %v637 = vsub.f32 %v501, %v605
        %v638 = vsub.f32 %v502, %v606
        %v639 = vsub.f32 %v503, %v607
        %v640 = vsub.f32 %v504, %v608
        %v641 = vsub.f32 %v505, %v609
        %v642 = vsub.f32 %v506, %v610
        %v643 = vsub.f32 %v507, %v611
        %v644 = vmul.f32 %v612, %v515
        %v645 = vmul.f32 %v613, %v515
        %v646 = vmul.f32 %v614, %v515
        %v647 = vmul.f32 %v615, %v515
        %v648 = vmul.f32 %v616, %v515
        %v649 = vmul.f32 %v617, %v515
        %v650 = vmul.f32 %v618, %v515
        %v651 = vmul.f32 %v619, %v515
        %v652 = vmul.f32 %v620, %v515
        %v653 = vmul.f32 %v621, %v515
        %v654 = vmul.f32 %v622, %v515
        %v655 = vmul.f32 %v623, %v515
        %v656 = vmul.f32 %v624, %v515
        %v657 = vmul.f32 %v625, %v515
        %v658 = vmul.f32 %v626, %v515
        %v659 = vmul.f32 %v627, %v515
        %v660 = vmul.f32 %v628, %v515
        %v661 = vmul.f32 %v629, %v515
        %v662 = vmul.f32 %v630, %v515
        %v663 = vmul.f32 %v631, %v515
        %v664 = vmul.f32 %v632, %v515
        %v665 = vmul.f32 %v633, %v515
        %v666 = vmul.f32 %v634, %v515
        %v667 = vmul.f32 %v635, %v515
        %v668 = vmul.f32 %v636, %v515
        %v669 = vmul.f32 %v637, %v515
        %v670 = vmul.f32 %v638, %v515
        %v671 = vmul.f32 %v639, %v515
        %v672 = vmul.f32 %v640, %v515
        %v673 = vmul.f32 %v641, %v515
        %v674 = vmul.f32 %v642, %v515
        %v675 = vmul.f32 %v643, %v515
        %v676 = vmul.f32 %v644, %v644
        %v677 = vmul.f32 %v645, %v645
        %v678 = vmul.f32 %v646, %v646
        %v679 = vmul.f32 %v647, %v647
        %v680 = vmul.f32 %v648, %v648
        %v681 = vmul.f32 %v649, %v649
        %v682 = vmul.f32 %v650, %v650
        %v683 = vmul.f32 %v651, %v651
        %v684 = vmul.f32 %v652, %v652
        %v685 = vmul.f32 %v653, %v653
        %v686 = vmul.f32 %v654, %v654
        %v687 = vmul.f32 %v655, %v655
        %v688 = vmul.f32 %v656, %v656
        %v689 = vmul.f32 %v657, %v657
        %v690 = vmul.f32 %v658, %v658
        %v691 = vmul.f32 %v659, %v659
        %v692 = vmul.f32 %v660, %v660
        %v693 = vmul.f32 %v661, %v661
        %v694 = vmul.f32 %v662, %v662
        %v695 = vmul.f32 %v663, %v663
        %v696 = vmul.f32 %v664, %v664
        %v697 = vmul.f32 %v665, %v665
        %v698 = vmul.f32 %v666, %v666
        %v699 = vmul.f32 %v667, %v667
        %v700 = vmul.f32 %v668, %v668
        %v701 = vmul.f32 %v669, %v669
        %v702 = vmul.f32 %v670, %v670
        %v703 = vmul.f32 %v671, %v671
        %v704 = vmul.f32 %v672, %v672
        %v705 = vmul.f32 %v673, %v673
        %v706 = vmul.f32 %v674, %v674
        %v707 = vmul.f32 %v675, %v675
        %708 = vadd.xlane.f32.xlu0 %v676
        %v709 = vpop.xlane.xlu0 %708
        %710 = vadd.xlane.f32.xlu0 %v677
        %v711 = vpop.xlane.xlu0 %710
        %712 = vadd.xlane.f32.xlu0 %v678
        %v713 = vpop.xlane.xlu0 %712
        %714 = vadd.xlane.f32.xlu0 %v679
        %v715 = vpop.xlane.xlu0 %714
        %716 = vadd.xlane.f32.xlu0 %v680
        %v717 = vpop.xlane.xlu0 %716
        %718 = vadd.xlane.f32.xlu0 %v681
        %v719 = vpop.xlane.xlu0 %718
        %720 = vadd.xlane.f32.xlu0 %v682
        %v721 = vpop.xlane.xlu0 %720
        %722 = vadd.xlane.f32.xlu0 %v683
        %v723 = vpop.xlane.xlu0 %722
        %724 = vadd.xlane.f32.xlu0 %v684
        %v725 = vpop.xlane.xlu0 %724
        %726 = vadd.xlane.f32.xlu0 %v685
        %v727 = vpop.xlane.xlu0 %726
        %728 = vadd.xlane.f32.xlu0 %v686
        %v729 = vpop.xlane.xlu0 %728
        %730 = vadd.xlane.f32.xlu0 %v687
        %v731 = vpop.xlane.xlu0 %730
        %732 = vadd.xlane.f32.xlu0 %v688
        %v733 = vpop.xlane.xlu0 %732
        %734 = vadd.xlane.f32.xlu0 %v689
        %v735 = vpop.xlane.xlu0 %734
        %736 = vadd.xlane.f32.xlu0 %v690
        %v737 = vpop.xlane.xlu0 %736
        %738 = vadd.xlane.f32.xlu0 %v691
        %v739 = vpop.xlane.xlu0 %738
        %740 = vadd.xlane.f32.xlu0 %v692
        %v741 = vpop.xlane.xlu0 %740
        %742 = vadd.xlane.f32.xlu0 %v693
        %v743 = vpop.xlane.xlu0 %742
        %744 = vadd.xlane.f32.xlu0 %v694
        %v745 = vpop.xlane.xlu0 %744
        %746 = vadd.xlane.f32.xlu0 %v695
        %v747 = vpop.xlane.xlu0 %746
        %748 = vadd.xlane.f32.xlu0 %v696
        %v749 = vpop.xlane.xlu0 %748
        %750 = vadd.xlane.f32.xlu0 %v697
        %v751 = vpop.xlane.xlu0 %750
        %752 = vadd.xlane.f32.xlu0 %v698
        %v753 = vpop.xlane.xlu0 %752
        %754 = vadd.xlane.f32.xlu0 %v699
        %v755 = vpop.xlane.xlu0 %754
        %756 = vadd.xlane.f32.xlu0 %v700
        %v757 = vpop.xlane.xlu0 %756
        %758 = vadd.xlane.f32.xlu0 %v701
        %v759 = vpop.xlane.xlu0 %758
        %760 = vadd.xlane.f32.xlu0 %v702
        %v761 = vpop.xlane.xlu0 %760
        %762 = vadd.xlane.f32.xlu0 %v703
        %v763 = vpop.xlane.xlu0 %762
        %764 = vadd.xlane.f32.xlu0 %v704
        %v765 = vpop.xlane.xlu0 %764
        %766 = vadd.xlane.f32.xlu0 %v705
        %v767 = vpop.xlane.xlu0 %766
        %768 = vadd.xlane.f32.xlu0 %v706
        %v769 = vpop.xlane.xlu0 %768
        %770 = vadd.xlane.f32.xlu0 %v707
        %v771 = vpop.xlane.xlu0 %770
        %v772 = vmul.f32 %v709, 0.03125
        %v773 = vmul.f32 %v711, 0.03125
        %v774 = vmul.f32 %v713, 0.03125
        %v775 = vmul.f32 %v715, 0.03125
        %v776 = vmul.f32 %v717, 0.03125
        %v777 = vmul.f32 %v719, 0.03125
        %v778 = vmul.f32 %v721, 0.03125
        %v779 = vmul.f32 %v723, 0.03125
        %v780 = vmul.f32 %v725, 0.03125
        %v781 = vmul.f32 %v727, 0.03125
        %v782 = vmul.f32 %v729, 0.03125
        %v783 = vmul.f32 %v731, 0.03125
        %v784 = vmul.f32 %v733, 0.03125
        %v785 = vmul.f32 %v735, 0.03125
        %v786 = vmul.f32 %v737, 0.03125
        %v787 = vmul.f32 %v739, 0.03125
        %v788 = vmul.f32 %v741, 0.03125
        %v789 = vmul.f32 %v743, 0.03125
        %v790 = vmul.f32 %v745, 0.03125
        %v791 = vmul.f32 %v747, 0.03125
        %v792 = vmul.f32 %v749, 0.03125
        %v793 = vmul.f32 %v751, 0.03125
        %v794 = vmul.f32 %v753, 0.03125
        %v795 = vmul.f32 %v755, 0.03125
        %v796 = vmul.f32 %v757, 0.03125
        %v797 = vmul.f32 %v759, 0.03125
        %v798 = vmul.f32 %v761, 0.03125
        %v799 = vmul.f32 %v763, 0.03125
        %v800 = vmul.f32 %v765, 0.03125
        %v801 = vmul.f32 %v767, 0.03125
        %v802 = vmul.f32 %v769, 0.03125
        %v803 = vmul.f32 %v771, 0.03125
        %v804 = vadd.f32 %v772, 1e-05
        %v805 = vadd.f32 %v773, 1e-05
        %v806 = vadd.f32 %v774, 1e-05
        %v807 = vadd.f32 %v775, 1e-05
        %v808 = vadd.f32 %v776, 1e-05
        %v809 = vadd.f32 %v777, 1e-05
        %v810 = vadd.f32 %v778, 1e-05
        %v811 = vadd.f32 %v779, 1e-05
        %v812 = vadd.f32 %v780, 1e-05
        %v813 = vadd.f32 %v781, 1e-05
        %v814 = vadd.f32 %v782, 1e-05
        %v815 = vadd.f32 %v783, 1e-05
        %v816 = vadd.f32 %v784, 1e-05
        %v817 = vadd.f32 %v785, 1e-05
        %v818 = vadd.f32 %v786, 1e-05
        %v819 = vadd.f32 %v787, 1e-05
        %v820 = vadd.f32 %v788, 1e-05
        %v821 = vadd.f32 %v789, 1e-05
        %v822 = vadd.f32 %v790, 1e-05
        %v823 = vadd.f32 %v791, 1e-05
        %v824 = vadd.f32 %v792, 1e-05
        %v825 = vadd.f32 %v793, 1e-05
        %v826 = vadd.f32 %v794, 1e-05
        %v827 = vadd.f32 %v795, 1e-05
        %v828 = vadd.f32 %v796, 1e-05
        %v829 = vadd.f32 %v797, 1e-05
        %v830 = vadd.f32 %v798, 1e-05
        %v831 = vadd.f32 %v799, 1e-05
        %v832 = vadd.f32 %v800, 1e-05
        %v833 = vadd.f32 %v801, 1e-05
        %v834 = vadd.f32 %v802, 1e-05
        %v835 = vadd.f32 %v803, 1e-05
        %v836 = vrsqrt.pop %v804
        %v837 = vrsqrt.pop %v805
        %v838 = vrsqrt.pop %v806
        %v839 = vrsqrt.pop %v807
        %v840 = vrsqrt.pop %v808
        %v841 = vrsqrt.pop %v809
        %v842 = vrsqrt.pop %v810
        %v843 = vrsqrt.pop %v811
        %v844 = vrsqrt.pop %v812
        %v845 = vrsqrt.pop %v813
        %v846 = vrsqrt.pop %v814
        %v847 = vrsqrt.pop %v815
        %v848 = vrsqrt.pop %v816
        %v849 = vrsqrt.pop %v817
        %v850 = vrsqrt.pop %v818
        %v851 = vrsqrt.pop %v819
        %v852 = vrsqrt.pop %v820
        %v853 = vrsqrt.pop %v821
        %v854 = vrsqrt.pop %v822
        %v855 = vrsqrt.pop %v823
        %v856 = vrsqrt.pop %v824
        %v857 = vrsqrt.pop %v825
        %v858 = vrsqrt.pop %v826
        %v859 = vrsqrt.pop %v827
        %v860 = vrsqrt.pop %v828
        %v861 = vrsqrt.pop %v829
        %v862 = vrsqrt.pop %v830
        %v863 = vrsqrt.pop %v831
        %v864 = vrsqrt.pop %v832
        %v865 = vrsqrt.pop %v833
        %v866 = vrsqrt.pop %v834
        %v867 = vrsqrt.pop %v835
        %v868 = vmul.f32 %v644, %v836
        %v869 = vmul.f32 %v645, %v837
        %v870 = vmul.f32 %v646, %v838
        %v871 = vmul.f32 %v647, %v839
        %v872 = vmul.f32 %v648, %v840
        %v873 = vmul.f32 %v649, %v841
        %v874 = vmul.f32 %v650, %v842
        %v875 = vmul.f32 %v651, %v843
        %v876 = vmul.f32 %v652, %v844
        %v877 = vmul.f32 %v653, %v845
        %v878 = vmul.f32 %v654, %v846
        %v879 = vmul.f32 %v655, %v847
        %v880 = vmul.f32 %v656, %v848
        %v881 = vmul.f32 %v657, %v849
        %v882 = vmul.f32 %v658, %v850
        %v883 = vmul.f32 %v659, %v851
        %v884 = vmul.f32 %v660, %v852
        %v885 = vmul.f32 %v661, %v853
        %v886 = vmul.f32 %v662, %v854
        %v887 = vmul.f32 %v663, %v855
        %v888 = vmul.f32 %v664, %v856
        %v889 = vmul.f32 %v665, %v857
        %v890 = vmul.f32 %v666, %v858
        %v891 = vmul.f32 %v667, %v859
        %v892 = vmul.f32 %v668, %v860
        %v893 = vmul.f32 %v669, %v861
        %v894 = vmul.f32 %v670, %v862
        %v895 = vmul.f32 %v671, %v863
        %v896 = vmul.f32 %v672, %v864
        %v897 = vmul.f32 %v673, %v865
        %v898 = vmul.f32 %v674, %v866
        %v899 = vmul.f32 %v675, %v867
        %v900 = vlaneseq
        %v901 = vshrl.u32 %v900, 7
        %v902 = vsub.s32 0, %v901
        %v903 = vrot.slane %v508, %v902
        %v904 = vmul.f32 %v868, %v903
        %v905 = vmul.f32 %v869, %v903
        %v906 = vmul.f32 %v870, %v903
        %v907 = vmul.f32 %v871, %v903
        %v908 = vmul.f32 %v872, %v903
        %v909 = vmul.f32 %v873, %v903
        %v910 = vmul.f32 %v874, %v903
        %v911 = vmul.f32 %v875, %v903
        %v912 = vmul.f32 %v876, %v903
        %v913 = vmul.f32 %v877, %v903
        %v914 = vmul.f32 %v878, %v903
        %v915 = vmul.f32 %v879, %v903
        %v916 = vmul.f32 %v880, %v903
        %v917 = vmul.f32 %v881, %v903
        %v918 = vmul.f32 %v882, %v903
        %v919 = vmul.f32 %v883, %v903
        %v920 = vmul.f32 %v884, %v903
        %v921 = vmul.f32 %v885, %v903
        %v922 = vmul.f32 %v886, %v903
        %v923 = vmul.f32 %v887, %v903
        %v924 = vmul.f32 %v888, %v903
        %v925 = vmul.f32 %v889, %v903
        %v926 = vmul.f32 %v890, %v903
        %v927 = vmul.f32 %v891, %v903
        %v928 = vmul.f32 %v892, %v903
        %v929 = vmul.f32 %v893, %v903
        %v930 = vmul.f32 %v894, %v903
        %v931 = vmul.f32 %v895, %v903
        %v932 = vmul.f32 %v896, %v903
        %v933 = vmul.f32 %v897, %v903
        %v934 = vmul.f32 %v898, %v903
        %v935 = vmul.f32 %v899, %v903
        %v936 = vlaneseq
        %v937 = vshrl.u32 %v936, 7
        %v938 = vsub.s32 1, %v937
        %v939 = vrot.slane %v508, %v938
        %v940 = vadd.f32 %v904, %v939
        %v941 = vadd.f32 %v905, %v939
        %v942 = vadd.f32 %v906, %v939
        %v943 = vadd.f32 %v907, %v939
        %v944 = vadd.f32 %v908, %v939
        %v945 = vadd.f32 %v909, %v939
        %v946 = vadd.f32 %v910, %v939
        %v947 = vadd.f32 %v911, %v939
        %v948 = vadd.f32 %v912, %v939
        %v949 = vadd.f32 %v913, %v939
        %v950 = vadd.f32 %v914, %v939
        %v951 = vadd.f32 %v915, %v939
        %v952 = vadd.f32 %v916, %v939
        %v953 = vadd.f32 %v917, %v939
        %v954 = vadd.f32 %v918, %v939
        %v955 = vadd.f32 %v919, %v939
        %v956 = vadd.f32 %v920, %v939
        %v957 = vadd.f32 %v921, %v939
        %v958 = vadd.f32 %v922, %v939
        %v959 = vadd.f32 %v923, %v939
        %v960 = vadd.f32 %v924, %v939
        %v961 = vadd.f32 %v925, %v939
        %v962 = vadd.f32 %v926, %v939
        %v963 = vadd.f32 %v927, %v939
        %v964 = vadd.f32 %v928, %v939
        %v965 = vadd.f32 %v929, %v939
        %v966 = vadd.f32 %v930, %v939
        %v967 = vadd.f32 %v931, %v939
        %v968 = vadd.f32 %v932, %v939
        %v969 = vadd.f32 %v933, %v939
        %v970 = vadd.f32 %v934, %v939
        %v971 = vadd.f32 %v935, %v939
        %v972 = vld [vmem:[%s2] sm:$0xff]
        %v973 = vld [vmem:[%s2 + $0x8] sm:$0xf]
        %v974 = vld [vmem:[%s2 + $0xc] sm:$0xff]
        %v975 = vld [vmem:[%s2 + $0x14] sm:$0xf]
        %v976 = vld [vmem:[%s2 + $0x18] sm:$0xff]
        %v977 = vld [vmem:[%s2 + $0x20] sm:$0xf]
        %v978 = vld [vmem:[%s2 + $0x24] sm:$0xff]
        %v979 = vld [vmem:[%s2 + $0x2c] sm:$0xf]
        %v980 = vld [vmem:[%s2 + $0x30] sm:$0xff]
        %v981 = vld [vmem:[%s2 + $0x38] sm:$0xf]
        %v982 = vld [vmem:[%s2 + $0x3c] sm:$0xff]
        %v983 = vld [vmem:[%s2 + $0x44] sm:$0xf]
        %v984 = vld [vmem:[%s2 + $0x48] sm:$0xff]
        %v985 = vld [vmem:[%s2 + $0x50] sm:$0xf]
        %v986 = vld [vmem:[%s2 + $0x54] sm:$0xff]
        %v987 = vld [vmem:[%s2 + $0x5c] sm:$0xf]
        %v988 = vld [vmem:[%s2 + $0x60] sm:$0xff]
        %v989 = vld [vmem:[%s2 + $0x68] sm:$0xf]
        %v990 = vld [vmem:[%s2 + $0x6c] sm:$0xff]
        %v991 = vld [vmem:[%s2 + $0x74] sm:$0xf]
        %v992 = vld [vmem:[%s2 + $0x78] sm:$0xff]
        %v993 = vld [vmem:[%s2 + $0x80] sm:$0xf]
        %v994 = vld [vmem:[%s2 + $0x84] sm:$0xff]
        %v995 = vld [vmem:[%s2 + $0x8c] sm:$0xf]
        %v996 = vld [vmem:[%s2 + $0x90] sm:$0xff]
        %v997 = vld [vmem:[%s2 + $0x98] sm:$0xf]
        %v998 = vld [vmem:[%s2 + $0x9c] sm:$0xff]
        %v999 = vld [vmem:[%s2 + $0xa4] sm:$0xf]
        %v1000 = vld [vmem:[%s2 + $0xa8] sm:$0xff]
        %v1001 = vld [vmem:[%s2 + $0xb0] sm:$0xf]
        %v1002 = vld [vmem:[%s2 + $0xb4] sm:$0xff]
        %v1003 = vld [vmem:[%s2 + $0xbc] sm:$0xf]
        %v1004 = vpack.c.bf16 %v941, %v940
        %v1005 = vpack.c.bf16 %v943, %v942
        %v1006 = vpack.c.bf16 %v945, %v944
        %v1007 = vpack.c.bf16 %v947, %v946
        %v1008 = vpack.c.bf16 %v949, %v948
        %v1009 = vpack.c.bf16 %v951, %v950
        %v1010 = vpack.c.bf16 %v953, %v952
        %v1011 = vpack.c.bf16 %v955, %v954
        %v1012 = vpack.c.bf16 %v957, %v956
        %v1013 = vpack.c.bf16 %v959, %v958
        %v1014 = vpack.c.bf16 %v961, %v960
        %v1015 = vpack.c.bf16 %v963, %v962
        %v1016 = vpack.c.bf16 %v965, %v964
        %v1017 = vpack.c.bf16 %v967, %v966
        %v1018 = vpack.c.bf16 %v969, %v968
        %v1019 = vpack.c.bf16 %v971, %v970
        %v1020 = vld [vmem:[%s3] sm:$0x7]
        %v1022 = vlaneseq
        %v1023 = vshrl.u32 %v1022, 7
        %v1024 = vsub.s32 0, %v1023
        %v1025 = vrot.slane %v1020, %v1024
        %v1026 = vlaneseq
        %v1027 = vshrl.u32 %v1026, 7
        %v1028 = vsub.s32 1, %v1027
        %v1029 = vrot.slane %v1020, %v1028
        %v1030 = vlaneseq
        %v1031 = vshrl.u32 %v1030, 7
        %v1032 = vsub.s32 2, %v1031
        %v1033 = vrot.slane %v1020, %v1032
        %v1069 = vunpack.c.l.b16 %v972
        %v1070 = vunpack.c.h.b16 %v972
        %v1071 = vunpack.c.l.b16 %v973
        %v1072 = vunpack.c.l.b16 %v974
        %v1073 = vunpack.c.h.b16 %v974
        %v1074 = vunpack.c.l.b16 %v975
        %v1075 = vunpack.c.l.b16 %v976
        %v1076 = vunpack.c.h.b16 %v976
        %v1077 = vunpack.c.l.b16 %v977
        %v1078 = vunpack.c.l.b16 %v978
        %v1079 = vunpack.c.h.b16 %v978
        %v1080 = vunpack.c.l.b16 %v979
        %v1081 = vunpack.c.l.b16 %v980
        %v1082 = vunpack.c.h.b16 %v980
        %v1083 = vunpack.c.l.b16 %v981
        %v1084 = vunpack.c.l.b16 %v982
        %v1085 = vunpack.c.h.b16 %v982
        %v1086 = vunpack.c.l.b16 %v983
        %v1087 = vunpack.c.l.b16 %v984
        %v1088 = vunpack.c.h.b16 %v984
        %v1089 = vunpack.c.l.b16 %v985
        %v1090 = vunpack.c.l.b16 %v986
        %v1091 = vunpack.c.h.b16 %v986
        %v1092 = vunpack.c.l.b16 %v987
        %v1093 = vunpack.c.l.b16 %v988
        %v1094 = vunpack.c.h.b16 %v988
        %v1095 = vunpack.c.l.b16 %v989
        %v1096 = vunpack.c.l.b16 %v990
        %v1097 = vunpack.c.h.b16 %v990
        %v1098 = vunpack.c.l.b16 %v991
        %v1099 = vunpack.c.l.b16 %v992
        %v1100 = vunpack.c.h.b16 %v992
        %v1101 = vunpack.c.l.b16 %v993
        %v1102 = vunpack.c.l.b16 %v994
        %v1103 = vunpack.c.h.b16 %v994
        %v1104 = vunpack.c.l.b16 %v995
        %v1105 = vunpack.c.l.b16 %v996
        %v1106 = vunpack.c.h.b16 %v996
        %v1107 = vunpack.c.l.b16 %v997
        %v1108 = vunpack.c.l.b16 %v998
        %v1109 = vunpack.c.h.b16 %v998
        %v1110 = vunpack.c.l.b16 %v999
        %v1111 = vunpack.c.l.b16 %v1000
        %v1112 = vunpack.c.h.b16 %v1000
        %v1113 = vunpack.c.l.b16 %v1001
        %v1114 = vunpack.c.l.b16 %v1002
        %v1115 = vunpack.c.h.b16 %v1002
        %v1116 = vunpack.c.l.b16 %v1003
        %v1117 = vpack.c.b16 %v1072, %v1069
        %v1118 = vpack.c.b16 %v1073, %v1070
        %v1119 = vpack.c.b16 %v1074, %v1071
        %v1120 = vpack.c.b16 %v1078, %v1075
        %v1121 = vpack.c.b16 %v1079, %v1076
        %v1122 = vpack.c.b16 %v1080, %v1077
        %v1123 = vpack.c.b16 %v1084, %v1081
        %v1124 = vpack.c.b16 %v1085, %v1082
        %v1125 = vpack.c.b16 %v1086, %v1083
        %v1126 = vpack.c.b16 %v1090, %v1087
        %v1127 = vpack.c.b16 %v1091, %v1088
        %v1128 = vpack.c.b16 %v1092, %v1089
        %v1129 = vpack.c.b16 %v1096, %v1093
        %v1130 = vpack.c.b16 %v1097, %v1094
        %v1131 = vpack.c.b16 %v1098, %v1095
        %v1132 = vpack.c.b16 %v1102, %v1099
        %v1133 = vpack.c.b16 %v1103, %v1100
        %v1134 = vpack.c.b16 %v1104, %v1101
        %v1135 = vpack.c.b16 %v1108, %v1105
        %v1136 = vpack.c.b16 %v1109, %v1106
        %v1137 = vpack.c.b16 %v1110, %v1107
        %v1138 = vpack.c.b16 %v1114, %v1111
        %v1139 = vpack.c.b16 %v1115, %v1112
        %v1140 = vpack.c.b16 %v1116, %v1113
        %1165 = vmatprep.subr.bf16.mxu0 %v1118
        %1166 = vmatpush1.bf16.msra.mxu0 %v1117
        %1167 = vmatprep.subr.bf16.mxu0 %v1121
        %1168 = vmatpush1.bf16.msra.mxu0 %v1120
        %1169 = vmatprep.subr.bf16.mxu0 %v1124
        %1170 = vmatpush1.bf16.msra.mxu0 %v1123
        %1171 = vmatprep.subr.bf16.mxu0 %v1127
        %1172 = vmatpush1.bf16.msra.mxu0 %v1126
        %1173 = vmatprep.subr.bf16.mxu0 %v1130
        %1174 = vmatpush1.bf16.msra.mxu0 %v1129
        %1175 = vmatprep.subr.bf16.mxu0 %v1133
        %1176 = vmatpush1.bf16.msra.mxu0 %v1132
        %1177 = vmatprep.subr.bf16.mxu0 %v1136
        %1178 = vmatpush1.bf16.msra.mxu0 %v1135
        %1179 = vmatprep.subr.bf16.mxu0 %v1139
        %1180 = vmatpush1.bf16.msra.mxu0 %v1138
        %1181 = vmatprep.subr.bf16.mxu0 0
        %1182 = vmatpush1.bf16.msra.mxu0 0
        %1183 = vmatprep.subr.bf16.mxu0 0
        %1184 = vmatpush1.bf16.msra.mxu0 0
        %1185 = vmatprep.subr.bf16.mxu0 0
        %1186 = vmatpush1.bf16.msra.mxu0 0
        %1187 = vmatprep.subr.bf16.mxu0 0
        %1188 = vmatpush1.bf16.msra.mxu0 0
        %1189 = vmatprep.subr.bf16.mxu0 0
        %1190 = vmatpush1.bf16.msra.mxu0 0
        %1191 = vmatprep.subr.bf16.mxu0 0
        %1192 = vmatpush1.bf16.msra.mxu0 0
        %1193 = vmatprep.subr.bf16.mxu0 0
        %1194 = vmatpush1.bf16.msra.mxu0 0
        %1195 = vmatprep.subr.bf16.mxu0 0
        %1196 = vmatpush1.bf16.msra.mxu0 0
        %1197 = vmatprep.mubr.bf16.mxu0 0
        %1198 = vmatmul.mubr.bf16.gmra.mrb[0].mxu0 %v1004
        %v1199 = vpop.f32.mrb[0].mxu0
        %v1200 = vadd.f32 %v1025, %v1199
        %v1201 = vpop.f32.mrb[0].mxu0
        %v1202 = vadd.f32 %v1029, %v1201
        %v1203 = vpop.f32.mrb[0].mxu0
        %v1204 = vadd.f32 %v1025, %v1203
        %v1205 = vpop.f32.mrb[0].mxu0
        %v1206 = vadd.f32 %v1029, %v1205
        %1207 = vmatprep.mubr.bf16.mxu0 0
        %1208 = vmatmul.mubr.bf16.gmra.mrb[0].mxu0 %v1005
        %v1209 = vpop.f32.mrb[0].mxu0
        %v1210 = vadd.f32 %v1025, %v1209
        %v1211 = vpop.f32.mrb[0].mxu0
        %v1212 = vadd.f32 %v1029, %v1211
        %v1213 = vpop.f32.mrb[0].mxu0
        %v1214 = vadd.f32 %v1025, %v1213
        %v1215 = vpop.f32.mrb[0].mxu0
        %v1216 = vadd.f32 %v1029, %v1215
        %1217 = vmatprep.mubr.bf16.mxu0 0
        %1218 = vmatmul.mubr.bf16.gmra.mrb[0].mxu0 %v1006
        %v1219 = vpop.f32.mrb[0].mxu0
        %v1220 = vadd.f32 %v1025, %v1219
        %v1221 = vpop.f32.mrb[0].mxu0
        %v1222 = vadd.f32 %v1029, %v1221
        %v1223 = vpop.f32.mrb[0].mxu0
        %v1224 = vadd.f32 %v1025, %v1223
        %v1225 = vpop.f32.mrb[0].mxu0
        %v1226 = vadd.f32 %v1029, %v1225
        %1227 = vmatprep.mubr.bf16.mxu0 0
        %1228 = vmatmul.mubr.bf16.gmra.mrb[0].mxu0 %v1007
        %v1229 = vpop.f32.mrb[0].mxu0
        %v1230 = vadd.f32 %v1025, %v1229
        %v1231 = vpop.f32.mrb[0].mxu0
        %v1232 = vadd.f32 %v1029, %v1231
        %v1233 = vpop.f32.mrb[0].mxu0
        %v1234 = vadd.f32 %v1025, %v1233
        %v1235 = vpop.f32.mrb[0].mxu0
        %v1236 = vadd.f32 %v1029, %v1235
        %1237 = vmatprep.mubr.bf16.mxu0 0
        %1238 = vmatmul.mubr.bf16.gmra.mrb[0].mxu0 %v1008
        %v1239 = vpop.f32.mrb[0].mxu0
        %v1240 = vadd.f32 %v1025, %v1239
        %v1241 = vpop.f32.mrb[0].mxu0
        %v1242 = vadd.f32 %v1029, %v1241
        %v1243 = vpop.f32.mrb[0].mxu0
        %v1244 = vadd.f32 %v1025, %v1243
        %v1245 = vpop.f32.mrb[0].mxu0
        %v1246 = vadd.f32 %v1029, %v1245
        %1247 = vmatprep.mubr.bf16.mxu0 0
        %1248 = vmatmul.mubr.bf16.gmra.mrb[0].mxu0 %v1009
        %v1249 = vpop.f32.mrb[0].mxu0
        %v1250 = vadd.f32 %v1025, %v1249
        %v1251 = vpop.f32.mrb[0].mxu0
        %v1252 = vadd.f32 %v1029, %v1251
        %v1253 = vpop.f32.mrb[0].mxu0
        %v1254 = vadd.f32 %v1025, %v1253
        %v1255 = vpop.f32.mrb[0].mxu0
        %v1256 = vadd.f32 %v1029, %v1255
        %1257 = vmatprep.mubr.bf16.mxu0 0
        %1258 = vmatmul.mubr.bf16.gmra.mrb[0].mxu0 %v1010
        %v1259 = vpop.f32.mrb[0].mxu0
        %v1260 = vadd.f32 %v1025, %v1259
        %v1261 = vpop.f32.mrb[0].mxu0
        %v1262 = vadd.f32 %v1029, %v1261
        %v1263 = vpop.f32.mrb[0].mxu0
        %v1264 = vadd.f32 %v1025, %v1263
        %v1265 = vpop.f32.mrb[0].mxu0
        %v1266 = vadd.f32 %v1029, %v1265
        %1267 = vmatprep.mubr.bf16.mxu0 0
        %1268 = vmatmul.mubr.bf16.gmra.mrb[0].mxu0 %v1011
        %v1269 = vpop.f32.mrb[0].mxu0
        %v1270 = vadd.f32 %v1025, %v1269
        %v1271 = vpop.f32.mrb[0].mxu0
        %v1272 = vadd.f32 %v1029, %v1271
        %v1273 = vpop.f32.mrb[0].mxu0
        %v1274 = vadd.f32 %v1025, %v1273
        %v1275 = vpop.f32.mrb[0].mxu0
        %v1276 = vadd.f32 %v1029, %v1275
        %1277 = vmatprep.mubr.bf16.mxu0 0
        %1278 = vmatmul.mubr.bf16.gmra.mrb[0].mxu0 %v1012
        %v1279 = vpop.f32.mrb[0].mxu0
        %v1280 = vadd.f32 %v1025, %v1279
        %v1281 = vpop.f32.mrb[0].mxu0
        %v1282 = vadd.f32 %v1029, %v1281
        %v1283 = vpop.f32.mrb[0].mxu0
        %v1284 = vadd.f32 %v1025, %v1283
        %v1285 = vpop.f32.mrb[0].mxu0
        %v1286 = vadd.f32 %v1029, %v1285
        %1287 = vmatprep.mubr.bf16.mxu0 0
        %1288 = vmatmul.mubr.bf16.gmra.mrb[0].mxu0 %v1013
        %v1289 = vpop.f32.mrb[0].mxu0
        %v1290 = vadd.f32 %v1025, %v1289
        %v1291 = vpop.f32.mrb[0].mxu0
        %v1292 = vadd.f32 %v1029, %v1291
        %v1293 = vpop.f32.mrb[0].mxu0
        %v1294 = vadd.f32 %v1025, %v1293
        %v1295 = vpop.f32.mrb[0].mxu0
        %v1296 = vadd.f32 %v1029, %v1295
        %1297 = vmatprep.mubr.bf16.mxu0 0
        %1298 = vmatmul.mubr.bf16.gmra.mrb[0].mxu0 %v1014
        %v1299 = vpop.f32.mrb[0].mxu0
        %v1300 = vadd.f32 %v1025, %v1299
        %v1301 = vpop.f32.mrb[0].mxu0
        %v1302 = vadd.f32 %v1029, %v1301
        %v1303 = vpop.f32.mrb[0].mxu0
        %v1304 = vadd.f32 %v1025, %v1303
        %v1305 = vpop.f32.mrb[0].mxu0
        %v1306 = vadd.f32 %v1029, %v1305
        %1307 = vmatprep.mubr.bf16.mxu0 0
        %1308 = vmatmul.mubr.bf16.gmra.mrb[0].mxu0 %v1015
        %v1309 = vpop.f32.mrb[0].mxu0
        %v1310 = vadd.f32 %v1025, %v1309
        %v1311 = vpop.f32.mrb[0].mxu0
        %v1312 = vadd.f32 %v1029, %v1311
        %v1313 = vpop.f32.mrb[0].mxu0
        %v1314 = vadd.f32 %v1025, %v1313
        %v1315 = vpop.f32.mrb[0].mxu0
        %v1316 = vadd.f32 %v1029, %v1315
        %1317 = vmatprep.mubr.bf16.mxu0 0
        %1318 = vmatmul.mubr.bf16.gmra.mrb[0].mxu0 %v1016
        %v1319 = vpop.f32.mrb[0].mxu0
        %v1320 = vadd.f32 %v1025, %v1319
        %v1321 = vpop.f32.mrb[0].mxu0
        %v1322 = vadd.f32 %v1029, %v1321
        %v1323 = vpop.f32.mrb[0].mxu0
        %v1324 = vadd.f32 %v1025, %v1323
        %v1325 = vpop.f32.mrb[0].mxu0
        %v1326 = vadd.f32 %v1029, %v1325
        %1327 = vmatprep.mubr.bf16.mxu0 0
        %1328 = vmatmul.mubr.bf16.gmra.mrb[0].mxu0 %v1017
        %v1329 = vpop.f32.mrb[0].mxu0
        %v1330 = vadd.f32 %v1025, %v1329
        %v1331 = vpop.f32.mrb[0].mxu0
        %v1332 = vadd.f32 %v1029, %v1331
        %v1333 = vpop.f32.mrb[0].mxu0
        %v1334 = vadd.f32 %v1025, %v1333
        %v1335 = vpop.f32.mrb[0].mxu0
        %v1336 = vadd.f32 %v1029, %v1335
        %1337 = vmatprep.mubr.bf16.mxu0 0
        %1338 = vmatmul.mubr.bf16.gmra.mrb[0].mxu0 %v1018
        %v1339 = vpop.f32.mrb[0].mxu0
        %v1340 = vadd.f32 %v1025, %v1339
        %v1341 = vpop.f32.mrb[0].mxu0
        %v1342 = vadd.f32 %v1029, %v1341
        %v1343 = vpop.f32.mrb[0].mxu0
        %v1344 = vadd.f32 %v1025, %v1343
        %v1345 = vpop.f32.mrb[0].mxu0
        %v1346 = vadd.f32 %v1029, %v1345
        %1347 = vmatprep.mubr.bf16.mxu0 0
        %1348 = vmatmul.mubr.bf16.gmra.mrb[0].mxu0 %v1019
        %v1349 = vpop.f32.mrb[0].mxu0
        %v1350 = vadd.f32 %v1025, %v1349
        %v1351 = vpop.f32.mrb[0].mxu0
        %v1352 = vadd.f32 %v1029, %v1351
        %v1353 = vpop.f32.mrb[0].mxu0
        %v1354 = vadd.f32 %v1025, %v1353
        %v1355 = vpop.f32.mrb[0].mxu0
        %v1356 = vadd.f32 %v1029, %v1355
        %1357 = vdwg.mxu0
        %1358 = vmatprep.subr.bf16.mxu0 0
        %1359 = vmatpush1.bf16.msra.mxu0 %v1119
        %1360 = vmatprep.subr.bf16.mxu0 0
        %1361 = vmatpush1.bf16.msra.mxu0 %v1122
        %1362 = vmatprep.subr.bf16.mxu0 0
        %1363 = vmatpush1.bf16.msra.mxu0 %v1125
        %1364 = vmatprep.subr.bf16.mxu0 0
        %1365 = vmatpush1.bf16.msra.mxu0 %v1128
        %1366 = vmatprep.subr.bf16.mxu0 0
        %1367 = vmatpush1.bf16.msra.mxu0 %v1131
        %1368 = vmatprep.subr.bf16.mxu0 0
        %1369 = vmatpush1.bf16.msra.mxu0 %v1134
        %1370 = vmatprep.subr.bf16.mxu0 0
        %1371 = vmatpush1.bf16.msra.mxu0 %v1137
        %1372 = vmatprep.subr.bf16.mxu0 0
        %1373 = vmatpush1.bf16.msra.mxu0 %v1140
        %1374 = vmatprep.subr.bf16.mxu0 0
        %1375 = vmatpush1.bf16.msra.mxu0 0
        %1376 = vmatprep.subr.bf16.mxu0 0
        %1377 = vmatpush1.bf16.msra.mxu0 0
        %1378 = vmatprep.subr.bf16.mxu0 0
        %1379 = vmatpush1.bf16.msra.mxu0 0
        %1380 = vmatprep.subr.bf16.mxu0 0
        %1381 = vmatpush1.bf16.msra.mxu0 0
        %1382 = vmatprep.subr.bf16.mxu0 0
        %1383 = vmatpush1.bf16.msra.mxu0 0
        %1384 = vmatprep.subr.bf16.mxu0 0
        %1385 = vmatpush1.bf16.msra.mxu0 0
        %1386 = vmatprep.subr.bf16.mxu0 0
        %1387 = vmatpush1.bf16.msra.mxu0 0
        %1388 = vmatprep.subr.bf16.mxu0 0
        %1389 = vmatpush1.bf16.msra.mxu0 0
        %1390 = vmatprep.mubr.bf16.mxu0 0
        %1391 = vmatmul.mubr.bf16.gmra.mrb[0].mxu0 %v1004
        %v1392 = vpop.f32.mrb[0].mxu0
        %v1393 = vadd.f32 %v1033, %v1392
        %v1394 = vpop.f32.mrb[0].mxu0
        %v1395 = vpop.f32.mrb[0].mxu0
        %v1396 = vadd.f32 %v1033, %v1395
        %v1397 = vpop.f32.mrb[0].mxu0
        %1398 = vmatprep.mubr.bf16.mxu0 0
        %1399 = vmatmul.mubr.bf16.gmra.mrb[0].mxu0 %v1005
        %v1400 = vpop.f32.mrb[0].mxu0
        %v1401 = vadd.f32 %v1033, %v1400
        %v1402 = vpop.f32.mrb[0].mxu0
        %v1403 = vpop.f32.mrb[0].mxu0
        %v1404 = vadd.f32 %v1033, %v1403
        %v1405 = vpop.f32.mrb[0].mxu0
        %1406 = vmatprep.mubr.bf16.mxu0 0
        %1407 = vmatmul.mubr.bf16.gmra.mrb[0].mxu0 %v1006
        %v1408 = vpop.f32.mrb[0].mxu0
        %v1409 = vadd.f32 %v1033, %v1408
        %v1410 = vpop.f32.mrb[0].mxu0
        %v1411 = vpop.f32.mrb[0].mxu0
        %v1412 = vadd.f32 %v1033, %v1411
        %v1413 = vpop.f32.mrb[0].mxu0
        %1414 = vmatprep.mubr.bf16.mxu0 0
        %1415 = vmatmul.mubr.bf16.gmra.mrb[0].mxu0 %v1007
        %v1416 = vpop.f32.mrb[0].mxu0
        %v1417 = vadd.f32 %v1033, %v1416
        %v1418 = vpop.f32.mrb[0].mxu0
        %v1419 = vpop.f32.mrb[0].mxu0
        %v1420 = vadd.f32 %v1033, %v1419
        %v1421 = vpop.f32.mrb[0].mxu0
        %1422 = vmatprep.mubr.bf16.mxu0 0
        %1423 = vmatmul.mubr.bf16.gmra.mrb[0].mxu0 %v1008
        %v1424 = vpop.f32.mrb[0].mxu0
        %v1425 = vadd.f32 %v1033, %v1424
        %v1426 = vpop.f32.mrb[0].mxu0
        %v1427 = vpop.f32.mrb[0].mxu0
        %v1428 = vadd.f32 %v1033, %v1427
        %v1429 = vpop.f32.mrb[0].mxu0
        %1430 = vmatprep.mubr.bf16.mxu0 0
        %1431 = vmatmul.mubr.bf16.gmra.mrb[0].mxu0 %v1009
        %v1432 = vpop.f32.mrb[0].mxu0
        %v1433 = vadd.f32 %v1033, %v1432
        %v1434 = vpop.f32.mrb[0].mxu0
        %v1435 = vpop.f32.mrb[0].mxu0
        %v1436 = vadd.f32 %v1033, %v1435
        %v1437 = vpop.f32.mrb[0].mxu0
        %1438 = vmatprep.mubr.bf16.mxu0 0
        %1439 = vmatmul.mubr.bf16.gmra.mrb[0].mxu0 %v1010
        %v1440 = vpop.f32.mrb[0].mxu0
        %v1441 = vadd.f32 %v1033, %v1440
        %v1442 = vpop.f32.mrb[0].mxu0
        %v1443 = vpop.f32.mrb[0].mxu0
        %v1444 = vadd.f32 %v1033, %v1443
        %v1445 = vpop.f32.mrb[0].mxu0
        %1446 = vmatprep.mubr.bf16.mxu0 0
        %1447 = vmatmul.mubr.bf16.gmra.mrb[0].mxu0 %v1011
        %v1448 = vpop.f32.mrb[0].mxu0
        %v1449 = vadd.f32 %v1033, %v1448
        %v1450 = vpop.f32.mrb[0].mxu0
        %v1451 = vpop.f32.mrb[0].mxu0
        %v1452 = vadd.f32 %v1033, %v1451
        %v1453 = vpop.f32.mrb[0].mxu0
        %1454 = vmatprep.mubr.bf16.mxu0 0
        %1455 = vmatmul.mubr.bf16.gmra.mrb[0].mxu0 %v1012
        %v1456 = vpop.f32.mrb[0].mxu0
        %v1457 = vadd.f32 %v1033, %v1456
        %v1458 = vpop.f32.mrb[0].mxu0
        %v1459 = vpop.f32.mrb[0].mxu0
        %v1460 = vadd.f32 %v1033, %v1459
        %v1461 = vpop.f32.mrb[0].mxu0
        %1462 = vmatprep.mubr.bf16.mxu0 0
        %1463 = vmatmul.mubr.bf16.gmra.mrb[0].mxu0 %v1013
        %v1464 = vpop.f32.mrb[0].mxu0
        %v1465 = vadd.f32 %v1033, %v1464
        %v1466 = vpop.f32.mrb[0].mxu0
        %v1467 = vpop.f32.mrb[0].mxu0
        %v1468 = vadd.f32 %v1033, %v1467
        %v1469 = vpop.f32.mrb[0].mxu0
        %1470 = vmatprep.mubr.bf16.mxu0 0
        %1471 = vmatmul.mubr.bf16.gmra.mrb[0].mxu0 %v1014
        %v1472 = vpop.f32.mrb[0].mxu0
        %v1473 = vadd.f32 %v1033, %v1472
        %v1474 = vpop.f32.mrb[0].mxu0
        %v1475 = vpop.f32.mrb[0].mxu0
        %v1476 = vadd.f32 %v1033, %v1475
        %v1477 = vpop.f32.mrb[0].mxu0
        %1478 = vmatprep.mubr.bf16.mxu0 0
        %1479 = vmatmul.mubr.bf16.gmra.mrb[0].mxu0 %v1015
        %v1480 = vpop.f32.mrb[0].mxu0
        %v1481 = vadd.f32 %v1033, %v1480
        %v1482 = vpop.f32.mrb[0].mxu0
        %v1483 = vpop.f32.mrb[0].mxu0
        %v1484 = vadd.f32 %v1033, %v1483
        %v1485 = vpop.f32.mrb[0].mxu0
        %1486 = vmatprep.mubr.bf16.mxu0 0
        %1487 = vmatmul.mubr.bf16.gmra.mrb[0].mxu0 %v1016
        %v1488 = vpop.f32.mrb[0].mxu0
        %v1489 = vadd.f32 %v1033, %v1488
        %v1490 = vpop.f32.mrb[0].mxu0
        %v1491 = vpop.f32.mrb[0].mxu0
        %v1492 = vadd.f32 %v1033, %v1491
        %v1493 = vpop.f32.mrb[0].mxu0
        %1494 = vmatprep.mubr.bf16.mxu0 0
        %1495 = vmatmul.mubr.bf16.gmra.mrb[0].mxu0 %v1017
        %v1496 = vpop.f32.mrb[0].mxu0
        %v1497 = vadd.f32 %v1033, %v1496
        %v1498 = vpop.f32.mrb[0].mxu0
        %v1499 = vpop.f32.mrb[0].mxu0
        %v1500 = vadd.f32 %v1033, %v1499
        %v1501 = vpop.f32.mrb[0].mxu0
        %1502 = vmatprep.mubr.bf16.mxu0 0
        %1503 = vmatmul.mubr.bf16.gmra.mrb[0].mxu0 %v1018
        %v1504 = vpop.f32.mrb[0].mxu0
        %v1505 = vadd.f32 %v1033, %v1504
        %v1506 = vpop.f32.mrb[0].mxu0
        %v1507 = vpop.f32.mrb[0].mxu0
        %v1508 = vadd.f32 %v1033, %v1507
        %v1509 = vpop.f32.mrb[0].mxu0
        %1510 = vmatprep.mubr.bf16.mxu0 0
        %1511 = vmatmul.mubr.bf16.gmra.mrb[0].mxu0 %v1019
        %v1512 = vpop.f32.mrb[0].mxu0
        %v1513 = vadd.f32 %v1033, %v1512
        %v1514 = vpop.f32.mrb[0].mxu0
        %v1515 = vpop.f32.mrb[0].mxu0
        %v1516 = vadd.f32 %v1033, %v1515
        %v1517 = vpop.f32.mrb[0].mxu0
        %1518 = vdwg.mxu0
        %v1519 = vmul.f32 %v1200, %v1202
        %v1520 = vmul.f32 %v1204, %v1206
        %v1521 = vmul.f32 %v1210, %v1212
        %v1522 = vmul.f32 %v1214, %v1216
        %v1523 = vmul.f32 %v1220, %v1222
        %v1524 = vmul.f32 %v1224, %v1226
        %v1525 = vmul.f32 %v1230, %v1232
        %v1526 = vmul.f32 %v1234, %v1236
        %v1527 = vmul.f32 %v1240, %v1242
        %v1528 = vmul.f32 %v1244, %v1246
        %v1529 = vmul.f32 %v1250, %v1252
        %v1530 = vmul.f32 %v1254, %v1256
        %v1531 = vmul.f32 %v1260, %v1262
        %v1532 = vmul.f32 %v1264, %v1266
        %v1533 = vmul.f32 %v1270, %v1272
        %v1534 = vmul.f32 %v1274, %v1276
        %v1535 = vmul.f32 %v1280, %v1282
        %v1536 = vmul.f32 %v1284, %v1286
        %v1537 = vmul.f32 %v1290, %v1292
        %v1538 = vmul.f32 %v1294, %v1296
        %v1539 = vmul.f32 %v1300, %v1302
        %v1540 = vmul.f32 %v1304, %v1306
        %v1541 = vmul.f32 %v1310, %v1312
        %v1542 = vmul.f32 %v1314, %v1316
        %v1543 = vmul.f32 %v1320, %v1322
        %v1544 = vmul.f32 %v1324, %v1326
        %v1545 = vmul.f32 %v1330, %v1332
        %v1546 = vmul.f32 %v1334, %v1336
        %v1547 = vmul.f32 %v1340, %v1342
        %v1548 = vmul.f32 %v1344, %v1346
        %v1549 = vmul.f32 %v1350, %v1352
        %v1550 = vmul.f32 %v1354, %v1356
        %v1551 = vld [vmem:[%s4] sm:$0xf]
        %v1552 = vld [vmem:[%s4 + $0x4] sm:$0xf]
        %v1553 = vld [vmem:[%s4 + $0x8] sm:$0xf]
        %v1554 = vld [vmem:[%s4 + $0xc] sm:$0xf]
        %v1555 = vld [vmem:[%s4 + $0x10] sm:$0xf]
        %v1556 = vld [vmem:[%s4 + $0x14] sm:$0xf]
        %v1557 = vld [vmem:[%s4 + $0x18] sm:$0xf]
        %v1558 = vld [vmem:[%s4 + $0x1c] sm:$0xf]
        %v1559 = vld [vmem:[%s4 + $0x20] sm:$0xf]
        %v1560 = vld [vmem:[%s4 + $0x24] sm:$0xf]
        %v1561 = vld [vmem:[%s4 + $0x28] sm:$0xf]
        %v1562 = vld [vmem:[%s4 + $0x2c] sm:$0xf]
        %v1563 = vld [vmem:[%s4 + $0x30] sm:$0xf]
        %v1564 = vld [vmem:[%s4 + $0x34] sm:$0xf]
        %v1565 = vld [vmem:[%s4 + $0x38] sm:$0xf]
        %v1566 = vld [vmem:[%s4 + $0x3c] sm:$0xf]
        %v1567 = vpack.c.bf16 %v1520, %v1519
        %v1568 = vpack.c.bf16 %v1522, %v1521
        %v1569 = vpack.c.bf16 %v1524, %v1523
        %v1570 = vpack.c.bf16 %v1526, %v1525
        %v1571 = vpack.c.bf16 %v1528, %v1527
        %v1572 = vpack.c.bf16 %v1530, %v1529
        %v1573 = vpack.c.bf16 %v1532, %v1531
        %v1574 = vpack.c.bf16 %v1534, %v1533
        %v1575 = vpack.c.bf16 %v1536, %v1535
        %v1576 = vpack.c.bf16 %v1538, %v1537
        %v1577 = vpack.c.bf16 %v1540, %v1539
        %v1578 = vpack.c.bf16 %v1542, %v1541
        %v1579 = vpack.c.bf16 %v1544, %v1543
        %v1580 = vpack.c.bf16 %v1546, %v1545
        %v1581 = vpack.c.bf16 %v1548, %v1547
        %v1582 = vpack.c.bf16 %v1550, %v1549
        %v1599 = vunpack.c.l.b16 %v1551
        %v1600 = vunpack.c.l.b16 %v1552
        %v1601 = vunpack.c.l.b16 %v1553
        %v1602 = vunpack.c.l.b16 %v1554
        %v1603 = vunpack.c.l.b16 %v1555
        %v1604 = vunpack.c.l.b16 %v1556
        %v1605 = vunpack.c.l.b16 %v1557
        %v1606 = vunpack.c.l.b16 %v1558
        %v1607 = vunpack.c.l.b16 %v1559
        %v1608 = vunpack.c.l.b16 %v1560
        %v1609 = vunpack.c.l.b16 %v1561
        %v1610 = vunpack.c.l.b16 %v1562
        %v1611 = vunpack.c.l.b16 %v1563
        %v1612 = vunpack.c.l.b16 %v1564
        %v1613 = vunpack.c.l.b16 %v1565
        %v1614 = vunpack.c.l.b16 %v1566
        %v1615 = vpack.c.b16 %v1600, %v1599
        %v1616 = vpack.c.b16 %v1602, %v1601
        %v1617 = vpack.c.b16 %v1604, %v1603
        %v1618 = vpack.c.b16 %v1606, %v1605
        %v1619 = vpack.c.b16 %v1608, %v1607
        %v1620 = vpack.c.b16 %v1610, %v1609
        %v1621 = vpack.c.b16 %v1612, %v1611
        %v1622 = vpack.c.b16 %v1614, %v1613
        %1631 = vmatprep.subr.bf16.mxu0 0
        %1632 = vmatpush1.bf16.msra.mxu0 %v1615
        %1633 = vmatprep.subr.bf16.mxu0 0
        %1634 = vmatpush1.bf16.msra.mxu0 %v1616
        %1635 = vmatprep.subr.bf16.mxu0 0
        %1636 = vmatpush1.bf16.msra.mxu0 %v1617
        %1637 = vmatprep.subr.bf16.mxu0 0
        %1638 = vmatpush1.bf16.msra.mxu0 %v1618
        %1639 = vmatprep.subr.bf16.mxu0 0
        %1640 = vmatpush1.bf16.msra.mxu0 %v1619
        %1641 = vmatprep.subr.bf16.mxu0 0
        %1642 = vmatpush1.bf16.msra.mxu0 %v1620
        %1643 = vmatprep.subr.bf16.mxu0 0
        %1644 = vmatpush1.bf16.msra.mxu0 %v1621
        %1645 = vmatprep.subr.bf16.mxu0 0
        %1646 = vmatpush1.bf16.msra.mxu0 %v1622
        %1647 = vmatprep.subr.bf16.mxu0 0
        %1648 = vmatpush1.bf16.msra.mxu0 0
        %1649 = vmatprep.subr.bf16.mxu0 0
        %1650 = vmatpush1.bf16.msra.mxu0 0
        %1651 = vmatprep.subr.bf16.mxu0 0
        %1652 = vmatpush1.bf16.msra.mxu0 0
        %1653 = vmatprep.subr.bf16.mxu0 0
        %1654 = vmatpush1.bf16.msra.mxu0 0
        %1655 = vmatprep.subr.bf16.mxu0 0
        %1656 = vmatpush1.bf16.msra.mxu0 0
        %1657 = vmatprep.subr.bf16.mxu0 0
        %1658 = vmatpush1.bf16.msra.mxu0 0
        %1659 = vmatprep.subr.bf16.mxu0 0
        %1660 = vmatpush1.bf16.msra.mxu0 0
        %1661 = vmatprep.subr.bf16.mxu0 0
        %1662 = vmatpush1.bf16.msra.mxu0 0
        %1663 = vmatprep.mubr.bf16.mxu0 0
        %1664 = vmatmul.mubr.bf16.gmra.mrb[0].mxu0 %v1567
        %v1665 = vpop.f32.mrb[0].mxu0
        %v1666 = vadd.f32 0.0, %v1665
        %v1667 = vpop.f32.mrb[0].mxu0
        %v1668 = vpop.f32.mrb[0].mxu0
        %v1669 = vadd.f32 0.0, %v1668
        %v1670 = vpop.f32.mrb[0].mxu0
        %1671 = vmatprep.mubr.bf16.mxu0 0
        %1672 = vmatmul.mubr.bf16.gmra.mrb[0].mxu0 %v1568
        %v1673 = vpop.f32.mrb[0].mxu0
        %v1674 = vadd.f32 0.0, %v1673
        %v1675 = vpop.f32.mrb[0].mxu0
        %v1676 = vpop.f32.mrb[0].mxu0
        %v1677 = vadd.f32 0.0, %v1676
        %v1678 = vpop.f32.mrb[0].mxu0
        %1679 = vmatprep.mubr.bf16.mxu0 0
        %1680 = vmatmul.mubr.bf16.gmra.mrb[0].mxu0 %v1569
        %v1681 = vpop.f32.mrb[0].mxu0
        %v1682 = vadd.f32 0.0, %v1681
        %v1683 = vpop.f32.mrb[0].mxu0
        %v1684 = vpop.f32.mrb[0].mxu0
        %v1685 = vadd.f32 0.0, %v1684
        %v1686 = vpop.f32.mrb[0].mxu0
        %1687 = vmatprep.mubr.bf16.mxu0 0
        %1688 = vmatmul.mubr.bf16.gmra.mrb[0].mxu0 %v1570
        %v1689 = vpop.f32.mrb[0].mxu0
        %v1690 = vadd.f32 0.0, %v1689
        %v1691 = vpop.f32.mrb[0].mxu0
        %v1692 = vpop.f32.mrb[0].mxu0
        %v1693 = vadd.f32 0.0, %v1692
        %v1694 = vpop.f32.mrb[0].mxu0
        %1695 = vmatprep.mubr.bf16.mxu0 0
        %1696 = vmatmul.mubr.bf16.gmra.mrb[0].mxu0 %v1571
        %v1697 = vpop.f32.mrb[0].mxu0
        %v1698 = vadd.f32 0.0, %v1697
        %v1699 = vpop.f32.mrb[0].mxu0
        %v1700 = vpop.f32.mrb[0].mxu0
        %v1701 = vadd.f32 0.0, %v1700
        %v1702 = vpop.f32.mrb[0].mxu0
        %1703 = vmatprep.mubr.bf16.mxu0 0
        %1704 = vmatmul.mubr.bf16.gmra.mrb[0].mxu0 %v1572
        %v1705 = vpop.f32.mrb[0].mxu0
        %v1706 = vadd.f32 0.0, %v1705
        %v1707 = vpop.f32.mrb[0].mxu0
        %v1708 = vpop.f32.mrb[0].mxu0
        %v1709 = vadd.f32 0.0, %v1708
        %v1710 = vpop.f32.mrb[0].mxu0
        %1711 = vmatprep.mubr.bf16.mxu0 0
        %1712 = vmatmul.mubr.bf16.gmra.mrb[0].mxu0 %v1573
        %v1713 = vpop.f32.mrb[0].mxu0
        %v1714 = vadd.f32 0.0, %v1713
        %v1715 = vpop.f32.mrb[0].mxu0
        %v1716 = vpop.f32.mrb[0].mxu0
        %v1717 = vadd.f32 0.0, %v1716
        %v1718 = vpop.f32.mrb[0].mxu0
        %1719 = vmatprep.mubr.bf16.mxu0 0
        %1720 = vmatmul.mubr.bf16.gmra.mrb[0].mxu0 %v1574
        %v1721 = vpop.f32.mrb[0].mxu0
        %v1722 = vadd.f32 0.0, %v1721
        %v1723 = vpop.f32.mrb[0].mxu0
        %v1724 = vpop.f32.mrb[0].mxu0
        %v1725 = vadd.f32 0.0, %v1724
        %v1726 = vpop.f32.mrb[0].mxu0
        %1727 = vmatprep.mubr.bf16.mxu0 0
        %1728 = vmatmul.mubr.bf16.gmra.mrb[0].mxu0 %v1575
        %v1729 = vpop.f32.mrb[0].mxu0
        %v1730 = vadd.f32 0.0, %v1729
        %v1731 = vpop.f32.mrb[0].mxu0
        %v1732 = vpop.f32.mrb[0].mxu0
        %v1733 = vadd.f32 0.0, %v1732
        %v1734 = vpop.f32.mrb[0].mxu0
        %1735 = vmatprep.mubr.bf16.mxu0 0
        %1736 = vmatmul.mubr.bf16.gmra.mrb[0].mxu0 %v1576
        %v1737 = vpop.f32.mrb[0].mxu0
        %v1738 = vadd.f32 0.0, %v1737
        %v1739 = vpop.f32.mrb[0].mxu0
        %v1740 = vpop.f32.mrb[0].mxu0
        %v1741 = vadd.f32 0.0, %v1740
        %v1742 = vpop.f32.mrb[0].mxu0
        %1743 = vmatprep.mubr.bf16.mxu0 0
        %1744 = vmatmul.mubr.bf16.gmra.mrb[0].mxu0 %v1577
        %v1745 = vpop.f32.mrb[0].mxu0
        %v1746 = vadd.f32 0.0, %v1745
        %v1747 = vpop.f32.mrb[0].mxu0
        %v1748 = vpop.f32.mrb[0].mxu0
        %v1749 = vadd.f32 0.0, %v1748
        %v1750 = vpop.f32.mrb[0].mxu0
        %1751 = vmatprep.mubr.bf16.mxu0 0
        %1752 = vmatmul.mubr.bf16.gmra.mrb[0].mxu0 %v1578
        %v1753 = vpop.f32.mrb[0].mxu0
        %v1754 = vadd.f32 0.0, %v1753
        %v1755 = vpop.f32.mrb[0].mxu0
        %v1756 = vpop.f32.mrb[0].mxu0
        %v1757 = vadd.f32 0.0, %v1756
        %v1758 = vpop.f32.mrb[0].mxu0
        %1759 = vmatprep.mubr.bf16.mxu0 0
        %1760 = vmatmul.mubr.bf16.gmra.mrb[0].mxu0 %v1579
        %v1761 = vpop.f32.mrb[0].mxu0
        %v1762 = vadd.f32 0.0, %v1761
        %v1763 = vpop.f32.mrb[0].mxu0
        %v1764 = vpop.f32.mrb[0].mxu0
        %v1765 = vadd.f32 0.0, %v1764
        %v1766 = vpop.f32.mrb[0].mxu0
        %1767 = vmatprep.mubr.bf16.mxu0 0
        %1768 = vmatmul.mubr.bf16.gmra.mrb[0].mxu0 %v1580
        %v1769 = vpop.f32.mrb[0].mxu0
        %v1770 = vadd.f32 0.0, %v1769
        %v1771 = vpop.f32.mrb[0].mxu0
        %v1772 = vpop.f32.mrb[0].mxu0
        %v1773 = vadd.f32 0.0, %v1772
        %v1774 = vpop.f32.mrb[0].mxu0
        %1775 = vmatprep.mubr.bf16.mxu0 0
        %1776 = vmatmul.mubr.bf16.gmra.mrb[0].mxu0 %v1581
        %v1777 = vpop.f32.mrb[0].mxu0
        %v1778 = vadd.f32 0.0, %v1777
        %v1779 = vpop.f32.mrb[0].mxu0
        %v1780 = vpop.f32.mrb[0].mxu0
        %v1781 = vadd.f32 0.0, %v1780
        %v1782 = vpop.f32.mrb[0].mxu0
        %1783 = vmatprep.mubr.bf16.mxu0 0
        %1784 = vmatmul.mubr.bf16.gmra.mrb[0].mxu0 %v1582
        %v1785 = vpop.f32.mrb[0].mxu0
        %v1786 = vadd.f32 0.0, %v1785
        %v1787 = vpop.f32.mrb[0].mxu0
        %v1788 = vpop.f32.mrb[0].mxu0
        %v1789 = vadd.f32 0.0, %v1788
        %v1790 = vpop.f32.mrb[0].mxu0
        %1791 = vdwg.mxu0
        %vm1792 = vcmask 130048
        %v1793 = vsel %vm1792, %v1666, -inf
        %1794 = vmax.xlane.f32.xlu0 %v1793
        %v1795 = vpop.xlane.xlu0 %1794
        %v1796 = vsel %vm1792, %v1669, -inf
        %1797 = vmax.xlane.f32.xlu0 %v1796
        %v1798 = vpop.xlane.xlu0 %1797
        %v1799 = vsel %vm1792, %v1674, -inf
        %1800 = vmax.xlane.f32.xlu0 %v1799
        %v1801 = vpop.xlane.xlu0 %1800
        %v1802 = vsel %vm1792, %v1677, -inf
        %1803 = vmax.xlane.f32.xlu0 %v1802
        %v1804 = vpop.xlane.xlu0 %1803
        %v1805 = vsel %vm1792, %v1682, -inf
        %1806 = vmax.xlane.f32.xlu0 %v1805
        %v1807 = vpop.xlane.xlu0 %1806
        %v1808 = vsel %vm1792, %v1685, -inf
        %1809 = vmax.xlane.f32.xlu0 %v1808
        %v1810 = vpop.xlane.xlu0 %1809
        %v1811 = vsel %vm1792, %v1690, -inf
        %1812 = vmax.xlane.f32.xlu0 %v1811
        %v1813 = vpop.xlane.xlu0 %1812
        %v1814 = vsel %vm1792, %v1693, -inf
        %1815 = vmax.xlane.f32.xlu0 %v1814
        %v1816 = vpop.xlane.xlu0 %1815
        %v1817 = vsel %vm1792, %v1698, -inf
        %1818 = vmax.xlane.f32.xlu0 %v1817
        %v1819 = vpop.xlane.xlu0 %1818
        %v1820 = vsel %vm1792, %v1701, -inf
        %1821 = vmax.xlane.f32.xlu0 %v1820
        %v1822 = vpop.xlane.xlu0 %1821
        %v1823 = vsel %vm1792, %v1706, -inf
        %1824 = vmax.xlane.f32.xlu0 %v1823
        %v1825 = vpop.xlane.xlu0 %1824
        %v1826 = vsel %vm1792, %v1709, -inf
        %1827 = vmax.xlane.f32.xlu0 %v1826
        %v1828 = vpop.xlane.xlu0 %1827
        %v1829 = vsel %vm1792, %v1714, -inf
        %1830 = vmax.xlane.f32.xlu0 %v1829
        %v1831 = vpop.xlane.xlu0 %1830
        %v1832 = vsel %vm1792, %v1717, -inf
        %1833 = vmax.xlane.f32.xlu0 %v1832
        %v1834 = vpop.xlane.xlu0 %1833
        %v1835 = vsel %vm1792, %v1722, -inf
        %1836 = vmax.xlane.f32.xlu0 %v1835
        %v1837 = vpop.xlane.xlu0 %1836
        %v1838 = vsel %vm1792, %v1725, -inf
        %1839 = vmax.xlane.f32.xlu0 %v1838
        %v1840 = vpop.xlane.xlu0 %1839
        %v1841 = vsel %vm1792, %v1730, -inf
        %1842 = vmax.xlane.f32.xlu0 %v1841
        %v1843 = vpop.xlane.xlu0 %1842
        %v1844 = vsel %vm1792, %v1733, -inf
        %1845 = vmax.xlane.f32.xlu0 %v1844
        %v1846 = vpop.xlane.xlu0 %1845
        %v1847 = vsel %vm1792, %v1738, -inf
        %1848 = vmax.xlane.f32.xlu0 %v1847
        %v1849 = vpop.xlane.xlu0 %1848
        %v1850 = vsel %vm1792, %v1741, -inf
        %1851 = vmax.xlane.f32.xlu0 %v1850
        %v1852 = vpop.xlane.xlu0 %1851
        %v1853 = vsel %vm1792, %v1746, -inf
        %1854 = vmax.xlane.f32.xlu0 %v1853
        %v1855 = vpop.xlane.xlu0 %1854
        %v1856 = vsel %vm1792, %v1749, -inf
        %1857 = vmax.xlane.f32.xlu0 %v1856
        %v1858 = vpop.xlane.xlu0 %1857
        %v1859 = vsel %vm1792, %v1754, -inf
        %1860 = vmax.xlane.f32.xlu0 %v1859
        %v1861 = vpop.xlane.xlu0 %1860
        %v1862 = vsel %vm1792, %v1757, -inf
        %1863 = vmax.xlane.f32.xlu0 %v1862
        %v1864 = vpop.xlane.xlu0 %1863
        %v1865 = vsel %vm1792, %v1762, -inf
        %1866 = vmax.xlane.f32.xlu0 %v1865
        %v1867 = vpop.xlane.xlu0 %1866
        %v1868 = vsel %vm1792, %v1765, -inf
        %1869 = vmax.xlane.f32.xlu0 %v1868
        %v1870 = vpop.xlane.xlu0 %1869
        %v1871 = vsel %vm1792, %v1770, -inf
        %1872 = vmax.xlane.f32.xlu0 %v1871
        %v1873 = vpop.xlane.xlu0 %1872
        %v1874 = vsel %vm1792, %v1773, -inf
        %1875 = vmax.xlane.f32.xlu0 %v1874
        %v1876 = vpop.xlane.xlu0 %1875
        %v1877 = vsel %vm1792, %v1778, -inf
        %1878 = vmax.xlane.f32.xlu0 %v1877
        %v1879 = vpop.xlane.xlu0 %1878
        %v1880 = vsel %vm1792, %v1781, -inf
        %1881 = vmax.xlane.f32.xlu0 %v1880
        %v1882 = vpop.xlane.xlu0 %1881
        %v1883 = vsel %vm1792, %v1786, -inf
        %1884 = vmax.xlane.f32.xlu0 %v1883
        %v1885 = vpop.xlane.xlu0 %1884
        %v1886 = vsel %vm1792, %v1789, -inf
        %1887 = vmax.xlane.f32.xlu0 %v1886
        %v1888 = vpop.xlane.xlu0 %1887
        %v1889 = vsub.f32 %v1666, %v1795
        %v1890 = vsub.f32 %v1669, %v1798
        %v1891 = vsub.f32 %v1674, %v1801
        %v1892 = vsub.f32 %v1677, %v1804
        %v1893 = vsub.f32 %v1682, %v1807
        %v1894 = vsub.f32 %v1685, %v1810
        %v1895 = vsub.f32 %v1690, %v1813
        %v1896 = vsub.f32 %v1693, %v1816
        %v1897 = vsub.f32 %v1698, %v1819
        %v1898 = vsub.f32 %v1701, %v1822
        %v1899 = vsub.f32 %v1706, %v1825
        %v1900 = vsub.f32 %v1709, %v1828
        %v1901 = vsub.f32 %v1714, %v1831
        %v1902 = vsub.f32 %v1717, %v1834
        %v1903 = vsub.f32 %v1722, %v1837
        %v1904 = vsub.f32 %v1725, %v1840
        %v1905 = vsub.f32 %v1730, %v1843
        %v1906 = vsub.f32 %v1733, %v1846
        %v1907 = vsub.f32 %v1738, %v1849
        %v1908 = vsub.f32 %v1741, %v1852
        %v1909 = vsub.f32 %v1746, %v1855
        %v1910 = vsub.f32 %v1749, %v1858
        %v1911 = vsub.f32 %v1754, %v1861
        %v1912 = vsub.f32 %v1757, %v1864
        %v1913 = vsub.f32 %v1762, %v1867
        %v1914 = vsub.f32 %v1765, %v1870
        %v1915 = vsub.f32 %v1770, %v1873
        %v1916 = vsub.f32 %v1773, %v1876
        %v1917 = vsub.f32 %v1778, %v1879
        %v1918 = vsub.f32 %v1781, %v1882
        %v1919 = vsub.f32 %v1786, %v1885
        %v1920 = vsub.f32 %v1789, %v1888
        %v1921 = vmul.f32 %v1889, 1.442695
        %v1922 = vpow.pop %v1921
        %v1923 = vmul.f32 %v1890, 1.442695
        %v1924 = vpow.pop %v1923
        %v1925 = vmul.f32 %v1891, 1.442695
        %v1926 = vpow.pop %v1925
        %v1927 = vmul.f32 %v1892, 1.442695
        %v1928 = vpow.pop %v1927
        %v1929 = vmul.f32 %v1893, 1.442695
        %v1930 = vpow.pop %v1929
        %v1931 = vmul.f32 %v1894, 1.442695
        %v1932 = vpow.pop %v1931
        %v1933 = vmul.f32 %v1895, 1.442695
        %v1934 = vpow.pop %v1933
        %v1935 = vmul.f32 %v1896, 1.442695
        %v1936 = vpow.pop %v1935
        %v1937 = vmul.f32 %v1897, 1.442695
        %v1938 = vpow.pop %v1937
        %v1939 = vmul.f32 %v1898, 1.442695
        %v1940 = vpow.pop %v1939
        %v1941 = vmul.f32 %v1899, 1.442695
        %v1942 = vpow.pop %v1941
        %v1943 = vmul.f32 %v1900, 1.442695
        %v1944 = vpow.pop %v1943
        %v1945 = vmul.f32 %v1901, 1.442695
        %v1946 = vpow.pop %v1945
        %v1947 = vmul.f32 %v1902, 1.442695
        %v1948 = vpow.pop %v1947
        %v1949 = vmul.f32 %v1903, 1.442695
        %v1950 = vpow.pop %v1949
        %v1951 = vmul.f32 %v1904, 1.442695
        %v1952 = vpow.pop %v1951
        %v1953 = vmul.f32 %v1905, 1.442695
        %v1954 = vpow.pop %v1953
        %v1955 = vmul.f32 %v1906, 1.442695
        %v1956 = vpow.pop %v1955
        %v1957 = vmul.f32 %v1907, 1.442695
        %v1958 = vpow.pop %v1957
        %v1959 = vmul.f32 %v1908, 1.442695
        %v1960 = vpow.pop %v1959
        %v1961 = vmul.f32 %v1909, 1.442695
        %v1962 = vpow.pop %v1961
        %v1963 = vmul.f32 %v1910, 1.442695
        %v1964 = vpow.pop %v1963
        %v1965 = vmul.f32 %v1911, 1.442695
        %v1966 = vpow.pop %v1965
        %v1967 = vmul.f32 %v1912, 1.442695
        %v1968 = vpow.pop %v1967
        %v1969 = vmul.f32 %v1913, 1.442695
        %v1970 = vpow.pop %v1969
        %v1971 = vmul.f32 %v1914, 1.442695
        %v1972 = vpow.pop %v1971
        %v1973 = vmul.f32 %v1915, 1.442695
        %v1974 = vpow.pop %v1973
        %v1975 = vmul.f32 %v1916, 1.442695
        %v1976 = vpow.pop %v1975
        %v1977 = vmul.f32 %v1917, 1.442695
        %v1978 = vpow.pop %v1977
        %v1979 = vmul.f32 %v1918, 1.442695
        %v1980 = vpow.pop %v1979
        %v1981 = vmul.f32 %v1919, 1.442695
        %v1982 = vpow.pop %v1981
        %v1983 = vmul.f32 %v1920, 1.442695
        %v1984 = vpow.pop %v1983
        %v1985 = vld [vmem:[%s5] sm:$0xff]
        %v1986 = vld [vmem:[%s5 + $0x8] sm:$0xff]
        %v1988 = vsel %vm1792, %v1922, 0
        %v1991 = vsel %vm1792, %v1924, 0
        %v1994 = vsel %vm1792, %v1926, 0
        %v1997 = vsel %vm1792, %v1928, 0
        %v2000 = vsel %vm1792, %v1930, 0
        %v2003 = vsel %vm1792, %v1932, 0
        %v2006 = vsel %vm1792, %v1934, 0
        %v2009 = vsel %vm1792, %v1936, 0
        %v2012 = vsel %vm1792, %v1938, 0
        %v2015 = vsel %vm1792, %v1940, 0
        %v2018 = vsel %vm1792, %v1942, 0
        %v2021 = vsel %vm1792, %v1944, 0
        %v2024 = vsel %vm1792, %v1946, 0
        %v2027 = vsel %vm1792, %v1948, 0
        %v2030 = vsel %vm1792, %v1950, 0
        %v2033 = vsel %vm1792, %v1952, 0
        %v2036 = vsel %vm1792, %v1954, 0
        %v2039 = vsel %vm1792, %v1956, 0
        %v2042 = vsel %vm1792, %v1958, 0
        %v2045 = vsel %vm1792, %v1960, 0
        %v2048 = vsel %vm1792, %v1962, 0
        %v2051 = vsel %vm1792, %v1964, 0
        %v2054 = vsel %vm1792, %v1966, 0
        %v2057 = vsel %vm1792, %v1968, 0
        %v2060 = vsel %vm1792, %v1970, 0
        %v2063 = vsel %vm1792, %v1972, 0
        %v2066 = vsel %vm1792, %v1974, 0
        %v2069 = vsel %vm1792, %v1976, 0
        %v2072 = vsel %vm1792, %v1978, 0
        %v2075 = vsel %vm1792, %v1980, 0
        %v2078 = vsel %vm1792, %v1982, 0
        %v2081 = vsel %vm1792, %v1984, 0
        %2083 = vmatprep.subr.mxu0 0.0
        %2084 = vmatpush1.msra.mxu0 %v1985
        %2085 = vmatprep.subr.mxu0 0.0
        %2086 = vmatpush1.msra.mxu0 %v1986
        %2087 = vmatprep.subr.mxu0 0.0
        %2088 = vmatpush1.msra.mxu0 0.0
        %2089 = vmatprep.subr.mxu0 0.0
        %2090 = vmatpush1.msra.mxu0 0.0
        %2091 = vmatprep.subr.mxu0 0.0
        %2092 = vmatpush1.msra.mxu0 0.0
        %2093 = vmatprep.subr.mxu0 0.0
        %2094 = vmatpush1.msra.mxu0 0.0
        %2095 = vmatprep.subr.mxu0 0.0
        %2096 = vmatpush1.msra.mxu0 0.0
        %2097 = vmatprep.subr.mxu0 0.0
        %2098 = vmatpush1.msra.mxu0 0.0
        %2099 = vmatprep.subr.mxu0 0.0
        %2100 = vmatpush1.msra.mxu0 0.0
        %2101 = vmatprep.subr.mxu0 0.0
        %2102 = vmatpush1.msra.mxu0 0.0
        %2103 = vmatprep.subr.mxu0 0.0
        %2104 = vmatpush1.msra.mxu0 0.0
        %2105 = vmatprep.subr.mxu0 0.0
        %2106 = vmatpush1.msra.mxu0 0.0
        %2107 = vmatprep.subr.mxu0 0.0
        %2108 = vmatpush1.msra.mxu0 0.0
        %2109 = vmatprep.subr.mxu0 0.0
        %2110 = vmatpush1.msra.mxu0 0.0
        %2111 = vmatprep.subr.mxu0 0.0
        %2112 = vmatpush1.msra.mxu0 0.0
        %2113 = vmatprep.subr.mxu0 0.0
        %2114 = vmatpush1.msra.mxu0 0.0
        %2115 = vmatprep.subr.mxu0 0.0
        %2116 = vmatpush1.msra.mxu0 0.0
        %2117 = vmatprep.subr.mxu0 0.0
        %2118 = vmatpush1.msra.mxu0 0.0
        %2119 = vmatprep.subr.mxu0 0.0
        %2120 = vmatpush1.msra.mxu0 0.0
        %2121 = vmatprep.subr.mxu0 0.0
        %2122 = vmatpush1.msra.mxu0 0.0
        %2123 = vmatprep.subr.mxu0 0.0
        %2124 = vmatpush1.msra.mxu0 0.0
        %2125 = vmatprep.subr.mxu0 0.0
        %2126 = vmatpush1.msra.mxu0 0.0
        %2127 = vmatprep.subr.mxu0 0.0
        %2128 = vmatpush1.msra.mxu0 0.0
        %2129 = vmatprep.subr.mxu0 0.0
        %2130 = vmatpush1.msra.mxu0 0.0
        %2131 = vmatprep.subr.mxu0 0.0
        %2132 = vmatpush1.msra.mxu0 0.0
        %2133 = vmatprep.subr.mxu0 0.0
        %2134 = vmatpush1.msra.mxu0 0.0
        %2135 = vmatprep.subr.mxu0 0.0
        %2136 = vmatpush1.msra.mxu0 0.0
        %2137 = vmatprep.subr.mxu0 0.0
        %2138 = vmatpush1.msra.mxu0 0.0
        %2139 = vmatprep.subr.mxu0 0.0
        %2140 = vmatpush1.msra.mxu0 0.0
        %2141 = vmatprep.subr.mxu0 0.0
        %2142 = vmatpush1.msra.mxu0 0.0
        %2143 = vmatprep.subr.mxu0 0.0
        %2144 = vmatpush1.msra.mxu0 0.0
        %2145 = vmatprep.subr.mxu0 0.0
        %2146 = vmatpush1.msra.mxu0 0.0
        %2147 = vmatprep.mubr.f32.mxu0 0.0
        %2148 = vmatmul.mubr.f32.gmra.mrb[0].mxu0 %v1988
        %v2149 = vpop.f32.mrb[0].mxu0
        %v2150 = vadd.f32 0.0, %v2149
        %v2151 = vpop.f32.mrb[0].mxu0
        %2152 = vmatprep.mubr.f32.mxu0 0.0
        %2153 = vmatmul.mubr.f32.gmra.mrb[0].mxu0 %v1991
        %v2154 = vpop.f32.mrb[0].mxu0
        %v2155 = vadd.f32 0.0, %v2154
        %v2156 = vpop.f32.mrb[0].mxu0
        %2157 = vmatprep.mubr.f32.mxu0 0.0
        %2158 = vmatmul.mubr.f32.gmra.mrb[0].mxu0 %v1994
        %v2159 = vpop.f32.mrb[0].mxu0
        %v2160 = vadd.f32 0.0, %v2159
        %v2161 = vpop.f32.mrb[0].mxu0
        %2162 = vmatprep.mubr.f32.mxu0 0.0
        %2163 = vmatmul.mubr.f32.gmra.mrb[0].mxu0 %v1997
        %v2164 = vpop.f32.mrb[0].mxu0
        %v2165 = vadd.f32 0.0, %v2164
        %v2166 = vpop.f32.mrb[0].mxu0
        %2167 = vmatprep.mubr.f32.mxu0 0.0
        %2168 = vmatmul.mubr.f32.gmra.mrb[0].mxu0 %v2000
        %v2169 = vpop.f32.mrb[0].mxu0
        %v2170 = vadd.f32 0.0, %v2169
        %v2171 = vpop.f32.mrb[0].mxu0
        %2172 = vmatprep.mubr.f32.mxu0 0.0
        %2173 = vmatmul.mubr.f32.gmra.mrb[0].mxu0 %v2003
        %v2174 = vpop.f32.mrb[0].mxu0
        %v2175 = vadd.f32 0.0, %v2174
        %v2176 = vpop.f32.mrb[0].mxu0
        %2177 = vmatprep.mubr.f32.mxu0 0.0
        %2178 = vmatmul.mubr.f32.gmra.mrb[0].mxu0 %v2006
        %v2179 = vpop.f32.mrb[0].mxu0
        %v2180 = vadd.f32 0.0, %v2179
        %v2181 = vpop.f32.mrb[0].mxu0
        %2182 = vmatprep.mubr.f32.mxu0 0.0
        %2183 = vmatmul.mubr.f32.gmra.mrb[0].mxu0 %v2009
        %v2184 = vpop.f32.mrb[0].mxu0
        %v2185 = vadd.f32 0.0, %v2184
        %v2186 = vpop.f32.mrb[0].mxu0
        %2187 = vmatprep.mubr.f32.mxu0 0.0
        %2188 = vmatmul.mubr.f32.gmra.mrb[0].mxu0 %v2012
        %v2189 = vpop.f32.mrb[0].mxu0
        %v2190 = vadd.f32 0.0, %v2189
        %v2191 = vpop.f32.mrb[0].mxu0
        %2192 = vmatprep.mubr.f32.mxu0 0.0
        %2193 = vmatmul.mubr.f32.gmra.mrb[0].mxu0 %v2015
        %v2194 = vpop.f32.mrb[0].mxu0
        %v2195 = vadd.f32 0.0, %v2194
        %v2196 = vpop.f32.mrb[0].mxu0
        %2197 = vmatprep.mubr.f32.mxu0 0.0
        %2198 = vmatmul.mubr.f32.gmra.mrb[0].mxu0 %v2018
        %v2199 = vpop.f32.mrb[0].mxu0
        %v2200 = vadd.f32 0.0, %v2199
        %v2201 = vpop.f32.mrb[0].mxu0
        %2202 = vmatprep.mubr.f32.mxu0 0.0
        %2203 = vmatmul.mubr.f32.gmra.mrb[0].mxu0 %v2021
        %v2204 = vpop.f32.mrb[0].mxu0
        %v2205 = vadd.f32 0.0, %v2204
        %v2206 = vpop.f32.mrb[0].mxu0
        %2207 = vmatprep.mubr.f32.mxu0 0.0
        %2208 = vmatmul.mubr.f32.gmra.mrb[0].mxu0 %v2024
        %v2209 = vpop.f32.mrb[0].mxu0
        %v2210 = vadd.f32 0.0, %v2209
        %v2211 = vpop.f32.mrb[0].mxu0
        %2212 = vmatprep.mubr.f32.mxu0 0.0
        %2213 = vmatmul.mubr.f32.gmra.mrb[0].mxu0 %v2027
        %v2214 = vpop.f32.mrb[0].mxu0
        %v2215 = vadd.f32 0.0, %v2214
        %v2216 = vpop.f32.mrb[0].mxu0
        %2217 = vmatprep.mubr.f32.mxu0 0.0
        %2218 = vmatmul.mubr.f32.gmra.mrb[0].mxu0 %v2030
        %v2219 = vpop.f32.mrb[0].mxu0
        %v2220 = vadd.f32 0.0, %v2219
        %v2221 = vpop.f32.mrb[0].mxu0
        %2222 = vmatprep.mubr.f32.mxu0 0.0
        %2223 = vmatmul.mubr.f32.gmra.mrb[0].mxu0 %v2033
        %v2224 = vpop.f32.mrb[0].mxu0
        %v2225 = vadd.f32 0.0, %v2224
        %v2226 = vpop.f32.mrb[0].mxu0
        %2227 = vmatprep.mubr.f32.mxu0 0.0
        %2228 = vmatmul.mubr.f32.gmra.mrb[0].mxu0 %v2036
        %v2229 = vpop.f32.mrb[0].mxu0
        %v2230 = vadd.f32 0.0, %v2229
        %v2231 = vpop.f32.mrb[0].mxu0
        %2232 = vmatprep.mubr.f32.mxu0 0.0
        %2233 = vmatmul.mubr.f32.gmra.mrb[0].mxu0 %v2039
        %v2234 = vpop.f32.mrb[0].mxu0
        %v2235 = vadd.f32 0.0, %v2234
        %v2236 = vpop.f32.mrb[0].mxu0
        %2237 = vmatprep.mubr.f32.mxu0 0.0
        %2238 = vmatmul.mubr.f32.gmra.mrb[0].mxu0 %v2042
        %v2239 = vpop.f32.mrb[0].mxu0
        %v2240 = vadd.f32 0.0, %v2239
        %v2241 = vpop.f32.mrb[0].mxu0
        %2242 = vmatprep.mubr.f32.mxu0 0.0
        %2243 = vmatmul.mubr.f32.gmra.mrb[0].mxu0 %v2045
        %v2244 = vpop.f32.mrb[0].mxu0
        %v2245 = vadd.f32 0.0, %v2244
        %v2246 = vpop.f32.mrb[0].mxu0
        %2247 = vmatprep.mubr.f32.mxu0 0.0
        %2248 = vmatmul.mubr.f32.gmra.mrb[0].mxu0 %v2048
        %v2249 = vpop.f32.mrb[0].mxu0
        %v2250 = vadd.f32 0.0, %v2249
        %v2251 = vpop.f32.mrb[0].mxu0
        %2252 = vmatprep.mubr.f32.mxu0 0.0
        %2253 = vmatmul.mubr.f32.gmra.mrb[0].mxu0 %v2051
        %v2254 = vpop.f32.mrb[0].mxu0
        %v2255 = vadd.f32 0.0, %v2254
        %v2256 = vpop.f32.mrb[0].mxu0
        %2257 = vmatprep.mubr.f32.mxu0 0.0
        %2258 = vmatmul.mubr.f32.gmra.mrb[0].mxu0 %v2054
        %v2259 = vpop.f32.mrb[0].mxu0
        %v2260 = vadd.f32 0.0, %v2259
        %v2261 = vpop.f32.mrb[0].mxu0
        %2262 = vmatprep.mubr.f32.mxu0 0.0
        %2263 = vmatmul.mubr.f32.gmra.mrb[0].mxu0 %v2057
        %v2264 = vpop.f32.mrb[0].mxu0
        %v2265 = vadd.f32 0.0, %v2264
        %v2266 = vpop.f32.mrb[0].mxu0
        %2267 = vmatprep.mubr.f32.mxu0 0.0
        %2268 = vmatmul.mubr.f32.gmra.mrb[0].mxu0 %v2060
        %v2269 = vpop.f32.mrb[0].mxu0
        %v2270 = vadd.f32 0.0, %v2269
        %v2271 = vpop.f32.mrb[0].mxu0
        %2272 = vmatprep.mubr.f32.mxu0 0.0
        %2273 = vmatmul.mubr.f32.gmra.mrb[0].mxu0 %v2063
        %v2274 = vpop.f32.mrb[0].mxu0
        %v2275 = vadd.f32 0.0, %v2274
        %v2276 = vpop.f32.mrb[0].mxu0
        %2277 = vmatprep.mubr.f32.mxu0 0.0
        %2278 = vmatmul.mubr.f32.gmra.mrb[0].mxu0 %v2066
        %v2279 = vpop.f32.mrb[0].mxu0
        %v2280 = vadd.f32 0.0, %v2279
        %v2281 = vpop.f32.mrb[0].mxu0
        %2282 = vmatprep.mubr.f32.mxu0 0.0
        %2283 = vmatmul.mubr.f32.gmra.mrb[0].mxu0 %v2069
        %v2284 = vpop.f32.mrb[0].mxu0
        %v2285 = vadd.f32 0.0, %v2284
        %v2286 = vpop.f32.mrb[0].mxu0
        %2287 = vmatprep.mubr.f32.mxu0 0.0
        %2288 = vmatmul.mubr.f32.gmra.mrb[0].mxu0 %v2072
        %v2289 = vpop.f32.mrb[0].mxu0
        %v2290 = vadd.f32 0.0, %v2289
        %v2291 = vpop.f32.mrb[0].mxu0
        %2292 = vmatprep.mubr.f32.mxu0 0.0
        %2293 = vmatmul.mubr.f32.gmra.mrb[0].mxu0 %v2075
        %v2294 = vpop.f32.mrb[0].mxu0
        %v2295 = vadd.f32 0.0, %v2294
        %v2296 = vpop.f32.mrb[0].mxu0
        %2297 = vmatprep.mubr.f32.mxu0 0.0
        %2298 = vmatmul.mubr.f32.gmra.mrb[0].mxu0 %v2078
        %v2299 = vpop.f32.mrb[0].mxu0
        %v2300 = vadd.f32 0.0, %v2299
        %v2301 = vpop.f32.mrb[0].mxu0
        %2302 = vmatprep.mubr.f32.mxu0 0.0
        %2303 = vmatmul.mubr.f32.gmra.mrb[0].mxu0 %v2081
        %v2304 = vpop.f32.mrb[0].mxu0
        %v2305 = vadd.f32 0.0, %v2304
        %v2306 = vpop.f32.mrb[0].mxu0
        %2307 = vdwg.mxu0
        %v2308 = vrcp.pop %v2150
        %v2309 = vrcp.pop %v2155
        %v2310 = vrcp.pop %v2160
        %v2311 = vrcp.pop %v2165
        %v2312 = vrcp.pop %v2170
        %v2313 = vrcp.pop %v2175
        %v2314 = vrcp.pop %v2180
        %v2315 = vrcp.pop %v2185
        %v2316 = vrcp.pop %v2190
        %v2317 = vrcp.pop %v2195
        %v2318 = vrcp.pop %v2200
        %v2319 = vrcp.pop %v2205
        %v2320 = vrcp.pop %v2210
        %v2321 = vrcp.pop %v2215
        %v2322 = vrcp.pop %v2220
        %v2323 = vrcp.pop %v2225
        %v2324 = vrcp.pop %v2230
        %v2325 = vrcp.pop %v2235
        %v2326 = vrcp.pop %v2240
        %v2327 = vrcp.pop %v2245
        %v2328 = vrcp.pop %v2250
        %v2329 = vrcp.pop %v2255
        %v2330 = vrcp.pop %v2260
        %v2331 = vrcp.pop %v2265
        %v2332 = vrcp.pop %v2270
        %v2333 = vrcp.pop %v2275
        %v2334 = vrcp.pop %v2280
        %v2335 = vrcp.pop %v2285
        %v2336 = vrcp.pop %v2290
        %v2337 = vrcp.pop %v2295
        %v2338 = vrcp.pop %v2300
        %v2339 = vrcp.pop %v2305
        %v2340 = vmul.f32 %v1922, %v2308
        %v2341 = vmul.f32 %v1924, %v2309
        %v2342 = vmul.f32 %v1926, %v2310
        %v2343 = vmul.f32 %v1928, %v2311
        %v2344 = vmul.f32 %v1930, %v2312
        %v2345 = vmul.f32 %v1932, %v2313
        %v2346 = vmul.f32 %v1934, %v2314
        %v2347 = vmul.f32 %v1936, %v2315
        %v2348 = vmul.f32 %v1938, %v2316
        %v2349 = vmul.f32 %v1940, %v2317
        %v2350 = vmul.f32 %v1942, %v2318
        %v2351 = vmul.f32 %v1944, %v2319
        %v2352 = vmul.f32 %v1946, %v2320
        %v2353 = vmul.f32 %v1948, %v2321
        %v2354 = vmul.f32 %v1950, %v2322
        %v2355 = vmul.f32 %v1952, %v2323
        %v2356 = vmul.f32 %v1954, %v2324
        %v2357 = vmul.f32 %v1956, %v2325
        %v2358 = vmul.f32 %v1958, %v2326
        %v2359 = vmul.f32 %v1960, %v2327
        %v2360 = vmul.f32 %v1962, %v2328
        %v2361 = vmul.f32 %v1964, %v2329
        %v2362 = vmul.f32 %v1966, %v2330
        %v2363 = vmul.f32 %v1968, %v2331
        %v2364 = vmul.f32 %v1970, %v2332
        %v2365 = vmul.f32 %v1972, %v2333
        %v2366 = vmul.f32 %v1974, %v2334
        %v2367 = vmul.f32 %v1976, %v2335
        %v2368 = vmul.f32 %v1978, %v2336
        %v2369 = vmul.f32 %v1980, %v2337
        %v2370 = vmul.f32 %v1982, %v2338
        %v2371 = vmul.f32 %v1984, %v2339
        %v2372 = vld [vmem:[%s6] sm:$0xf]
        %v2373 = vld [vmem:[%s6 + $0x4] sm:$0xf]
        %v2374 = vpack.c.bf16 %v2341, %v2340
        %v2375 = vpack.c.bf16 %v2343, %v2342
        %v2376 = vpack.c.bf16 %v2345, %v2344
        %v2377 = vpack.c.bf16 %v2347, %v2346
        %v2378 = vpack.c.bf16 %v2349, %v2348
        %v2379 = vpack.c.bf16 %v2351, %v2350
        %v2380 = vpack.c.bf16 %v2353, %v2352
        %v2381 = vpack.c.bf16 %v2355, %v2354
        %v2382 = vpack.c.bf16 %v2357, %v2356
        %v2383 = vpack.c.bf16 %v2359, %v2358
        %v2384 = vpack.c.bf16 %v2361, %v2360
        %v2385 = vpack.c.bf16 %v2363, %v2362
        %v2386 = vpack.c.bf16 %v2365, %v2364
        %v2387 = vpack.c.bf16 %v2367, %v2366
        %v2388 = vpack.c.bf16 %v2369, %v2368
        %v2389 = vpack.c.bf16 %v2371, %v2370
        %v2392 = vunpack.c.l.b16 %v2372
        %v2393 = vunpack.c.l.b16 %v2373
        %v2394 = vpack.c.b16 %v2393, %v2392
        %v2397 = vsel %vm1792, %v2374, 0
        %v2400 = vsel %vm1792, %v2375, 0
        %v2403 = vsel %vm1792, %v2376, 0
        %v2406 = vsel %vm1792, %v2377, 0
        %v2409 = vsel %vm1792, %v2378, 0
        %v2412 = vsel %vm1792, %v2379, 0
        %v2415 = vsel %vm1792, %v2380, 0
        %v2418 = vsel %vm1792, %v2381, 0
        %v2421 = vsel %vm1792, %v2382, 0
        %v2424 = vsel %vm1792, %v2383, 0
        %v2427 = vsel %vm1792, %v2384, 0
        %v2430 = vsel %vm1792, %v2385, 0
        %v2433 = vsel %vm1792, %v2386, 0
        %v2436 = vsel %vm1792, %v2387, 0
        %v2439 = vsel %vm1792, %v2388, 0
        %v2442 = vsel %vm1792, %v2389, 0
        %2444 = vmatprep.subr.bf16.mxu0 0
        %2445 = vmatpush1.bf16.msra.mxu0 %v2394
        %2446 = vmatprep.subr.bf16.mxu0 0
        %2447 = vmatpush1.bf16.msra.mxu0 0
        %2448 = vmatprep.subr.bf16.mxu0 0
        %2449 = vmatpush1.bf16.msra.mxu0 0
        %2450 = vmatprep.subr.bf16.mxu0 0
        %2451 = vmatpush1.bf16.msra.mxu0 0
        %2452 = vmatprep.subr.bf16.mxu0 0
        %2453 = vmatpush1.bf16.msra.mxu0 0
        %2454 = vmatprep.subr.bf16.mxu0 0
        %2455 = vmatpush1.bf16.msra.mxu0 0
        %2456 = vmatprep.subr.bf16.mxu0 0
        %2457 = vmatpush1.bf16.msra.mxu0 0
        %2458 = vmatprep.subr.bf16.mxu0 0
        %2459 = vmatpush1.bf16.msra.mxu0 0
        %2460 = vmatprep.subr.bf16.mxu0 0
        %2461 = vmatpush1.bf16.msra.mxu0 0
        %2462 = vmatprep.subr.bf16.mxu0 0
        %2463 = vmatpush1.bf16.msra.mxu0 0
        %2464 = vmatprep.subr.bf16.mxu0 0
        %2465 = vmatpush1.bf16.msra.mxu0 0
        %2466 = vmatprep.subr.bf16.mxu0 0
        %2467 = vmatpush1.bf16.msra.mxu0 0
        %2468 = vmatprep.subr.bf16.mxu0 0
        %2469 = vmatpush1.bf16.msra.mxu0 0
        %2470 = vmatprep.subr.bf16.mxu0 0
        %2471 = vmatpush1.bf16.msra.mxu0 0
        %2472 = vmatprep.subr.bf16.mxu0 0
        %2473 = vmatpush1.bf16.msra.mxu0 0
        %2474 = vmatprep.subr.bf16.mxu0 0
        %2475 = vmatpush1.bf16.msra.mxu0 0
        %2476 = vmatprep.mubr.bf16.mxu0 0
        %2477 = vmatmul.mubr.bf16.gmra.mrb[0].mxu0 %v2397
        %v2478 = vpop.f32.mrb[0].mxu0
        %v2479 = vadd.f32 0.0, %v2478
        %v2480 = vpop.f32.mrb[0].mxu0
        %v2481 = vpop.f32.mrb[0].mxu0
        %v2482 = vadd.f32 0.0, %v2481
        %v2483 = vpop.f32.mrb[0].mxu0
        %2484 = vmatprep.mubr.bf16.mxu0 0
        %2485 = vmatmul.mubr.bf16.gmra.mrb[0].mxu0 %v2400
        %v2486 = vpop.f32.mrb[0].mxu0
        %v2487 = vadd.f32 0.0, %v2486
        %v2488 = vpop.f32.mrb[0].mxu0
        %v2489 = vpop.f32.mrb[0].mxu0
        %v2490 = vadd.f32 0.0, %v2489
        %v2491 = vpop.f32.mrb[0].mxu0
        %2492 = vmatprep.mubr.bf16.mxu0 0
        %2493 = vmatmul.mubr.bf16.gmra.mrb[0].mxu0 %v2403
        %v2494 = vpop.f32.mrb[0].mxu0
        %v2495 = vadd.f32 0.0, %v2494
        %v2496 = vpop.f32.mrb[0].mxu0
        %v2497 = vpop.f32.mrb[0].mxu0
        %v2498 = vadd.f32 0.0, %v2497
        %v2499 = vpop.f32.mrb[0].mxu0
        %2500 = vmatprep.mubr.bf16.mxu0 0
        %2501 = vmatmul.mubr.bf16.gmra.mrb[0].mxu0 %v2406
        %v2502 = vpop.f32.mrb[0].mxu0
        %v2503 = vadd.f32 0.0, %v2502
        %v2504 = vpop.f32.mrb[0].mxu0
        %v2505 = vpop.f32.mrb[0].mxu0
        %v2506 = vadd.f32 0.0, %v2505
        %v2507 = vpop.f32.mrb[0].mxu0
        %2508 = vmatprep.mubr.bf16.mxu0 0
        %2509 = vmatmul.mubr.bf16.gmra.mrb[0].mxu0 %v2409
        %v2510 = vpop.f32.mrb[0].mxu0
        %v2511 = vadd.f32 0.0, %v2510
        %v2512 = vpop.f32.mrb[0].mxu0
        %v2513 = vpop.f32.mrb[0].mxu0
        %v2514 = vadd.f32 0.0, %v2513
        %v2515 = vpop.f32.mrb[0].mxu0
        %2516 = vmatprep.mubr.bf16.mxu0 0
        %2517 = vmatmul.mubr.bf16.gmra.mrb[0].mxu0 %v2412
        %v2518 = vpop.f32.mrb[0].mxu0
        %v2519 = vadd.f32 0.0, %v2518
        %v2520 = vpop.f32.mrb[0].mxu0
        %v2521 = vpop.f32.mrb[0].mxu0
        %v2522 = vadd.f32 0.0, %v2521
        %v2523 = vpop.f32.mrb[0].mxu0
        %2524 = vmatprep.mubr.bf16.mxu0 0
        %2525 = vmatmul.mubr.bf16.gmra.mrb[0].mxu0 %v2415
        %v2526 = vpop.f32.mrb[0].mxu0
        %v2527 = vadd.f32 0.0, %v2526
        %v2528 = vpop.f32.mrb[0].mxu0
        %v2529 = vpop.f32.mrb[0].mxu0
        %v2530 = vadd.f32 0.0, %v2529
        %v2531 = vpop.f32.mrb[0].mxu0
        %2532 = vmatprep.mubr.bf16.mxu0 0
        %2533 = vmatmul.mubr.bf16.gmra.mrb[0].mxu0 %v2418
        %v2534 = vpop.f32.mrb[0].mxu0
        %v2535 = vadd.f32 0.0, %v2534
        %v2536 = vpop.f32.mrb[0].mxu0
        %v2537 = vpop.f32.mrb[0].mxu0
        %v2538 = vadd.f32 0.0, %v2537
        %v2539 = vpop.f32.mrb[0].mxu0
        %2540 = vmatprep.mubr.bf16.mxu0 0
        %2541 = vmatmul.mubr.bf16.gmra.mrb[0].mxu0 %v2421
        %v2542 = vpop.f32.mrb[0].mxu0
        %v2543 = vadd.f32 0.0, %v2542
        %v2544 = vpop.f32.mrb[0].mxu0
        %v2545 = vpop.f32.mrb[0].mxu0
        %v2546 = vadd.f32 0.0, %v2545
        %v2547 = vpop.f32.mrb[0].mxu0
        %2548 = vmatprep.mubr.bf16.mxu0 0
        %2549 = vmatmul.mubr.bf16.gmra.mrb[0].mxu0 %v2424
        %v2550 = vpop.f32.mrb[0].mxu0
        %v2551 = vadd.f32 0.0, %v2550
        %v2552 = vpop.f32.mrb[0].mxu0
        %v2553 = vpop.f32.mrb[0].mxu0
        %v2554 = vadd.f32 0.0, %v2553
        %v2555 = vpop.f32.mrb[0].mxu0
        %2556 = vmatprep.mubr.bf16.mxu0 0
        %2557 = vmatmul.mubr.bf16.gmra.mrb[0].mxu0 %v2427
        %v2558 = vpop.f32.mrb[0].mxu0
        %v2559 = vadd.f32 0.0, %v2558
        %v2560 = vpop.f32.mrb[0].mxu0
        %v2561 = vpop.f32.mrb[0].mxu0
        %v2562 = vadd.f32 0.0, %v2561
        %v2563 = vpop.f32.mrb[0].mxu0
        %2564 = vmatprep.mubr.bf16.mxu0 0
        %2565 = vmatmul.mubr.bf16.gmra.mrb[0].mxu0 %v2430
        %v2566 = vpop.f32.mrb[0].mxu0
        %v2567 = vadd.f32 0.0, %v2566
        %v2568 = vpop.f32.mrb[0].mxu0
        %v2569 = vpop.f32.mrb[0].mxu0
        %v2570 = vadd.f32 0.0, %v2569
        %v2571 = vpop.f32.mrb[0].mxu0
        %2572 = vmatprep.mubr.bf16.mxu0 0
        %2573 = vmatmul.mubr.bf16.gmra.mrb[0].mxu0 %v2433
        %v2574 = vpop.f32.mrb[0].mxu0
        %v2575 = vadd.f32 0.0, %v2574
        %v2576 = vpop.f32.mrb[0].mxu0
        %v2577 = vpop.f32.mrb[0].mxu0
        %v2578 = vadd.f32 0.0, %v2577
        %v2579 = vpop.f32.mrb[0].mxu0
        %2580 = vmatprep.mubr.bf16.mxu0 0
        %2581 = vmatmul.mubr.bf16.gmra.mrb[0].mxu0 %v2436
        %v2582 = vpop.f32.mrb[0].mxu0
        %v2583 = vadd.f32 0.0, %v2582
        %v2584 = vpop.f32.mrb[0].mxu0
        %v2585 = vpop.f32.mrb[0].mxu0
        %v2586 = vadd.f32 0.0, %v2585
        %v2587 = vpop.f32.mrb[0].mxu0
        %2588 = vmatprep.mubr.bf16.mxu0 0
        %2589 = vmatmul.mubr.bf16.gmra.mrb[0].mxu0 %v2439
        %v2590 = vpop.f32.mrb[0].mxu0
        %v2591 = vadd.f32 0.0, %v2590
        %v2592 = vpop.f32.mrb[0].mxu0
        %v2593 = vpop.f32.mrb[0].mxu0
        %v2594 = vadd.f32 0.0, %v2593
        %v2595 = vpop.f32.mrb[0].mxu0
        %2596 = vmatprep.mubr.bf16.mxu0 0
        %2597 = vmatmul.mubr.bf16.gmra.mrb[0].mxu0 %v2442
        %v2598 = vpop.f32.mrb[0].mxu0
        %v2599 = vadd.f32 0.0, %v2598
        %v2600 = vpop.f32.mrb[0].mxu0
        %v2601 = vpop.f32.mrb[0].mxu0
        %v2602 = vadd.f32 0.0, %v2601
        %v2603 = vpop.f32.mrb[0].mxu0
        %2604 = vdwg.mxu0
        %v2605 = vmul.f32 %v2479, %v1393
        %v2606 = vmul.f32 %v2482, %v1396
        %v2607 = vmul.f32 %v2487, %v1401
        %v2608 = vmul.f32 %v2490, %v1404
        %v2609 = vmul.f32 %v2495, %v1409
        %v2610 = vmul.f32 %v2498, %v1412
        %v2611 = vmul.f32 %v2503, %v1417
        %v2612 = vmul.f32 %v2506, %v1420
        %v2613 = vmul.f32 %v2511, %v1425
        %v2614 = vmul.f32 %v2514, %v1428
        %v2615 = vmul.f32 %v2519, %v1433
        %v2616 = vmul.f32 %v2522, %v1436
        %v2617 = vmul.f32 %v2527, %v1441
        %v2618 = vmul.f32 %v2530, %v1444
        %v2619 = vmul.f32 %v2535, %v1449
        %v2620 = vmul.f32 %v2538, %v1452
        %v2621 = vmul.f32 %v2543, %v1457
        %v2622 = vmul.f32 %v2546, %v1460
        %v2623 = vmul.f32 %v2551, %v1465
        %v2624 = vmul.f32 %v2554, %v1468
        %v2625 = vmul.f32 %v2559, %v1473
        %v2626 = vmul.f32 %v2562, %v1476
        %v2627 = vmul.f32 %v2567, %v1481
        %v2628 = vmul.f32 %v2570, %v1484
        %v2629 = vmul.f32 %v2575, %v1489
        %v2630 = vmul.f32 %v2578, %v1492
        %v2631 = vmul.f32 %v2583, %v1497
        %v2632 = vmul.f32 %v2586, %v1500
        %v2633 = vmul.f32 %v2591, %v1505
        %v2634 = vmul.f32 %v2594, %v1508
        %v2635 = vmul.f32 %v2599, %v1513
        %v2636 = vmul.f32 %v2602, %v1516
        %v2637 = vld [vmem:[%s7] sm:$0xf]
        %v2638 = vld [vmem:[%s7 + $0x4] sm:$0xf]
        %v2639 = vld [vmem:[%s7 + $0x8] sm:$0xf]
        %v2640 = vld [vmem:[%s7 + $0xc] sm:$0xf]
        %v2641 = vld [vmem:[%s7 + $0x10] sm:$0xf]
        %v2642 = vld [vmem:[%s7 + $0x14] sm:$0xf]
        %v2643 = vld [vmem:[%s7 + $0x18] sm:$0xf]
        %v2644 = vld [vmem:[%s7 + $0x1c] sm:$0xf]
        %v2645 = vld [vmem:[%s7 + $0x20] sm:$0xf]
        %v2646 = vld [vmem:[%s7 + $0x24] sm:$0xf]
        %v2647 = vld [vmem:[%s7 + $0x28] sm:$0xf]
        %v2648 = vld [vmem:[%s7 + $0x2c] sm:$0xf]
        %v2649 = vld [vmem:[%s7 + $0x30] sm:$0xf]
        %v2650 = vld [vmem:[%s7 + $0x34] sm:$0xf]
        %v2651 = vld [vmem:[%s7 + $0x38] sm:$0xf]
        %v2652 = vld [vmem:[%s7 + $0x3c] sm:$0xf]
        %v2653 = vpack.c.bf16 %v2606, %v2605
        %v2654 = vpack.c.bf16 %v2608, %v2607
        %v2655 = vpack.c.bf16 %v2610, %v2609
        %v2656 = vpack.c.bf16 %v2612, %v2611
        %v2657 = vpack.c.bf16 %v2614, %v2613
        %v2658 = vpack.c.bf16 %v2616, %v2615
        %v2659 = vpack.c.bf16 %v2618, %v2617
        %v2660 = vpack.c.bf16 %v2620, %v2619
        %v2661 = vpack.c.bf16 %v2622, %v2621
        %v2662 = vpack.c.bf16 %v2624, %v2623
        %v2663 = vpack.c.bf16 %v2626, %v2625
        %v2664 = vpack.c.bf16 %v2628, %v2627
        %v2665 = vpack.c.bf16 %v2630, %v2629
        %v2666 = vpack.c.bf16 %v2632, %v2631
        %v2667 = vpack.c.bf16 %v2634, %v2633
        %v2668 = vpack.c.bf16 %v2636, %v2635
        %v2685 = vunpack.c.l.b16 %v2637
        %v2686 = vunpack.c.l.b16 %v2638
        %v2687 = vunpack.c.l.b16 %v2639
        %v2688 = vunpack.c.l.b16 %v2640
        %v2689 = vunpack.c.l.b16 %v2641
        %v2690 = vunpack.c.l.b16 %v2642
        %v2691 = vunpack.c.l.b16 %v2643
        %v2692 = vunpack.c.l.b16 %v2644
        %v2693 = vunpack.c.l.b16 %v2645
        %v2694 = vunpack.c.l.b16 %v2646
        %v2695 = vunpack.c.l.b16 %v2647
        %v2696 = vunpack.c.l.b16 %v2648
        %v2697 = vunpack.c.l.b16 %v2649
        %v2698 = vunpack.c.l.b16 %v2650
        %v2699 = vunpack.c.l.b16 %v2651
        %v2700 = vunpack.c.l.b16 %v2652
        %v2701 = vpack.c.b16 %v2686, %v2685
        %v2702 = vpack.c.b16 %v2688, %v2687
        %v2703 = vpack.c.b16 %v2690, %v2689
        %v2704 = vpack.c.b16 %v2692, %v2691
        %v2705 = vpack.c.b16 %v2694, %v2693
        %v2706 = vpack.c.b16 %v2696, %v2695
        %v2707 = vpack.c.b16 %v2698, %v2697
        %v2708 = vpack.c.b16 %v2700, %v2699
        %2717 = vmatprep.subr.bf16.mxu0 0
        %2718 = vmatpush1.bf16.msra.mxu0 %v2701
        %2719 = vmatprep.subr.bf16.mxu0 0
        %2720 = vmatpush1.bf16.msra.mxu0 %v2702
        %2721 = vmatprep.subr.bf16.mxu0 0
        %2722 = vmatpush1.bf16.msra.mxu0 %v2703
        %2723 = vmatprep.subr.bf16.mxu0 0
        %2724 = vmatpush1.bf16.msra.mxu0 %v2704
        %2725 = vmatprep.subr.bf16.mxu0 0
        %2726 = vmatpush1.bf16.msra.mxu0 %v2705
        %2727 = vmatprep.subr.bf16.mxu0 0
        %2728 = vmatpush1.bf16.msra.mxu0 %v2706
        %2729 = vmatprep.subr.bf16.mxu0 0
        %2730 = vmatpush1.bf16.msra.mxu0 %v2707
        %2731 = vmatprep.subr.bf16.mxu0 0
        %2732 = vmatpush1.bf16.msra.mxu0 %v2708
        %2733 = vmatprep.subr.bf16.mxu0 0
        %2734 = vmatpush1.bf16.msra.mxu0 0
        %2735 = vmatprep.subr.bf16.mxu0 0
        %2736 = vmatpush1.bf16.msra.mxu0 0
        %2737 = vmatprep.subr.bf16.mxu0 0
        %2738 = vmatpush1.bf16.msra.mxu0 0
        %2739 = vmatprep.subr.bf16.mxu0 0
        %2740 = vmatpush1.bf16.msra.mxu0 0
        %2741 = vmatprep.subr.bf16.mxu0 0
        %2742 = vmatpush1.bf16.msra.mxu0 0
        %2743 = vmatprep.subr.bf16.mxu0 0
        %2744 = vmatpush1.bf16.msra.mxu0 0
        %2745 = vmatprep.subr.bf16.mxu0 0
        %2746 = vmatpush1.bf16.msra.mxu0 0
        %2747 = vmatprep.subr.bf16.mxu0 0
        %2748 = vmatpush1.bf16.msra.mxu0 0
        %2749 = vmatprep.mubr.bf16.mxu0 0
        %2750 = vmatmul.mubr.bf16.gmra.mrb[0].mxu0 %v2653
        %v2751 = vpop.f32.mrb[0].mxu0
        %v2752 = vadd.f32 0.0, %v2751
        %v2753 = vpop.f32.mrb[0].mxu0
        %v2754 = vpop.f32.mrb[0].mxu0
        %v2755 = vadd.f32 0.0, %v2754
        %v2756 = vpop.f32.mrb[0].mxu0
        %2757 = vmatprep.mubr.bf16.mxu0 0
        %2758 = vmatmul.mubr.bf16.gmra.mrb[0].mxu0 %v2654
        %v2759 = vpop.f32.mrb[0].mxu0
        %v2760 = vadd.f32 0.0, %v2759
        %v2761 = vpop.f32.mrb[0].mxu0
        %v2762 = vpop.f32.mrb[0].mxu0
        %v2763 = vadd.f32 0.0, %v2762
        %v2764 = vpop.f32.mrb[0].mxu0
        %2765 = vmatprep.mubr.bf16.mxu0 0
        %2766 = vmatmul.mubr.bf16.gmra.mrb[0].mxu0 %v2655
        %v2767 = vpop.f32.mrb[0].mxu0
        %v2768 = vadd.f32 0.0, %v2767
        %v2769 = vpop.f32.mrb[0].mxu0
        %v2770 = vpop.f32.mrb[0].mxu0
        %v2771 = vadd.f32 0.0, %v2770
        %v2772 = vpop.f32.mrb[0].mxu0
        %2773 = vmatprep.mubr.bf16.mxu0 0
        %2774 = vmatmul.mubr.bf16.gmra.mrb[0].mxu0 %v2656
        %v2775 = vpop.f32.mrb[0].mxu0
        %v2776 = vadd.f32 0.0, %v2775
        %v2777 = vpop.f32.mrb[0].mxu0
        %v2778 = vpop.f32.mrb[0].mxu0
        %v2779 = vadd.f32 0.0, %v2778
        %v2780 = vpop.f32.mrb[0].mxu0
        %2781 = vmatprep.mubr.bf16.mxu0 0
        %2782 = vmatmul.mubr.bf16.gmra.mrb[0].mxu0 %v2657
        %v2783 = vpop.f32.mrb[0].mxu0
        %v2784 = vadd.f32 0.0, %v2783
        %v2785 = vpop.f32.mrb[0].mxu0
        %v2786 = vpop.f32.mrb[0].mxu0
        %v2787 = vadd.f32 0.0, %v2786
        %v2788 = vpop.f32.mrb[0].mxu0
        %2789 = vmatprep.mubr.bf16.mxu0 0
        %2790 = vmatmul.mubr.bf16.gmra.mrb[0].mxu0 %v2658
        %v2791 = vpop.f32.mrb[0].mxu0
        %v2792 = vadd.f32 0.0, %v2791
        %v2793 = vpop.f32.mrb[0].mxu0
        %v2794 = vpop.f32.mrb[0].mxu0
        %v2795 = vadd.f32 0.0, %v2794
        %v2796 = vpop.f32.mrb[0].mxu0
        %2797 = vmatprep.mubr.bf16.mxu0 0
        %2798 = vmatmul.mubr.bf16.gmra.mrb[0].mxu0 %v2659
        %v2799 = vpop.f32.mrb[0].mxu0
        %v2800 = vadd.f32 0.0, %v2799
        %v2801 = vpop.f32.mrb[0].mxu0
        %v2802 = vpop.f32.mrb[0].mxu0
        %v2803 = vadd.f32 0.0, %v2802
        %v2804 = vpop.f32.mrb[0].mxu0
        %2805 = vmatprep.mubr.bf16.mxu0 0
        %2806 = vmatmul.mubr.bf16.gmra.mrb[0].mxu0 %v2660
        %v2807 = vpop.f32.mrb[0].mxu0
        %v2808 = vadd.f32 0.0, %v2807
        %v2809 = vpop.f32.mrb[0].mxu0
        %v2810 = vpop.f32.mrb[0].mxu0
        %v2811 = vadd.f32 0.0, %v2810
        %v2812 = vpop.f32.mrb[0].mxu0
        %2813 = vmatprep.mubr.bf16.mxu0 0
        %2814 = vmatmul.mubr.bf16.gmra.mrb[0].mxu0 %v2661
        %v2815 = vpop.f32.mrb[0].mxu0
        %v2816 = vadd.f32 0.0, %v2815
        %v2817 = vpop.f32.mrb[0].mxu0
        %v2818 = vpop.f32.mrb[0].mxu0
        %v2819 = vadd.f32 0.0, %v2818
        %v2820 = vpop.f32.mrb[0].mxu0
        %2821 = vmatprep.mubr.bf16.mxu0 0
        %2822 = vmatmul.mubr.bf16.gmra.mrb[0].mxu0 %v2662
        %v2823 = vpop.f32.mrb[0].mxu0
        %v2824 = vadd.f32 0.0, %v2823
        %v2825 = vpop.f32.mrb[0].mxu0
        %v2826 = vpop.f32.mrb[0].mxu0
        %v2827 = vadd.f32 0.0, %v2826
        %v2828 = vpop.f32.mrb[0].mxu0
        %2829 = vmatprep.mubr.bf16.mxu0 0
        %2830 = vmatmul.mubr.bf16.gmra.mrb[0].mxu0 %v2663
        %v2831 = vpop.f32.mrb[0].mxu0
        %v2832 = vadd.f32 0.0, %v2831
        %v2833 = vpop.f32.mrb[0].mxu0
        %v2834 = vpop.f32.mrb[0].mxu0
        %v2835 = vadd.f32 0.0, %v2834
        %v2836 = vpop.f32.mrb[0].mxu0
        %2837 = vmatprep.mubr.bf16.mxu0 0
        %2838 = vmatmul.mubr.bf16.gmra.mrb[0].mxu0 %v2664
        %v2839 = vpop.f32.mrb[0].mxu0
        %v2840 = vadd.f32 0.0, %v2839
        %v2841 = vpop.f32.mrb[0].mxu0
        %v2842 = vpop.f32.mrb[0].mxu0
        %v2843 = vadd.f32 0.0, %v2842
        %v2844 = vpop.f32.mrb[0].mxu0
        %2845 = vmatprep.mubr.bf16.mxu0 0
        %2846 = vmatmul.mubr.bf16.gmra.mrb[0].mxu0 %v2665
        %v2847 = vpop.f32.mrb[0].mxu0
        %v2848 = vadd.f32 0.0, %v2847
        %v2849 = vpop.f32.mrb[0].mxu0
        %v2850 = vpop.f32.mrb[0].mxu0
        %v2851 = vadd.f32 0.0, %v2850
        %v2852 = vpop.f32.mrb[0].mxu0
        %2853 = vmatprep.mubr.bf16.mxu0 0
        %2854 = vmatmul.mubr.bf16.gmra.mrb[0].mxu0 %v2666
        %v2855 = vpop.f32.mrb[0].mxu0
        %v2856 = vadd.f32 0.0, %v2855
        %v2857 = vpop.f32.mrb[0].mxu0
        %v2858 = vpop.f32.mrb[0].mxu0
        %v2859 = vadd.f32 0.0, %v2858
        %v2860 = vpop.f32.mrb[0].mxu0
        %2861 = vmatprep.mubr.bf16.mxu0 0
        %2862 = vmatmul.mubr.bf16.gmra.mrb[0].mxu0 %v2667
        %v2863 = vpop.f32.mrb[0].mxu0
        %v2864 = vadd.f32 0.0, %v2863
        %v2865 = vpop.f32.mrb[0].mxu0
        %v2866 = vpop.f32.mrb[0].mxu0
        %v2867 = vadd.f32 0.0, %v2866
        %v2868 = vpop.f32.mrb[0].mxu0
        %2869 = vmatprep.mubr.bf16.mxu0 0
        %2870 = vmatmul.mubr.bf16.gmra.mrb[0].mxu0 %v2668
        %v2871 = vpop.f32.mrb[0].mxu0
        %v2872 = vadd.f32 0.0, %v2871
        %v2873 = vpop.f32.mrb[0].mxu0
        %v2874 = vpop.f32.mrb[0].mxu0
        %v2875 = vadd.f32 0.0, %v2874
        %v2876 = vpop.f32.mrb[0].mxu0
        %2877 = vdwg.mxu0
        %v2878 = vlaneseq
        %v2879 = vshrl.u32 %v2878, 7
        %v2880 = vsub.s32 2, %v2879
        %v2881 = vrot.slane %v508, %v2880
        %v2882 = vmul.f32 %v2881, %v2752
        %v2883 = vmul.f32 %v2881, %v2755
        %v2884 = vmul.f32 %v2881, %v2760
        %v2885 = vmul.f32 %v2881, %v2763
        %v2886 = vmul.f32 %v2881, %v2768
        %v2887 = vmul.f32 %v2881, %v2771
        %v2888 = vmul.f32 %v2881, %v2776
        %v2889 = vmul.f32 %v2881, %v2779
        %v2890 = vmul.f32 %v2881, %v2784
        %v2891 = vmul.f32 %v2881, %v2787
        %v2892 = vmul.f32 %v2881, %v2792
        %v2893 = vmul.f32 %v2881, %v2795
        %v2894 = vmul.f32 %v2881, %v2800
        %v2895 = vmul.f32 %v2881, %v2803
        %v2896 = vmul.f32 %v2881, %v2808
        %v2897 = vmul.f32 %v2881, %v2811
        %v2898 = vmul.f32 %v2881, %v2816
        %v2899 = vmul.f32 %v2881, %v2819
        %v2900 = vmul.f32 %v2881, %v2824
        %v2901 = vmul.f32 %v2881, %v2827
        %v2902 = vmul.f32 %v2881, %v2832
        %v2903 = vmul.f32 %v2881, %v2835
        %v2904 = vmul.f32 %v2881, %v2840
        %v2905 = vmul.f32 %v2881, %v2843
        %v2906 = vmul.f32 %v2881, %v2848
        %v2907 = vmul.f32 %v2881, %v2851
        %v2908 = vmul.f32 %v2881, %v2856
        %v2909 = vmul.f32 %v2881, %v2859
        %v2910 = vmul.f32 %v2881, %v2864
        %v2911 = vmul.f32 %v2881, %v2867
        %v2912 = vmul.f32 %v2881, %v2872
        %v2913 = vmul.f32 %v2881, %v2875
        %v2914 = vadd.f32 %v476, %v2882
        %v2915 = vadd.f32 %v477, %v2883
        %v2916 = vadd.f32 %v478, %v2884
        %v2917 = vadd.f32 %v479, %v2885
        %v2918 = vadd.f32 %v480, %v2886
        %v2919 = vadd.f32 %v481, %v2887
        %v2920 = vadd.f32 %v482, %v2888
        %v2921 = vadd.f32 %v483, %v2889
        %v2922 = vadd.f32 %v484, %v2890
        %v2923 = vadd.f32 %v485, %v2891
        %v2924 = vadd.f32 %v486, %v2892
        %v2925 = vadd.f32 %v487, %v2893
        %v2926 = vadd.f32 %v488, %v2894
        %v2927 = vadd.f32 %v489, %v2895
        %v2928 = vadd.f32 %v490, %v2896
        %v2929 = vadd.f32 %v491, %v2897
        %v2930 = vadd.f32 %v492, %v2898
        %v2931 = vadd.f32 %v493, %v2899
        %v2932 = vadd.f32 %v494, %v2900
        %v2933 = vadd.f32 %v495, %v2901
        %v2934 = vadd.f32 %v496, %v2902
        %v2935 = vadd.f32 %v497, %v2903
        %v2936 = vadd.f32 %v498, %v2904
        %v2937 = vadd.f32 %v499, %v2905
        %v2938 = vadd.f32 %v500, %v2906
        %v2939 = vadd.f32 %v501, %v2907
        %v2940 = vadd.f32 %v502, %v2908
        %v2941 = vadd.f32 %v503, %v2909
        %v2942 = vadd.f32 %v504, %v2910
        %v2943 = vadd.f32 %v505, %v2911
        %v2944 = vadd.f32 %v506, %v2912
        %v2945 = vadd.f32 %v507, %v2913
        %2946 = vadd.xlane.f32.xlu0 %v2914
        %v2947 = vpop.xlane.xlu0 %2946
        %2948 = vadd.xlane.f32.xlu0 %v2915
        %v2949 = vpop.xlane.xlu0 %2948
        %2950 = vadd.xlane.f32.xlu0 %v2916
        %v2951 = vpop.xlane.xlu0 %2950
        %2952 = vadd.xlane.f32.xlu0 %v2917
        %v2953 = vpop.xlane.xlu0 %2952
        %2954 = vadd.xlane.f32.xlu0 %v2918
        %v2955 = vpop.xlane.xlu0 %2954
        %2956 = vadd.xlane.f32.xlu0 %v2919
        %v2957 = vpop.xlane.xlu0 %2956
        %2958 = vadd.xlane.f32.xlu0 %v2920
        %v2959 = vpop.xlane.xlu0 %2958
        %2960 = vadd.xlane.f32.xlu0 %v2921
        %v2961 = vpop.xlane.xlu0 %2960
        %2962 = vadd.xlane.f32.xlu0 %v2922
        %v2963 = vpop.xlane.xlu0 %2962
        %2964 = vadd.xlane.f32.xlu0 %v2923
        %v2965 = vpop.xlane.xlu0 %2964
        %2966 = vadd.xlane.f32.xlu0 %v2924
        %v2967 = vpop.xlane.xlu0 %2966
        %2968 = vadd.xlane.f32.xlu0 %v2925
        %v2969 = vpop.xlane.xlu0 %2968
        %2970 = vadd.xlane.f32.xlu0 %v2926
        %v2971 = vpop.xlane.xlu0 %2970
        %2972 = vadd.xlane.f32.xlu0 %v2927
        %v2973 = vpop.xlane.xlu0 %2972
        %2974 = vadd.xlane.f32.xlu0 %v2928
        %v2975 = vpop.xlane.xlu0 %2974
        %2976 = vadd.xlane.f32.xlu0 %v2929
        %v2977 = vpop.xlane.xlu0 %2976
        %2978 = vadd.xlane.f32.xlu0 %v2930
        %v2979 = vpop.xlane.xlu0 %2978
        %2980 = vadd.xlane.f32.xlu0 %v2931
        %v2981 = vpop.xlane.xlu0 %2980
        %2982 = vadd.xlane.f32.xlu0 %v2932
        %v2983 = vpop.xlane.xlu0 %2982
        %2984 = vadd.xlane.f32.xlu0 %v2933
        %v2985 = vpop.xlane.xlu0 %2984
        %2986 = vadd.xlane.f32.xlu0 %v2934
        %v2987 = vpop.xlane.xlu0 %2986
        %2988 = vadd.xlane.f32.xlu0 %v2935
        %v2989 = vpop.xlane.xlu0 %2988
        %2990 = vadd.xlane.f32.xlu0 %v2936
        %v2991 = vpop.xlane.xlu0 %2990
        %2992 = vadd.xlane.f32.xlu0 %v2937
        %v2993 = vpop.xlane.xlu0 %2992
        %2994 = vadd.xlane.f32.xlu0 %v2938
        %v2995 = vpop.xlane.xlu0 %2994
        %2996 = vadd.xlane.f32.xlu0 %v2939
        %v2997 = vpop.xlane.xlu0 %2996
        %2998 = vadd.xlane.f32.xlu0 %v2940
        %v2999 = vpop.xlane.xlu0 %2998
        %3000 = vadd.xlane.f32.xlu0 %v2941
        %v3001 = vpop.xlane.xlu0 %3000
        %3002 = vadd.xlane.f32.xlu0 %v2942
        %v3003 = vpop.xlane.xlu0 %3002
        %3004 = vadd.xlane.f32.xlu0 %v2943
        %v3005 = vpop.xlane.xlu0 %3004
        %3006 = vadd.xlane.f32.xlu0 %v2944
        %v3007 = vpop.xlane.xlu0 %3006
        %3008 = vadd.xlane.f32.xlu0 %v2945
        %v3009 = vpop.xlane.xlu0 %3008
        %v3010 = vmul.f32 %v2947, 0.03125
        %v3011 = vmul.f32 %v2949, 0.03125
        %v3012 = vmul.f32 %v2951, 0.03125
        %v3013 = vmul.f32 %v2953, 0.03125
        %v3014 = vmul.f32 %v2955, 0.03125
        %v3015 = vmul.f32 %v2957, 0.03125
        %v3016 = vmul.f32 %v2959, 0.03125
        %v3017 = vmul.f32 %v2961, 0.03125
        %v3018 = vmul.f32 %v2963, 0.03125
        %v3019 = vmul.f32 %v2965, 0.03125
        %v3020 = vmul.f32 %v2967, 0.03125
        %v3021 = vmul.f32 %v2969, 0.03125
        %v3022 = vmul.f32 %v2971, 0.03125
        %v3023 = vmul.f32 %v2973, 0.03125
        %v3024 = vmul.f32 %v2975, 0.03125
        %v3025 = vmul.f32 %v2977, 0.03125
        %v3026 = vmul.f32 %v2979, 0.03125
        %v3027 = vmul.f32 %v2981, 0.03125
        %v3028 = vmul.f32 %v2983, 0.03125
        %v3029 = vmul.f32 %v2985, 0.03125
        %v3030 = vmul.f32 %v2987, 0.03125
        %v3031 = vmul.f32 %v2989, 0.03125
        %v3032 = vmul.f32 %v2991, 0.03125
        %v3033 = vmul.f32 %v2993, 0.03125
        %v3034 = vmul.f32 %v2995, 0.03125
        %v3035 = vmul.f32 %v2997, 0.03125
        %v3036 = vmul.f32 %v2999, 0.03125
        %v3037 = vmul.f32 %v3001, 0.03125
        %v3038 = vmul.f32 %v3003, 0.03125
        %v3039 = vmul.f32 %v3005, 0.03125
        %v3040 = vmul.f32 %v3007, 0.03125
        %v3041 = vmul.f32 %v3009, 0.03125
        %v3042 = vsub.f32 %v2914, %v3010
        %v3043 = vsub.f32 %v2915, %v3011
        %v3044 = vsub.f32 %v2916, %v3012
        %v3045 = vsub.f32 %v2917, %v3013
        %v3046 = vsub.f32 %v2918, %v3014
        %v3047 = vsub.f32 %v2919, %v3015
        %v3048 = vsub.f32 %v2920, %v3016
        %v3049 = vsub.f32 %v2921, %v3017
        %v3050 = vsub.f32 %v2922, %v3018
        %v3051 = vsub.f32 %v2923, %v3019
        %v3052 = vsub.f32 %v2924, %v3020
        %v3053 = vsub.f32 %v2925, %v3021
        %v3054 = vsub.f32 %v2926, %v3022
        %v3055 = vsub.f32 %v2927, %v3023
        %v3056 = vsub.f32 %v2928, %v3024
        %v3057 = vsub.f32 %v2929, %v3025
        %v3058 = vsub.f32 %v2930, %v3026
        %v3059 = vsub.f32 %v2931, %v3027
        %v3060 = vsub.f32 %v2932, %v3028
        %v3061 = vsub.f32 %v2933, %v3029
        %v3062 = vsub.f32 %v2934, %v3030
        %v3063 = vsub.f32 %v2935, %v3031
        %v3064 = vsub.f32 %v2936, %v3032
        %v3065 = vsub.f32 %v2937, %v3033
        %v3066 = vsub.f32 %v2938, %v3034
        %v3067 = vsub.f32 %v2939, %v3035
        %v3068 = vsub.f32 %v2940, %v3036
        %v3069 = vsub.f32 %v2941, %v3037
        %v3070 = vsub.f32 %v2942, %v3038
        %v3071 = vsub.f32 %v2943, %v3039
        %v3072 = vsub.f32 %v2944, %v3040
        %v3073 = vsub.f32 %v2945, %v3041
        %v3074 = vmul.f32 %v3042, %v515
        %v3075 = vmul.f32 %v3043, %v515
        %v3076 = vmul.f32 %v3044, %v515
        %v3077 = vmul.f32 %v3045, %v515
        %v3078 = vmul.f32 %v3046, %v515
        %v3079 = vmul.f32 %v3047, %v515
        %v3080 = vmul.f32 %v3048, %v515
        %v3081 = vmul.f32 %v3049, %v515
        %v3082 = vmul.f32 %v3050, %v515
        %v3083 = vmul.f32 %v3051, %v515
        %v3084 = vmul.f32 %v3052, %v515
        %v3085 = vmul.f32 %v3053, %v515
        %v3086 = vmul.f32 %v3054, %v515
        %v3087 = vmul.f32 %v3055, %v515
        %v3088 = vmul.f32 %v3056, %v515
        %v3089 = vmul.f32 %v3057, %v515
        %v3090 = vmul.f32 %v3058, %v515
        %v3091 = vmul.f32 %v3059, %v515
        %v3092 = vmul.f32 %v3060, %v515
        %v3093 = vmul.f32 %v3061, %v515
        %v3094 = vmul.f32 %v3062, %v515
        %v3095 = vmul.f32 %v3063, %v515
        %v3096 = vmul.f32 %v3064, %v515
        %v3097 = vmul.f32 %v3065, %v515
        %v3098 = vmul.f32 %v3066, %v515
        %v3099 = vmul.f32 %v3067, %v515
        %v3100 = vmul.f32 %v3068, %v515
        %v3101 = vmul.f32 %v3069, %v515
        %v3102 = vmul.f32 %v3070, %v515
        %v3103 = vmul.f32 %v3071, %v515
        %v3104 = vmul.f32 %v3072, %v515
        %v3105 = vmul.f32 %v3073, %v515
        %v3106 = vmul.f32 %v3074, %v3074
        %v3107 = vmul.f32 %v3075, %v3075
        %v3108 = vmul.f32 %v3076, %v3076
        %v3109 = vmul.f32 %v3077, %v3077
        %v3110 = vmul.f32 %v3078, %v3078
        %v3111 = vmul.f32 %v3079, %v3079
        %v3112 = vmul.f32 %v3080, %v3080
        %v3113 = vmul.f32 %v3081, %v3081
        %v3114 = vmul.f32 %v3082, %v3082
        %v3115 = vmul.f32 %v3083, %v3083
        %v3116 = vmul.f32 %v3084, %v3084
        %v3117 = vmul.f32 %v3085, %v3085
        %v3118 = vmul.f32 %v3086, %v3086
        %v3119 = vmul.f32 %v3087, %v3087
        %v3120 = vmul.f32 %v3088, %v3088
        %v3121 = vmul.f32 %v3089, %v3089
        %v3122 = vmul.f32 %v3090, %v3090
        %v3123 = vmul.f32 %v3091, %v3091
        %v3124 = vmul.f32 %v3092, %v3092
        %v3125 = vmul.f32 %v3093, %v3093
        %v3126 = vmul.f32 %v3094, %v3094
        %v3127 = vmul.f32 %v3095, %v3095
        %v3128 = vmul.f32 %v3096, %v3096
        %v3129 = vmul.f32 %v3097, %v3097
        %v3130 = vmul.f32 %v3098, %v3098
        %v3131 = vmul.f32 %v3099, %v3099
        %v3132 = vmul.f32 %v3100, %v3100
        %v3133 = vmul.f32 %v3101, %v3101
        %v3134 = vmul.f32 %v3102, %v3102
        %v3135 = vmul.f32 %v3103, %v3103
        %v3136 = vmul.f32 %v3104, %v3104
        %v3137 = vmul.f32 %v3105, %v3105
        %3138 = vadd.xlane.f32.xlu0 %v3106
        %v3139 = vpop.xlane.xlu0 %3138
        %3140 = vadd.xlane.f32.xlu0 %v3107
        %v3141 = vpop.xlane.xlu0 %3140
        %3142 = vadd.xlane.f32.xlu0 %v3108
        %v3143 = vpop.xlane.xlu0 %3142
        %3144 = vadd.xlane.f32.xlu0 %v3109
        %v3145 = vpop.xlane.xlu0 %3144
        %3146 = vadd.xlane.f32.xlu0 %v3110
        %v3147 = vpop.xlane.xlu0 %3146
        %3148 = vadd.xlane.f32.xlu0 %v3111
        %v3149 = vpop.xlane.xlu0 %3148
        %3150 = vadd.xlane.f32.xlu0 %v3112
        %v3151 = vpop.xlane.xlu0 %3150
        %3152 = vadd.xlane.f32.xlu0 %v3113
        %v3153 = vpop.xlane.xlu0 %3152
        %3154 = vadd.xlane.f32.xlu0 %v3114
        %v3155 = vpop.xlane.xlu0 %3154
        %3156 = vadd.xlane.f32.xlu0 %v3115
        %v3157 = vpop.xlane.xlu0 %3156
        %3158 = vadd.xlane.f32.xlu0 %v3116
        %v3159 = vpop.xlane.xlu0 %3158
        %3160 = vadd.xlane.f32.xlu0 %v3117
        %v3161 = vpop.xlane.xlu0 %3160
        %3162 = vadd.xlane.f32.xlu0 %v3118
        %v3163 = vpop.xlane.xlu0 %3162
        %3164 = vadd.xlane.f32.xlu0 %v3119
        %v3165 = vpop.xlane.xlu0 %3164
        %3166 = vadd.xlane.f32.xlu0 %v3120
        %v3167 = vpop.xlane.xlu0 %3166
        %3168 = vadd.xlane.f32.xlu0 %v3121
        %v3169 = vpop.xlane.xlu0 %3168
        %3170 = vadd.xlane.f32.xlu0 %v3122
        %v3171 = vpop.xlane.xlu0 %3170
        %3172 = vadd.xlane.f32.xlu0 %v3123
        %v3173 = vpop.xlane.xlu0 %3172
        %3174 = vadd.xlane.f32.xlu0 %v3124
        %v3175 = vpop.xlane.xlu0 %3174
        %3176 = vadd.xlane.f32.xlu0 %v3125
        %v3177 = vpop.xlane.xlu0 %3176
        %3178 = vadd.xlane.f32.xlu0 %v3126
        %v3179 = vpop.xlane.xlu0 %3178
        %3180 = vadd.xlane.f32.xlu0 %v3127
        %v3181 = vpop.xlane.xlu0 %3180
        %3182 = vadd.xlane.f32.xlu0 %v3128
        %v3183 = vpop.xlane.xlu0 %3182
        %3184 = vadd.xlane.f32.xlu0 %v3129
        %v3185 = vpop.xlane.xlu0 %3184
        %3186 = vadd.xlane.f32.xlu0 %v3130
        %v3187 = vpop.xlane.xlu0 %3186
        %3188 = vadd.xlane.f32.xlu0 %v3131
        %v3189 = vpop.xlane.xlu0 %3188
        %3190 = vadd.xlane.f32.xlu0 %v3132
        %v3191 = vpop.xlane.xlu0 %3190
        %3192 = vadd.xlane.f32.xlu0 %v3133
        %v3193 = vpop.xlane.xlu0 %3192
        %3194 = vadd.xlane.f32.xlu0 %v3134
        %v3195 = vpop.xlane.xlu0 %3194
        %3196 = vadd.xlane.f32.xlu0 %v3135
        %v3197 = vpop.xlane.xlu0 %3196
        %3198 = vadd.xlane.f32.xlu0 %v3136
        %v3199 = vpop.xlane.xlu0 %3198
        %3200 = vadd.xlane.f32.xlu0 %v3137
        %v3201 = vpop.xlane.xlu0 %3200
        %v3202 = vmul.f32 %v3139, 0.03125
        %v3203 = vmul.f32 %v3141, 0.03125
        %v3204 = vmul.f32 %v3143, 0.03125
        %v3205 = vmul.f32 %v3145, 0.03125
        %v3206 = vmul.f32 %v3147, 0.03125
        %v3207 = vmul.f32 %v3149, 0.03125
        %v3208 = vmul.f32 %v3151, 0.03125
        %v3209 = vmul.f32 %v3153, 0.03125
        %v3210 = vmul.f32 %v3155, 0.03125
        %v3211 = vmul.f32 %v3157, 0.03125
        %v3212 = vmul.f32 %v3159, 0.03125
        %v3213 = vmul.f32 %v3161, 0.03125
        %v3214 = vmul.f32 %v3163, 0.03125
        %v3215 = vmul.f32 %v3165, 0.03125
        %v3216 = vmul.f32 %v3167, 0.03125
        %v3217 = vmul.f32 %v3169, 0.03125
        %v3218 = vmul.f32 %v3171, 0.03125
        %v3219 = vmul.f32 %v3173, 0.03125
        %v3220 = vmul.f32 %v3175, 0.03125
        %v3221 = vmul.f32 %v3177, 0.03125
        %v3222 = vmul.f32 %v3179, 0.03125
        %v3223 = vmul.f32 %v3181, 0.03125
        %v3224 = vmul.f32 %v3183, 0.03125
        %v3225 = vmul.f32 %v3185, 0.03125
        %v3226 = vmul.f32 %v3187, 0.03125
        %v3227 = vmul.f32 %v3189, 0.03125
        %v3228 = vmul.f32 %v3191, 0.03125
        %v3229 = vmul.f32 %v3193, 0.03125
        %v3230 = vmul.f32 %v3195, 0.03125
        %v3231 = vmul.f32 %v3197, 0.03125
        %v3232 = vmul.f32 %v3199, 0.03125
        %v3233 = vmul.f32 %v3201, 0.03125
        %v3234 = vadd.f32 %v3202, 1e-05
        %v3235 = vadd.f32 %v3203, 1e-05
        %v3236 = vadd.f32 %v3204, 1e-05
        %v3237 = vadd.f32 %v3205, 1e-05
        %v3238 = vadd.f32 %v3206, 1e-05
        %v3239 = vadd.f32 %v3207, 1e-05
        %v3240 = vadd.f32 %v3208, 1e-05
        %v3241 = vadd.f32 %v3209, 1e-05
        %v3242 = vadd.f32 %v3210, 1e-05
        %v3243 = vadd.f32 %v3211, 1e-05
        %v3244 = vadd.f32 %v3212, 1e-05
        %v3245 = vadd.f32 %v3213, 1e-05
        %v3246 = vadd.f32 %v3214, 1e-05
        %v3247 = vadd.f32 %v3215, 1e-05
        %v3248 = vadd.f32 %v3216, 1e-05
        %v3249 = vadd.f32 %v3217, 1e-05
        %v3250 = vadd.f32 %v3218, 1e-05
        %v3251 = vadd.f32 %v3219, 1e-05
        %v3252 = vadd.f32 %v3220, 1e-05
        %v3253 = vadd.f32 %v3221, 1e-05
        %v3254 = vadd.f32 %v3222, 1e-05
        %v3255 = vadd.f32 %v3223, 1e-05
        %v3256 = vadd.f32 %v3224, 1e-05
        %v3257 = vadd.f32 %v3225, 1e-05
        %v3258 = vadd.f32 %v3226, 1e-05
        %v3259 = vadd.f32 %v3227, 1e-05
        %v3260 = vadd.f32 %v3228, 1e-05
        %v3261 = vadd.f32 %v3229, 1e-05
        %v3262 = vadd.f32 %v3230, 1e-05
        %v3263 = vadd.f32 %v3231, 1e-05
        %v3264 = vadd.f32 %v3232, 1e-05
        %v3265 = vadd.f32 %v3233, 1e-05
        %v3266 = vrsqrt.pop %v3234
        %v3267 = vrsqrt.pop %v3235
        %v3268 = vrsqrt.pop %v3236
        %v3269 = vrsqrt.pop %v3237
        %v3270 = vrsqrt.pop %v3238
        %v3271 = vrsqrt.pop %v3239
        %v3272 = vrsqrt.pop %v3240
        %v3273 = vrsqrt.pop %v3241
        %v3274 = vrsqrt.pop %v3242
        %v3275 = vrsqrt.pop %v3243
        %v3276 = vrsqrt.pop %v3244
        %v3277 = vrsqrt.pop %v3245
        %v3278 = vrsqrt.pop %v3246
        %v3279 = vrsqrt.pop %v3247
        %v3280 = vrsqrt.pop %v3248
        %v3281 = vrsqrt.pop %v3249
        %v3282 = vrsqrt.pop %v3250
        %v3283 = vrsqrt.pop %v3251
        %v3284 = vrsqrt.pop %v3252
        %v3285 = vrsqrt.pop %v3253
        %v3286 = vrsqrt.pop %v3254
        %v3287 = vrsqrt.pop %v3255
        %v3288 = vrsqrt.pop %v3256
        %v3289 = vrsqrt.pop %v3257
        %v3290 = vrsqrt.pop %v3258
        %v3291 = vrsqrt.pop %v3259
        %v3292 = vrsqrt.pop %v3260
        %v3293 = vrsqrt.pop %v3261
        %v3294 = vrsqrt.pop %v3262
        %v3295 = vrsqrt.pop %v3263
        %v3296 = vrsqrt.pop %v3264
        %v3297 = vrsqrt.pop %v3265
        %v3298 = vmul.f32 %v3074, %v3266
        %v3299 = vmul.f32 %v3075, %v3267
        %v3300 = vmul.f32 %v3076, %v3268
        %v3301 = vmul.f32 %v3077, %v3269
        %v3302 = vmul.f32 %v3078, %v3270
        %v3303 = vmul.f32 %v3079, %v3271
        %v3304 = vmul.f32 %v3080, %v3272
        %v3305 = vmul.f32 %v3081, %v3273
        %v3306 = vmul.f32 %v3082, %v3274
        %v3307 = vmul.f32 %v3083, %v3275
        %v3308 = vmul.f32 %v3084, %v3276
        %v3309 = vmul.f32 %v3085, %v3277
        %v3310 = vmul.f32 %v3086, %v3278
        %v3311 = vmul.f32 %v3087, %v3279
        %v3312 = vmul.f32 %v3088, %v3280
        %v3313 = vmul.f32 %v3089, %v3281
        %v3314 = vmul.f32 %v3090, %v3282
        %v3315 = vmul.f32 %v3091, %v3283
        %v3316 = vmul.f32 %v3092, %v3284
        %v3317 = vmul.f32 %v3093, %v3285
        %v3318 = vmul.f32 %v3094, %v3286
        %v3319 = vmul.f32 %v3095, %v3287
        %v3320 = vmul.f32 %v3096, %v3288
        %v3321 = vmul.f32 %v3097, %v3289
        %v3322 = vmul.f32 %v3098, %v3290
        %v3323 = vmul.f32 %v3099, %v3291
        %v3324 = vmul.f32 %v3100, %v3292
        %v3325 = vmul.f32 %v3101, %v3293
        %v3326 = vmul.f32 %v3102, %v3294
        %v3327 = vmul.f32 %v3103, %v3295
        %v3328 = vmul.f32 %v3104, %v3296
        %v3329 = vmul.f32 %v3105, %v3297
        %v3330 = vlaneseq
        %v3331 = vshrl.u32 %v3330, 7
        %v3332 = vsub.s32 3, %v3331
        %v3333 = vrot.slane %v508, %v3332
        %v3334 = vmul.f32 %v3298, %v3333
        %v3335 = vmul.f32 %v3299, %v3333
        %v3336 = vmul.f32 %v3300, %v3333
        %v3337 = vmul.f32 %v3301, %v3333
        %v3338 = vmul.f32 %v3302, %v3333
        %v3339 = vmul.f32 %v3303, %v3333
        %v3340 = vmul.f32 %v3304, %v3333
        %v3341 = vmul.f32 %v3305, %v3333
        %v3342 = vmul.f32 %v3306, %v3333
        %v3343 = vmul.f32 %v3307, %v3333
        %v3344 = vmul.f32 %v3308, %v3333
        %v3345 = vmul.f32 %v3309, %v3333
        %v3346 = vmul.f32 %v3310, %v3333
        %v3347 = vmul.f32 %v3311, %v3333
        %v3348 = vmul.f32 %v3312, %v3333
        %v3349 = vmul.f32 %v3313, %v3333
        %v3350 = vmul.f32 %v3314, %v3333
        %v3351 = vmul.f32 %v3315, %v3333
        %v3352 = vmul.f32 %v3316, %v3333
        %v3353 = vmul.f32 %v3317, %v3333
        %v3354 = vmul.f32 %v3318, %v3333
        %v3355 = vmul.f32 %v3319, %v3333
        %v3356 = vmul.f32 %v3320, %v3333
        %v3357 = vmul.f32 %v3321, %v3333
        %v3358 = vmul.f32 %v3322, %v3333
        %v3359 = vmul.f32 %v3323, %v3333
        %v3360 = vmul.f32 %v3324, %v3333
        %v3361 = vmul.f32 %v3325, %v3333
        %v3362 = vmul.f32 %v3326, %v3333
        %v3363 = vmul.f32 %v3327, %v3333
        %v3364 = vmul.f32 %v3328, %v3333
        %v3365 = vmul.f32 %v3329, %v3333
        %v3366 = vlaneseq
        %v3367 = vshrl.u32 %v3366, 7
        %v3368 = vsub.s32 4, %v3367
        %v3369 = vrot.slane %v508, %v3368
        %v3370 = vadd.f32 %v3334, %v3369
        %v3371 = vadd.f32 %v3335, %v3369
        %v3372 = vadd.f32 %v3336, %v3369
        %v3373 = vadd.f32 %v3337, %v3369
        %v3374 = vadd.f32 %v3338, %v3369
        %v3375 = vadd.f32 %v3339, %v3369
        %v3376 = vadd.f32 %v3340, %v3369
        %v3377 = vadd.f32 %v3341, %v3369
        %v3378 = vadd.f32 %v3342, %v3369
        %v3379 = vadd.f32 %v3343, %v3369
        %v3380 = vadd.f32 %v3344, %v3369
        %v3381 = vadd.f32 %v3345, %v3369
        %v3382 = vadd.f32 %v3346, %v3369
        %v3383 = vadd.f32 %v3347, %v3369
        %v3384 = vadd.f32 %v3348, %v3369
        %v3385 = vadd.f32 %v3349, %v3369
        %v3386 = vadd.f32 %v3350, %v3369
        %v3387 = vadd.f32 %v3351, %v3369
        %v3388 = vadd.f32 %v3352, %v3369
        %v3389 = vadd.f32 %v3353, %v3369
        %v3390 = vadd.f32 %v3354, %v3369
        %v3391 = vadd.f32 %v3355, %v3369
        %v3392 = vadd.f32 %v3356, %v3369
        %v3393 = vadd.f32 %v3357, %v3369
        %v3394 = vadd.f32 %v3358, %v3369
        %v3395 = vadd.f32 %v3359, %v3369
        %v3396 = vadd.f32 %v3360, %v3369
        %v3397 = vadd.f32 %v3361, %v3369
        %v3398 = vadd.f32 %v3362, %v3369
        %v3399 = vadd.f32 %v3363, %v3369
        %v3400 = vadd.f32 %v3364, %v3369
        %v3401 = vadd.f32 %v3365, %v3369
        %v3402 = vld [vmem:[%s8] sm:$0xf]
        %v3403 = vld [vmem:[%s8 + $0x4] sm:$0xf]
        %v3404 = vld [vmem:[%s8 + $0x8] sm:$0xf]
        %v3405 = vld [vmem:[%s8 + $0xc] sm:$0xf]
        %v3406 = vld [vmem:[%s8 + $0x10] sm:$0xf]
        %v3407 = vld [vmem:[%s8 + $0x14] sm:$0xf]
        %v3408 = vld [vmem:[%s8 + $0x18] sm:$0xf]
        %v3409 = vld [vmem:[%s8 + $0x1c] sm:$0xf]
        %v3410 = vld [vmem:[%s8 + $0x20] sm:$0xf]
        %v3411 = vld [vmem:[%s8 + $0x24] sm:$0xf]
        %v3412 = vld [vmem:[%s8 + $0x28] sm:$0xf]
        %v3413 = vld [vmem:[%s8 + $0x2c] sm:$0xf]
        %v3414 = vld [vmem:[%s8 + $0x30] sm:$0xf]
        %v3415 = vld [vmem:[%s8 + $0x34] sm:$0xf]
        %v3416 = vld [vmem:[%s8 + $0x38] sm:$0xf]
        %v3417 = vld [vmem:[%s8 + $0x3c] sm:$0xf]
        %v3418 = vpack.c.bf16 %v3371, %v3370
        %v3419 = vpack.c.bf16 %v3373, %v3372
        %v3420 = vpack.c.bf16 %v3375, %v3374
        %v3421 = vpack.c.bf16 %v3377, %v3376
        %v3422 = vpack.c.bf16 %v3379, %v3378
        %v3423 = vpack.c.bf16 %v3381, %v3380
        %v3424 = vpack.c.bf16 %v3383, %v3382
        %v3425 = vpack.c.bf16 %v3385, %v3384
        %v3426 = vpack.c.bf16 %v3387, %v3386
        %v3427 = vpack.c.bf16 %v3389, %v3388
        %v3428 = vpack.c.bf16 %v3391, %v3390
        %v3429 = vpack.c.bf16 %v3393, %v3392
        %v3430 = vpack.c.bf16 %v3395, %v3394
        %v3431 = vpack.c.bf16 %v3397, %v3396
        %v3432 = vpack.c.bf16 %v3399, %v3398
        %v3433 = vpack.c.bf16 %v3401, %v3400
        %v3434 = vlaneseq
        %v3435 = vshrl.u32 %v3434, 7
        %v3436 = vsub.s32 5, %v3435
        %v3437 = vrot.slane %v508, %v3436
        %v3454 = vunpack.c.l.b16 %v3402
        %v3455 = vunpack.c.l.b16 %v3403
        %v3456 = vunpack.c.l.b16 %v3404
        %v3457 = vunpack.c.l.b16 %v3405
        %v3458 = vunpack.c.l.b16 %v3406
        %v3459 = vunpack.c.l.b16 %v3407
        %v3460 = vunpack.c.l.b16 %v3408
        %v3461 = vunpack.c.l.b16 %v3409
        %v3462 = vunpack.c.l.b16 %v3410
        %v3463 = vunpack.c.l.b16 %v3411
        %v3464 = vunpack.c.l.b16 %v3412
        %v3465 = vunpack.c.l.b16 %v3413
        %v3466 = vunpack.c.l.b16 %v3414
        %v3467 = vunpack.c.l.b16 %v3415
        %v3468 = vunpack.c.l.b16 %v3416
        %v3469 = vunpack.c.l.b16 %v3417
        %v3470 = vpack.c.b16 %v3455, %v3454
        %v3471 = vpack.c.b16 %v3457, %v3456
        %v3472 = vpack.c.b16 %v3459, %v3458
        %v3473 = vpack.c.b16 %v3461, %v3460
        %v3474 = vpack.c.b16 %v3463, %v3462
        %v3475 = vpack.c.b16 %v3465, %v3464
        %v3476 = vpack.c.b16 %v3467, %v3466
        %v3477 = vpack.c.b16 %v3469, %v3468
        %3486 = vmatprep.subr.bf16.mxu0 0
        %3487 = vmatpush1.bf16.msra.mxu0 %v3470
        %3488 = vmatprep.subr.bf16.mxu0 0
        %3489 = vmatpush1.bf16.msra.mxu0 %v3471
        %3490 = vmatprep.subr.bf16.mxu0 0
        %3491 = vmatpush1.bf16.msra.mxu0 %v3472
        %3492 = vmatprep.subr.bf16.mxu0 0
        %3493 = vmatpush1.bf16.msra.mxu0 %v3473
        %3494 = vmatprep.subr.bf16.mxu0 0
        %3495 = vmatpush1.bf16.msra.mxu0 %v3474
        %3496 = vmatprep.subr.bf16.mxu0 0
        %3497 = vmatpush1.bf16.msra.mxu0 %v3475
        %3498 = vmatprep.subr.bf16.mxu0 0
        %3499 = vmatpush1.bf16.msra.mxu0 %v3476
        %3500 = vmatprep.subr.bf16.mxu0 0
        %3501 = vmatpush1.bf16.msra.mxu0 %v3477
        %3502 = vmatprep.subr.bf16.mxu0 0
        %3503 = vmatpush1.bf16.msra.mxu0 0
        %3504 = vmatprep.subr.bf16.mxu0 0
        %3505 = vmatpush1.bf16.msra.mxu0 0
        %3506 = vmatprep.subr.bf16.mxu0 0
        %3507 = vmatpush1.bf16.msra.mxu0 0
        %3508 = vmatprep.subr.bf16.mxu0 0
        %3509 = vmatpush1.bf16.msra.mxu0 0
        %3510 = vmatprep.subr.bf16.mxu0 0
        %3511 = vmatpush1.bf16.msra.mxu0 0
        %3512 = vmatprep.subr.bf16.mxu0 0
        %3513 = vmatpush1.bf16.msra.mxu0 0
        %3514 = vmatprep.subr.bf16.mxu0 0
        %3515 = vmatpush1.bf16.msra.mxu0 0
        %3516 = vmatprep.subr.bf16.mxu0 0
        %3517 = vmatpush1.bf16.msra.mxu0 0
        %3518 = vmatprep.mubr.bf16.mxu0 0
        %3519 = vmatmul.mubr.bf16.gmra.mrb[0].mxu0 %v3418
        %v3520 = vpop.f32.mrb[0].mxu0
        %v3521 = vadd.f32 %v3437, %v3520
        %v3522 = vpop.f32.mrb[0].mxu0
        %v3523 = vpop.f32.mrb[0].mxu0
        %v3524 = vadd.f32 %v3437, %v3523
        %v3525 = vpop.f32.mrb[0].mxu0
        %3526 = vmatprep.mubr.bf16.mxu0 0
        %3527 = vmatmul.mubr.bf16.gmra.mrb[0].mxu0 %v3419
        %v3528 = vpop.f32.mrb[0].mxu0
        %v3529 = vadd.f32 %v3437, %v3528
        %v3530 = vpop.f32.mrb[0].mxu0
        %v3531 = vpop.f32.mrb[0].mxu0
        %v3532 = vadd.f32 %v3437, %v3531
        %v3533 = vpop.f32.mrb[0].mxu0
        %3534 = vmatprep.mubr.bf16.mxu0 0
        %3535 = vmatmul.mubr.bf16.gmra.mrb[0].mxu0 %v3420
        %v3536 = vpop.f32.mrb[0].mxu0
        %v3537 = vadd.f32 %v3437, %v3536
        %v3538 = vpop.f32.mrb[0].mxu0
        %v3539 = vpop.f32.mrb[0].mxu0
        %v3540 = vadd.f32 %v3437, %v3539
        %v3541 = vpop.f32.mrb[0].mxu0
        %3542 = vmatprep.mubr.bf16.mxu0 0
        %3543 = vmatmul.mubr.bf16.gmra.mrb[0].mxu0 %v3421
        %v3544 = vpop.f32.mrb[0].mxu0
        %v3545 = vadd.f32 %v3437, %v3544
        %v3546 = vpop.f32.mrb[0].mxu0
        %v3547 = vpop.f32.mrb[0].mxu0
        %v3548 = vadd.f32 %v3437, %v3547
        %v3549 = vpop.f32.mrb[0].mxu0
        %3550 = vmatprep.mubr.bf16.mxu0 0
        %3551 = vmatmul.mubr.bf16.gmra.mrb[0].mxu0 %v3422
        %v3552 = vpop.f32.mrb[0].mxu0
        %v3553 = vadd.f32 %v3437, %v3552
        %v3554 = vpop.f32.mrb[0].mxu0
        %v3555 = vpop.f32.mrb[0].mxu0
        %v3556 = vadd.f32 %v3437, %v3555
        %v3557 = vpop.f32.mrb[0].mxu0
        %3558 = vmatprep.mubr.bf16.mxu0 0
        %3559 = vmatmul.mubr.bf16.gmra.mrb[0].mxu0 %v3423
        %v3560 = vpop.f32.mrb[0].mxu0
        %v3561 = vadd.f32 %v3437, %v3560
        %v3562 = vpop.f32.mrb[0].mxu0
        %v3563 = vpop.f32.mrb[0].mxu0
        %v3564 = vadd.f32 %v3437, %v3563
        %v3565 = vpop.f32.mrb[0].mxu0
        %3566 = vmatprep.mubr.bf16.mxu0 0
        %3567 = vmatmul.mubr.bf16.gmra.mrb[0].mxu0 %v3424
        %v3568 = vpop.f32.mrb[0].mxu0
        %v3569 = vadd.f32 %v3437, %v3568
        %v3570 = vpop.f32.mrb[0].mxu0
        %v3571 = vpop.f32.mrb[0].mxu0
        %v3572 = vadd.f32 %v3437, %v3571
        %v3573 = vpop.f32.mrb[0].mxu0
        %3574 = vmatprep.mubr.bf16.mxu0 0
        %3575 = vmatmul.mubr.bf16.gmra.mrb[0].mxu0 %v3425
        %v3576 = vpop.f32.mrb[0].mxu0
        %v3577 = vadd.f32 %v3437, %v3576
        %v3578 = vpop.f32.mrb[0].mxu0
        %v3579 = vpop.f32.mrb[0].mxu0
        %v3580 = vadd.f32 %v3437, %v3579
        %v3581 = vpop.f32.mrb[0].mxu0
        %3582 = vmatprep.mubr.bf16.mxu0 0
        %3583 = vmatmul.mubr.bf16.gmra.mrb[0].mxu0 %v3426
        %v3584 = vpop.f32.mrb[0].mxu0
        %v3585 = vadd.f32 %v3437, %v3584
        %v3586 = vpop.f32.mrb[0].mxu0
        %v3587 = vpop.f32.mrb[0].mxu0
        %v3588 = vadd.f32 %v3437, %v3587
        %v3589 = vpop.f32.mrb[0].mxu0
        %3590 = vmatprep.mubr.bf16.mxu0 0
        %3591 = vmatmul.mubr.bf16.gmra.mrb[0].mxu0 %v3427
        %v3592 = vpop.f32.mrb[0].mxu0
        %v3593 = vadd.f32 %v3437, %v3592
        %v3594 = vpop.f32.mrb[0].mxu0
        %v3595 = vpop.f32.mrb[0].mxu0
        %v3596 = vadd.f32 %v3437, %v3595
        %v3597 = vpop.f32.mrb[0].mxu0
        %3598 = vmatprep.mubr.bf16.mxu0 0
        %3599 = vmatmul.mubr.bf16.gmra.mrb[0].mxu0 %v3428
        %v3600 = vpop.f32.mrb[0].mxu0
        %v3601 = vadd.f32 %v3437, %v3600
        %v3602 = vpop.f32.mrb[0].mxu0
        %v3603 = vpop.f32.mrb[0].mxu0
        %v3604 = vadd.f32 %v3437, %v3603
        %v3605 = vpop.f32.mrb[0].mxu0
        %3606 = vmatprep.mubr.bf16.mxu0 0
        %3607 = vmatmul.mubr.bf16.gmra.mrb[0].mxu0 %v3429
        %v3608 = vpop.f32.mrb[0].mxu0
        %v3609 = vadd.f32 %v3437, %v3608
        %v3610 = vpop.f32.mrb[0].mxu0
        %v3611 = vpop.f32.mrb[0].mxu0
        %v3612 = vadd.f32 %v3437, %v3611
        %v3613 = vpop.f32.mrb[0].mxu0
        %3614 = vmatprep.mubr.bf16.mxu0 0
        %3615 = vmatmul.mubr.bf16.gmra.mrb[0].mxu0 %v3430
        %v3616 = vpop.f32.mrb[0].mxu0
        %v3617 = vadd.f32 %v3437, %v3616
        %v3618 = vpop.f32.mrb[0].mxu0
        %v3619 = vpop.f32.mrb[0].mxu0
        %v3620 = vadd.f32 %v3437, %v3619
        %v3621 = vpop.f32.mrb[0].mxu0
        %3622 = vmatprep.mubr.bf16.mxu0 0
        %3623 = vmatmul.mubr.bf16.gmra.mrb[0].mxu0 %v3431
        %v3624 = vpop.f32.mrb[0].mxu0
        %v3625 = vadd.f32 %v3437, %v3624
        %v3626 = vpop.f32.mrb[0].mxu0
        %v3627 = vpop.f32.mrb[0].mxu0
        %v3628 = vadd.f32 %v3437, %v3627
        %v3629 = vpop.f32.mrb[0].mxu0
        %3630 = vmatprep.mubr.bf16.mxu0 0
        %3631 = vmatmul.mubr.bf16.gmra.mrb[0].mxu0 %v3432
        %v3632 = vpop.f32.mrb[0].mxu0
        %v3633 = vadd.f32 %v3437, %v3632
        %v3634 = vpop.f32.mrb[0].mxu0
        %v3635 = vpop.f32.mrb[0].mxu0
        %v3636 = vadd.f32 %v3437, %v3635
        %v3637 = vpop.f32.mrb[0].mxu0
        %3638 = vmatprep.mubr.bf16.mxu0 0
        %3639 = vmatmul.mubr.bf16.gmra.mrb[0].mxu0 %v3433
        %v3640 = vpop.f32.mrb[0].mxu0
        %v3641 = vadd.f32 %v3437, %v3640
        %v3642 = vpop.f32.mrb[0].mxu0
        %v3643 = vpop.f32.mrb[0].mxu0
        %v3644 = vadd.f32 %v3437, %v3643
        %v3645 = vpop.f32.mrb[0].mxu0
        %3646 = vdwg.mxu0
        %v3647 = vlaneseq
        %v3648 = vshrl.u32 %v3647, 7
        %v3649 = vsub.s32 6, %v3648
        %v3650 = vrot.slane %v508, %v3649
        %v3651 = vmul.f32 %v3521, %v3650
        %v3652 = vmul.f32 %v3524, %v3650
        %v3653 = vmul.f32 %v3529, %v3650
        %v3654 = vmul.f32 %v3532, %v3650
        %v3655 = vmul.f32 %v3537, %v3650
        %v3656 = vmul.f32 %v3540, %v3650
        %v3657 = vmul.f32 %v3545, %v3650
        %v3658 = vmul.f32 %v3548, %v3650
        %v3659 = vmul.f32 %v3553, %v3650
        %v3660 = vmul.f32 %v3556, %v3650
        %v3661 = vmul.f32 %v3561, %v3650
        %v3662 = vmul.f32 %v3564, %v3650
        %v3663 = vmul.f32 %v3569, %v3650
        %v3664 = vmul.f32 %v3572, %v3650
        %v3665 = vmul.f32 %v3577, %v3650
        %v3666 = vmul.f32 %v3580, %v3650
        %v3667 = vmul.f32 %v3585, %v3650
        %v3668 = vmul.f32 %v3588, %v3650
        %v3669 = vmul.f32 %v3593, %v3650
        %v3670 = vmul.f32 %v3596, %v3650
        %v3671 = vmul.f32 %v3601, %v3650
        %v3672 = vmul.f32 %v3604, %v3650
        %v3673 = vmul.f32 %v3609, %v3650
        %v3674 = vmul.f32 %v3612, %v3650
        %v3675 = vmul.f32 %v3617, %v3650
        %v3676 = vmul.f32 %v3620, %v3650
        %v3677 = vmul.f32 %v3625, %v3650
        %v3678 = vmul.f32 %v3628, %v3650
        %v3679 = vmul.f32 %v3633, %v3650
        %v3680 = vmul.f32 %v3636, %v3650
        %v3681 = vmul.f32 %v3641, %v3650
        %v3682 = vmul.f32 %v3644, %v3650
        %v3683 = vlaneseq
        %v3684 = vshrl.u32 %v3683, 7
        %v3685 = vsub.s32 7, %v3684
        %v3686 = vrot.slane %v508, %v3685
        %v3687 = vadd.f32 %v3651, %v3686
        %v3688 = vadd.f32 %v3652, %v3686
        %v3689 = vadd.f32 %v3653, %v3686
        %v3690 = vadd.f32 %v3654, %v3686
        %v3691 = vadd.f32 %v3655, %v3686
        %v3692 = vadd.f32 %v3656, %v3686
        %v3693 = vadd.f32 %v3657, %v3686
        %v3694 = vadd.f32 %v3658, %v3686
        %v3695 = vadd.f32 %v3659, %v3686
        %v3696 = vadd.f32 %v3660, %v3686
        %v3697 = vadd.f32 %v3661, %v3686
        %v3698 = vadd.f32 %v3662, %v3686
        %v3699 = vadd.f32 %v3663, %v3686
        %v3700 = vadd.f32 %v3664, %v3686
        %v3701 = vadd.f32 %v3665, %v3686
        %v3702 = vadd.f32 %v3666, %v3686
        %v3703 = vadd.f32 %v3667, %v3686
        %v3704 = vadd.f32 %v3668, %v3686
        %v3705 = vadd.f32 %v3669, %v3686
        %v3706 = vadd.f32 %v3670, %v3686
        %v3707 = vadd.f32 %v3671, %v3686
        %v3708 = vadd.f32 %v3672, %v3686
        %v3709 = vadd.f32 %v3673, %v3686
        %v3710 = vadd.f32 %v3674, %v3686
        %v3711 = vadd.f32 %v3675, %v3686
        %v3712 = vadd.f32 %v3676, %v3686
        %v3713 = vadd.f32 %v3677, %v3686
        %v3714 = vadd.f32 %v3678, %v3686
        %v3715 = vadd.f32 %v3679, %v3686
        %v3716 = vadd.f32 %v3680, %v3686
        %v3717 = vadd.f32 %v3681, %v3686
        %v3718 = vadd.f32 %v3682, %v3686
        %v3719 = vlaneseq
        %v3720 = vshrl.u32 %v3719, 7
        %v3721 = vsub.s32 0, %v3720
        %v3722 = vrot.slane %v509, %v3721
        %v3723 = vmul.f32 %v3687, %v3722
        %v3724 = vmul.f32 %v3688, %v3722
        %v3725 = vmul.f32 %v3689, %v3722
        %v3726 = vmul.f32 %v3690, %v3722
        %v3727 = vmul.f32 %v3691, %v3722
        %v3728 = vmul.f32 %v3692, %v3722
        %v3729 = vmul.f32 %v3693, %v3722
        %v3730 = vmul.f32 %v3694, %v3722
        %v3731 = vmul.f32 %v3695, %v3722
        %v3732 = vmul.f32 %v3696, %v3722
        %v3733 = vmul.f32 %v3697, %v3722
        %v3734 = vmul.f32 %v3698, %v3722
        %v3735 = vmul.f32 %v3699, %v3722
        %v3736 = vmul.f32 %v3700, %v3722
        %v3737 = vmul.f32 %v3701, %v3722
        %v3738 = vmul.f32 %v3702, %v3722
        %v3739 = vmul.f32 %v3703, %v3722
        %v3740 = vmul.f32 %v3704, %v3722
        %v3741 = vmul.f32 %v3705, %v3722
        %v3742 = vmul.f32 %v3706, %v3722
        %v3743 = vmul.f32 %v3707, %v3722
        %v3744 = vmul.f32 %v3708, %v3722
        %v3745 = vmul.f32 %v3709, %v3722
        %v3746 = vmul.f32 %v3710, %v3722
        %v3747 = vmul.f32 %v3711, %v3722
        %v3748 = vmul.f32 %v3712, %v3722
        %v3749 = vmul.f32 %v3713, %v3722
        %v3750 = vmul.f32 %v3714, %v3722
        %v3751 = vmul.f32 %v3715, %v3722
        %v3752 = vmul.f32 %v3716, %v3722
        %v3753 = vmul.f32 %v3717, %v3722
        %v3754 = vmul.f32 %v3718, %v3722
        %v3755 = vlaneseq
        %v3756 = vshrl.u32 %v3755, 7
        %v3757 = vsub.s32 1, %v3756
        %v3758 = vrot.slane %v509, %v3757
        %v3759 = vadd.f32 %v3723, %v3758
        %v3760 = vadd.f32 %v3724, %v3758
        %v3761 = vadd.f32 %v3725, %v3758
        %v3762 = vadd.f32 %v3726, %v3758
        %v3763 = vadd.f32 %v3727, %v3758
        %v3764 = vadd.f32 %v3728, %v3758
        %v3765 = vadd.f32 %v3729, %v3758
        %v3766 = vadd.f32 %v3730, %v3758
        %v3767 = vadd.f32 %v3731, %v3758
        %v3768 = vadd.f32 %v3732, %v3758
        %v3769 = vadd.f32 %v3733, %v3758
        %v3770 = vadd.f32 %v3734, %v3758
        %v3771 = vadd.f32 %v3735, %v3758
        %v3772 = vadd.f32 %v3736, %v3758
        %v3773 = vadd.f32 %v3737, %v3758
        %v3774 = vadd.f32 %v3738, %v3758
        %v3775 = vadd.f32 %v3739, %v3758
        %v3776 = vadd.f32 %v3740, %v3758
        %v3777 = vadd.f32 %v3741, %v3758
        %v3778 = vadd.f32 %v3742, %v3758
        %v3779 = vadd.f32 %v3743, %v3758
        %v3780 = vadd.f32 %v3744, %v3758
        %v3781 = vadd.f32 %v3745, %v3758
        %v3782 = vadd.f32 %v3746, %v3758
        %v3783 = vadd.f32 %v3747, %v3758
        %v3784 = vadd.f32 %v3748, %v3758
        %v3785 = vadd.f32 %v3749, %v3758
        %v3786 = vadd.f32 %v3750, %v3758
        %v3787 = vadd.f32 %v3751, %v3758
        %v3788 = vadd.f32 %v3752, %v3758
        %v3789 = vadd.f32 %v3753, %v3758
        %v3790 = vadd.f32 %v3754, %v3758
        %v3791 = vlaneseq
        %v3792 = vshrl.u32 %v3791, 7
        %v3793 = vsub.s32 2, %v3792
        %v3794 = vrot.slane %v509, %v3793
        %v3795 = vmul.f32 %v3794, %v3759
        %v3796 = vmul.f32 %v3794, %v3760
        %v3797 = vmul.f32 %v3794, %v3761
        %v3798 = vmul.f32 %v3794, %v3762
        %v3799 = vmul.f32 %v3794, %v3763
        %v3800 = vmul.f32 %v3794, %v3764
        %v3801 = vmul.f32 %v3794, %v3765
        %v3802 = vmul.f32 %v3794, %v3766
        %v3803 = vmul.f32 %v3794, %v3767
        %v3804 = vmul.f32 %v3794, %v3768
        %v3805 = vmul.f32 %v3794, %v3769
        %v3806 = vmul.f32 %v3794, %v3770
        %v3807 = vmul.f32 %v3794, %v3771
        %v3808 = vmul.f32 %v3794, %v3772
        %v3809 = vmul.f32 %v3794, %v3773
        %v3810 = vmul.f32 %v3794, %v3774
        %v3811 = vmul.f32 %v3794, %v3775
        %v3812 = vmul.f32 %v3794, %v3776
        %v3813 = vmul.f32 %v3794, %v3777
        %v3814 = vmul.f32 %v3794, %v3778
        %v3815 = vmul.f32 %v3794, %v3779
        %v3816 = vmul.f32 %v3794, %v3780
        %v3817 = vmul.f32 %v3794, %v3781
        %v3818 = vmul.f32 %v3794, %v3782
        %v3819 = vmul.f32 %v3794, %v3783
        %v3820 = vmul.f32 %v3794, %v3784
        %v3821 = vmul.f32 %v3794, %v3785
        %v3822 = vmul.f32 %v3794, %v3786
        %v3823 = vmul.f32 %v3794, %v3787
        %v3824 = vmul.f32 %v3794, %v3788
        %v3825 = vmul.f32 %v3794, %v3789
        %v3826 = vmul.f32 %v3794, %v3790
        %v3827 = vadd.f32 %v3521, %v3795
        %v3828 = vadd.f32 %v3524, %v3796
        %v3829 = vadd.f32 %v3529, %v3797
        %v3830 = vadd.f32 %v3532, %v3798
        %v3831 = vadd.f32 %v3537, %v3799
        %v3832 = vadd.f32 %v3540, %v3800
        %v3833 = vadd.f32 %v3545, %v3801
        %v3834 = vadd.f32 %v3548, %v3802
        %v3835 = vadd.f32 %v3553, %v3803
        %v3836 = vadd.f32 %v3556, %v3804
        %v3837 = vadd.f32 %v3561, %v3805
        %v3838 = vadd.f32 %v3564, %v3806
        %v3839 = vadd.f32 %v3569, %v3807
        %v3840 = vadd.f32 %v3572, %v3808
        %v3841 = vadd.f32 %v3577, %v3809
        %v3842 = vadd.f32 %v3580, %v3810
        %v3843 = vadd.f32 %v3585, %v3811
        %v3844 = vadd.f32 %v3588, %v3812
        %v3845 = vadd.f32 %v3593, %v3813
        %v3846 = vadd.f32 %v3596, %v3814
        %v3847 = vadd.f32 %v3601, %v3815
        %v3848 = vadd.f32 %v3604, %v3816
        %v3849 = vadd.f32 %v3609, %v3817
        %v3850 = vadd.f32 %v3612, %v3818
        %v3851 = vadd.f32 %v3617, %v3819
        %v3852 = vadd.f32 %v3620, %v3820
        %v3853 = vadd.f32 %v3625, %v3821
        %v3854 = vadd.f32 %v3628, %v3822
        %v3855 = vadd.f32 %v3633, %v3823
        %v3856 = vadd.f32 %v3636, %v3824
        %v3857 = vadd.f32 %v3641, %v3825
        %v3858 = vadd.f32 %v3644, %v3826
        %v3859 = vlaneseq
        %v3860 = vshrl.u32 %v3859, 7
        %v3861 = vsub.s32 3, %v3860
        %v3862 = vrot.slane %v509, %v3861
        %v3863 = vmul.f32 %v3827, %v3862
        %v3864 = vmul.f32 %v3828, %v3862
        %v3865 = vmul.f32 %v3829, %v3862
        %v3866 = vmul.f32 %v3830, %v3862
        %v3867 = vmul.f32 %v3831, %v3862
        %v3868 = vmul.f32 %v3832, %v3862
        %v3869 = vmul.f32 %v3833, %v3862
        %v3870 = vmul.f32 %v3834, %v3862
        %v3871 = vmul.f32 %v3835, %v3862
        %v3872 = vmul.f32 %v3836, %v3862
        %v3873 = vmul.f32 %v3837, %v3862
        %v3874 = vmul.f32 %v3838, %v3862
        %v3875 = vmul.f32 %v3839, %v3862
        %v3876 = vmul.f32 %v3840, %v3862
        %v3877 = vmul.f32 %v3841, %v3862
        %v3878 = vmul.f32 %v3842, %v3862
        %v3879 = vmul.f32 %v3843, %v3862
        %v3880 = vmul.f32 %v3844, %v3862
        %v3881 = vmul.f32 %v3845, %v3862
        %v3882 = vmul.f32 %v3846, %v3862
        %v3883 = vmul.f32 %v3847, %v3862
        %v3884 = vmul.f32 %v3848, %v3862
        %v3885 = vmul.f32 %v3849, %v3862
        %v3886 = vmul.f32 %v3850, %v3862
        %v3887 = vmul.f32 %v3851, %v3862
        %v3888 = vmul.f32 %v3852, %v3862
        %v3889 = vmul.f32 %v3853, %v3862
        %v3890 = vmul.f32 %v3854, %v3862
        %v3891 = vmul.f32 %v3855, %v3862
        %v3892 = vmul.f32 %v3856, %v3862
        %v3893 = vmul.f32 %v3857, %v3862
        %v3894 = vmul.f32 %v3858, %v3862
        %v3895 = vlaneseq
        %v3896 = vshrl.u32 %v3895, 7
        %v3897 = vsub.s32 4, %v3896
        %v3898 = vrot.slane %v509, %v3897
        %v3899 = vadd.f32 %v3863, %v3898
        %v3900 = vadd.f32 %v3864, %v3898
        %v3901 = vadd.f32 %v3865, %v3898
        %v3902 = vadd.f32 %v3866, %v3898
        %v3903 = vadd.f32 %v3867, %v3898
        %v3904 = vadd.f32 %v3868, %v3898
        %v3905 = vadd.f32 %v3869, %v3898
        %v3906 = vadd.f32 %v3870, %v3898
        %v3907 = vadd.f32 %v3871, %v3898
        %v3908 = vadd.f32 %v3872, %v3898
        %v3909 = vadd.f32 %v3873, %v3898
        %v3910 = vadd.f32 %v3874, %v3898
        %v3911 = vadd.f32 %v3875, %v3898
        %v3912 = vadd.f32 %v3876, %v3898
        %v3913 = vadd.f32 %v3877, %v3898
        %v3914 = vadd.f32 %v3878, %v3898
        %v3915 = vadd.f32 %v3879, %v3898
        %v3916 = vadd.f32 %v3880, %v3898
        %v3917 = vadd.f32 %v3881, %v3898
        %v3918 = vadd.f32 %v3882, %v3898
        %v3919 = vadd.f32 %v3883, %v3898
        %v3920 = vadd.f32 %v3884, %v3898
        %v3921 = vadd.f32 %v3885, %v3898
        %v3922 = vadd.f32 %v3886, %v3898
        %v3923 = vadd.f32 %v3887, %v3898
        %v3924 = vadd.f32 %v3888, %v3898
        %v3925 = vadd.f32 %v3889, %v3898
        %v3926 = vadd.f32 %v3890, %v3898
        %v3927 = vadd.f32 %v3891, %v3898
        %v3928 = vadd.f32 %v3892, %v3898
        %v3929 = vadd.f32 %v3893, %v3898
        %v3930 = vadd.f32 %v3894, %v3898
        %v3931 = vld [vmem:[%s9] sm:$0xf]
        %v3932 = vld [vmem:[%s9 + $0x4] sm:$0xf]
        %v3933 = vld [vmem:[%s9 + $0x8] sm:$0xf]
        %v3934 = vld [vmem:[%s9 + $0xc] sm:$0xf]
        %v3935 = vld [vmem:[%s9 + $0x10] sm:$0xf]
        %v3936 = vld [vmem:[%s9 + $0x14] sm:$0xf]
        %v3937 = vld [vmem:[%s9 + $0x18] sm:$0xf]
        %v3938 = vld [vmem:[%s9 + $0x1c] sm:$0xf]
        %v3939 = vld [vmem:[%s9 + $0x20] sm:$0xf]
        %v3940 = vld [vmem:[%s9 + $0x24] sm:$0xf]
        %v3941 = vld [vmem:[%s9 + $0x28] sm:$0xf]
        %v3942 = vld [vmem:[%s9 + $0x2c] sm:$0xf]
        %v3943 = vld [vmem:[%s9 + $0x30] sm:$0xf]
        %v3944 = vld [vmem:[%s9 + $0x34] sm:$0xf]
        %v3945 = vld [vmem:[%s9 + $0x38] sm:$0xf]
        %v3946 = vld [vmem:[%s9 + $0x3c] sm:$0xf]
        %v3947 = vpack.c.bf16 %v3900, %v3899
        %v3948 = vpack.c.bf16 %v3902, %v3901
        %v3949 = vpack.c.bf16 %v3904, %v3903
        %v3950 = vpack.c.bf16 %v3906, %v3905
        %v3951 = vpack.c.bf16 %v3908, %v3907
        %v3952 = vpack.c.bf16 %v3910, %v3909
        %v3953 = vpack.c.bf16 %v3912, %v3911
        %v3954 = vpack.c.bf16 %v3914, %v3913
        %v3955 = vpack.c.bf16 %v3916, %v3915
        %v3956 = vpack.c.bf16 %v3918, %v3917
        %v3957 = vpack.c.bf16 %v3920, %v3919
        %v3958 = vpack.c.bf16 %v3922, %v3921
        %v3959 = vpack.c.bf16 %v3924, %v3923
        %v3960 = vpack.c.bf16 %v3926, %v3925
        %v3961 = vpack.c.bf16 %v3928, %v3927
        %v3962 = vpack.c.bf16 %v3930, %v3929
        %v3963 = vld [vmem:[%s10] sm:$0x1]
        %v3965 = vlaneseq
        %v3966 = vshrl.u32 %v3965, 7
        %v3967 = vsub.s32 0, %v3966
        %v3968 = vrot.slane %v3963, %v3967
        %v3986 = vunpack.c.l.b16 %v3931
        %v3987 = vunpack.c.l.b16 %v3932
        %v3988 = vunpack.c.l.b16 %v3933
        %v3989 = vunpack.c.l.b16 %v3934
        %v3990 = vunpack.c.l.b16 %v3935
        %v3991 = vunpack.c.l.b16 %v3936
        %v3992 = vunpack.c.l.b16 %v3937
        %v3993 = vunpack.c.l.b16 %v3938
        %v3994 = vunpack.c.l.b16 %v3939
        %v3995 = vunpack.c.l.b16 %v3940
        %v3996 = vunpack.c.l.b16 %v3941
        %v3997 = vunpack.c.l.b16 %v3942
        %v3998 = vunpack.c.l.b16 %v3943
        %v3999 = vunpack.c.l.b16 %v3944
        %v4000 = vunpack.c.l.b16 %v3945
        %v4001 = vunpack.c.l.b16 %v3946
        %v4002 = vpack.c.b16 %v3987, %v3986
        %v4003 = vpack.c.b16 %v3989, %v3988
        %v4004 = vpack.c.b16 %v3991, %v3990
        %v4005 = vpack.c.b16 %v3993, %v3992
        %v4006 = vpack.c.b16 %v3995, %v3994
        %v4007 = vpack.c.b16 %v3997, %v3996
        %v4008 = vpack.c.b16 %v3999, %v3998
        %v4009 = vpack.c.b16 %v4001, %v4000
        %4018 = vmatprep.subr.bf16.mxu0 0
        %4019 = vmatpush1.bf16.msra.mxu0 %v4002
        %4020 = vmatprep.subr.bf16.mxu0 0
        %4021 = vmatpush1.bf16.msra.mxu0 %v4003
        %4022 = vmatprep.subr.bf16.mxu0 0
        %4023 = vmatpush1.bf16.msra.mxu0 %v4004
        %4024 = vmatprep.subr.bf16.mxu0 0
        %4025 = vmatpush1.bf16.msra.mxu0 %v4005
        %4026 = vmatprep.subr.bf16.mxu0 0
        %4027 = vmatpush1.bf16.msra.mxu0 %v4006
        %4028 = vmatprep.subr.bf16.mxu0 0
        %4029 = vmatpush1.bf16.msra.mxu0 %v4007
        %4030 = vmatprep.subr.bf16.mxu0 0
        %4031 = vmatpush1.bf16.msra.mxu0 %v4008
        %4032 = vmatprep.subr.bf16.mxu0 0
        %4033 = vmatpush1.bf16.msra.mxu0 %v4009
        %4034 = vmatprep.subr.bf16.mxu0 0
        %4035 = vmatpush1.bf16.msra.mxu0 0
        %4036 = vmatprep.subr.bf16.mxu0 0
        %4037 = vmatpush1.bf16.msra.mxu0 0
        %4038 = vmatprep.subr.bf16.mxu0 0
        %4039 = vmatpush1.bf16.msra.mxu0 0
        %4040 = vmatprep.subr.bf16.mxu0 0
        %4041 = vmatpush1.bf16.msra.mxu0 0
        %4042 = vmatprep.subr.bf16.mxu0 0
        %4043 = vmatpush1.bf16.msra.mxu0 0
        %4044 = vmatprep.subr.bf16.mxu0 0
        %4045 = vmatpush1.bf16.msra.mxu0 0
        %4046 = vmatprep.subr.bf16.mxu0 0
        %4047 = vmatpush1.bf16.msra.mxu0 0
        %4048 = vmatprep.subr.bf16.mxu0 0
        %4049 = vmatpush1.bf16.msra.mxu0 0
        %4050 = vmatprep.mubr.bf16.mxu0 0
        %4051 = vmatmul.mubr.bf16.gmra.mrb[0].mxu0 %v3947
        %v4052 = vpop.f32.mrb[0].mxu0
        %v4053 = vadd.f32 %v3968, %v4052
        %v4054 = vpop.f32.mrb[0].mxu0
        %v4055 = vpop.f32.mrb[0].mxu0
        %v4056 = vadd.f32 %v3968, %v4055
        %v4057 = vpop.f32.mrb[0].mxu0
        %4058 = vmatprep.mubr.bf16.mxu0 0
        %4059 = vmatmul.mubr.bf16.gmra.mrb[0].mxu0 %v3948
        %v4060 = vpop.f32.mrb[0].mxu0
        %v4061 = vadd.f32 %v3968, %v4060
        %v4062 = vpop.f32.mrb[0].mxu0
        %v4063 = vpop.f32.mrb[0].mxu0
        %v4064 = vadd.f32 %v3968, %v4063
        %v4065 = vpop.f32.mrb[0].mxu0
        %4066 = vmatprep.mubr.bf16.mxu0 0
        %4067 = vmatmul.mubr.bf16.gmra.mrb[0].mxu0 %v3949
        %v4068 = vpop.f32.mrb[0].mxu0
        %v4069 = vadd.f32 %v3968, %v4068
        %v4070 = vpop.f32.mrb[0].mxu0
        %v4071 = vpop.f32.mrb[0].mxu0
        %v4072 = vadd.f32 %v3968, %v4071
        %v4073 = vpop.f32.mrb[0].mxu0
        %4074 = vmatprep.mubr.bf16.mxu0 0
        %4075 = vmatmul.mubr.bf16.gmra.mrb[0].mxu0 %v3950
        %v4076 = vpop.f32.mrb[0].mxu0
        %v4077 = vadd.f32 %v3968, %v4076
        %v4078 = vpop.f32.mrb[0].mxu0
        %v4079 = vpop.f32.mrb[0].mxu0
        %v4080 = vadd.f32 %v3968, %v4079
        %v4081 = vpop.f32.mrb[0].mxu0
        %4082 = vmatprep.mubr.bf16.mxu0 0
        %4083 = vmatmul.mubr.bf16.gmra.mrb[0].mxu0 %v3951
        %v4084 = vpop.f32.mrb[0].mxu0
        %v4085 = vadd.f32 %v3968, %v4084
        %v4086 = vpop.f32.mrb[0].mxu0
        %v4087 = vpop.f32.mrb[0].mxu0
        %v4088 = vadd.f32 %v3968, %v4087
        %v4089 = vpop.f32.mrb[0].mxu0
        %4090 = vmatprep.mubr.bf16.mxu0 0
        %4091 = vmatmul.mubr.bf16.gmra.mrb[0].mxu0 %v3952
        %v4092 = vpop.f32.mrb[0].mxu0
        %v4093 = vadd.f32 %v3968, %v4092
        %v4094 = vpop.f32.mrb[0].mxu0
        %v4095 = vpop.f32.mrb[0].mxu0
        %v4096 = vadd.f32 %v3968, %v4095
        %v4097 = vpop.f32.mrb[0].mxu0
        %4098 = vmatprep.mubr.bf16.mxu0 0
        %4099 = vmatmul.mubr.bf16.gmra.mrb[0].mxu0 %v3953
        %v4100 = vpop.f32.mrb[0].mxu0
        %v4101 = vadd.f32 %v3968, %v4100
        %v4102 = vpop.f32.mrb[0].mxu0
        %v4103 = vpop.f32.mrb[0].mxu0
        %v4104 = vadd.f32 %v3968, %v4103
        %v4105 = vpop.f32.mrb[0].mxu0
        %4106 = vmatprep.mubr.bf16.mxu0 0
        %4107 = vmatmul.mubr.bf16.gmra.mrb[0].mxu0 %v3954
        %v4108 = vpop.f32.mrb[0].mxu0
        %v4109 = vadd.f32 %v3968, %v4108
        %v4110 = vpop.f32.mrb[0].mxu0
        %v4111 = vpop.f32.mrb[0].mxu0
        %v4112 = vadd.f32 %v3968, %v4111
        %v4113 = vpop.f32.mrb[0].mxu0
        %4114 = vmatprep.mubr.bf16.mxu0 0
        %4115 = vmatmul.mubr.bf16.gmra.mrb[0].mxu0 %v3955
        %v4116 = vpop.f32.mrb[0].mxu0
        %v4117 = vadd.f32 %v3968, %v4116
        %v4118 = vpop.f32.mrb[0].mxu0
        %v4119 = vpop.f32.mrb[0].mxu0
        %v4120 = vadd.f32 %v3968, %v4119
        %v4121 = vpop.f32.mrb[0].mxu0
        %4122 = vmatprep.mubr.bf16.mxu0 0
        %4123 = vmatmul.mubr.bf16.gmra.mrb[0].mxu0 %v3956
        %v4124 = vpop.f32.mrb[0].mxu0
        %v4125 = vadd.f32 %v3968, %v4124
        %v4126 = vpop.f32.mrb[0].mxu0
        %v4127 = vpop.f32.mrb[0].mxu0
        %v4128 = vadd.f32 %v3968, %v4127
        %v4129 = vpop.f32.mrb[0].mxu0
        %4130 = vmatprep.mubr.bf16.mxu0 0
        %4131 = vmatmul.mubr.bf16.gmra.mrb[0].mxu0 %v3957
        %v4132 = vpop.f32.mrb[0].mxu0
        %v4133 = vadd.f32 %v3968, %v4132
        %v4134 = vpop.f32.mrb[0].mxu0
        %v4135 = vpop.f32.mrb[0].mxu0
        %v4136 = vadd.f32 %v3968, %v4135
        %v4137 = vpop.f32.mrb[0].mxu0
        %4138 = vmatprep.mubr.bf16.mxu0 0
        %4139 = vmatmul.mubr.bf16.gmra.mrb[0].mxu0 %v3958
        %v4140 = vpop.f32.mrb[0].mxu0
        %v4141 = vadd.f32 %v3968, %v4140
        %v4142 = vpop.f32.mrb[0].mxu0
        %v4143 = vpop.f32.mrb[0].mxu0
        %v4144 = vadd.f32 %v3968, %v4143
        %v4145 = vpop.f32.mrb[0].mxu0
        %4146 = vmatprep.mubr.bf16.mxu0 0
        %4147 = vmatmul.mubr.bf16.gmra.mrb[0].mxu0 %v3959
        %v4148 = vpop.f32.mrb[0].mxu0
        %v4149 = vadd.f32 %v3968, %v4148
        %v4150 = vpop.f32.mrb[0].mxu0
        %v4151 = vpop.f32.mrb[0].mxu0
        %v4152 = vadd.f32 %v3968, %v4151
        %v4153 = vpop.f32.mrb[0].mxu0
        %4154 = vmatprep.mubr.bf16.mxu0 0
        %4155 = vmatmul.mubr.bf16.gmra.mrb[0].mxu0 %v3960
        %v4156 = vpop.f32.mrb[0].mxu0
        %v4157 = vadd.f32 %v3968, %v4156
        %v4158 = vpop.f32.mrb[0].mxu0
        %v4159 = vpop.f32.mrb[0].mxu0
        %v4160 = vadd.f32 %v3968, %v4159
        %v4161 = vpop.f32.mrb[0].mxu0
        %4162 = vmatprep.mubr.bf16.mxu0 0
        %4163 = vmatmul.mubr.bf16.gmra.mrb[0].mxu0 %v3961
        %v4164 = vpop.f32.mrb[0].mxu0
        %v4165 = vadd.f32 %v3968, %v4164
        %v4166 = vpop.f32.mrb[0].mxu0
        %v4167 = vpop.f32.mrb[0].mxu0
        %v4168 = vadd.f32 %v3968, %v4167
        %v4169 = vpop.f32.mrb[0].mxu0
        %4170 = vmatprep.mubr.bf16.mxu0 0
        %4171 = vmatmul.mubr.bf16.gmra.mrb[0].mxu0 %v3962
        %v4172 = vpop.f32.mrb[0].mxu0
        %v4173 = vadd.f32 %v3968, %v4172
        %v4174 = vpop.f32.mrb[0].mxu0
        %v4175 = vpop.f32.mrb[0].mxu0
        %v4176 = vadd.f32 %v3968, %v4175
        %v4177 = vpop.f32.mrb[0].mxu0
        %4178 = vdwg.mxu0
        %v4179 = vmul.f32 %v4053, %v4053
        %v4180 = vmul.f32 %v4056, %v4056
        %v4181 = vmul.f32 %v4061, %v4061
        %v4182 = vmul.f32 %v4064, %v4064
        %v4183 = vmul.f32 %v4069, %v4069
        %v4184 = vmul.f32 %v4072, %v4072
        %v4185 = vmul.f32 %v4077, %v4077
        %v4186 = vmul.f32 %v4080, %v4080
        %v4187 = vmul.f32 %v4085, %v4085
        %v4188 = vmul.f32 %v4088, %v4088
        %v4189 = vmul.f32 %v4093, %v4093
        %v4190 = vmul.f32 %v4096, %v4096
        %v4191 = vmul.f32 %v4101, %v4101
        %v4192 = vmul.f32 %v4104, %v4104
        %v4193 = vmul.f32 %v4109, %v4109
        %v4194 = vmul.f32 %v4112, %v4112
        %v4195 = vmul.f32 %v4117, %v4117
        %v4196 = vmul.f32 %v4120, %v4120
        %v4197 = vmul.f32 %v4125, %v4125
        %v4198 = vmul.f32 %v4128, %v4128
        %v4199 = vmul.f32 %v4133, %v4133
        %v4200 = vmul.f32 %v4136, %v4136
        %v4201 = vmul.f32 %v4141, %v4141
        %v4202 = vmul.f32 %v4144, %v4144
        %v4203 = vmul.f32 %v4149, %v4149
        %v4204 = vmul.f32 %v4152, %v4152
        %v4205 = vmul.f32 %v4157, %v4157
        %v4206 = vmul.f32 %v4160, %v4160
        %v4207 = vmul.f32 %v4165, %v4165
        %v4208 = vmul.f32 %v4168, %v4168
        %v4209 = vmul.f32 %v4173, %v4173
        %v4210 = vmul.f32 %v4176, %v4176
        %v4211 = vmul.f32 %v4053, %v4179
        %v4212 = vmul.f32 %v4056, %v4180
        %v4213 = vmul.f32 %v4061, %v4181
        %v4214 = vmul.f32 %v4064, %v4182
        %v4215 = vmul.f32 %v4069, %v4183
        %v4216 = vmul.f32 %v4072, %v4184
        %v4217 = vmul.f32 %v4077, %v4185
        %v4218 = vmul.f32 %v4080, %v4186
        %v4219 = vmul.f32 %v4085, %v4187
        %v4220 = vmul.f32 %v4088, %v4188
        %v4221 = vmul.f32 %v4093, %v4189
        %v4222 = vmul.f32 %v4096, %v4190
        %v4223 = vmul.f32 %v4101, %v4191
        %v4224 = vmul.f32 %v4104, %v4192
        %v4225 = vmul.f32 %v4109, %v4193
        %v4226 = vmul.f32 %v4112, %v4194
        %v4227 = vmul.f32 %v4117, %v4195
        %v4228 = vmul.f32 %v4120, %v4196
        %v4229 = vmul.f32 %v4125, %v4197
        %v4230 = vmul.f32 %v4128, %v4198
        %v4231 = vmul.f32 %v4133, %v4199
        %v4232 = vmul.f32 %v4136, %v4200
        %v4233 = vmul.f32 %v4141, %v4201
        %v4234 = vmul.f32 %v4144, %v4202
        %v4235 = vmul.f32 %v4149, %v4203
        %v4236 = vmul.f32 %v4152, %v4204
        %v4237 = vmul.f32 %v4157, %v4205
        %v4238 = vmul.f32 %v4160, %v4206
        %v4239 = vmul.f32 %v4165, %v4207
        %v4240 = vmul.f32 %v4168, %v4208
        %v4241 = vmul.f32 %v4173, %v4209
        %v4242 = vmul.f32 %v4176, %v4210
        %v4243 = vmul.f32 %v4211, 0.044715
        %v4244 = vmul.f32 %v4212, 0.044715
        %v4245 = vmul.f32 %v4213, 0.044715
        %v4246 = vmul.f32 %v4214, 0.044715
        %v4247 = vmul.f32 %v4215, 0.044715
        %v4248 = vmul.f32 %v4216, 0.044715
        %v4249 = vmul.f32 %v4217, 0.044715
        %v4250 = vmul.f32 %v4218, 0.044715
        %v4251 = vmul.f32 %v4219, 0.044715
        %v4252 = vmul.f32 %v4220, 0.044715
        %v4253 = vmul.f32 %v4221, 0.044715
        %v4254 = vmul.f32 %v4222, 0.044715
        %v4255 = vmul.f32 %v4223, 0.044715
        %v4256 = vmul.f32 %v4224, 0.044715
        %v4257 = vmul.f32 %v4225, 0.044715
        %v4258 = vmul.f32 %v4226, 0.044715
        %v4259 = vmul.f32 %v4227, 0.044715
        %v4260 = vmul.f32 %v4228, 0.044715
        %v4261 = vmul.f32 %v4229, 0.044715
        %v4262 = vmul.f32 %v4230, 0.044715
        %v4263 = vmul.f32 %v4231, 0.044715
        %v4264 = vmul.f32 %v4232, 0.044715
        %v4265 = vmul.f32 %v4233, 0.044715
        %v4266 = vmul.f32 %v4234, 0.044715
        %v4267 = vmul.f32 %v4235, 0.044715
        %v4268 = vmul.f32 %v4236, 0.044715
        %v4269 = vmul.f32 %v4237, 0.044715
        %v4270 = vmul.f32 %v4238, 0.044715
        %v4271 = vmul.f32 %v4239, 0.044715
        %v4272 = vmul.f32 %v4240, 0.044715
        %v4273 = vmul.f32 %v4241, 0.044715
        %v4274 = vmul.f32 %v4242, 0.044715
        %v4275 = vadd.f32 %v4053, %v4243
        %v4276 = vadd.f32 %v4056, %v4244
        %v4277 = vadd.f32 %v4061, %v4245
        %v4278 = vadd.f32 %v4064, %v4246
        %v4279 = vadd.f32 %v4069, %v4247
        %v4280 = vadd.f32 %v4072, %v4248
        %v4281 = vadd.f32 %v4077, %v4249
        %v4282 = vadd.f32 %v4080, %v4250
        %v4283 = vadd.f32 %v4085, %v4251
        %v4284 = vadd.f32 %v4088, %v4252
        %v4285 = vadd.f32 %v4093, %v4253
        %v4286 = vadd.f32 %v4096, %v4254
        %v4287 = vadd.f32 %v4101, %v4255
        %v4288 = vadd.f32 %v4104, %v4256
        %v4289 = vadd.f32 %v4109, %v4257
        %v4290 = vadd.f32 %v4112, %v4258
        %v4291 = vadd.f32 %v4117, %v4259
        %v4292 = vadd.f32 %v4120, %v4260
        %v4293 = vadd.f32 %v4125, %v4261
        %v4294 = vadd.f32 %v4128, %v4262
        %v4295 = vadd.f32 %v4133, %v4263
        %v4296 = vadd.f32 %v4136, %v4264
        %v4297 = vadd.f32 %v4141, %v4265
        %v4298 = vadd.f32 %v4144, %v4266
        %v4299 = vadd.f32 %v4149, %v4267
        %v4300 = vadd.f32 %v4152, %v4268
        %v4301 = vadd.f32 %v4157, %v4269
        %v4302 = vadd.f32 %v4160, %v4270
        %v4303 = vadd.f32 %v4165, %v4271
        %v4304 = vadd.f32 %v4168, %v4272
        %v4305 = vadd.f32 %v4173, %v4273
        %v4306 = vadd.f32 %v4176, %v4274
        %v4307 = vmul.f32 %v4275, 0.7978846
        %v4308 = vmul.f32 %v4276, 0.7978846
        %v4309 = vmul.f32 %v4277, 0.7978846
        %v4310 = vmul.f32 %v4278, 0.7978846
        %v4311 = vmul.f32 %v4279, 0.7978846
        %v4312 = vmul.f32 %v4280, 0.7978846
        %v4313 = vmul.f32 %v4281, 0.7978846
        %v4314 = vmul.f32 %v4282, 0.7978846
        %v4315 = vmul.f32 %v4283, 0.7978846
        %v4316 = vmul.f32 %v4284, 0.7978846
        %v4317 = vmul.f32 %v4285, 0.7978846
        %v4318 = vmul.f32 %v4286, 0.7978846
        %v4319 = vmul.f32 %v4287, 0.7978846
        %v4320 = vmul.f32 %v4288, 0.7978846
        %v4321 = vmul.f32 %v4289, 0.7978846
        %v4322 = vmul.f32 %v4290, 0.7978846
        %v4323 = vmul.f32 %v4291, 0.7978846
        %v4324 = vmul.f32 %v4292, 0.7978846
        %v4325 = vmul.f32 %v4293, 0.7978846
        %v4326 = vmul.f32 %v4294, 0.7978846
        %v4327 = vmul.f32 %v4295, 0.7978846
        %v4328 = vmul.f32 %v4296, 0.7978846
        %v4329 = vmul.f32 %v4297, 0.7978846
        %v4330 = vmul.f32 %v4298, 0.7978846
        %v4331 = vmul.f32 %v4299, 0.7978846
        %v4332 = vmul.f32 %v4300, 0.7978846
        %v4333 = vmul.f32 %v4301, 0.7978846
        %v4334 = vmul.f32 %v4302, 0.7978846
        %v4335 = vmul.f32 %v4303, 0.7978846
        %v4336 = vmul.f32 %v4304, 0.7978846
        %v4337 = vmul.f32 %v4305, 0.7978846
        %v4338 = vmul.f32 %v4306, 0.7978846
        %v4339 = vtanh.pop %v4307
        %v4340 = vtanh.pop %v4308
        %v4341 = vtanh.pop %v4309
        %v4342 = vtanh.pop %v4310
        %v4343 = vtanh.pop %v4311
        %v4344 = vtanh.pop %v4312
        %v4345 = vtanh.pop %v4313
        %v4346 = vtanh.pop %v4314
        %v4347 = vtanh.pop %v4315
        %v4348 = vtanh.pop %v4316
        %v4349 = vtanh.pop %v4317
        %v4350 = vtanh.pop %v4318
        %v4351 = vtanh.pop %v4319
        %v4352 = vtanh.pop %v4320
        %v4353 = vtanh.pop %v4321
        %v4354 = vtanh.pop %v4322
        %v4355 = vtanh.pop %v4323
        %v4356 = vtanh.pop %v4324
        %v4357 = vtanh.pop %v4325
        %v4358 = vtanh.pop %v4326
        %v4359 = vtanh.pop %v4327
        %v4360 = vtanh.pop %v4328
        %v4361 = vtanh.pop %v4329
        %v4362 = vtanh.pop %v4330
        %v4363 = vtanh.pop %v4331
        %v4364 = vtanh.pop %v4332
        %v4365 = vtanh.pop %v4333
        %v4366 = vtanh.pop %v4334
        %v4367 = vtanh.pop %v4335
        %v4368 = vtanh.pop %v4336
        %v4369 = vtanh.pop %v4337
        %v4370 = vtanh.pop %v4338
        %v4371 = vadd.f32 %v4339, 1.0
        %v4372 = vadd.f32 %v4340, 1.0
        %v4373 = vadd.f32 %v4341, 1.0
        %v4374 = vadd.f32 %v4342, 1.0
        %v4375 = vadd.f32 %v4343, 1.0
        %v4376 = vadd.f32 %v4344, 1.0
        %v4377 = vadd.f32 %v4345, 1.0
        %v4378 = vadd.f32 %v4346, 1.0
        %v4379 = vadd.f32 %v4347, 1.0
        %v4380 = vadd.f32 %v4348, 1.0
        %v4381 = vadd.f32 %v4349, 1.0
        %v4382 = vadd.f32 %v4350, 1.0
        %v4383 = vadd.f32 %v4351, 1.0
        %v4384 = vadd.f32 %v4352, 1.0
        %v4385 = vadd.f32 %v4353, 1.0
        %v4386 = vadd.f32 %v4354, 1.0
        %v4387 = vadd.f32 %v4355, 1.0
        %v4388 = vadd.f32 %v4356, 1.0
        %v4389 = vadd.f32 %v4357, 1.0
        %v4390 = vadd.f32 %v4358, 1.0
        %v4391 = vadd.f32 %v4359, 1.0
        %v4392 = vadd.f32 %v4360, 1.0
        %v4393 = vadd.f32 %v4361, 1.0
        %v4394 = vadd.f32 %v4362, 1.0
        %v4395 = vadd.f32 %v4363, 1.0
        %v4396 = vadd.f32 %v4364, 1.0
        %v4397 = vadd.f32 %v4365, 1.0
        %v4398 = vadd.f32 %v4366, 1.0
        %v4399 = vadd.f32 %v4367, 1.0
        %v4400 = vadd.f32 %v4368, 1.0
        %v4401 = vadd.f32 %v4369, 1.0
        %v4402 = vadd.f32 %v4370, 1.0
        %v4403 = vmul.f32 %v4371, 0.5
        %v4404 = vmul.f32 %v4372, 0.5
        %v4405 = vmul.f32 %v4373, 0.5
        %v4406 = vmul.f32 %v4374, 0.5
        %v4407 = vmul.f32 %v4375, 0.5
        %v4408 = vmul.f32 %v4376, 0.5
        %v4409 = vmul.f32 %v4377, 0.5
        %v4410 = vmul.f32 %v4378, 0.5
        %v4411 = vmul.f32 %v4379, 0.5
        %v4412 = vmul.f32 %v4380, 0.5
        %v4413 = vmul.f32 %v4381, 0.5
        %v4414 = vmul.f32 %v4382, 0.5
        %v4415 = vmul.f32 %v4383, 0.5
        %v4416 = vmul.f32 %v4384, 0.5
        %v4417 = vmul.f32 %v4385, 0.5
        %v4418 = vmul.f32 %v4386, 0.5
        %v4419 = vmul.f32 %v4387, 0.5
        %v4420 = vmul.f32 %v4388, 0.5
        %v4421 = vmul.f32 %v4389, 0.5
        %v4422 = vmul.f32 %v4390, 0.5
        %v4423 = vmul.f32 %v4391, 0.5
        %v4424 = vmul.f32 %v4392, 0.5
        %v4425 = vmul.f32 %v4393, 0.5
        %v4426 = vmul.f32 %v4394, 0.5
        %v4427 = vmul.f32 %v4395, 0.5
        %v4428 = vmul.f32 %v4396, 0.5
        %v4429 = vmul.f32 %v4397, 0.5
        %v4430 = vmul.f32 %v4398, 0.5
        %v4431 = vmul.f32 %v4399, 0.5
        %v4432 = vmul.f32 %v4400, 0.5
        %v4433 = vmul.f32 %v4401, 0.5
        %v4434 = vmul.f32 %v4402, 0.5
        %v4435 = vmul.f32 %v4053, %v4403
        %v4436 = vmul.f32 %v4056, %v4404
        %v4437 = vmul.f32 %v4061, %v4405
        %v4438 = vmul.f32 %v4064, %v4406
        %v4439 = vmul.f32 %v4069, %v4407
        %v4440 = vmul.f32 %v4072, %v4408
        %v4441 = vmul.f32 %v4077, %v4409
        %v4442 = vmul.f32 %v4080, %v4410
        %v4443 = vmul.f32 %v4085, %v4411
        %v4444 = vmul.f32 %v4088, %v4412
        %v4445 = vmul.f32 %v4093, %v4413
        %v4446 = vmul.f32 %v4096, %v4414
        %v4447 = vmul.f32 %v4101, %v4415
        %v4448 = vmul.f32 %v4104, %v4416
        %v4449 = vmul.f32 %v4109, %v4417
        %v4450 = vmul.f32 %v4112, %v4418
        %v4451 = vmul.f32 %v4117, %v4419
        %v4452 = vmul.f32 %v4120, %v4420
        %v4453 = vmul.f32 %v4125, %v4421
        %v4454 = vmul.f32 %v4128, %v4422
        %v4455 = vmul.f32 %v4133, %v4423
        %v4456 = vmul.f32 %v4136, %v4424
        %v4457 = vmul.f32 %v4141, %v4425
        %v4458 = vmul.f32 %v4144, %v4426
        %v4459 = vmul.f32 %v4149, %v4427
        %v4460 = vmul.f32 %v4152, %v4428
        %v4461 = vmul.f32 %v4157, %v4429
        %v4462 = vmul.f32 %v4160, %v4430
        %v4463 = vmul.f32 %v4165, %v4431
        %v4464 = vmul.f32 %v4168, %v4432
        %v4465 = vmul.f32 %v4173, %v4433
        %v4466 = vmul.f32 %v4176, %v4434
        %v4467 = vld [vmem:[%s11] sm:$0xf]
        %v4468 = vld [vmem:[%s11 + $0x4] sm:$0xf]
        %v4469 = vld [vmem:[%s11 + $0x8] sm:$0xf]
        %v4470 = vld [vmem:[%s11 + $0xc] sm:$0xf]
        %v4471 = vld [vmem:[%s11 + $0x10] sm:$0xf]
        %v4472 = vld [vmem:[%s11 + $0x14] sm:$0xf]
        %v4473 = vld [vmem:[%s11 + $0x18] sm:$0xf]
        %v4474 = vld [vmem:[%s11 + $0x1c] sm:$0xf]
        %v4475 = vld [vmem:[%s11 + $0x20] sm:$0xf]
        %v4476 = vld [vmem:[%s11 + $0x24] sm:$0xf]
        %v4477 = vld [vmem:[%s11 + $0x28] sm:$0xf]
        %v4478 = vld [vmem:[%s11 + $0x2c] sm:$0xf]
        %v4479 = vld [vmem:[%s11 + $0x30] sm:$0xf]
        %v4480 = vld [vmem:[%s11 + $0x34] sm:$0xf]
        %v4481 = vld [vmem:[%s11 + $0x38] sm:$0xf]
        %v4482 = vld [vmem:[%s11 + $0x3c] sm:$0xf]
        %v4483 = vpack.c.bf16 %v4436, %v4435
        %v4484 = vpack.c.bf16 %v4438, %v4437
        %v4485 = vpack.c.bf16 %v4440, %v4439
        %v4486 = vpack.c.bf16 %v4442, %v4441
        %v4487 = vpack.c.bf16 %v4444, %v4443
        %v4488 = vpack.c.bf16 %v4446, %v4445
        %v4489 = vpack.c.bf16 %v4448, %v4447
        %v4490 = vpack.c.bf16 %v4450, %v4449
        %v4491 = vpack.c.bf16 %v4452, %v4451
        %v4492 = vpack.c.bf16 %v4454, %v4453
        %v4493 = vpack.c.bf16 %v4456, %v4455
        %v4494 = vpack.c.bf16 %v4458, %v4457
        %v4495 = vpack.c.bf16 %v4460, %v4459
        %v4496 = vpack.c.bf16 %v4462, %v4461
        %v4497 = vpack.c.bf16 %v4464, %v4463
        %v4498 = vpack.c.bf16 %v4466, %v4465
        %v4499 = vlaneseq
        %v4500 = vshrl.u32 %v4499, 7
        %v4501 = vsub.s32 5, %v4500
        %v4502 = vrot.slane %v509, %v4501
        %v4519 = vunpack.c.l.b16 %v4467
        %v4520 = vunpack.c.l.b16 %v4468
        %v4521 = vunpack.c.l.b16 %v4469
        %v4522 = vunpack.c.l.b16 %v4470
        %v4523 = vunpack.c.l.b16 %v4471
        %v4524 = vunpack.c.l.b16 %v4472
        %v4525 = vunpack.c.l.b16 %v4473
        %v4526 = vunpack.c.l.b16 %v4474
        %v4527 = vunpack.c.l.b16 %v4475
        %v4528 = vunpack.c.l.b16 %v4476
        %v4529 = vunpack.c.l.b16 %v4477
        %v4530 = vunpack.c.l.b16 %v4478
        %v4531 = vunpack.c.l.b16 %v4479
        %v4532 = vunpack.c.l.b16 %v4480
        %v4533 = vunpack.c.l.b16 %v4481
        %v4534 = vunpack.c.l.b16 %v4482
        %v4535 = vpack.c.b16 %v4520, %v4519
        %v4536 = vpack.c.b16 %v4522, %v4521
        %v4537 = vpack.c.b16 %v4524, %v4523
        %v4538 = vpack.c.b16 %v4526, %v4525
        %v4539 = vpack.c.b16 %v4528, %v4527
        %v4540 = vpack.c.b16 %v4530, %v4529
        %v4541 = vpack.c.b16 %v4532, %v4531
        %v4542 = vpack.c.b16 %v4534, %v4533
        %4551 = vmatprep.subr.bf16.mxu0 0
        %4552 = vmatpush1.bf16.msra.mxu0 %v4535
        %4553 = vmatprep.subr.bf16.mxu0 0
        %4554 = vmatpush1.bf16.msra.mxu0 %v4536
        %4555 = vmatprep.subr.bf16.mxu0 0
        %4556 = vmatpush1.bf16.msra.mxu0 %v4537
        %4557 = vmatprep.subr.bf16.mxu0 0
        %4558 = vmatpush1.bf16.msra.mxu0 %v4538
        %4559 = vmatprep.subr.bf16.mxu0 0
        %4560 = vmatpush1.bf16.msra.mxu0 %v4539
        %4561 = vmatprep.subr.bf16.mxu0 0
        %4562 = vmatpush1.bf16.msra.mxu0 %v4540
        %4563 = vmatprep.subr.bf16.mxu0 0
        %4564 = vmatpush1.bf16.msra.mxu0 %v4541
        %4565 = vmatprep.subr.bf16.mxu0 0
        %4566 = vmatpush1.bf16.msra.mxu0 %v4542
        %4567 = vmatprep.subr.bf16.mxu0 0
        %4568 = vmatpush1.bf16.msra.mxu0 0
        %4569 = vmatprep.subr.bf16.mxu0 0
        %4570 = vmatpush1.bf16.msra.mxu0 0
        %4571 = vmatprep.subr.bf16.mxu0 0
        %4572 = vmatpush1.bf16.msra.mxu0 0
        %4573 = vmatprep.subr.bf16.mxu0 0
        %4574 = vmatpush1.bf16.msra.mxu0 0
        %4575 = vmatprep.subr.bf16.mxu0 0
        %4576 = vmatpush1.bf16.msra.mxu0 0
        %4577 = vmatprep.subr.bf16.mxu0 0
        %4578 = vmatpush1.bf16.msra.mxu0 0
        %4579 = vmatprep.subr.bf16.mxu0 0
        %4580 = vmatpush1.bf16.msra.mxu0 0
        %4581 = vmatprep.subr.bf16.mxu0 0
        %4582 = vmatpush1.bf16.msra.mxu0 0
        %4583 = vmatprep.mubr.bf16.mxu0 0
        %4584 = vmatmul.mubr.bf16.gmra.mrb[0].mxu0 %v4483
        %v4585 = vpop.f32.mrb[0].mxu0
        %v4586 = vadd.f32 %v4502, %v4585
        %v4587 = vpop.f32.mrb[0].mxu0
        %v4588 = vpop.f32.mrb[0].mxu0
        %v4589 = vadd.f32 %v4502, %v4588
        %v4590 = vpop.f32.mrb[0].mxu0
        %4591 = vmatprep.mubr.bf16.mxu0 0
        %4592 = vmatmul.mubr.bf16.gmra.mrb[0].mxu0 %v4484
        %v4593 = vpop.f32.mrb[0].mxu0
        %v4594 = vadd.f32 %v4502, %v4593
        %v4595 = vpop.f32.mrb[0].mxu0
        %v4596 = vpop.f32.mrb[0].mxu0
        %v4597 = vadd.f32 %v4502, %v4596
        %v4598 = vpop.f32.mrb[0].mxu0
        %4599 = vmatprep.mubr.bf16.mxu0 0
        %4600 = vmatmul.mubr.bf16.gmra.mrb[0].mxu0 %v4485
        %v4601 = vpop.f32.mrb[0].mxu0
        %v4602 = vadd.f32 %v4502, %v4601
        %v4603 = vpop.f32.mrb[0].mxu0
        %v4604 = vpop.f32.mrb[0].mxu0
        %v4605 = vadd.f32 %v4502, %v4604
        %v4606 = vpop.f32.mrb[0].mxu0
        %4607 = vmatprep.mubr.bf16.mxu0 0
        %4608 = vmatmul.mubr.bf16.gmra.mrb[0].mxu0 %v4486
        %v4609 = vpop.f32.mrb[0].mxu0
        %v4610 = vadd.f32 %v4502, %v4609
        %v4611 = vpop.f32.mrb[0].mxu0
        %v4612 = vpop.f32.mrb[0].mxu0
        %v4613 = vadd.f32 %v4502, %v4612
        %v4614 = vpop.f32.mrb[0].mxu0
        %4615 = vmatprep.mubr.bf16.mxu0 0
        %4616 = vmatmul.mubr.bf16.gmra.mrb[0].mxu0 %v4487
        %v4617 = vpop.f32.mrb[0].mxu0
        %v4618 = vadd.f32 %v4502, %v4617
        %v4619 = vpop.f32.mrb[0].mxu0
        %v4620 = vpop.f32.mrb[0].mxu0
        %v4621 = vadd.f32 %v4502, %v4620
        %v4622 = vpop.f32.mrb[0].mxu0
        %4623 = vmatprep.mubr.bf16.mxu0 0
        %4624 = vmatmul.mubr.bf16.gmra.mrb[0].mxu0 %v4488
        %v4625 = vpop.f32.mrb[0].mxu0
        %v4626 = vadd.f32 %v4502, %v4625
        %v4627 = vpop.f32.mrb[0].mxu0
        %v4628 = vpop.f32.mrb[0].mxu0
        %v4629 = vadd.f32 %v4502, %v4628
        %v4630 = vpop.f32.mrb[0].mxu0
        %4631 = vmatprep.mubr.bf16.mxu0 0
        %4632 = vmatmul.mubr.bf16.gmra.mrb[0].mxu0 %v4489
        %v4633 = vpop.f32.mrb[0].mxu0
        %v4634 = vadd.f32 %v4502, %v4633
        %v4635 = vpop.f32.mrb[0].mxu0
        %v4636 = vpop.f32.mrb[0].mxu0
        %v4637 = vadd.f32 %v4502, %v4636
        %v4638 = vpop.f32.mrb[0].mxu0
        %4639 = vmatprep.mubr.bf16.mxu0 0
        %4640 = vmatmul.mubr.bf16.gmra.mrb[0].mxu0 %v4490
        %v4641 = vpop.f32.mrb[0].mxu0
        %v4642 = vadd.f32 %v4502, %v4641
        %v4643 = vpop.f32.mrb[0].mxu0
        %v4644 = vpop.f32.mrb[0].mxu0
        %v4645 = vadd.f32 %v4502, %v4644
        %v4646 = vpop.f32.mrb[0].mxu0
        %4647 = vmatprep.mubr.bf16.mxu0 0
        %4648 = vmatmul.mubr.bf16.gmra.mrb[0].mxu0 %v4491
        %v4649 = vpop.f32.mrb[0].mxu0
        %v4650 = vadd.f32 %v4502, %v4649
        %v4651 = vpop.f32.mrb[0].mxu0
        %v4652 = vpop.f32.mrb[0].mxu0
        %v4653 = vadd.f32 %v4502, %v4652
        %v4654 = vpop.f32.mrb[0].mxu0
        %4655 = vmatprep.mubr.bf16.mxu0 0
        %4656 = vmatmul.mubr.bf16.gmra.mrb[0].mxu0 %v4492
        %v4657 = vpop.f32.mrb[0].mxu0
        %v4658 = vadd.f32 %v4502, %v4657
        %v4659 = vpop.f32.mrb[0].mxu0
        %v4660 = vpop.f32.mrb[0].mxu0
        %v4661 = vadd.f32 %v4502, %v4660
        %v4662 = vpop.f32.mrb[0].mxu0
        %4663 = vmatprep.mubr.bf16.mxu0 0
        %4664 = vmatmul.mubr.bf16.gmra.mrb[0].mxu0 %v4493
        %v4665 = vpop.f32.mrb[0].mxu0
        %v4666 = vadd.f32 %v4502, %v4665
        %v4667 = vpop.f32.mrb[0].mxu0
        %v4668 = vpop.f32.mrb[0].mxu0
        %v4669 = vadd.f32 %v4502, %v4668
        %v4670 = vpop.f32.mrb[0].mxu0
        %4671 = vmatprep.mubr.bf16.mxu0 0
        %4672 = vmatmul.mubr.bf16.gmra.mrb[0].mxu0 %v4494
        %v4673 = vpop.f32.mrb[0].mxu0
        %v4674 = vadd.f32 %v4502, %v4673
        %v4675 = vpop.f32.mrb[0].mxu0
        %v4676 = vpop.f32.mrb[0].mxu0
        %v4677 = vadd.f32 %v4502, %v4676
        %v4678 = vpop.f32.mrb[0].mxu0
        %4679 = vmatprep.mubr.bf16.mxu0 0
        %4680 = vmatmul.mubr.bf16.gmra.mrb[0].mxu0 %v4495
        %v4681 = vpop.f32.mrb[0].mxu0
        %v4682 = vadd.f32 %v4502, %v4681
        %v4683 = vpop.f32.mrb[0].mxu0
        %v4684 = vpop.f32.mrb[0].mxu0
        %v4685 = vadd.f32 %v4502, %v4684
        %v4686 = vpop.f32.mrb[0].mxu0
        %4687 = vmatprep.mubr.bf16.mxu0 0
        %4688 = vmatmul.mubr.bf16.gmra.mrb[0].mxu0 %v4496
        %v4689 = vpop.f32.mrb[0].mxu0
        %v4690 = vadd.f32 %v4502, %v4689
        %v4691 = vpop.f32.mrb[0].mxu0
        %v4692 = vpop.f32.mrb[0].mxu0
        %v4693 = vadd.f32 %v4502, %v4692
        %v4694 = vpop.f32.mrb[0].mxu0
        %4695 = vmatprep.mubr.bf16.mxu0 0
        %4696 = vmatmul.mubr.bf16.gmra.mrb[0].mxu0 %v4497
        %v4697 = vpop.f32.mrb[0].mxu0
        %v4698 = vadd.f32 %v4502, %v4697
        %v4699 = vpop.f32.mrb[0].mxu0
        %v4700 = vpop.f32.mrb[0].mxu0
        %v4701 = vadd.f32 %v4502, %v4700
        %v4702 = vpop.f32.mrb[0].mxu0
        %4703 = vmatprep.mubr.bf16.mxu0 0
        %4704 = vmatmul.mubr.bf16.gmra.mrb[0].mxu0 %v4498
        %v4705 = vpop.f32.mrb[0].mxu0
        %v4706 = vadd.f32 %v4502, %v4705
        %v4707 = vpop.f32.mrb[0].mxu0
        %v4708 = vpop.f32.mrb[0].mxu0
        %v4709 = vadd.f32 %v4502, %v4708
        %v4710 = vpop.f32.mrb[0].mxu0
        %4711 = vdwg.mxu0
        %v4712 = vlaneseq
        %v4713 = vshrl.u32 %v4712, 7
        %v4714 = vsub.s32 6, %v4713
        %v4715 = vrot.slane %v509, %v4714
        %v4716 = vmul.f32 %v4715, %v4586
        %v4717 = vmul.f32 %v4715, %v4589
        %v4718 = vmul.f32 %v4715, %v4594
        %v4719 = vmul.f32 %v4715, %v4597
        %v4720 = vmul.f32 %v4715, %v4602
        %v4721 = vmul.f32 %v4715, %v4605
        %v4722 = vmul.f32 %v4715, %v4610
        %v4723 = vmul.f32 %v4715, %v4613
        %v4724 = vmul.f32 %v4715, %v4618
        %v4725 = vmul.f32 %v4715, %v4621
        %v4726 = vmul.f32 %v4715, %v4626
        %v4727 = vmul.f32 %v4715, %v4629
        %v4728 = vmul.f32 %v4715, %v4634
        %v4729 = vmul.f32 %v4715, %v4637
        %v4730 = vmul.f32 %v4715, %v4642
        %v4731 = vmul.f32 %v4715, %v4645
        %v4732 = vmul.f32 %v4715, %v4650
        %v4733 = vmul.f32 %v4715, %v4653
        %v4734 = vmul.f32 %v4715, %v4658
        %v4735 = vmul.f32 %v4715, %v4661
        %v4736 = vmul.f32 %v4715, %v4666
        %v4737 = vmul.f32 %v4715, %v4669
        %v4738 = vmul.f32 %v4715, %v4674
        %v4739 = vmul.f32 %v4715, %v4677
        %v4740 = vmul.f32 %v4715, %v4682
        %v4741 = vmul.f32 %v4715, %v4685
        %v4742 = vmul.f32 %v4715, %v4690
        %v4743 = vmul.f32 %v4715, %v4693
        %v4744 = vmul.f32 %v4715, %v4698
        %v4745 = vmul.f32 %v4715, %v4701
        %v4746 = vmul.f32 %v4715, %v4706
        %v4747 = vmul.f32 %v4715, %v4709
        %v4748 = vadd.f32 %v3827, %v4716
        %v4749 = vadd.f32 %v3828, %v4717
        %v4750 = vadd.f32 %v3829, %v4718
        %v4751 = vadd.f32 %v3830, %v4719
        %v4752 = vadd.f32 %v3831, %v4720
        %v4753 = vadd.f32 %v3832, %v4721
        %v4754 = vadd.f32 %v3833, %v4722
        %v4755 = vadd.f32 %v3834, %v4723
        %v4756 = vadd.f32 %v3835, %v4724
        %v4757 = vadd.f32 %v3836, %v4725
        %v4758 = vadd.f32 %v3837, %v4726
        %v4759 = vadd.f32 %v3838, %v4727
        %v4760 = vadd.f32 %v3839, %v4728
        %v4761 = vadd.f32 %v3840, %v4729
        %v4762 = vadd.f32 %v3841, %v4730
        %v4763 = vadd.f32 %v3842, %v4731
        %v4764 = vadd.f32 %v3843, %v4732
        %v4765 = vadd.f32 %v3844, %v4733
        %v4766 = vadd.f32 %v3845, %v4734
        %v4767 = vadd.f32 %v3846, %v4735
        %v4768 = vadd.f32 %v3847, %v4736
        %v4769 = vadd.f32 %v3848, %v4737
        %v4770 = vadd.f32 %v3849, %v4738
        %v4771 = vadd.f32 %v3850, %v4739
        %v4772 = vadd.f32 %v3851, %v4740
        %v4773 = vadd.f32 %v3852, %v4741
        %v4774 = vadd.f32 %v3853, %v4742
        %v4775 = vadd.f32 %v3854, %v4743
        %v4776 = vadd.f32 %v3855, %v4744
        %v4777 = vadd.f32 %v3856, %v4745
        %v4778 = vadd.f32 %v3857, %v4746
        %v4779 = vadd.f32 %v3858, %v4747
        %v4780 = vlaneseq
        %v4781 = vshrl.u32 %v4780, 7
        %v4782 = vsub.s32 7, %v4781
        %v4783 = vrot.slane %v509, %v4782
        %v4784 = vmul.f32 %v4748, %v4783
        %v4785 = vmul.f32 %v4749, %v4783
        %v4786 = vmul.f32 %v4750, %v4783
        %v4787 = vmul.f32 %v4751, %v4783
        %v4788 = vmul.f32 %v4752, %v4783
        %v4789 = vmul.f32 %v4753, %v4783
        %v4790 = vmul.f32 %v4754, %v4783
        %v4791 = vmul.f32 %v4755, %v4783
        %v4792 = vmul.f32 %v4756, %v4783
        %v4793 = vmul.f32 %v4757, %v4783
        %v4794 = vmul.f32 %v4758, %v4783
        %v4795 = vmul.f32 %v4759, %v4783
        %v4796 = vmul.f32 %v4760, %v4783
        %v4797 = vmul.f32 %v4761, %v4783
        %v4798 = vmul.f32 %v4762, %v4783
        %v4799 = vmul.f32 %v4763, %v4783
        %v4800 = vmul.f32 %v4764, %v4783
        %v4801 = vmul.f32 %v4765, %v4783
        %v4802 = vmul.f32 %v4766, %v4783
        %v4803 = vmul.f32 %v4767, %v4783
        %v4804 = vmul.f32 %v4768, %v4783
        %v4805 = vmul.f32 %v4769, %v4783
        %v4806 = vmul.f32 %v4770, %v4783
        %v4807 = vmul.f32 %v4771, %v4783
        %v4808 = vmul.f32 %v4772, %v4783
        %v4809 = vmul.f32 %v4773, %v4783
        %v4810 = vmul.f32 %v4774, %v4783
        %v4811 = vmul.f32 %v4775, %v4783
        %v4812 = vmul.f32 %v4776, %v4783
        %v4813 = vmul.f32 %v4777, %v4783
        %v4814 = vmul.f32 %v4778, %v4783
        %v4815 = vmul.f32 %v4779, %v4783
        %v4816 = vlaneseq
        %v4817 = vshrl.u32 %v4816, 7
        %v4818 = vsub.s32 0, %v4817
        %v4819 = vrot.slane %v510, %v4818
        %v4820 = vadd.f32 %v4784, %v4819
        %v4821 = vadd.f32 %v4785, %v4819
        %v4822 = vadd.f32 %v4786, %v4819
        %v4823 = vadd.f32 %v4787, %v4819
        %v4824 = vadd.f32 %v4788, %v4819
        %v4825 = vadd.f32 %v4789, %v4819
        %v4826 = vadd.f32 %v4790, %v4819
        %v4827 = vadd.f32 %v4791, %v4819
        %v4828 = vadd.f32 %v4792, %v4819
        %v4829 = vadd.f32 %v4793, %v4819
        %v4830 = vadd.f32 %v4794, %v4819
        %v4831 = vadd.f32 %v4795, %v4819
        %v4832 = vadd.f32 %v4796, %v4819
        %v4833 = vadd.f32 %v4797, %v4819
        %v4834 = vadd.f32 %v4798, %v4819
        %v4835 = vadd.f32 %v4799, %v4819
        %v4836 = vadd.f32 %v4800, %v4819
        %v4837 = vadd.f32 %v4801, %v4819
        %v4838 = vadd.f32 %v4802, %v4819
        %v4839 = vadd.f32 %v4803, %v4819
        %v4840 = vadd.f32 %v4804, %v4819
        %v4841 = vadd.f32 %v4805, %v4819
        %v4842 = vadd.f32 %v4806, %v4819
        %v4843 = vadd.f32 %v4807, %v4819
        %v4844 = vadd.f32 %v4808, %v4819
        %v4845 = vadd.f32 %v4809, %v4819
        %v4846 = vadd.f32 %v4810, %v4819
        %v4847 = vadd.f32 %v4811, %v4819
        %v4848 = vadd.f32 %v4812, %v4819
        %v4849 = vadd.f32 %v4813, %v4819
        %v4850 = vadd.f32 %v4814, %v4819
        %v4851 = vadd.f32 %v4815, %v4819
        %v4852 = vld [vmem:[%s12] sm:$0xf]
        %v4853 = vld [vmem:[%s12 + $0x4] sm:$0xf]
        %v4854 = vld [vmem:[%s12 + $0x8] sm:$0xf]
        %v4855 = vld [vmem:[%s12 + $0xc] sm:$0xf]
        %v4856 = vld [vmem:[%s12 + $0x10] sm:$0xf]
        %v4857 = vld [vmem:[%s12 + $0x14] sm:$0xf]
        %v4858 = vld [vmem:[%s12 + $0x18] sm:$0xf]
        %v4859 = vld [vmem:[%s12 + $0x1c] sm:$0xf]
        %v4860 = vld [vmem:[%s12 + $0x20] sm:$0xf]
        %v4861 = vld [vmem:[%s12 + $0x24] sm:$0xf]
        %v4862 = vld [vmem:[%s12 + $0x28] sm:$0xf]
        %v4863 = vld [vmem:[%s12 + $0x2c] sm:$0xf]
        %v4864 = vld [vmem:[%s12 + $0x30] sm:$0xf]
        %v4865 = vld [vmem:[%s12 + $0x34] sm:$0xf]
        %v4866 = vld [vmem:[%s12 + $0x38] sm:$0xf]
        %v4867 = vld [vmem:[%s12 + $0x3c] sm:$0xf]
        %v4868 = vpack.c.bf16 %v4821, %v4820
        %v4869 = vpack.c.bf16 %v4823, %v4822
        %v4870 = vpack.c.bf16 %v4825, %v4824
        %v4871 = vpack.c.bf16 %v4827, %v4826
        %v4872 = vpack.c.bf16 %v4829, %v4828
        %v4873 = vpack.c.bf16 %v4831, %v4830
        %v4874 = vpack.c.bf16 %v4833, %v4832
        %v4875 = vpack.c.bf16 %v4835, %v4834
        %v4876 = vpack.c.bf16 %v4837, %v4836
        %v4877 = vpack.c.bf16 %v4839, %v4838
        %v4878 = vpack.c.bf16 %v4841, %v4840
        %v4879 = vpack.c.bf16 %v4843, %v4842
        %v4880 = vpack.c.bf16 %v4845, %v4844
        %v4881 = vpack.c.bf16 %v4847, %v4846
        %v4882 = vpack.c.bf16 %v4849, %v4848
        %v4883 = vpack.c.bf16 %v4851, %v4850
        %v4884 = vlaneseq
        %v4885 = vshrl.u32 %v4884, 7
        %v4886 = vsub.s32 1, %v4885
        %v4887 = vrot.slane %v510, %v4886
        %v4904 = vunpack.c.l.b16 %v4852
        %v4905 = vunpack.c.l.b16 %v4853
        %v4906 = vunpack.c.l.b16 %v4854
        %v4907 = vunpack.c.l.b16 %v4855
        %v4908 = vunpack.c.l.b16 %v4856
        %v4909 = vunpack.c.l.b16 %v4857
        %v4910 = vunpack.c.l.b16 %v4858
        %v4911 = vunpack.c.l.b16 %v4859
        %v4912 = vunpack.c.l.b16 %v4860
        %v4913 = vunpack.c.l.b16 %v4861
        %v4914 = vunpack.c.l.b16 %v4862
        %v4915 = vunpack.c.l.b16 %v4863
        %v4916 = vunpack.c.l.b16 %v4864
        %v4917 = vunpack.c.l.b16 %v4865
        %v4918 = vunpack.c.l.b16 %v4866
        %v4919 = vunpack.c.l.b16 %v4867
        %v4920 = vpack.c.b16 %v4905, %v4904
        %v4921 = vpack.c.b16 %v4907, %v4906
        %v4922 = vpack.c.b16 %v4909, %v4908
        %v4923 = vpack.c.b16 %v4911, %v4910
        %v4924 = vpack.c.b16 %v4913, %v4912
        %v4925 = vpack.c.b16 %v4915, %v4914
        %v4926 = vpack.c.b16 %v4917, %v4916
        %v4927 = vpack.c.b16 %v4919, %v4918
        %4936 = vmatprep.subr.bf16.mxu0 0
        %4937 = vmatpush1.bf16.msra.mxu0 %v4920
        %4938 = vmatprep.subr.bf16.mxu0 0
        %4939 = vmatpush1.bf16.msra.mxu0 %v4921
        %4940 = vmatprep.subr.bf16.mxu0 0
        %4941 = vmatpush1.bf16.msra.mxu0 %v4922
        %4942 = vmatprep.subr.bf16.mxu0 0
        %4943 = vmatpush1.bf16.msra.mxu0 %v4923
        %4944 = vmatprep.subr.bf16.mxu0 0
        %4945 = vmatpush1.bf16.msra.mxu0 %v4924
        %4946 = vmatprep.subr.bf16.mxu0 0
        %4947 = vmatpush1.bf16.msra.mxu0 %v4925
        %4948 = vmatprep.subr.bf16.mxu0 0
        %4949 = vmatpush1.bf16.msra.mxu0 %v4926
        %4950 = vmatprep.subr.bf16.mxu0 0
        %4951 = vmatpush1.bf16.msra.mxu0 %v4927
        %4952 = vmatprep.subr.bf16.mxu0 0
        %4953 = vmatpush1.bf16.msra.mxu0 0
        %4954 = vmatprep.subr.bf16.mxu0 0
        %4955 = vmatpush1.bf16.msra.mxu0 0
        %4956 = vmatprep.subr.bf16.mxu0 0
        %4957 = vmatpush1.bf16.msra.mxu0 0
        %4958 = vmatprep.subr.bf16.mxu0 0
        %4959 = vmatpush1.bf16.msra.mxu0 0
        %4960 = vmatprep.subr.bf16.mxu0 0
        %4961 = vmatpush1.bf16.msra.mxu0 0
        %4962 = vmatprep.subr.bf16.mxu0 0
        %4963 = vmatpush1.bf16.msra.mxu0 0
        %4964 = vmatprep.subr.bf16.mxu0 0
        %4965 = vmatpush1.bf16.msra.mxu0 0
        %4966 = vmatprep.subr.bf16.mxu0 0
        %4967 = vmatpush1.bf16.msra.mxu0 0
        %4968 = vmatprep.mubr.bf16.mxu0 0
        %4969 = vmatmul.mubr.bf16.gmra.mrb[0].mxu0 %v4868
        %v4970 = vpop.f32.mrb[0].mxu0
        %v4971 = vadd.f32 %v4887, %v4970
        %v4972 = vpop.f32.mrb[0].mxu0
        %v4973 = vpop.f32.mrb[0].mxu0
        %v4974 = vadd.f32 %v4887, %v4973
        %v4975 = vpop.f32.mrb[0].mxu0
        %4976 = vmatprep.mubr.bf16.mxu0 0
        %4977 = vmatmul.mubr.bf16.gmra.mrb[0].mxu0 %v4869
        %v4978 = vpop.f32.mrb[0].mxu0
        %v4979 = vadd.f32 %v4887, %v4978
        %v4980 = vpop.f32.mrb[0].mxu0
        %v4981 = vpop.f32.mrb[0].mxu0
        %v4982 = vadd.f32 %v4887, %v4981
        %v4983 = vpop.f32.mrb[0].mxu0
        %4984 = vmatprep.mubr.bf16.mxu0 0
        %4985 = vmatmul.mubr.bf16.gmra.mrb[0].mxu0 %v4870
        %v4986 = vpop.f32.mrb[0].mxu0
        %v4987 = vadd.f32 %v4887, %v4986
        %v4988 = vpop.f32.mrb[0].mxu0
        %v4989 = vpop.f32.mrb[0].mxu0
        %v4990 = vadd.f32 %v4887, %v4989
        %v4991 = vpop.f32.mrb[0].mxu0
        %4992 = vmatprep.mubr.bf16.mxu0 0
        %4993 = vmatmul.mubr.bf16.gmra.mrb[0].mxu0 %v4871
        %v4994 = vpop.f32.mrb[0].mxu0
        %v4995 = vadd.f32 %v4887, %v4994
        %v4996 = vpop.f32.mrb[0].mxu0
        %v4997 = vpop.f32.mrb[0].mxu0
        %v4998 = vadd.f32 %v4887, %v4997
        %v4999 = vpop.f32.mrb[0].mxu0
        %5000 = vmatprep.mubr.bf16.mxu0 0
        %5001 = vmatmul.mubr.bf16.gmra.mrb[0].mxu0 %v4872
        %v5002 = vpop.f32.mrb[0].mxu0
        %v5003 = vadd.f32 %v4887, %v5002
        %v5004 = vpop.f32.mrb[0].mxu0
        %v5005 = vpop.f32.mrb[0].mxu0
        %v5006 = vadd.f32 %v4887, %v5005
        %v5007 = vpop.f32.mrb[0].mxu0
        %5008 = vmatprep.mubr.bf16.mxu0 0
        %5009 = vmatmul.mubr.bf16.gmra.mrb[0].mxu0 %v4873
        %v5010 = vpop.f32.mrb[0].mxu0
        %v5011 = vadd.f32 %v4887, %v5010
        %v5012 = vpop.f32.mrb[0].mxu0
        %v5013 = vpop.f32.mrb[0].mxu0
        %v5014 = vadd.f32 %v4887, %v5013
        %v5015 = vpop.f32.mrb[0].mxu0
        %5016 = vmatprep.mubr.bf16.mxu0 0
        %5017 = vmatmul.mubr.bf16.gmra.mrb[0].mxu0 %v4874
        %v5018 = vpop.f32.mrb[0].mxu0
        %v5019 = vadd.f32 %v4887, %v5018
        %v5020 = vpop.f32.mrb[0].mxu0
        %v5021 = vpop.f32.mrb[0].mxu0
        %v5022 = vadd.f32 %v4887, %v5021
        %v5023 = vpop.f32.mrb[0].mxu0
        %5024 = vmatprep.mubr.bf16.mxu0 0
        %5025 = vmatmul.mubr.bf16.gmra.mrb[0].mxu0 %v4875
        %v5026 = vpop.f32.mrb[0].mxu0
        %v5027 = vadd.f32 %v4887, %v5026
        %v5028 = vpop.f32.mrb[0].mxu0
        %v5029 = vpop.f32.mrb[0].mxu0
        %v5030 = vadd.f32 %v4887, %v5029
        %v5031 = vpop.f32.mrb[0].mxu0
        %5032 = vmatprep.mubr.bf16.mxu0 0
        %5033 = vmatmul.mubr.bf16.gmra.mrb[0].mxu0 %v4876
        %v5034 = vpop.f32.mrb[0].mxu0
        %v5035 = vadd.f32 %v4887, %v5034
        %v5036 = vpop.f32.mrb[0].mxu0
        %v5037 = vpop.f32.mrb[0].mxu0
        %v5038 = vadd.f32 %v4887, %v5037
        %v5039 = vpop.f32.mrb[0].mxu0
        %5040 = vmatprep.mubr.bf16.mxu0 0
        %5041 = vmatmul.mubr.bf16.gmra.mrb[0].mxu0 %v4877
        %v5042 = vpop.f32.mrb[0].mxu0
        %v5043 = vadd.f32 %v4887, %v5042
        %v5044 = vpop.f32.mrb[0].mxu0
        %v5045 = vpop.f32.mrb[0].mxu0
        %v5046 = vadd.f32 %v4887, %v5045
        %v5047 = vpop.f32.mrb[0].mxu0
        %5048 = vmatprep.mubr.bf16.mxu0 0
        %5049 = vmatmul.mubr.bf16.gmra.mrb[0].mxu0 %v4878
        %v5050 = vpop.f32.mrb[0].mxu0
        %v5051 = vadd.f32 %v4887, %v5050
        %v5052 = vpop.f32.mrb[0].mxu0
        %v5053 = vpop.f32.mrb[0].mxu0
        %v5054 = vadd.f32 %v4887, %v5053
        %v5055 = vpop.f32.mrb[0].mxu0
        %5056 = vmatprep.mubr.bf16.mxu0 0
        %5057 = vmatmul.mubr.bf16.gmra.mrb[0].mxu0 %v4879
        %v5058 = vpop.f32.mrb[0].mxu0
        %v5059 = vadd.f32 %v4887, %v5058
        %v5060 = vpop.f32.mrb[0].mxu0
        %v5061 = vpop.f32.mrb[0].mxu0
        %v5062 = vadd.f32 %v4887, %v5061
        %v5063 = vpop.f32.mrb[0].mxu0
        %5064 = vmatprep.mubr.bf16.mxu0 0
        %5065 = vmatmul.mubr.bf16.gmra.mrb[0].mxu0 %v4880
        %v5066 = vpop.f32.mrb[0].mxu0
        %v5067 = vadd.f32 %v4887, %v5066
        %v5068 = vpop.f32.mrb[0].mxu0
        %v5069 = vpop.f32.mrb[0].mxu0
        %v5070 = vadd.f32 %v4887, %v5069
        %v5071 = vpop.f32.mrb[0].mxu0
        %5072 = vmatprep.mubr.bf16.mxu0 0
        %5073 = vmatmul.mubr.bf16.gmra.mrb[0].mxu0 %v4881
        %v5074 = vpop.f32.mrb[0].mxu0
        %v5075 = vadd.f32 %v4887, %v5074
        %v5076 = vpop.f32.mrb[0].mxu0
        %v5077 = vpop.f32.mrb[0].mxu0
        %v5078 = vadd.f32 %v4887, %v5077
        %v5079 = vpop.f32.mrb[0].mxu0
        %5080 = vmatprep.mubr.bf16.mxu0 0
        %5081 = vmatmul.mubr.bf16.gmra.mrb[0].mxu0 %v4882
        %v5082 = vpop.f32.mrb[0].mxu0
        %v5083 = vadd.f32 %v4887, %v5082
        %v5084 = vpop.f32.mrb[0].mxu0
        %v5085 = vpop.f32.mrb[0].mxu0
        %v5086 = vadd.f32 %v4887, %v5085
        %v5087 = vpop.f32.mrb[0].mxu0
        %5088 = vmatprep.mubr.bf16.mxu0 0
        %5089 = vmatmul.mubr.bf16.gmra.mrb[0].mxu0 %v4883
        %v5090 = vpop.f32.mrb[0].mxu0
        %v5091 = vadd.f32 %v4887, %v5090
        %v5092 = vpop.f32.mrb[0].mxu0
        %v5093 = vpop.f32.mrb[0].mxu0
        %v5094 = vadd.f32 %v4887, %v5093
        %v5095 = vpop.f32.mrb[0].mxu0
        %5096 = vdwg.mxu0
        %v5097 = vlaneseq
        %v5098 = vshrl.u32 %v5097, 7
        %v5099 = vsub.s32 2, %v5098
        %v5100 = vrot.slane %v510, %v5099
        %v5101 = vmul.f32 %v5100, %v4971
        %v5102 = vmul.f32 %v5100, %v4974
        %v5103 = vmul.f32 %v5100, %v4979
        %v5104 = vmul.f32 %v5100, %v4982
        %v5105 = vmul.f32 %v5100, %v4987
        %v5106 = vmul.f32 %v5100, %v4990
        %v5107 = vmul.f32 %v5100, %v4995
        %v5108 = vmul.f32 %v5100, %v4998
        %v5109 = vmul.f32 %v5100, %v5003
        %v5110 = vmul.f32 %v5100, %v5006
        %v5111 = vmul.f32 %v5100, %v5011
        %v5112 = vmul.f32 %v5100, %v5014
        %v5113 = vmul.f32 %v5100, %v5019
        %v5114 = vmul.f32 %v5100, %v5022
        %v5115 = vmul.f32 %v5100, %v5027
        %v5116 = vmul.f32 %v5100, %v5030
        %v5117 = vmul.f32 %v5100, %v5035
        %v5118 = vmul.f32 %v5100, %v5038
        %v5119 = vmul.f32 %v5100, %v5043
        %v5120 = vmul.f32 %v5100, %v5046
        %v5121 = vmul.f32 %v5100, %v5051
        %v5122 = vmul.f32 %v5100, %v5054
        %v5123 = vmul.f32 %v5100, %v5059
        %v5124 = vmul.f32 %v5100, %v5062
        %v5125 = vmul.f32 %v5100, %v5067
        %v5126 = vmul.f32 %v5100, %v5070
        %v5127 = vmul.f32 %v5100, %v5075
        %v5128 = vmul.f32 %v5100, %v5078
        %v5129 = vmul.f32 %v5100, %v5083
        %v5130 = vmul.f32 %v5100, %v5086
        %v5131 = vmul.f32 %v5100, %v5091
        %v5132 = vmul.f32 %v5100, %v5094
        %v5133 = vadd.f32 %v2914, %v5101
        %v5134 = vadd.f32 %v2915, %v5102
        %v5135 = vadd.f32 %v2916, %v5103
        %v5136 = vadd.f32 %v2917, %v5104
        %v5137 = vadd.f32 %v2918, %v5105
        %v5138 = vadd.f32 %v2919, %v5106
        %v5139 = vadd.f32 %v2920, %v5107
        %v5140 = vadd.f32 %v2921, %v5108
        %v5141 = vadd.f32 %v2922, %v5109
        %v5142 = vadd.f32 %v2923, %v5110
        %v5143 = vadd.f32 %v2924, %v5111
        %v5144 = vadd.f32 %v2925, %v5112
        %v5145 = vadd.f32 %v2926, %v5113
        %v5146 = vadd.f32 %v2927, %v5114
        %v5147 = vadd.f32 %v2928, %v5115
        %v5148 = vadd.f32 %v2929, %v5116
        %v5149 = vadd.f32 %v2930, %v5117
        %v5150 = vadd.f32 %v2931, %v5118
        %v5151 = vadd.f32 %v2932, %v5119
        %v5152 = vadd.f32 %v2933, %v5120
        %v5153 = vadd.f32 %v2934, %v5121
        %v5154 = vadd.f32 %v2935, %v5122
        %v5155 = vadd.f32 %v2936, %v5123
        %v5156 = vadd.f32 %v2937, %v5124
        %v5157 = vadd.f32 %v2938, %v5125
        %v5158 = vadd.f32 %v2939, %v5126
        %v5159 = vadd.f32 %v2940, %v5127
        %v5160 = vadd.f32 %v2941, %v5128
        %v5161 = vadd.f32 %v2942, %v5129
        %v5162 = vadd.f32 %v2943, %v5130
        %v5163 = vadd.f32 %v2944, %v5131
        %v5164 = vadd.f32 %v2945, %v5132
        %5165 = vst [vmem:[%s434] sm:$0xff] %v5133
        %5166 = vst [vmem:[%s434 + $0x8] sm:$0xff] %v5134
        %5167 = vst [vmem:[%s434 + $0x10] sm:$0xff] %v5135
        %5168 = vst [vmem:[%s434 + $0x18] sm:$0xff] %v5136
        %5169 = vst [vmem:[%s434 + $0x20] sm:$0xff] %v5137
        %5170 = vst [vmem:[%s434 + $0x28] sm:$0xff] %v5138
        %5171 = vst [vmem:[%s434 + $0x30] sm:$0xff] %v5139
        %5172 = vst [vmem:[%s434 + $0x38] sm:$0xff] %v5140
        %5173 = vst [vmem:[%s434 + $0x40] sm:$0xff] %v5141
        %5174 = vst [vmem:[%s434 + $0x48] sm:$0xff] %v5142
        %5175 = vst [vmem:[%s434 + $0x50] sm:$0xff] %v5143
        %5176 = vst [vmem:[%s434 + $0x58] sm:$0xff] %v5144
        %5177 = vst [vmem:[%s434 + $0x60] sm:$0xff] %v5145
        %5178 = vst [vmem:[%s434 + $0x68] sm:$0xff] %v5146
        %5179 = vst [vmem:[%s434 + $0x70] sm:$0xff] %v5147
        %5180 = vst [vmem:[%s434 + $0x78] sm:$0xff] %v5148
        %5181 = vst [vmem:[%s434 + $0x80] sm:$0xff] %v5149
        %5182 = vst [vmem:[%s434 + $0x88] sm:$0xff] %v5150
        %5183 = vst [vmem:[%s434 + $0x90] sm:$0xff] %v5151
        %5184 = vst [vmem:[%s434 + $0x98] sm:$0xff] %v5152
        %5185 = vst [vmem:[%s434 + $0xa0] sm:$0xff] %v5153
        %5186 = vst [vmem:[%s434 + $0xa8] sm:$0xff] %v5154
        %5187 = vst [vmem:[%s434 + $0xb0] sm:$0xff] %v5155
        %5188 = vst [vmem:[%s434 + $0xb8] sm:$0xff] %v5156
        %5189 = vst [vmem:[%s434 + $0xc0] sm:$0xff] %v5157
        %5190 = vst [vmem:[%s434 + $0xc8] sm:$0xff] %v5158
        %5191 = vst [vmem:[%s434 + $0xd0] sm:$0xff] %v5159
        %5192 = vst [vmem:[%s434 + $0xd8] sm:$0xff] %v5160
        %5193 = vst [vmem:[%s434 + $0xe0] sm:$0xff] %v5161
        %5194 = vst [vmem:[%s434 + $0xe8] sm:$0xff] %v5162
        %5195 = vst [vmem:[%s434 + $0xf0] sm:$0xff] %v5163
        %5196 = vst [vmem:[%s434 + $0xf8] sm:$0xff] %v5164
        %s5197 = sand.u32 %s313, 1
        %s5198 = scalar_lea.sflag [#allocation3], %s5197
        %s5199 = sand.u32 %s313, 1
        %s5200 = smul.addr %s5199, 256
        %s5201 = scalar_lea.vmem [#allocation2], %s5200
        // Predicated region
        $region73: #{tpu_custom_call.1} parent=71 // pred_check
          %p5202 = pneg %p323
        $region74: #{tpu_custom_call.1} parent=71 // pred_check_branch
          %5204 = sbr.rel (%p5202) target = $region76
        $region75: #{tpu_custom_call.1} parent=71 // pred_region
          %s5205 = smul.u32 32, %s27
          %s5207 = ssub.s32 4096, 4096
          %5208 = vsyncadd %s5198, %s5207
          %s5209 = smul.addr %s5205, 128
          %s5210 = scalar_lea.hbm %s13, %s5209
          %s5211 = sshll.u32 %s5201, 4
          %s5212 = int_to_ptr.vmem [resolvable:$true] %s5211
          %5217 = dma.vmem_to_hbm [thread:$0]  %s5212, 4096, %s5210, %s5198, 128, 128, 8
        $region76: #{tpu_custom_call.1} parent=71 // pred_fallthru
          _
      $region72: #{tpu_custom_call.1} parent=5 // pred_fallthru
        _
      %p5218 = scmp.le.s32.totalorder 2, %s22
      // Predicated region
      $region77: #{tpu_custom_call.1} parent=5 // pred_check
        %p5219 = pneg %p5218
      $region78: #{tpu_custom_call.1} parent=5 // pred_check_branch
        %5221 = sbr.rel (%p5219) target = $region80
      $region79: #{tpu_custom_call.1} parent=5 // pred_region
        %s5222 = ssub.s32 %s22, 2
        // Predicated region
        $region81: #{tpu_custom_call.1} parent=79 // pred_check
          %p5223 = pneg %p329
        $region82: #{tpu_custom_call.1} parent=79 // pred_check_branch
          %5225 = sbr.rel (%p5223) target = $region84
        $region83: #{tpu_custom_call.1} parent=79 // pred_region
          %s5226 = sand.u32 %s314, 1
          %s5227 = scalar_lea.sflag [#allocation3], %s5226
          %s5228 = sand.u32 %s314, 1
          %s5229 = smul.addr %s5228, 256
          %s5230 = scalar_lea.vmem [#allocation2], %s5229
          %5231 = dma.done %s5227, 4096
        $region84: #{tpu_custom_call.1} parent=79 // pred_fallthru
          _
      $region80: #{tpu_custom_call.1} parent=5 // pred_fallthru
        _
    $region6: #{tpu_custom_call.1} parent=1 // loop_footer
      %s26 = sadd.s32 1, %s22
    $region7: #{tpu_custom_call.1} parent=1 // loop_footer_branch
      %21 = sbr.rel target = $region3
    $region8: #{tpu_custom_call.1} parent=1 // loop_exit
      _
    %5232 = vsyncpa [#allocation3], 1
    %s5233 = scalar_lea.sflag [#allocation3], 1
    %5234 = vsyncpa %s5233, 1

</llo_original>
